<compile_context>
chip_gen: v5e
topology: v5e:2x2
jax: 0.10.0
libtpu: 0.0.40
codegen_flags: <defaults>
</compile_context>

<pallas_src>
import jax
import jax.numpy as jnp
import numpy as np
from jax import lax
from jax.experimental import pallas as pl
from jax.experimental.pallas import tpu as pltpu

# ----- problem sizes (routing branch, small like the module's DigitCaps layer) -----
B = 2          # batch
C = 10         # num_capsules
R = 32         # num_route_nodes
IC = 8         # in_channels  (input capsule dim)
OC = 16        # out_channels (output capsule dim)
NUM_ITERS = 3  # NUM_ROUTING_ITERATIONS

_HIGH = lax.Precision.HIGHEST


def _make_capsule_routing_kernel(b, r, c, oc, num_iters):
    """Build the single-invocation routing kernel for static shapes."""
    co = c * oc

    def kernel(xblk_ref, w_ref, o_ref):
        # xblk_ref: [B*R, R*IC]  block-diagonal x (row b*R+rr holds x[b,rr,:] at cols rr*IC:(rr+1)*IC)
        # w_ref:    [R*IC, C*OC] route_weights rearranged with capsules folded onto the lane axis
        # o_ref:    [B, C*OC]    squashed output capsules, lane-dense
        xblk = xblk_ref[...]
        w = w_ref[...]

        # priors[b, rr, cc*OC + o] = sum_i x[b, rr, i] * route_weights[cc, rr, i, o]
        # (one MXU matmul; the block-diagonal form turns the per-route contraction
        #  into a single dense GEMM instead of R tiny, MXU-starved matmuls)
        priors = jnp.dot(xblk, w, preferred_element_type=jnp.float32,
                         precision=_HIGH).reshape(b, r, co)

        # Constant 0/1 segment matrix: seg[j, j'] = 1 iff lanes j, j' belong to the same
        # capsule.  A matmul against it performs "sum over OC within each capsule,
        # broadcast back over OC" without leaving the dense lane layout.
        j0 = lax.broadcasted_iota(jnp.int32, (co, co), 0)
        j1 = lax.broadcasted_iota(jnp.int32, (co, co), 1)
        if oc & (oc - 1) == 0:
            same = (j0 ^ j1) < oc            # OC is a power of two: same group of OC lanes
        else:
            same = (j0 // oc) == (j1 // oc)
        seg = same.astype(jnp.float32)

        logits = jnp.zeros((b, r, co), jnp.float32)
        v = None

        for it in range(num_iters):          # short fixed trip-count -> static unroll
            if it == 0:
                # logits == 0  =>  softmax over routes is exactly uniform (1/R)
                s = jnp.sum(priors, axis=1) * jnp.float32(1.0 / r)       # [B, CO]
            else:
                m = jnp.max(logits, axis=1, keepdims=True)               # sublane reduce (XLU)
                e = jnp.exp(logits - m)                                  # EUP
                probs = e / jnp.sum(e, axis=1, keepdims=True)
                s = jnp.sum(probs * priors, axis=1)                      # [B, CO]

            # squash: per-capsule squared norm, broadcast over that capsule's OC lanes
            sqn = jnp.dot(s * s, seg, preferred_element_type=jnp.float32,
                          precision=_HIGH)                               # [B, CO]
            v = (sqn / (1.0 + sqn)) * s * lax.rsqrt(sqn)                 # [B, CO] (EUP rsqrt)

            if it != num_iters - 1:
                # agreement (priors . v over OC) broadcast back over OC, added to logits
                pd = (priors * v[:, None, :]).reshape(b * r, co)
                delta = jnp.dot(pd, seg, preferred_element_type=jnp.float32,
                                precision=_HIGH)
                logits = logits + delta.reshape(b, r, co)

        o_ref[...] = v

    return kernel


@jax.jit
def capsule_layer_forward(x, route_weights):
    """x: [B, R, IC] f32, route_weights: [C, R, IC, OC] f32 -> [C, B, 1, 1, OC]."""
    b, r, ic = x.shape
    c, _, _, oc = route_weights.shape
    co = c * oc

    # Block-diagonal x: xblk[b*R + rr, rr'*IC + i] = x[b, rr, i] * (rr == rr')
    eye = jnp.eye(r, dtype=jnp.float32)                                  # [R, R]
    xblk = (x.astype(jnp.float32)[:, :, None, :] * eye[:, :, None]).reshape(b * r, r * ic)
    # Weights: [C, R, IC, OC] -> [R*IC, C*OC]  (capsules folded onto the lane axis)
    wflat = jnp.transpose(route_weights.astype(jnp.float32),
                          (1, 2, 0, 3)).reshape(r * ic, co)

    out2d = pl.pallas_call(
        _make_capsule_routing_kernel(b, r, c, oc, NUM_ITERS),
        out_shape=jax.ShapeDtypeStruct((b, co), jnp.float32),
        in_specs=[
            pl.BlockSpec(memory_space=pltpu.MemorySpace.VMEM),           # xblk, fully resident
            pl.BlockSpec(memory_space=pltpu.MemorySpace.VMEM),           # wflat, fully resident
        ],
        out_specs=pl.BlockSpec(memory_space=pltpu.MemorySpace.VMEM),
        # NOTE: on v7x one could use grid=(B,) + dimension_semantics=("parallel",) to
        # shard the independent batch elements across the two TensorCores; on v5e/v6e
        # (1 TC) this gridless single-step form has the least per-step overhead.
    )(xblk, wflat)

    # [B, C*OC] -> [C, B, 1, 1, OC] to match the PyTorch forward's output shape
    return jnp.transpose(out2d.reshape(b, c, oc), (1, 0, 2)).reshape(c, b, 1, 1, oc)


def capsule_layer_reference(x, route_weights):
    """Pure-JAX reference mirroring the PyTorch forward exactly."""
    priors = jnp.einsum('bri,crio->cbro', x, route_weights,
                        precision=_HIGH)[:, :, :, None, :]               # [C,B,R,1,OC]
    logits = jnp.zeros_like(priors)
    outputs = None
    for i in range(NUM_ITERS):
        probs = jax.nn.softmax(logits, axis=2)
        s = jnp.sum(probs * priors, axis=2, keepdims=True)
        sq = jnp.sum(s * s, axis=-1, keepdims=True)
        outputs = (sq / (1.0 + sq)) * s / jnp.sqrt(sq)
        if i != NUM_ITERS - 1:
            logits = logits + jnp.sum(priors * outputs, axis=-1, keepdims=True)
    return outputs


if __name__ == "__main__":
    key = jax.random.PRNGKey(0)
    k_x, k_w = jax.random.split(key)

    # deterministic "parameters" (torch.randn equivalent) and input
    x = jax.random.normal(k_x, (B, R, IC), dtype=jnp.float32)
    route_weights = jax.random.normal(k_w, (C, R, IC, OC), dtype=jnp.float32)

    out = jax.block_until_ready(capsule_layer_forward(x, route_weights))
    ref = jax.block_until_ready(capsule_layer_reference(x, route_weights))

    np.testing.assert_allclose(np.asarray(out), np.asarray(ref), rtol=1e-5, atol=1e-5)
    print("KERNEL_OK")
</pallas_src>

<mosaic_0001>
module attributes {stable_mosaic.version = 11 : i64} {
  func.func @kernel(%arg0: memref<64x256xf32, #tpu.memory_space<vmem>>, %arg1: memref<256x160xf32, #tpu.memory_space<vmem>>, %arg2: memref<2x160xf32, #tpu.memory_space<vmem>>) attributes {dimension_semantics = [], scalar_prefetch = 0 : i64, scratch_operands = 0 : i64, tpu.core_type = #tpu.core_type<tc>} {
    %c0 = arith.constant 0 : index
    %c0_0 = arith.constant 0 : index
    %0 = vector.load %arg0[%c0, %c0_0] : memref<64x256xf32, #tpu.memory_space<vmem>>, vector<64x256xf32>
    %c0_1 = arith.constant 0 : index
    %c0_2 = arith.constant 0 : index
    %1 = vector.load %arg1[%c0_1, %c0_2] : memref<256x160xf32, #tpu.memory_space<vmem>>, vector<256x160xf32>
    %cst = arith.constant dense<0.000000e+00> : vector<64x160xf32>
    %2 = tpu.matmul %0, %1, %cst {dimension_numbers = #tpu.dot_dimension_numbers<[1], [0], [0], [1], [0, 0, 1, 1], [], []>, precision = #tpu.contract_precision<fp32>} : vector<64x256xf32>, vector<256x160xf32>, vector<64x160xf32> -> vector<64x160xf32>
    %3 = vector.shape_cast %2 : vector<64x160xf32> to vector<2x32x160xf32>
    %4 = tpu.iota {dimensions = array<i32: 0>} : vector<160x160xi32>
    %5 = tpu.iota {dimensions = array<i32: 1>} : vector<160x160xi32>
    %6 = arith.xori %4, %5 : vector<160x160xi32>
    %c16_i32 = arith.constant 16 : i32
    %7 = vector.broadcast %c16_i32 : i32 to vector<160x160xi32>
    %8 = arith.cmpi slt, %6, %7 : vector<160x160xi32>
    %9 = arith.extui %8 : vector<160x160xi1> to vector<160x160xi32>
    %10 = arith.sitofp %9 : vector<160x160xi32> to vector<160x160xf32>
    %cst_3 = arith.constant 0.000000e+00 : f32
    %11 = vector.broadcast %cst_3 : f32 to vector<2x32x160xf32>
    %cst_4 = arith.constant dense<0.000000e+00> : vector<2x160xf32>
    %12 = vector.multi_reduction <add>, %3, %cst_4 [1] : vector<2x32x160xf32> to vector<2x160xf32>
    %cst_5 = arith.constant 3.125000e-02 : f32
    %13 = vector.broadcast %cst_5 : f32 to vector<2x160xf32>
    %14 = arith.mulf %12, %13 : vector<2x160xf32>
    %15 = arith.mulf %14, %14 : vector<2x160xf32>
    %cst_6 = arith.constant dense<0.000000e+00> : vector<2x160xf32>
    %16 = tpu.matmul %15, %10, %cst_6 {dimension_numbers = #tpu.dot_dimension_numbers<[1], [0], [0], [1], [0, 0, 1, 1], [], []>, precision = #tpu.contract_precision<fp32>} : vector<2x160xf32>, vector<160x160xf32>, vector<2x160xf32> -> vector<2x160xf32>
    %cst_7 = arith.constant 1.000000e+00 : f32
    %17 = vector.broadcast %cst_7 : f32 to vector<2x160xf32>
    %18 = arith.addf %17, %16 : vector<2x160xf32>
    %19 = arith.divf %16, %18 : vector<2x160xf32>
    %20 = arith.mulf %19, %14 : vector<2x160xf32>
    %21 = math.rsqrt %16 : vector<2x160xf32>
    %22 = arith.mulf %20, %21 : vector<2x160xf32>
    %23 = vector.shape_cast %22 : vector<2x160xf32> to vector<2x1x160xf32>
    %24 = vector.broadcast %23 : vector<2x1x160xf32> to vector<2x32x160xf32>
    %25 = arith.mulf %3, %24 : vector<2x32x160xf32>
    %26 = vector.shape_cast %25 : vector<2x32x160xf32> to vector<64x160xf32>
    %cst_8 = arith.constant dense<0.000000e+00> : vector<64x160xf32>
    %27 = tpu.matmul %26, %10, %cst_8 {dimension_numbers = #tpu.dot_dimension_numbers<[1], [0], [0], [1], [0, 0, 1, 1], [], []>, precision = #tpu.contract_precision<fp32>} : vector<64x160xf32>, vector<160x160xf32>, vector<64x160xf32> -> vector<64x160xf32>
    %28 = vector.shape_cast %27 : vector<64x160xf32> to vector<2x32x160xf32>
    %29 = arith.addf %11, %28 : vector<2x32x160xf32>
    %cst_9 = arith.constant dense<0xFF800000> : vector<2x160xf32>
    %30 = vector.multi_reduction <maximumf>, %29, %cst_9 [1] : vector<2x32x160xf32> to vector<2x160xf32>
    %31 = vector.shape_cast %30 : vector<2x160xf32> to vector<2x1x160xf32>
    %32 = vector.broadcast %31 : vector<2x1x160xf32> to vector<2x32x160xf32>
    %33 = arith.subf %29, %32 : vector<2x32x160xf32>
    %34 = math.exp %33 : vector<2x32x160xf32>
    %cst_10 = arith.constant dense<0.000000e+00> : vector<2x160xf32>
    %35 = vector.multi_reduction <add>, %34, %cst_10 [1] : vector<2x32x160xf32> to vector<2x160xf32>
    %36 = vector.shape_cast %35 : vector<2x160xf32> to vector<2x1x160xf32>
    %37 = vector.broadcast %36 : vector<2x1x160xf32> to vector<2x32x160xf32>
    %38 = arith.divf %34, %37 : vector<2x32x160xf32>
    %39 = arith.mulf %38, %3 : vector<2x32x160xf32>
    %cst_11 = arith.constant dense<0.000000e+00> : vector<2x160xf32>
    %40 = vector.multi_reduction <add>, %39, %cst_11 [1] : vector<2x32x160xf32> to vector<2x160xf32>
    %41 = arith.mulf %40, %40 : vector<2x160xf32>
    %cst_12 = arith.constant dense<0.000000e+00> : vector<2x160xf32>
    %42 = tpu.matmul %41, %10, %cst_12 {dimension_numbers = #tpu.dot_dimension_numbers<[1], [0], [0], [1], [0, 0, 1, 1], [], []>, precision = #tpu.contract_precision<fp32>} : vector<2x160xf32>, vector<160x160xf32>, vector<2x160xf32> -> vector<2x160xf32>
    %cst_13 = arith.constant 1.000000e+00 : f32
    %43 = vector.broadcast %cst_13 : f32 to vector<2x160xf32>
    %44 = arith.addf %43, %42 : vector<2x160xf32>
    %45 = arith.divf %42, %44 : vector<2x160xf32>
    %46 = arith.mulf %45, %40 : vector<2x160xf32>
    %47 = math.rsqrt %42 : vector<2x160xf32>
    %48 = arith.mulf %46, %47 : vector<2x160xf32>
    %49 = vector.shape_cast %48 : vector<2x160xf32> to vector<2x1x160xf32>
    %50 = vector.broadcast %49 : vector<2x1x160xf32> to vector<2x32x160xf32>
    %51 = arith.mulf %3, %50 : vector<2x32x160xf32>
    %52 = vector.shape_cast %51 : vector<2x32x160xf32> to vector<64x160xf32>
    %cst_14 = arith.constant dense<0.000000e+00> : vector<64x160xf32>
    %53 = tpu.matmul %52, %10, %cst_14 {dimension_numbers = #tpu.dot_dimension_numbers<[1], [0], [0], [1], [0, 0, 1, 1], [], []>, precision = #tpu.contract_precision<fp32>} : vector<64x160xf32>, vector<160x160xf32>, vector<64x160xf32> -> vector<64x160xf32>
    %54 = vector.shape_cast %53 : vector<64x160xf32> to vector<2x32x160xf32>
    %55 = arith.addf %29, %54 : vector<2x32x160xf32>
    %cst_15 = arith.constant dense<0xFF800000> : vector<2x160xf32>
    %56 = vector.multi_reduction <maximumf>, %55, %cst_15 [1] : vector<2x32x160xf32> to vector<2x160xf32>
    %57 = vector.shape_cast %56 : vector<2x160xf32> to vector<2x1x160xf32>
    %58 = vector.broadcast %57 : vector<2x1x160xf32> to vector<2x32x160xf32>
    %59 = arith.subf %55, %58 : vector<2x32x160xf32>
    %60 = math.exp %59 : vector<2x32x160xf32>
    %cst_16 = arith.constant dense<0.000000e+00> : vector<2x160xf32>
    %61 = vector.multi_reduction <add>, %60, %cst_16 [1] : vector<2x32x160xf32> to vector<2x160xf32>
    %62 = vector.shape_cast %61 : vector<2x160xf32> to vector<2x1x160xf32>
    %63 = vector.broadcast %62 : vector<2x1x160xf32> to vector<2x32x160xf32>
    %64 = arith.divf %60, %63 : vector<2x32x160xf32>
    %65 = arith.mulf %64, %3 : vector<2x32x160xf32>
    %cst_17 = arith.constant dense<0.000000e+00> : vector<2x160xf32>
    %66 = vector.multi_reduction <add>, %65, %cst_17 [1] : vector<2x32x160xf32> to vector<2x160xf32>
    %67 = arith.mulf %66, %66 : vector<2x160xf32>
    %cst_18 = arith.constant dense<0.000000e+00> : vector<2x160xf32>
    %68 = tpu.matmul %67, %10, %cst_18 {dimension_numbers = #tpu.dot_dimension_numbers<[1], [0], [0], [1], [0, 0, 1, 1], [], []>, precision = #tpu.contract_precision<fp32>} : vector<2x160xf32>, vector<160x160xf32>, vector<2x160xf32> -> vector<2x160xf32>
    %cst_19 = arith.constant 1.000000e+00 : f32
    %69 = vector.broadcast %cst_19 : f32 to vector<2x160xf32>
    %70 = arith.addf %69, %68 : vector<2x160xf32>
    %71 = arith.divf %68, %70 : vector<2x160xf32>
    %72 = arith.mulf %71, %66 : vector<2x160xf32>
    %73 = math.rsqrt %68 : vector<2x160xf32>
    %74 = arith.mulf %72, %73 : vector<2x160xf32>
    %c0_20 = arith.constant 0 : index
    %c0_21 = arith.constant 0 : index
    %75 = vector.load %arg2[%c0_20, %c0_21] : memref<2x160xf32, #tpu.memory_space<vmem>>, vector<2x160xf32>
    tpu.vector_store %arg2[%c0_20, %c0_21], %74 {strides = array<i32>} : memref<2x160xf32, #tpu.memory_space<vmem>>, vector<2x160xf32>,
    return
  }
}

</mosaic_0001>

<llo_original>
// kernel: capsule_layer_forward.1
$region0: #{capsule_layer_forward.1}
  #allocation0 [shape = 'u32[]', space=smem, size = 0x4, offset = 0x4, fixed_abs, tag = 'smem constant byte address 0x4 - core index']
  #allocation1 [shape = 'u32[72,128]{1,0:T(1,128)}', space=vmem, size = 0x9000, scoped, tag = 'internal scratch']
  %s0 = inlined_call_operand.vmem [shape: f32[64,256], index: 0, kind: input, shape index: {}]
  %s1 = inlined_call_operand.vmem [shape: f32[256,160], index: 1, kind: input, shape index: {}]
  %s2 = inlined_call_operand.vmem [shape: f32[2,160], index: 2, kind: output, shape index: {}]
  %s3 = sld [smem:[#allocation0]]
  $region18: #{capsule_layer_forward.1} parent=0
    _
  %s5 = ssub.s32 1, %s3
  %s6 = scalar_select 0, %s5, %s3
  // Predicated region
  $region2: #{capsule_layer_forward.1} parent=0 // pred_check
    _
  $region3: #{capsule_layer_forward.1} parent=0 // pred_check_branch
    %8 = sbr.rel (0) target = $region5
  $region4: #{capsule_layer_forward.1} parent=0 // pred_region
    _
  $region5: #{capsule_layer_forward.1} parent=0 // pred_fallthru
    _
  // Predicated region
  $region6: #{capsule_layer_forward.1} parent=0 // pred_check
    _
  $region7: #{capsule_layer_forward.1} parent=0 // pred_check_branch
    %10 = sbr.rel (0) target = $region9
  $region8: #{capsule_layer_forward.1} parent=0 // pred_region
    _
  $region9: #{capsule_layer_forward.1} parent=0 // pred_fallthru
    _
  %v11 = vld [vmem:[%s0] sm:$0xff]
  %v12 = vld [vmem:[%s0 + $0x8] sm:$0xff]
  %v13 = vld [vmem:[%s0 + $0x10] sm:$0xff]
  %v14 = vld [vmem:[%s0 + $0x18] sm:$0xff]
  %v15 = vld [vmem:[%s0 + $0x20] sm:$0xff]
  %v16 = vld [vmem:[%s0 + $0x28] sm:$0xff]
  %v17 = vld [vmem:[%s0 + $0x30] sm:$0xff]
  %v18 = vld [vmem:[%s0 + $0x38] sm:$0xff]
  %v19 = vld [vmem:[%s0 + $0x40] sm:$0xff]
  %v20 = vld [vmem:[%s0 + $0x48] sm:$0xff]
  %v21 = vld [vmem:[%s0 + $0x50] sm:$0xff]
  %v22 = vld [vmem:[%s0 + $0x58] sm:$0xff]
  %v23 = vld [vmem:[%s0 + $0x60] sm:$0xff]
  %v24 = vld [vmem:[%s0 + $0x68] sm:$0xff]
  %v25 = vld [vmem:[%s0 + $0x70] sm:$0xff]
  %v26 = vld [vmem:[%s0 + $0x78] sm:$0xff]
  %v27 = vld [vmem:[%s1] sm:$0xff]
  %v28 = vld [vmem:[%s1 + $0x8] sm:$0xff]
  %v29 = vld [vmem:[%s1 + $0x10] sm:$0xff]
  %v30 = vld [vmem:[%s1 + $0x18] sm:$0xff]
  %v31 = vld [vmem:[%s1 + $0x20] sm:$0xff]
  %v32 = vld [vmem:[%s1 + $0x28] sm:$0xff]
  %v33 = vld [vmem:[%s1 + $0x30] sm:$0xff]
  %v34 = vld [vmem:[%s1 + $0x38] sm:$0xff]
  %v35 = vld [vmem:[%s1 + $0x40] sm:$0xff]
  %v36 = vld [vmem:[%s1 + $0x48] sm:$0xff]
  %v37 = vld [vmem:[%s1 + $0x50] sm:$0xff]
  %v38 = vld [vmem:[%s1 + $0x58] sm:$0xff]
  %v39 = vld [vmem:[%s1 + $0x60] sm:$0xff]
  %v40 = vld [vmem:[%s1 + $0x68] sm:$0xff]
  %v41 = vld [vmem:[%s1 + $0x70] sm:$0xff]
  %v42 = vld [vmem:[%s1 + $0x78] sm:$0xff]
  %v43 = vld [vmem:[%s1 + $0x80] sm:$0xff]
  %v44 = vld [vmem:[%s1 + $0x88] sm:$0xff]
  %v45 = vld [vmem:[%s1 + $0x90] sm:$0xff]
  %v46 = vld [vmem:[%s1 + $0x98] sm:$0xff]
  %v47 = vld [vmem:[%s1 + $0xa0] sm:$0xff]
  %v48 = vld [vmem:[%s1 + $0xa8] sm:$0xff]
  %v49 = vld [vmem:[%s1 + $0xb0] sm:$0xff]
  %v50 = vld [vmem:[%s1 + $0xb8] sm:$0xff]
  %v51 = vld [vmem:[%s1 + $0xc0] sm:$0xff]
  %v52 = vld [vmem:[%s1 + $0xc8] sm:$0xff]
  %v53 = vld [vmem:[%s1 + $0xd0] sm:$0xff]
  %v54 = vld [vmem:[%s1 + $0xd8] sm:$0xff]
  %v55 = vld [vmem:[%s1 + $0xe0] sm:$0xff]
  %v56 = vld [vmem:[%s1 + $0xe8] sm:$0xff]
  %v57 = vld [vmem:[%s1 + $0xf0] sm:$0xff]
  %v58 = vld [vmem:[%s1 + $0xf8] sm:$0xff]
  %v59 = vld [vmem:[%s1 + $0x100] sm:$0xff]
  %v60 = vld [vmem:[%s1 + $0x108] sm:$0xff]
  %v61 = vld [vmem:[%s1 + $0x110] sm:$0xff]
  %v62 = vld [vmem:[%s1 + $0x118] sm:$0xff]
  %v63 = vld [vmem:[%s1 + $0x120] sm:$0xff]
  %v64 = vld [vmem:[%s1 + $0x128] sm:$0xff]
  %v65 = vld [vmem:[%s1 + $0x130] sm:$0xff]
  %v66 = vld [vmem:[%s1 + $0x138] sm:$0xff]
  %v67 = vld [vmem:[%s1 + $0x140] sm:$0xff]
  %v68 = vld [vmem:[%s1 + $0x148] sm:$0xff]
  %v69 = vld [vmem:[%s1 + $0x150] sm:$0xff]
  %v70 = vld [vmem:[%s1 + $0x158] sm:$0xff]
  %v71 = vld [vmem:[%s1 + $0x160] sm:$0xff]
  %v72 = vld [vmem:[%s1 + $0x168] sm:$0xff]
  %v73 = vld [vmem:[%s1 + $0x170] sm:$0xff]
  %v74 = vld [vmem:[%s1 + $0x178] sm:$0xff]
  %v75 = vld [vmem:[%s1 + $0x180] sm:$0xff]
  %v76 = vld [vmem:[%s1 + $0x188] sm:$0xff]
  %v77 = vld [vmem:[%s1 + $0x190] sm:$0xff]
  %v78 = vld [vmem:[%s1 + $0x198] sm:$0xff]
  %v79 = vld [vmem:[%s1 + $0x1a0] sm:$0xff]
  %v80 = vld [vmem:[%s1 + $0x1a8] sm:$0xff]
  %v81 = vld [vmem:[%s1 + $0x1b0] sm:$0xff]
  %v82 = vld [vmem:[%s1 + $0x1b8] sm:$0xff]
  %v83 = vld [vmem:[%s1 + $0x1c0] sm:$0xff]
  %v84 = vld [vmem:[%s1 + $0x1c8] sm:$0xff]
  %v85 = vld [vmem:[%s1 + $0x1d0] sm:$0xff]
  %v86 = vld [vmem:[%s1 + $0x1d8] sm:$0xff]
  %v87 = vld [vmem:[%s1 + $0x1e0] sm:$0xff]
  %v88 = vld [vmem:[%s1 + $0x1e8] sm:$0xff]
  %v89 = vld [vmem:[%s1 + $0x1f0] sm:$0xff]
  %v90 = vld [vmem:[%s1 + $0x1f8] sm:$0xff]
  %v91 = vand.u32 %v57, 4294901760
  %92 = vmatpush.msra.mxu0 %v91
  %v93 = vand.u32 %v55, 4294901760
  %94 = vmatpush.msra.mxu0 %v93
  %v95 = vand.u32 %v53, 4294901760
  %96 = vmatpush.msra.mxu0 %v95
  %v97 = vand.u32 %v51, 4294901760
  %98 = vmatpush.msra.mxu0 %v97
  %v99 = vand.u32 %v49, 4294901760
  %100 = vmatpush.msra.mxu0 %v99
  %v101 = vand.u32 %v47, 4294901760
  %102 = vmatpush.msra.mxu0 %v101
  %v103 = vand.u32 %v45, 4294901760
  %104 = vmatpush.msra.mxu0 %v103
  %v105 = vand.u32 %v43, 4294901760
  %106 = vmatpush.msra.mxu0 %v105
  %v107 = vand.u32 %v41, 4294901760
  %108 = vmatpush.msra.mxu0 %v107
  %v109 = vand.u32 %v39, 4294901760
  %110 = vmatpush.msra.mxu0 %v109
  %v111 = vand.u32 %v37, 4294901760
  %112 = vmatpush.msra.mxu0 %v111
  %v113 = vand.u32 %v35, 4294901760
  %114 = vmatpush.msra.mxu0 %v113
  %v115 = vand.u32 %v33, 4294901760
  %116 = vmatpush.msra.mxu0 %v115
  %v117 = vand.u32 %v31, 4294901760
  %118 = vmatpush.msra.mxu0 %v117
  %v119 = vand.u32 %v29, 4294901760
  %120 = vmatpush.msra.mxu0 %v119
  %v121 = vand.u32 %v27, 4294901760
  %122 = vmatpush.msra.mxu0 %v121
  %v123 = vand.u32 %v11, 4294901760
  %v124 = vsub.f32 %v11, %v123
  %v125 = vand.u32 %v124, 4294901760
  %v126 = vsub.f32 %v124, %v125
  %v127 = vand.u32 %v126, 4294901760
  %128 = vmatmul.f32.gmra.mxu0 %v127
  %v129 = vpop.f32.mrf.mxu0
  %v130 = vadd.f32 0.0, %v129
  %v131 = vand.u32 %v13, 4294901760
  %v132 = vsub.f32 %v13, %v131
  %v133 = vand.u32 %v132, 4294901760
  %v134 = vsub.f32 %v132, %v133
  %v135 = vand.u32 %v134, 4294901760
  %136 = vmatmul.f32.gmra.mxu0 %v135
  %v137 = vpop.f32.mrf.mxu0
  %v138 = vadd.f32 0.0, %v137
  %v139 = vand.u32 %v15, 4294901760
  %v140 = vsub.f32 %v15, %v139
  %v141 = vand.u32 %v140, 4294901760
  %v142 = vsub.f32 %v140, %v141
  %v143 = vand.u32 %v142, 4294901760
  %144 = vmatmul.f32.gmra.mxu0 %v143
  %v145 = vpop.f32.mrf.mxu0
  %v146 = vadd.f32 0.0, %v145
  %v147 = vand.u32 %v17, 4294901760
  %v148 = vsub.f32 %v17, %v147
  %v149 = vand.u32 %v148, 4294901760
  %v150 = vsub.f32 %v148, %v149
  %v151 = vand.u32 %v150, 4294901760
  %152 = vmatmul.f32.gmra.mxu0 %v151
  %v153 = vpop.f32.mrf.mxu0
  %v154 = vadd.f32 0.0, %v153
  %v155 = vand.u32 %v19, 4294901760
  %v156 = vsub.f32 %v19, %v155
  %v157 = vand.u32 %v156, 4294901760
  %v158 = vsub.f32 %v156, %v157
  %v159 = vand.u32 %v158, 4294901760
  %160 = vmatmul.f32.gmra.mxu0 %v159
  %v161 = vpop.f32.mrf.mxu0
  %v162 = vadd.f32 0.0, %v161
  %v163 = vand.u32 %v21, 4294901760
  %v164 = vsub.f32 %v21, %v163
  %v165 = vand.u32 %v164, 4294901760
  %v166 = vsub.f32 %v164, %v165
  %v167 = vand.u32 %v166, 4294901760
  %168 = vmatmul.f32.gmra.mxu0 %v167
  %v169 = vpop.f32.mrf.mxu0
  %v170 = vadd.f32 0.0, %v169
  %v171 = vand.u32 %v23, 4294901760
  %v172 = vsub.f32 %v23, %v171
  %v173 = vand.u32 %v172, 4294901760
  %v174 = vsub.f32 %v172, %v173
  %v175 = vand.u32 %v174, 4294901760
  %176 = vmatmul.f32.gmra.mxu0 %v175
  %v177 = vpop.f32.mrf.mxu0
  %v178 = vadd.f32 0.0, %v177
  %v179 = vand.u32 %v25, 4294901760
  %v180 = vsub.f32 %v25, %v179
  %v181 = vand.u32 %v180, 4294901760
  %v182 = vsub.f32 %v180, %v181
  %v183 = vand.u32 %v182, 4294901760
  %184 = vmatmul.f32.gmra.mxu0 %v183
  %v185 = vpop.f32.mrf.mxu0
  %v186 = vadd.f32 0.0, %v185
  %187 = vdwg.mxu0
  %v188 = vand.u32 %v57, 4294901760
  %v189 = vsub.f32 %v57, %v188
  %v190 = vand.u32 %v189, 4294901760
  %v191 = vsub.f32 %v189, %v190
  %v192 = vand.u32 %v191, 4294901760
  %193 = vmatpush.msra.mxu0 %v192
  %v194 = vand.u32 %v55, 4294901760
  %v195 = vsub.f32 %v55, %v194
  %v196 = vand.u32 %v195, 4294901760
  %v197 = vsub.f32 %v195, %v196
  %v198 = vand.u32 %v197, 4294901760
  %199 = vmatpush.msra.mxu0 %v198
  %v200 = vand.u32 %v53, 4294901760
  %v201 = vsub.f32 %v53, %v200
  %v202 = vand.u32 %v201, 4294901760
  %v203 = vsub.f32 %v201, %v202
  %v204 = vand.u32 %v203, 4294901760
  %205 = vmatpush.msra.mxu0 %v204
  %v206 = vand.u32 %v51, 4294901760
  %v207 = vsub.f32 %v51, %v206
  %v208 = vand.u32 %v207, 4294901760
  %v209 = vsub.f32 %v207, %v208
  %v210 = vand.u32 %v209, 4294901760
  %211 = vmatpush.msra.mxu0 %v210
  %v212 = vand.u32 %v49, 4294901760
  %v213 = vsub.f32 %v49, %v212
  %v214 = vand.u32 %v213, 4294901760
  %v215 = vsub.f32 %v213, %v214
  %v216 = vand.u32 %v215, 4294901760
  %217 = vmatpush.msra.mxu0 %v216
  %v218 = vand.u32 %v47, 4294901760
  %v219 = vsub.f32 %v47, %v218
  %v220 = vand.u32 %v219, 4294901760
  %v221 = vsub.f32 %v219, %v220
  %v222 = vand.u32 %v221, 4294901760
  %223 = vmatpush.msra.mxu0 %v222
  %v224 = vand.u32 %v45, 4294901760
  %v225 = vsub.f32 %v45, %v224
  %v226 = vand.u32 %v225, 4294901760
  %v227 = vsub.f32 %v225, %v226
  %v228 = vand.u32 %v227, 4294901760
  %229 = vmatpush.msra.mxu0 %v228
  %v230 = vand.u32 %v43, 4294901760
  %v231 = vsub.f32 %v43, %v230
  %v232 = vand.u32 %v231, 4294901760
  %v233 = vsub.f32 %v231, %v232
  %v234 = vand.u32 %v233, 4294901760
  %235 = vmatpush.msra.mxu0 %v234
  %v236 = vand.u32 %v41, 4294901760
  %v237 = vsub.f32 %v41, %v236
  %v238 = vand.u32 %v237, 4294901760
  %v239 = vsub.f32 %v237, %v238
  %v240 = vand.u32 %v239, 4294901760
  %241 = vmatpush.msra.mxu0 %v240
  %v242 = vand.u32 %v39, 4294901760
  %v243 = vsub.f32 %v39, %v242
  %v244 = vand.u32 %v243, 4294901760
  %v245 = vsub.f32 %v243, %v244
  %v246 = vand.u32 %v245, 4294901760
  %247 = vmatpush.msra.mxu0 %v246
  %v248 = vand.u32 %v37, 4294901760
  %v249 = vsub.f32 %v37, %v248
  %v250 = vand.u32 %v249, 4294901760
  %v251 = vsub.f32 %v249, %v250
  %v252 = vand.u32 %v251, 4294901760
  %253 = vmatpush.msra.mxu0 %v252
  %v254 = vand.u32 %v35, 4294901760
  %v255 = vsub.f32 %v35, %v254
  %v256 = vand.u32 %v255, 4294901760
  %v257 = vsub.f32 %v255, %v256
  %v258 = vand.u32 %v257, 4294901760
  %259 = vmatpush.msra.mxu0 %v258
  %v260 = vand.u32 %v33, 4294901760
  %v261 = vsub.f32 %v33, %v260
  %v262 = vand.u32 %v261, 4294901760
  %v263 = vsub.f32 %v261, %v262
  %v264 = vand.u32 %v263, 4294901760
  %265 = vmatpush.msra.mxu0 %v264
  %v266 = vand.u32 %v31, 4294901760
  %v267 = vsub.f32 %v31, %v266
  %v268 = vand.u32 %v267, 4294901760
  %v269 = vsub.f32 %v267, %v268
  %v270 = vand.u32 %v269, 4294901760
  %271 = vmatpush.msra.mxu0 %v270
  %v272 = vand.u32 %v29, 4294901760
  %v273 = vsub.f32 %v29, %v272
  %v274 = vand.u32 %v273, 4294901760
  %v275 = vsub.f32 %v273, %v274
  %v276 = vand.u32 %v275, 4294901760
  %277 = vmatpush.msra.mxu0 %v276
  %v278 = vand.u32 %v27, 4294901760
  %v279 = vsub.f32 %v27, %v278
  %v280 = vand.u32 %v279, 4294901760
  %v281 = vsub.f32 %v279, %v280
  %v282 = vand.u32 %v281, 4294901760
  %283 = vmatpush.msra.mxu0 %v282
  %v284 = vand.u32 %v11, 4294901760
  %285 = vmatmul.f32.gmra.mxu0 %v284
  %v286 = vpop.f32.mrf.mxu0
  %v287 = vadd.f32 %v130, %v286
  %v288 = vand.u32 %v13, 4294901760
  %289 = vmatmul.f32.gmra.mxu0 %v288
  %v290 = vpop.f32.mrf.mxu0
  %v291 = vadd.f32 %v138, %v290
  %v292 = vand.u32 %v15, 4294901760
  %293 = vmatmul.f32.gmra.mxu0 %v292
  %v294 = vpop.f32.mrf.mxu0
  %v295 = vadd.f32 %v146, %v294
  %v296 = vand.u32 %v17, 4294901760
  %297 = vmatmul.f32.gmra.mxu0 %v296
  %v298 = vpop.f32.mrf.mxu0
  %v299 = vadd.f32 %v154, %v298
  %v300 = vand.u32 %v19, 4294901760
  %301 = vmatmul.f32.gmra.mxu0 %v300
  %v302 = vpop.f32.mrf.mxu0
  %v303 = vadd.f32 %v162, %v302
  %v304 = vand.u32 %v21, 4294901760
  %305 = vmatmul.f32.gmra.mxu0 %v304
  %v306 = vpop.f32.mrf.mxu0
  %v307 = vadd.f32 %v170, %v306
  %v308 = vand.u32 %v23, 4294901760
  %309 = vmatmul.f32.gmra.mxu0 %v308
  %v310 = vpop.f32.mrf.mxu0
  %v311 = vadd.f32 %v178, %v310
  %v312 = vand.u32 %v25, 4294901760
  %313 = vmatmul.f32.gmra.mxu0 %v312
  %v314 = vpop.f32.mrf.mxu0
  %v315 = vadd.f32 %v186, %v314
  %316 = vdwg.mxu0
  %v317 = vand.u32 %v57, 4294901760
  %v318 = vsub.f32 %v57, %v317
  %319 = vmatpush.msra.mxu0 %v318
  %v320 = vand.u32 %v55, 4294901760
  %v321 = vsub.f32 %v55, %v320
  %322 = vmatpush.msra.mxu0 %v321
  %v323 = vand.u32 %v53, 4294901760
  %v324 = vsub.f32 %v53, %v323
  %325 = vmatpush.msra.mxu0 %v324
  %v326 = vand.u32 %v51, 4294901760
  %v327 = vsub.f32 %v51, %v326
  %328 = vmatpush.msra.mxu0 %v327
  %v329 = vand.u32 %v49, 4294901760
  %v330 = vsub.f32 %v49, %v329
  %331 = vmatpush.msra.mxu0 %v330
  %v332 = vand.u32 %v47, 4294901760
  %v333 = vsub.f32 %v47, %v332
  %334 = vmatpush.msra.mxu0 %v333
  %v335 = vand.u32 %v45, 4294901760
  %v336 = vsub.f32 %v45, %v335
  %337 = vmatpush.msra.mxu0 %v336
  %v338 = vand.u32 %v43, 4294901760
  %v339 = vsub.f32 %v43, %v338
  %340 = vmatpush.msra.mxu0 %v339
  %v341 = vand.u32 %v41, 4294901760
  %v342 = vsub.f32 %v41, %v341
  %343 = vmatpush.msra.mxu0 %v342
  %v344 = vand.u32 %v39, 4294901760
  %v345 = vsub.f32 %v39, %v344
  %346 = vmatpush.msra.mxu0 %v345
  %v347 = vand.u32 %v37, 4294901760
  %v348 = vsub.f32 %v37, %v347
  %349 = vmatpush.msra.mxu0 %v348
  %v350 = vand.u32 %v35, 4294901760
  %v351 = vsub.f32 %v35, %v350
  %352 = vmatpush.msra.mxu0 %v351
  %v353 = vand.u32 %v33, 4294901760
  %v354 = vsub.f32 %v33, %v353
  %355 = vmatpush.msra.mxu0 %v354
  %v356 = vand.u32 %v31, 4294901760
  %v357 = vsub.f32 %v31, %v356
  %358 = vmatpush.msra.mxu0 %v357
  %v359 = vand.u32 %v29, 4294901760
  %v360 = vsub.f32 %v29, %v359
  %361 = vmatpush.msra.mxu0 %v360
  %v362 = vand.u32 %v27, 4294901760
  %v363 = vsub.f32 %v27, %v362
  %364 = vmatpush.msra.mxu0 %v363
  %v365 = vand.u32 %v11, 4294901760
  %v366 = vsub.f32 %v11, %v365
  %367 = vmatmul.f32.gmra.mxu0 %v366
  %v368 = vpop.f32.mrf.mxu0
  %v369 = vadd.f32 %v287, %v368
  %v370 = vand.u32 %v13, 4294901760
  %v371 = vsub.f32 %v13, %v370
  %372 = vmatmul.f32.gmra.mxu0 %v371
  %v373 = vpop.f32.mrf.mxu0
  %v374 = vadd.f32 %v291, %v373
  %v375 = vand.u32 %v15, 4294901760
  %v376 = vsub.f32 %v15, %v375
  %377 = vmatmul.f32.gmra.mxu0 %v376
  %v378 = vpop.f32.mrf.mxu0
  %v379 = vadd.f32 %v295, %v378
  %v380 = vand.u32 %v17, 4294901760
  %v381 = vsub.f32 %v17, %v380
  %382 = vmatmul.f32.gmra.mxu0 %v381
  %v383 = vpop.f32.mrf.mxu0
  %v384 = vadd.f32 %v299, %v383
  %v385 = vand.u32 %v19, 4294901760
  %v386 = vsub.f32 %v19, %v385
  %387 = vmatmul.f32.gmra.mxu0 %v386
  %v388 = vpop.f32.mrf.mxu0
  %v389 = vadd.f32 %v303, %v388
  %v390 = vand.u32 %v21, 4294901760
  %v391 = vsub.f32 %v21, %v390
  %392 = vmatmul.f32.gmra.mxu0 %v391
  %v393 = vpop.f32.mrf.mxu0
  %v394 = vadd.f32 %v307, %v393
  %v395 = vand.u32 %v23, 4294901760
  %v396 = vsub.f32 %v23, %v395
  %397 = vmatmul.f32.gmra.mxu0 %v396
  %v398 = vpop.f32.mrf.mxu0
  %v399 = vadd.f32 %v311, %v398
  %v400 = vand.u32 %v25, 4294901760
  %v401 = vsub.f32 %v25, %v400
  %402 = vmatmul.f32.gmra.mxu0 %v401
  %v403 = vpop.f32.mrf.mxu0
  %v404 = vadd.f32 %v315, %v403
  %405 = vdwg.mxu0
  %v406 = vand.u32 %v57, 4294901760
  %407 = vmatpush.msra.mxu0 %v406
  %v408 = vand.u32 %v55, 4294901760
  %409 = vmatpush.msra.mxu0 %v408
  %v410 = vand.u32 %v53, 4294901760
  %411 = vmatpush.msra.mxu0 %v410
  %v412 = vand.u32 %v51, 4294901760
  %413 = vmatpush.msra.mxu0 %v412
  %v414 = vand.u32 %v49, 4294901760
  %415 = vmatpush.msra.mxu0 %v414
  %v416 = vand.u32 %v47, 4294901760
  %417 = vmatpush.msra.mxu0 %v416
  %v418 = vand.u32 %v45, 4294901760
  %419 = vmatpush.msra.mxu0 %v418
  %v420 = vand.u32 %v43, 4294901760
  %421 = vmatpush.msra.mxu0 %v420
  %v422 = vand.u32 %v41, 4294901760
  %423 = vmatpush.msra.mxu0 %v422
  %v424 = vand.u32 %v39, 4294901760
  %425 = vmatpush.msra.mxu0 %v424
  %v426 = vand.u32 %v37, 4294901760
  %427 = vmatpush.msra.mxu0 %v426
  %v428 = vand.u32 %v35, 4294901760
  %429 = vmatpush.msra.mxu0 %v428
  %v430 = vand.u32 %v33, 4294901760
  %431 = vmatpush.msra.mxu0 %v430
  %v432 = vand.u32 %v31, 4294901760
  %433 = vmatpush.msra.mxu0 %v432
  %v434 = vand.u32 %v29, 4294901760
  %435 = vmatpush.msra.mxu0 %v434
  %v436 = vand.u32 %v27, 4294901760
  %437 = vmatpush.msra.mxu0 %v436
  %v438 = vand.u32 %v11, 4294901760
  %v439 = vsub.f32 %v11, %v438
  %v440 = vand.u32 %v439, 4294901760
  %441 = vmatmul.f32.gmra.mxu0 %v440
  %v442 = vpop.f32.mrf.mxu0
  %v443 = vadd.f32 %v369, %v442
  %v444 = vand.u32 %v13, 4294901760
  %v445 = vsub.f32 %v13, %v444
  %v446 = vand.u32 %v445, 4294901760
  %447 = vmatmul.f32.gmra.mxu0 %v446
  %v448 = vpop.f32.mrf.mxu0
  %v449 = vadd.f32 %v374, %v448
  %v450 = vand.u32 %v15, 4294901760
  %v451 = vsub.f32 %v15, %v450
  %v452 = vand.u32 %v451, 4294901760
  %453 = vmatmul.f32.gmra.mxu0 %v452
  %v454 = vpop.f32.mrf.mxu0
  %v455 = vadd.f32 %v379, %v454
  %v456 = vand.u32 %v17, 4294901760
  %v457 = vsub.f32 %v17, %v456
  %v458 = vand.u32 %v457, 4294901760
  %459 = vmatmul.f32.gmra.mxu0 %v458
  %v460 = vpop.f32.mrf.mxu0
  %v461 = vadd.f32 %v384, %v460
  %v462 = vand.u32 %v19, 4294901760
  %v463 = vsub.f32 %v19, %v462
  %v464 = vand.u32 %v463, 4294901760
  %465 = vmatmul.f32.gmra.mxu0 %v464
  %v466 = vpop.f32.mrf.mxu0
  %v467 = vadd.f32 %v389, %v466
  %v468 = vand.u32 %v21, 4294901760
  %v469 = vsub.f32 %v21, %v468
  %v470 = vand.u32 %v469, 4294901760
  %471 = vmatmul.f32.gmra.mxu0 %v470
  %v472 = vpop.f32.mrf.mxu0
  %v473 = vadd.f32 %v394, %v472
  %v474 = vand.u32 %v23, 4294901760
  %v475 = vsub.f32 %v23, %v474
  %v476 = vand.u32 %v475, 4294901760
  %477 = vmatmul.f32.gmra.mxu0 %v476
  %v478 = vpop.f32.mrf.mxu0
  %v479 = vadd.f32 %v399, %v478
  %v480 = vand.u32 %v25, 4294901760
  %v481 = vsub.f32 %v25, %v480
  %v482 = vand.u32 %v481, 4294901760
  %483 = vmatmul.f32.gmra.mxu0 %v482
  %v484 = vpop.f32.mrf.mxu0
  %v485 = vadd.f32 %v404, %v484
  %486 = vdwg.mxu0
  %v487 = vand.u32 %v57, 4294901760
  %v488 = vsub.f32 %v57, %v487
  %v489 = vand.u32 %v488, 4294901760
  %490 = vmatpush.msra.mxu0 %v489
  %v491 = vand.u32 %v55, 4294901760
  %v492 = vsub.f32 %v55, %v491
  %v493 = vand.u32 %v492, 4294901760
  %494 = vmatpush.msra.mxu0 %v493
  %v495 = vand.u32 %v53, 4294901760
  %v496 = vsub.f32 %v53, %v495
  %v497 = vand.u32 %v496, 4294901760
  %498 = vmatpush.msra.mxu0 %v497
  %v499 = vand.u32 %v51, 4294901760
  %v500 = vsub.f32 %v51, %v499
  %v501 = vand.u32 %v500, 4294901760
  %502 = vmatpush.msra.mxu0 %v501
  %v503 = vand.u32 %v49, 4294901760
  %v504 = vsub.f32 %v49, %v503
  %v505 = vand.u32 %v504, 4294901760
  %506 = vmatpush.msra.mxu0 %v505
  %v507 = vand.u32 %v47, 4294901760
  %v508 = vsub.f32 %v47, %v507
  %v509 = vand.u32 %v508, 4294901760
  %510 = vmatpush.msra.mxu0 %v509
  %v511 = vand.u32 %v45, 4294901760
  %v512 = vsub.f32 %v45, %v511
  %v513 = vand.u32 %v512, 4294901760
  %514 = vmatpush.msra.mxu0 %v513
  %v515 = vand.u32 %v43, 4294901760
  %v516 = vsub.f32 %v43, %v515
  %v517 = vand.u32 %v516, 4294901760
  %518 = vmatpush.msra.mxu0 %v517
  %v519 = vand.u32 %v41, 4294901760
  %v520 = vsub.f32 %v41, %v519
  %v521 = vand.u32 %v520, 4294901760
  %522 = vmatpush.msra.mxu0 %v521
  %v523 = vand.u32 %v39, 4294901760
  %v524 = vsub.f32 %v39, %v523
  %v525 = vand.u32 %v524, 4294901760
  %526 = vmatpush.msra.mxu0 %v525
  %v527 = vand.u32 %v37, 4294901760
  %v528 = vsub.f32 %v37, %v527
  %v529 = vand.u32 %v528, 4294901760
  %530 = vmatpush.msra.mxu0 %v529
  %v531 = vand.u32 %v35, 4294901760
  %v532 = vsub.f32 %v35, %v531
  %v533 = vand.u32 %v532, 4294901760
  %534 = vmatpush.msra.mxu0 %v533
  %v535 = vand.u32 %v33, 4294901760
  %v536 = vsub.f32 %v33, %v535
  %v537 = vand.u32 %v536, 4294901760
  %538 = vmatpush.msra.mxu0 %v537
  %v539 = vand.u32 %v31, 4294901760
  %v540 = vsub.f32 %v31, %v539
  %v541 = vand.u32 %v540, 4294901760
  %542 = vmatpush.msra.mxu0 %v541
  %v543 = vand.u32 %v29, 4294901760
  %v544 = vsub.f32 %v29, %v543
  %v545 = vand.u32 %v544, 4294901760
  %546 = vmatpush.msra.mxu0 %v545
  %v547 = vand.u32 %v27, 4294901760
  %v548 = vsub.f32 %v27, %v547
  %v549 = vand.u32 %v548, 4294901760
  %550 = vmatpush.msra.mxu0 %v549
  %v551 = vand.u32 %v11, 4294901760
  %552 = vmatmul.f32.gmra.mxu0 %v551
  %v553 = vpop.f32.mrf.mxu0
  %v554 = vadd.f32 %v443, %v553
  %v555 = vand.u32 %v13, 4294901760
  %556 = vmatmul.f32.gmra.mxu0 %v555
  %v557 = vpop.f32.mrf.mxu0
  %v558 = vadd.f32 %v449, %v557
  %v559 = vand.u32 %v15, 4294901760
  %560 = vmatmul.f32.gmra.mxu0 %v559
  %v561 = vpop.f32.mrf.mxu0
  %v562 = vadd.f32 %v455, %v561
  %v563 = vand.u32 %v17, 4294901760
  %564 = vmatmul.f32.gmra.mxu0 %v563
  %v565 = vpop.f32.mrf.mxu0
  %v566 = vadd.f32 %v461, %v565
  %v567 = vand.u32 %v19, 4294901760
  %568 = vmatmul.f32.gmra.mxu0 %v567
  %v569 = vpop.f32.mrf.mxu0
  %v570 = vadd.f32 %v467, %v569
  %v571 = vand.u32 %v21, 4294901760
  %572 = vmatmul.f32.gmra.mxu0 %v571
  %v573 = vpop.f32.mrf.mxu0
  %v574 = vadd.f32 %v473, %v573
  %v575 = vand.u32 %v23, 4294901760
  %576 = vmatmul.f32.gmra.mxu0 %v575
  %v577 = vpop.f32.mrf.mxu0
  %v578 = vadd.f32 %v479, %v577
  %v579 = vand.u32 %v25, 4294901760
  %580 = vmatmul.f32.gmra.mxu0 %v579
  %v581 = vpop.f32.mrf.mxu0
  %v582 = vadd.f32 %v485, %v581
  %583 = vdwg.mxu0
  %v584 = vand.u32 %v57, 4294901760
  %585 = vmatpush.msra.mxu0 %v584
  %v586 = vand.u32 %v55, 4294901760
  %587 = vmatpush.msra.mxu0 %v586
  %v588 = vand.u32 %v53, 4294901760
  %589 = vmatpush.msra.mxu0 %v588
  %v590 = vand.u32 %v51, 4294901760
  %591 = vmatpush.msra.mxu0 %v590
  %v592 = vand.u32 %v49, 4294901760
  %593 = vmatpush.msra.mxu0 %v592
  %v594 = vand.u32 %v47, 4294901760
  %595 = vmatpush.msra.mxu0 %v594
  %v596 = vand.u32 %v45, 4294901760
  %597 = vmatpush.msra.mxu0 %v596
  %v598 = vand.u32 %v43, 4294901760
  %599 = vmatpush.msra.mxu0 %v598
  %v600 = vand.u32 %v41, 4294901760
  %601 = vmatpush.msra.mxu0 %v600
  %v602 = vand.u32 %v39, 4294901760
  %603 = vmatpush.msra.mxu0 %v602
  %v604 = vand.u32 %v37, 4294901760
  %605 = vmatpush.msra.mxu0 %v604
  %v606 = vand.u32 %v35, 4294901760
  %607 = vmatpush.msra.mxu0 %v606
  %v608 = vand.u32 %v33, 4294901760
  %609 = vmatpush.msra.mxu0 %v608
  %v610 = vand.u32 %v31, 4294901760
  %611 = vmatpush.msra.mxu0 %v610
  %v612 = vand.u32 %v29, 4294901760
  %613 = vmatpush.msra.mxu0 %v612
  %v614 = vand.u32 %v27, 4294901760
  %615 = vmatpush.msra.mxu0 %v614
  %v616 = vand.u32 %v11, 4294901760
  %617 = vmatmul.f32.gmra.mxu0 %v616
  %v618 = vpop.f32.mrf.mxu0
  %v619 = vadd.f32 %v554, %v618
  %v620 = vand.u32 %v13, 4294901760
  %621 = vmatmul.f32.gmra.mxu0 %v620
  %v622 = vpop.f32.mrf.mxu0
  %v623 = vadd.f32 %v558, %v622
  %v624 = vand.u32 %v15, 4294901760
  %625 = vmatmul.f32.gmra.mxu0 %v624
  %v626 = vpop.f32.mrf.mxu0
  %v627 = vadd.f32 %v562, %v626
  %v628 = vand.u32 %v17, 4294901760
  %629 = vmatmul.f32.gmra.mxu0 %v628
  %v630 = vpop.f32.mrf.mxu0
  %v631 = vadd.f32 %v566, %v630
  %v632 = vand.u32 %v19, 4294901760
  %633 = vmatmul.f32.gmra.mxu0 %v632
  %v634 = vpop.f32.mrf.mxu0
  %v635 = vadd.f32 %v570, %v634
  %v636 = vand.u32 %v21, 4294901760
  %637 = vmatmul.f32.gmra.mxu0 %v636
  %v638 = vpop.f32.mrf.mxu0
  %v639 = vadd.f32 %v574, %v638
  %v640 = vand.u32 %v23, 4294901760
  %641 = vmatmul.f32.gmra.mxu0 %v640
  %v642 = vpop.f32.mrf.mxu0
  %v643 = vadd.f32 %v578, %v642
  %v644 = vand.u32 %v25, 4294901760
  %645 = vmatmul.f32.gmra.mxu0 %v644
  %v646 = vpop.f32.mrf.mxu0
  %v647 = vadd.f32 %v582, %v646
  %648 = vdwg.mxu0
  %v649 = vand.u32 %v89, 4294901760
  %650 = vmatpush.msra.mxu0 %v649
  %v651 = vand.u32 %v87, 4294901760
  %652 = vmatpush.msra.mxu0 %v651
  %v653 = vand.u32 %v85, 4294901760
  %654 = vmatpush.msra.mxu0 %v653
  %v655 = vand.u32 %v83, 4294901760
  %656 = vmatpush.msra.mxu0 %v655
  %v657 = vand.u32 %v81, 4294901760
  %658 = vmatpush.msra.mxu0 %v657
  %v659 = vand.u32 %v79, 4294901760
  %660 = vmatpush.msra.mxu0 %v659
  %v661 = vand.u32 %v77, 4294901760
  %662 = vmatpush.msra.mxu0 %v661
  %v663 = vand.u32 %v75, 4294901760
  %664 = vmatpush.msra.mxu0 %v663
  %v665 = vand.u32 %v73, 4294901760
  %666 = vmatpush.msra.mxu0 %v665
  %v667 = vand.u32 %v71, 4294901760
  %668 = vmatpush.msra.mxu0 %v667
  %v669 = vand.u32 %v69, 4294901760
  %670 = vmatpush.msra.mxu0 %v669
  %v671 = vand.u32 %v67, 4294901760
  %672 = vmatpush.msra.mxu0 %v671
  %v673 = vand.u32 %v65, 4294901760
  %674 = vmatpush.msra.mxu0 %v673
  %v675 = vand.u32 %v63, 4294901760
  %676 = vmatpush.msra.mxu0 %v675
  %v677 = vand.u32 %v61, 4294901760
  %678 = vmatpush.msra.mxu0 %v677
  %v679 = vand.u32 %v59, 4294901760
  %680 = vmatpush.msra.mxu0 %v679
  %v681 = vand.u32 %v12, 4294901760
  %v682 = vsub.f32 %v12, %v681
  %v683 = vand.u32 %v682, 4294901760
  %v684 = vsub.f32 %v682, %v683
  %v685 = vand.u32 %v684, 4294901760
  %686 = vmatmul.f32.gmra.mxu0 %v685
  %v687 = vpop.f32.mrf.mxu0
  %v688 = vadd.f32 %v619, %v687
  %v689 = vand.u32 %v14, 4294901760
  %v690 = vsub.f32 %v14, %v689
  %v691 = vand.u32 %v690, 4294901760
  %v692 = vsub.f32 %v690, %v691
  %v693 = vand.u32 %v692, 4294901760
  %694 = vmatmul.f32.gmra.mxu0 %v693
  %v695 = vpop.f32.mrf.mxu0
  %v696 = vadd.f32 %v623, %v695
  %v697 = vand.u32 %v16, 4294901760
  %v698 = vsub.f32 %v16, %v697
  %v699 = vand.u32 %v698, 4294901760
  %v700 = vsub.f32 %v698, %v699
  %v701 = vand.u32 %v700, 4294901760
  %702 = vmatmul.f32.gmra.mxu0 %v701
  %v703 = vpop.f32.mrf.mxu0
  %v704 = vadd.f32 %v627, %v703
  %v705 = vand.u32 %v18, 4294901760
  %v706 = vsub.f32 %v18, %v705
  %v707 = vand.u32 %v706, 4294901760
  %v708 = vsub.f32 %v706, %v707
  %v709 = vand.u32 %v708, 4294901760
  %710 = vmatmul.f32.gmra.mxu0 %v709
  %v711 = vpop.f32.mrf.mxu0
  %v712 = vadd.f32 %v631, %v711
  %v713 = vand.u32 %v20, 4294901760
  %v714 = vsub.f32 %v20, %v713
  %v715 = vand.u32 %v714, 4294901760
  %v716 = vsub.f32 %v714, %v715
  %v717 = vand.u32 %v716, 4294901760
  %718 = vmatmul.f32.gmra.mxu0 %v717
  %v719 = vpop.f32.mrf.mxu0
  %v720 = vadd.f32 %v635, %v719
  %v721 = vand.u32 %v22, 4294901760
  %v722 = vsub.f32 %v22, %v721
  %v723 = vand.u32 %v722, 4294901760
  %v724 = vsub.f32 %v722, %v723
  %v725 = vand.u32 %v724, 4294901760
  %726 = vmatmul.f32.gmra.mxu0 %v725
  %v727 = vpop.f32.mrf.mxu0
  %v728 = vadd.f32 %v639, %v727
  %v729 = vand.u32 %v24, 4294901760
  %v730 = vsub.f32 %v24, %v729
  %v731 = vand.u32 %v730, 4294901760
  %v732 = vsub.f32 %v730, %v731
  %v733 = vand.u32 %v732, 4294901760
  %734 = vmatmul.f32.gmra.mxu0 %v733
  %v735 = vpop.f32.mrf.mxu0
  %v736 = vadd.f32 %v643, %v735
  %v737 = vand.u32 %v26, 4294901760
  %v738 = vsub.f32 %v26, %v737
  %v739 = vand.u32 %v738, 4294901760
  %v740 = vsub.f32 %v738, %v739
  %v741 = vand.u32 %v740, 4294901760
  %742 = vmatmul.f32.gmra.mxu0 %v741
  %v743 = vpop.f32.mrf.mxu0
  %v744 = vadd.f32 %v647, %v743
  %745 = vdwg.mxu0
  %v746 = vand.u32 %v89, 4294901760
  %v747 = vsub.f32 %v89, %v746
  %v748 = vand.u32 %v747, 4294901760
  %v749 = vsub.f32 %v747, %v748
  %v750 = vand.u32 %v749, 4294901760
  %751 = vmatpush.msra.mxu0 %v750
  %v752 = vand.u32 %v87, 4294901760
  %v753 = vsub.f32 %v87, %v752
  %v754 = vand.u32 %v753, 4294901760
  %v755 = vsub.f32 %v753, %v754
  %v756 = vand.u32 %v755, 4294901760
  %757 = vmatpush.msra.mxu0 %v756
  %v758 = vand.u32 %v85, 4294901760
  %v759 = vsub.f32 %v85, %v758
  %v760 = vand.u32 %v759, 4294901760
  %v761 = vsub.f32 %v759, %v760
  %v762 = vand.u32 %v761, 4294901760
  %763 = vmatpush.msra.mxu0 %v762
  %v764 = vand.u32 %v83, 4294901760
  %v765 = vsub.f32 %v83, %v764
  %v766 = vand.u32 %v765, 4294901760
  %v767 = vsub.f32 %v765, %v766
  %v768 = vand.u32 %v767, 4294901760
  %769 = vmatpush.msra.mxu0 %v768
  %v770 = vand.u32 %v81, 4294901760
  %v771 = vsub.f32 %v81, %v770
  %v772 = vand.u32 %v771, 4294901760
  %v773 = vsub.f32 %v771, %v772
  %v774 = vand.u32 %v773, 4294901760
  %775 = vmatpush.msra.mxu0 %v774
  %v776 = vand.u32 %v79, 4294901760
  %v777 = vsub.f32 %v79, %v776
  %v778 = vand.u32 %v777, 4294901760
  %v779 = vsub.f32 %v777, %v778
  %v780 = vand.u32 %v779, 4294901760
  %781 = vmatpush.msra.mxu0 %v780
  %v782 = vand.u32 %v77, 4294901760
  %v783 = vsub.f32 %v77, %v782
  %v784 = vand.u32 %v783, 4294901760
  %v785 = vsub.f32 %v783, %v784
  %v786 = vand.u32 %v785, 4294901760
  %787 = vmatpush.msra.mxu0 %v786
  %v788 = vand.u32 %v75, 4294901760
  %v789 = vsub.f32 %v75, %v788
  %v790 = vand.u32 %v789, 4294901760
  %v791 = vsub.f32 %v789, %v790
  %v792 = vand.u32 %v791, 4294901760
  %793 = vmatpush.msra.mxu0 %v792
  %v794 = vand.u32 %v73, 4294901760
  %v795 = vsub.f32 %v73, %v794
  %v796 = vand.u32 %v795, 4294901760
  %v797 = vsub.f32 %v795, %v796
  %v798 = vand.u32 %v797, 4294901760
  %799 = vmatpush.msra.mxu0 %v798
  %v800 = vand.u32 %v71, 4294901760
  %v801 = vsub.f32 %v71, %v800
  %v802 = vand.u32 %v801, 4294901760
  %v803 = vsub.f32 %v801, %v802
  %v804 = vand.u32 %v803, 4294901760
  %805 = vmatpush.msra.mxu0 %v804
  %v806 = vand.u32 %v69, 4294901760
  %v807 = vsub.f32 %v69, %v806
  %v808 = vand.u32 %v807, 4294901760
  %v809 = vsub.f32 %v807, %v808
  %v810 = vand.u32 %v809, 4294901760
  %811 = vmatpush.msra.mxu0 %v810
  %v812 = vand.u32 %v67, 4294901760
  %v813 = vsub.f32 %v67, %v812
  %v814 = vand.u32 %v813, 4294901760
  %v815 = vsub.f32 %v813, %v814
  %v816 = vand.u32 %v815, 4294901760
  %817 = vmatpush.msra.mxu0 %v816
  %v818 = vand.u32 %v65, 4294901760
  %v819 = vsub.f32 %v65, %v818
  %v820 = vand.u32 %v819, 4294901760
  %v821 = vsub.f32 %v819, %v820
  %v822 = vand.u32 %v821, 4294901760
  %823 = vmatpush.msra.mxu0 %v822
  %v824 = vand.u32 %v63, 4294901760
  %v825 = vsub.f32 %v63, %v824
  %v826 = vand.u32 %v825, 4294901760
  %v827 = vsub.f32 %v825, %v826
  %v828 = vand.u32 %v827, 4294901760
  %829 = vmatpush.msra.mxu0 %v828
  %v830 = vand.u32 %v61, 4294901760
  %v831 = vsub.f32 %v61, %v830
  %v832 = vand.u32 %v831, 4294901760
  %v833 = vsub.f32 %v831, %v832
  %v834 = vand.u32 %v833, 4294901760
  %835 = vmatpush.msra.mxu0 %v834
  %v836 = vand.u32 %v59, 4294901760
  %v837 = vsub.f32 %v59, %v836
  %v838 = vand.u32 %v837, 4294901760
  %v839 = vsub.f32 %v837, %v838
  %v840 = vand.u32 %v839, 4294901760
  %841 = vmatpush.msra.mxu0 %v840
  %v842 = vand.u32 %v12, 4294901760
  %843 = vmatmul.f32.gmra.mxu0 %v842
  %v844 = vpop.f32.mrf.mxu0
  %v845 = vadd.f32 %v688, %v844
  %v846 = vand.u32 %v14, 4294901760
  %847 = vmatmul.f32.gmra.mxu0 %v846
  %v848 = vpop.f32.mrf.mxu0
  %v849 = vadd.f32 %v696, %v848
  %v850 = vand.u32 %v16, 4294901760
  %851 = vmatmul.f32.gmra.mxu0 %v850
  %v852 = vpop.f32.mrf.mxu0
  %v853 = vadd.f32 %v704, %v852
  %v854 = vand.u32 %v18, 4294901760
  %855 = vmatmul.f32.gmra.mxu0 %v854
  %v856 = vpop.f32.mrf.mxu0
  %v857 = vadd.f32 %v712, %v856
  %v858 = vand.u32 %v20, 4294901760
  %859 = vmatmul.f32.gmra.mxu0 %v858
  %v860 = vpop.f32.mrf.mxu0
  %v861 = vadd.f32 %v720, %v860
  %v862 = vand.u32 %v22, 4294901760
  %863 = vmatmul.f32.gmra.mxu0 %v862
  %v864 = vpop.f32.mrf.mxu0
  %v865 = vadd.f32 %v728, %v864
  %v866 = vand.u32 %v24, 4294901760
  %867 = vmatmul.f32.gmra.mxu0 %v866
  %v868 = vpop.f32.mrf.mxu0
  %v869 = vadd.f32 %v736, %v868
  %v870 = vand.u32 %v26, 4294901760
  %871 = vmatmul.f32.gmra.mxu0 %v870
  %v872 = vpop.f32.mrf.mxu0
  %v873 = vadd.f32 %v744, %v872
  %874 = vdwg.mxu0
  %v875 = vand.u32 %v89, 4294901760
  %v876 = vsub.f32 %v89, %v875
  %877 = vmatpush.msra.mxu0 %v876
  %v878 = vand.u32 %v87, 4294901760
  %v879 = vsub.f32 %v87, %v878
  %880 = vmatpush.msra.mxu0 %v879
  %v881 = vand.u32 %v85, 4294901760
  %v882 = vsub.f32 %v85, %v881
  %883 = vmatpush.msra.mxu0 %v882
  %v884 = vand.u32 %v83, 4294901760
  %v885 = vsub.f32 %v83, %v884
  %886 = vmatpush.msra.mxu0 %v885
  %v887 = vand.u32 %v81, 4294901760
  %v888 = vsub.f32 %v81, %v887
  %889 = vmatpush.msra.mxu0 %v888
  %v890 = vand.u32 %v79, 4294901760
  %v891 = vsub.f32 %v79, %v890
  %892 = vmatpush.msra.mxu0 %v891
  %v893 = vand.u32 %v77, 4294901760
  %v894 = vsub.f32 %v77, %v893
  %895 = vmatpush.msra.mxu0 %v894
  %v896 = vand.u32 %v75, 4294901760
  %v897 = vsub.f32 %v75, %v896
  %898 = vmatpush.msra.mxu0 %v897
  %v899 = vand.u32 %v73, 4294901760
  %v900 = vsub.f32 %v73, %v899
  %901 = vmatpush.msra.mxu0 %v900
  %v902 = vand.u32 %v71, 4294901760
  %v903 = vsub.f32 %v71, %v902
  %904 = vmatpush.msra.mxu0 %v903
  %v905 = vand.u32 %v69, 4294901760
  %v906 = vsub.f32 %v69, %v905
  %907 = vmatpush.msra.mxu0 %v906
  %v908 = vand.u32 %v67, 4294901760
  %v909 = vsub.f32 %v67, %v908
  %910 = vmatpush.msra.mxu0 %v909
  %v911 = vand.u32 %v65, 4294901760
  %v912 = vsub.f32 %v65, %v911
  %913 = vmatpush.msra.mxu0 %v912
  %v914 = vand.u32 %v63, 4294901760
  %v915 = vsub.f32 %v63, %v914
  %916 = vmatpush.msra.mxu0 %v915
  %v917 = vand.u32 %v61, 4294901760
  %v918 = vsub.f32 %v61, %v917
  %919 = vmatpush.msra.mxu0 %v918
  %v920 = vand.u32 %v59, 4294901760
  %v921 = vsub.f32 %v59, %v920
  %922 = vmatpush.msra.mxu0 %v921
  %v923 = vand.u32 %v12, 4294901760
  %v924 = vsub.f32 %v12, %v923
  %925 = vmatmul.f32.gmra.mxu0 %v924
  %v926 = vpop.f32.mrf.mxu0
  %v927 = vadd.f32 %v845, %v926
  %v928 = vand.u32 %v14, 4294901760
  %v929 = vsub.f32 %v14, %v928
  %930 = vmatmul.f32.gmra.mxu0 %v929
  %v931 = vpop.f32.mrf.mxu0
  %v932 = vadd.f32 %v849, %v931
  %v933 = vand.u32 %v16, 4294901760
  %v934 = vsub.f32 %v16, %v933
  %935 = vmatmul.f32.gmra.mxu0 %v934
  %v936 = vpop.f32.mrf.mxu0
  %v937 = vadd.f32 %v853, %v936
  %v938 = vand.u32 %v18, 4294901760
  %v939 = vsub.f32 %v18, %v938
  %940 = vmatmul.f32.gmra.mxu0 %v939
  %v941 = vpop.f32.mrf.mxu0
  %v942 = vadd.f32 %v857, %v941
  %v943 = vand.u32 %v20, 4294901760
  %v944 = vsub.f32 %v20, %v943
  %945 = vmatmul.f32.gmra.mxu0 %v944
  %v946 = vpop.f32.mrf.mxu0
  %v947 = vadd.f32 %v861, %v946
  %v948 = vand.u32 %v22, 4294901760
  %v949 = vsub.f32 %v22, %v948
  %950 = vmatmul.f32.gmra.mxu0 %v949
  %v951 = vpop.f32.mrf.mxu0
  %v952 = vadd.f32 %v865, %v951
  %v953 = vand.u32 %v24, 4294901760
  %v954 = vsub.f32 %v24, %v953
  %955 = vmatmul.f32.gmra.mxu0 %v954
  %v956 = vpop.f32.mrf.mxu0
  %v957 = vadd.f32 %v869, %v956
  %v958 = vand.u32 %v26, 4294901760
  %v959 = vsub.f32 %v26, %v958
  %960 = vmatmul.f32.gmra.mxu0 %v959
  %v961 = vpop.f32.mrf.mxu0
  %v962 = vadd.f32 %v873, %v961
  %963 = vdwg.mxu0
  %v964 = vand.u32 %v89, 4294901760
  %965 = vmatpush.msra.mxu0 %v964
  %v966 = vand.u32 %v87, 4294901760
  %967 = vmatpush.msra.mxu0 %v966
  %v968 = vand.u32 %v85, 4294901760
  %969 = vmatpush.msra.mxu0 %v968
  %v970 = vand.u32 %v83, 4294901760
  %971 = vmatpush.msra.mxu0 %v970
  %v972 = vand.u32 %v81, 4294901760
  %973 = vmatpush.msra.mxu0 %v972
  %v974 = vand.u32 %v79, 4294901760
  %975 = vmatpush.msra.mxu0 %v974
  %v976 = vand.u32 %v77, 4294901760
  %977 = vmatpush.msra.mxu0 %v976
  %v978 = vand.u32 %v75, 4294901760
  %979 = vmatpush.msra.mxu0 %v978
  %v980 = vand.u32 %v73, 4294901760
  %981 = vmatpush.msra.mxu0 %v980
  %v982 = vand.u32 %v71, 4294901760
  %983 = vmatpush.msra.mxu0 %v982
  %v984 = vand.u32 %v69, 4294901760
  %985 = vmatpush.msra.mxu0 %v984
  %v986 = vand.u32 %v67, 4294901760
  %987 = vmatpush.msra.mxu0 %v986
  %v988 = vand.u32 %v65, 4294901760
  %989 = vmatpush.msra.mxu0 %v988
  %v990 = vand.u32 %v63, 4294901760
  %991 = vmatpush.msra.mxu0 %v990
  %v992 = vand.u32 %v61, 4294901760
  %993 = vmatpush.msra.mxu0 %v992
  %v994 = vand.u32 %v59, 4294901760
  %995 = vmatpush.msra.mxu0 %v994
  %v996 = vand.u32 %v12, 4294901760
  %v997 = vsub.f32 %v12, %v996
  %v998 = vand.u32 %v997, 4294901760
  %999 = vmatmul.f32.gmra.mxu0 %v998
  %v1000 = vpop.f32.mrf.mxu0
  %v1001 = vadd.f32 %v927, %v1000
  %v1002 = vand.u32 %v14, 4294901760
  %v1003 = vsub.f32 %v14, %v1002
  %v1004 = vand.u32 %v1003, 4294901760
  %1005 = vmatmul.f32.gmra.mxu0 %v1004
  %v1006 = vpop.f32.mrf.mxu0
  %v1007 = vadd.f32 %v932, %v1006
  %v1008 = vand.u32 %v16, 4294901760
  %v1009 = vsub.f32 %v16, %v1008
  %v1010 = vand.u32 %v1009, 4294901760
  %1011 = vmatmul.f32.gmra.mxu0 %v1010
  %v1012 = vpop.f32.mrf.mxu0
  %v1013 = vadd.f32 %v937, %v1012
  %v1014 = vand.u32 %v18, 4294901760
  %v1015 = vsub.f32 %v18, %v1014
  %v1016 = vand.u32 %v1015, 4294901760
  %1017 = vmatmul.f32.gmra.mxu0 %v1016
  %v1018 = vpop.f32.mrf.mxu0
  %v1019 = vadd.f32 %v942, %v1018
  %v1020 = vand.u32 %v20, 4294901760
  %v1021 = vsub.f32 %v20, %v1020
  %v1022 = vand.u32 %v1021, 4294901760
  %1023 = vmatmul.f32.gmra.mxu0 %v1022
  %v1024 = vpop.f32.mrf.mxu0
  %v1025 = vadd.f32 %v947, %v1024
  %v1026 = vand.u32 %v22, 4294901760
  %v1027 = vsub.f32 %v22, %v1026
  %v1028 = vand.u32 %v1027, 4294901760
  %1029 = vmatmul.f32.gmra.mxu0 %v1028
  %v1030 = vpop.f32.mrf.mxu0
  %v1031 = vadd.f32 %v952, %v1030
  %v1032 = vand.u32 %v24, 4294901760
  %v1033 = vsub.f32 %v24, %v1032
  %v1034 = vand.u32 %v1033, 4294901760
  %1035 = vmatmul.f32.gmra.mxu0 %v1034
  %v1036 = vpop.f32.mrf.mxu0
  %v1037 = vadd.f32 %v957, %v1036
  %v1038 = vand.u32 %v26, 4294901760
  %v1039 = vsub.f32 %v26, %v1038
  %v1040 = vand.u32 %v1039, 4294901760
  %1041 = vmatmul.f32.gmra.mxu0 %v1040
  %v1042 = vpop.f32.mrf.mxu0
  %v1043 = vadd.f32 %v962, %v1042
  %1044 = vdwg.mxu0
  %v1045 = vand.u32 %v89, 4294901760
  %v1046 = vsub.f32 %v89, %v1045
  %v1047 = vand.u32 %v1046, 4294901760
  %1048 = vmatpush.msra.mxu0 %v1047
  %v1049 = vand.u32 %v87, 4294901760
  %v1050 = vsub.f32 %v87, %v1049
  %v1051 = vand.u32 %v1050, 4294901760
  %1052 = vmatpush.msra.mxu0 %v1051
  %v1053 = vand.u32 %v85, 4294901760
  %v1054 = vsub.f32 %v85, %v1053
  %v1055 = vand.u32 %v1054, 4294901760
  %1056 = vmatpush.msra.mxu0 %v1055
  %v1057 = vand.u32 %v83, 4294901760
  %v1058 = vsub.f32 %v83, %v1057
  %v1059 = vand.u32 %v1058, 4294901760
  %1060 = vmatpush.msra.mxu0 %v1059
  %v1061 = vand.u32 %v81, 4294901760
  %v1062 = vsub.f32 %v81, %v1061
  %v1063 = vand.u32 %v1062, 4294901760
  %1064 = vmatpush.msra.mxu0 %v1063
  %v1065 = vand.u32 %v79, 4294901760
  %v1066 = vsub.f32 %v79, %v1065
  %v1067 = vand.u32 %v1066, 4294901760
  %1068 = vmatpush.msra.mxu0 %v1067
  %v1069 = vand.u32 %v77, 4294901760
  %v1070 = vsub.f32 %v77, %v1069
  %v1071 = vand.u32 %v1070, 4294901760
  %1072 = vmatpush.msra.mxu0 %v1071
  %v1073 = vand.u32 %v75, 4294901760
  %v1074 = vsub.f32 %v75, %v1073
  %v1075 = vand.u32 %v1074, 4294901760
  %1076 = vmatpush.msra.mxu0 %v1075
  %v1077 = vand.u32 %v73, 4294901760
  %v1078 = vsub.f32 %v73, %v1077
  %v1079 = vand.u32 %v1078, 4294901760
  %1080 = vmatpush.msra.mxu0 %v1079
  %v1081 = vand.u32 %v71, 4294901760
  %v1082 = vsub.f32 %v71, %v1081
  %v1083 = vand.u32 %v1082, 4294901760
  %1084 = vmatpush.msra.mxu0 %v1083
  %v1085 = vand.u32 %v69, 4294901760
  %v1086 = vsub.f32 %v69, %v1085
  %v1087 = vand.u32 %v1086, 4294901760
  %1088 = vmatpush.msra.mxu0 %v1087
  %v1089 = vand.u32 %v67, 4294901760
  %v1090 = vsub.f32 %v67, %v1089
  %v1091 = vand.u32 %v1090, 4294901760
  %1092 = vmatpush.msra.mxu0 %v1091
  %v1093 = vand.u32 %v65, 4294901760
  %v1094 = vsub.f32 %v65, %v1093
  %v1095 = vand.u32 %v1094, 4294901760
  %1096 = vmatpush.msra.mxu0 %v1095
  %v1097 = vand.u32 %v63, 4294901760
  %v1098 = vsub.f32 %v63, %v1097
  %v1099 = vand.u32 %v1098, 4294901760
  %1100 = vmatpush.msra.mxu0 %v1099
  %v1101 = vand.u32 %v61, 4294901760
  %v1102 = vsub.f32 %v61, %v1101
  %v1103 = vand.u32 %v1102, 4294901760
  %1104 = vmatpush.msra.mxu0 %v1103
  %v1105 = vand.u32 %v59, 4294901760
  %v1106 = vsub.f32 %v59, %v1105
  %v1107 = vand.u32 %v1106, 4294901760
  %1108 = vmatpush.msra.mxu0 %v1107
  %v1109 = vand.u32 %v12, 4294901760
  %1110 = vmatmul.f32.gmra.mxu0 %v1109
  %v1111 = vpop.f32.mrf.mxu0
  %v1112 = vadd.f32 %v1001, %v1111
  %v1113 = vand.u32 %v14, 4294901760
  %1114 = vmatmul.f32.gmra.mxu0 %v1113
  %v1115 = vpop.f32.mrf.mxu0
  %v1116 = vadd.f32 %v1007, %v1115
  %v1117 = vand.u32 %v16, 4294901760
  %1118 = vmatmul.f32.gmra.mxu0 %v1117
  %v1119 = vpop.f32.mrf.mxu0
  %v1120 = vadd.f32 %v1013, %v1119
  %v1121 = vand.u32 %v18, 4294901760
  %1122 = vmatmul.f32.gmra.mxu0 %v1121
  %v1123 = vpop.f32.mrf.mxu0
  %v1124 = vadd.f32 %v1019, %v1123
  %v1125 = vand.u32 %v20, 4294901760
  %1126 = vmatmul.f32.gmra.mxu0 %v1125
  %v1127 = vpop.f32.mrf.mxu0
  %v1128 = vadd.f32 %v1025, %v1127
  %v1129 = vand.u32 %v22, 4294901760
  %1130 = vmatmul.f32.gmra.mxu0 %v1129
  %v1131 = vpop.f32.mrf.mxu0
  %v1132 = vadd.f32 %v1031, %v1131
  %v1133 = vand.u32 %v24, 4294901760
  %1134 = vmatmul.f32.gmra.mxu0 %v1133
  %v1135 = vpop.f32.mrf.mxu0
  %v1136 = vadd.f32 %v1037, %v1135
  %v1137 = vand.u32 %v26, 4294901760
  %1138 = vmatmul.f32.gmra.mxu0 %v1137
  %v1139 = vpop.f32.mrf.mxu0
  %v1140 = vadd.f32 %v1043, %v1139
  %1141 = vdwg.mxu0
  %v1142 = vand.u32 %v89, 4294901760
  %1143 = vmatpush.msra.mxu0 %v1142
  %v1144 = vand.u32 %v87, 4294901760
  %1145 = vmatpush.msra.mxu0 %v1144
  %v1146 = vand.u32 %v85, 4294901760
  %1147 = vmatpush.msra.mxu0 %v1146
  %v1148 = vand.u32 %v83, 4294901760
  %1149 = vmatpush.msra.mxu0 %v1148
  %v1150 = vand.u32 %v81, 4294901760
  %1151 = vmatpush.msra.mxu0 %v1150
  %v1152 = vand.u32 %v79, 4294901760
  %1153 = vmatpush.msra.mxu0 %v1152
  %v1154 = vand.u32 %v77, 4294901760
  %1155 = vmatpush.msra.mxu0 %v1154
  %v1156 = vand.u32 %v75, 4294901760
  %1157 = vmatpush.msra.mxu0 %v1156
  %v1158 = vand.u32 %v73, 4294901760
  %1159 = vmatpush.msra.mxu0 %v1158
  %v1160 = vand.u32 %v71, 4294901760
  %1161 = vmatpush.msra.mxu0 %v1160
  %v1162 = vand.u32 %v69, 4294901760
  %1163 = vmatpush.msra.mxu0 %v1162
  %v1164 = vand.u32 %v67, 4294901760
  %1165 = vmatpush.msra.mxu0 %v1164
  %v1166 = vand.u32 %v65, 4294901760
  %1167 = vmatpush.msra.mxu0 %v1166
  %v1168 = vand.u32 %v63, 4294901760
  %1169 = vmatpush.msra.mxu0 %v1168
  %v1170 = vand.u32 %v61, 4294901760
  %1171 = vmatpush.msra.mxu0 %v1170
  %v1172 = vand.u32 %v59, 4294901760
  %1173 = vmatpush.msra.mxu0 %v1172
  %v1174 = vand.u32 %v12, 4294901760
  %1175 = vmatmul.f32.gmra.mxu0 %v1174
  %v1176 = vpop.f32.mrf.mxu0
  %v1177 = vadd.f32 %v1112, %v1176
  %v1178 = vand.u32 %v14, 4294901760
  %1179 = vmatmul.f32.gmra.mxu0 %v1178
  %v1180 = vpop.f32.mrf.mxu0
  %v1181 = vadd.f32 %v1116, %v1180
  %v1182 = vand.u32 %v16, 4294901760
  %1183 = vmatmul.f32.gmra.mxu0 %v1182
  %v1184 = vpop.f32.mrf.mxu0
  %v1185 = vadd.f32 %v1120, %v1184
  %v1186 = vand.u32 %v18, 4294901760
  %1187 = vmatmul.f32.gmra.mxu0 %v1186
  %v1188 = vpop.f32.mrf.mxu0
  %v1189 = vadd.f32 %v1124, %v1188
  %v1190 = vand.u32 %v20, 4294901760
  %1191 = vmatmul.f32.gmra.mxu0 %v1190
  %v1192 = vpop.f32.mrf.mxu0
  %v1193 = vadd.f32 %v1128, %v1192
  %v1194 = vand.u32 %v22, 4294901760
  %1195 = vmatmul.f32.gmra.mxu0 %v1194
  %v1196 = vpop.f32.mrf.mxu0
  %v1197 = vadd.f32 %v1132, %v1196
  %v1198 = vand.u32 %v24, 4294901760
  %1199 = vmatmul.f32.gmra.mxu0 %v1198
  %v1200 = vpop.f32.mrf.mxu0
  %v1201 = vadd.f32 %v1136, %v1200
  %v1202 = vand.u32 %v26, 4294901760
  %1203 = vmatmul.f32.gmra.mxu0 %v1202
  %v1204 = vpop.f32.mrf.mxu0
  %v1205 = vadd.f32 %v1140, %v1204
  %1206 = vdwg.mxu0
  %v1207 = vand.u32 %v58, 4294901760
  %1208 = vmatpush.msra.mxu0 %v1207
  %v1209 = vand.u32 %v56, 4294901760
  %1210 = vmatpush.msra.mxu0 %v1209
  %v1211 = vand.u32 %v54, 4294901760
  %1212 = vmatpush.msra.mxu0 %v1211
  %v1213 = vand.u32 %v52, 4294901760
  %1214 = vmatpush.msra.mxu0 %v1213
  %v1215 = vand.u32 %v50, 4294901760
  %1216 = vmatpush.msra.mxu0 %v1215
  %v1217 = vand.u32 %v48, 4294901760
  %1218 = vmatpush.msra.mxu0 %v1217
  %v1219 = vand.u32 %v46, 4294901760
  %1220 = vmatpush.msra.mxu0 %v1219
  %v1221 = vand.u32 %v44, 4294901760
  %1222 = vmatpush.msra.mxu0 %v1221
  %v1223 = vand.u32 %v42, 4294901760
  %1224 = vmatpush.msra.mxu0 %v1223
  %v1225 = vand.u32 %v40, 4294901760
  %1226 = vmatpush.msra.mxu0 %v1225
  %v1227 = vand.u32 %v38, 4294901760
  %1228 = vmatpush.msra.mxu0 %v1227
  %v1229 = vand.u32 %v36, 4294901760
  %1230 = vmatpush.msra.mxu0 %v1229
  %v1231 = vand.u32 %v34, 4294901760
  %1232 = vmatpush.msra.mxu0 %v1231
  %v1233 = vand.u32 %v32, 4294901760
  %1234 = vmatpush.msra.mxu0 %v1233
  %v1235 = vand.u32 %v30, 4294901760
  %1236 = vmatpush.msra.mxu0 %v1235
  %v1237 = vand.u32 %v28, 4294901760
  %1238 = vmatpush.msra.mxu0 %v1237
  %v1239 = vand.u32 %v11, 4294901760
  %v1240 = vsub.f32 %v11, %v1239
  %v1241 = vand.u32 %v1240, 4294901760
  %v1242 = vsub.f32 %v1240, %v1241
  %v1243 = vand.u32 %v1242, 4294901760
  %1244 = vmatmul.f32.gmra.mxu0 %v1243
  %v1245 = vpop.f32.mrf.mxu0
  %v1246 = vadd.f32 0.0, %v1245
  %v1247 = vand.u32 %v13, 4294901760
  %v1248 = vsub.f32 %v13, %v1247
  %v1249 = vand.u32 %v1248, 4294901760
  %v1250 = vsub.f32 %v1248, %v1249
  %v1251 = vand.u32 %v1250, 4294901760
  %1252 = vmatmul.f32.gmra.mxu0 %v1251
  %v1253 = vpop.f32.mrf.mxu0
  %v1254 = vadd.f32 0.0, %v1253
  %v1255 = vand.u32 %v15, 4294901760
  %v1256 = vsub.f32 %v15, %v1255
  %v1257 = vand.u32 %v1256, 4294901760
  %v1258 = vsub.f32 %v1256, %v1257
  %v1259 = vand.u32 %v1258, 4294901760
  %1260 = vmatmul.f32.gmra.mxu0 %v1259
  %v1261 = vpop.f32.mrf.mxu0
  %v1262 = vadd.f32 0.0, %v1261
  %v1263 = vand.u32 %v17, 4294901760
  %v1264 = vsub.f32 %v17, %v1263
  %v1265 = vand.u32 %v1264, 4294901760
  %v1266 = vsub.f32 %v1264, %v1265
  %v1267 = vand.u32 %v1266, 4294901760
  %1268 = vmatmul.f32.gmra.mxu0 %v1267
  %v1269 = vpop.f32.mrf.mxu0
  %v1270 = vadd.f32 0.0, %v1269
  %v1271 = vand.u32 %v19, 4294901760
  %v1272 = vsub.f32 %v19, %v1271
  %v1273 = vand.u32 %v1272, 4294901760
  %v1274 = vsub.f32 %v1272, %v1273
  %v1275 = vand.u32 %v1274, 4294901760
  %1276 = vmatmul.f32.gmra.mxu0 %v1275
  %v1277 = vpop.f32.mrf.mxu0
  %v1278 = vadd.f32 0.0, %v1277
  %v1279 = vand.u32 %v21, 4294901760
  %v1280 = vsub.f32 %v21, %v1279
  %v1281 = vand.u32 %v1280, 4294901760
  %v1282 = vsub.f32 %v1280, %v1281
  %v1283 = vand.u32 %v1282, 4294901760
  %1284 = vmatmul.f32.gmra.mxu0 %v1283
  %v1285 = vpop.f32.mrf.mxu0
  %v1286 = vadd.f32 0.0, %v1285
  %v1287 = vand.u32 %v23, 4294901760
  %v1288 = vsub.f32 %v23, %v1287
  %v1289 = vand.u32 %v1288, 4294901760
  %v1290 = vsub.f32 %v1288, %v1289
  %v1291 = vand.u32 %v1290, 4294901760
  %1292 = vmatmul.f32.gmra.mxu0 %v1291
  %v1293 = vpop.f32.mrf.mxu0
  %v1294 = vadd.f32 0.0, %v1293
  %v1295 = vand.u32 %v25, 4294901760
  %v1296 = vsub.f32 %v25, %v1295
  %v1297 = vand.u32 %v1296, 4294901760
  %v1298 = vsub.f32 %v1296, %v1297
  %v1299 = vand.u32 %v1298, 4294901760
  %1300 = vmatmul.f32.gmra.mxu0 %v1299
  %v1301 = vpop.f32.mrf.mxu0
  %v1302 = vadd.f32 0.0, %v1301
  %1303 = vdwg.mxu0
  %v1304 = vand.u32 %v58, 4294901760
  %v1305 = vsub.f32 %v58, %v1304
  %v1306 = vand.u32 %v1305, 4294901760
  %v1307 = vsub.f32 %v1305, %v1306
  %v1308 = vand.u32 %v1307, 4294901760
  %1309 = vmatpush.msra.mxu0 %v1308
  %v1310 = vand.u32 %v56, 4294901760
  %v1311 = vsub.f32 %v56, %v1310
  %v1312 = vand.u32 %v1311, 4294901760
  %v1313 = vsub.f32 %v1311, %v1312
  %v1314 = vand.u32 %v1313, 4294901760
  %1315 = vmatpush.msra.mxu0 %v1314
  %v1316 = vand.u32 %v54, 4294901760
  %v1317 = vsub.f32 %v54, %v1316
  %v1318 = vand.u32 %v1317, 4294901760
  %v1319 = vsub.f32 %v1317, %v1318
  %v1320 = vand.u32 %v1319, 4294901760
  %1321 = vmatpush.msra.mxu0 %v1320
  %v1322 = vand.u32 %v52, 4294901760
  %v1323 = vsub.f32 %v52, %v1322
  %v1324 = vand.u32 %v1323, 4294901760
  %v1325 = vsub.f32 %v1323, %v1324
  %v1326 = vand.u32 %v1325, 4294901760
  %1327 = vmatpush.msra.mxu0 %v1326
  %v1328 = vand.u32 %v50, 4294901760
  %v1329 = vsub.f32 %v50, %v1328
  %v1330 = vand.u32 %v1329, 4294901760
  %v1331 = vsub.f32 %v1329, %v1330
  %v1332 = vand.u32 %v1331, 4294901760
  %1333 = vmatpush.msra.mxu0 %v1332
  %v1334 = vand.u32 %v48, 4294901760
  %v1335 = vsub.f32 %v48, %v1334
  %v1336 = vand.u32 %v1335, 4294901760
  %v1337 = vsub.f32 %v1335, %v1336
  %v1338 = vand.u32 %v1337, 4294901760
  %1339 = vmatpush.msra.mxu0 %v1338
  %v1340 = vand.u32 %v46, 4294901760
  %v1341 = vsub.f32 %v46, %v1340
  %v1342 = vand.u32 %v1341, 4294901760
  %v1343 = vsub.f32 %v1341, %v1342
  %v1344 = vand.u32 %v1343, 4294901760
  %1345 = vmatpush.msra.mxu0 %v1344
  %v1346 = vand.u32 %v44, 4294901760
  %v1347 = vsub.f32 %v44, %v1346
  %v1348 = vand.u32 %v1347, 4294901760
  %v1349 = vsub.f32 %v1347, %v1348
  %v1350 = vand.u32 %v1349, 4294901760
  %1351 = vmatpush.msra.mxu0 %v1350
  %v1352 = vand.u32 %v42, 4294901760
  %v1353 = vsub.f32 %v42, %v1352
  %v1354 = vand.u32 %v1353, 4294901760
  %v1355 = vsub.f32 %v1353, %v1354
  %v1356 = vand.u32 %v1355, 4294901760
  %1357 = vmatpush.msra.mxu0 %v1356
  %v1358 = vand.u32 %v40, 4294901760
  %v1359 = vsub.f32 %v40, %v1358
  %v1360 = vand.u32 %v1359, 4294901760
  %v1361 = vsub.f32 %v1359, %v1360
  %v1362 = vand.u32 %v1361, 4294901760
  %1363 = vmatpush.msra.mxu0 %v1362
  %v1364 = vand.u32 %v38, 4294901760
  %v1365 = vsub.f32 %v38, %v1364
  %v1366 = vand.u32 %v1365, 4294901760
  %v1367 = vsub.f32 %v1365, %v1366
  %v1368 = vand.u32 %v1367, 4294901760
  %1369 = vmatpush.msra.mxu0 %v1368
  %v1370 = vand.u32 %v36, 4294901760
  %v1371 = vsub.f32 %v36, %v1370
  %v1372 = vand.u32 %v1371, 4294901760
  %v1373 = vsub.f32 %v1371, %v1372
  %v1374 = vand.u32 %v1373, 4294901760
  %1375 = vmatpush.msra.mxu0 %v1374
  %v1376 = vand.u32 %v34, 4294901760
  %v1377 = vsub.f32 %v34, %v1376
  %v1378 = vand.u32 %v1377, 4294901760
  %v1379 = vsub.f32 %v1377, %v1378
  %v1380 = vand.u32 %v1379, 4294901760
  %1381 = vmatpush.msra.mxu0 %v1380
  %v1382 = vand.u32 %v32, 4294901760
  %v1383 = vsub.f32 %v32, %v1382
  %v1384 = vand.u32 %v1383, 4294901760
  %v1385 = vsub.f32 %v1383, %v1384
  %v1386 = vand.u32 %v1385, 4294901760
  %1387 = vmatpush.msra.mxu0 %v1386
  %v1388 = vand.u32 %v30, 4294901760
  %v1389 = vsub.f32 %v30, %v1388
  %v1390 = vand.u32 %v1389, 4294901760
  %v1391 = vsub.f32 %v1389, %v1390
  %v1392 = vand.u32 %v1391, 4294901760
  %1393 = vmatpush.msra.mxu0 %v1392
  %v1394 = vand.u32 %v28, 4294901760
  %v1395 = vsub.f32 %v28, %v1394
  %v1396 = vand.u32 %v1395, 4294901760
  %v1397 = vsub.f32 %v1395, %v1396
  %v1398 = vand.u32 %v1397, 4294901760
  %1399 = vmatpush.msra.mxu0 %v1398
  %v1400 = vand.u32 %v11, 4294901760
  %1401 = vmatmul.f32.gmra.mxu0 %v1400
  %v1402 = vpop.f32.mrf.mxu0
  %v1403 = vadd.f32 %v1246, %v1402
  %v1404 = vand.u32 %v13, 4294901760
  %1405 = vmatmul.f32.gmra.mxu0 %v1404
  %v1406 = vpop.f32.mrf.mxu0
  %v1407 = vadd.f32 %v1254, %v1406
  %v1408 = vand.u32 %v15, 4294901760
  %1409 = vmatmul.f32.gmra.mxu0 %v1408
  %v1410 = vpop.f32.mrf.mxu0
  %v1411 = vadd.f32 %v1262, %v1410
  %v1412 = vand.u32 %v17, 4294901760
  %1413 = vmatmul.f32.gmra.mxu0 %v1412
  %v1414 = vpop.f32.mrf.mxu0
  %v1415 = vadd.f32 %v1270, %v1414
  %v1416 = vand.u32 %v19, 4294901760
  %1417 = vmatmul.f32.gmra.mxu0 %v1416
  %v1418 = vpop.f32.mrf.mxu0
  %v1419 = vadd.f32 %v1278, %v1418
  %v1420 = vand.u32 %v21, 4294901760
  %1421 = vmatmul.f32.gmra.mxu0 %v1420
  %v1422 = vpop.f32.mrf.mxu0
  %v1423 = vadd.f32 %v1286, %v1422
  %v1424 = vand.u32 %v23, 4294901760
  %1425 = vmatmul.f32.gmra.mxu0 %v1424
  %v1426 = vpop.f32.mrf.mxu0
  %v1427 = vadd.f32 %v1294, %v1426
  %v1428 = vand.u32 %v25, 4294901760
  %1429 = vmatmul.f32.gmra.mxu0 %v1428
  %v1430 = vpop.f32.mrf.mxu0
  %v1431 = vadd.f32 %v1302, %v1430
  %1432 = vdwg.mxu0
  %v1433 = vand.u32 %v58, 4294901760
  %v1434 = vsub.f32 %v58, %v1433
  %1435 = vmatpush.msra.mxu0 %v1434
  %v1436 = vand.u32 %v56, 4294901760
  %v1437 = vsub.f32 %v56, %v1436
  %1438 = vmatpush.msra.mxu0 %v1437
  %v1439 = vand.u32 %v54, 4294901760
  %v1440 = vsub.f32 %v54, %v1439
  %1441 = vmatpush.msra.mxu0 %v1440
  %v1442 = vand.u32 %v52, 4294901760
  %v1443 = vsub.f32 %v52, %v1442
  %1444 = vmatpush.msra.mxu0 %v1443
  %v1445 = vand.u32 %v50, 4294901760
  %v1446 = vsub.f32 %v50, %v1445
  %1447 = vmatpush.msra.mxu0 %v1446
  %v1448 = vand.u32 %v48, 4294901760
  %v1449 = vsub.f32 %v48, %v1448
  %1450 = vmatpush.msra.mxu0 %v1449
  %v1451 = vand.u32 %v46, 4294901760
  %v1452 = vsub.f32 %v46, %v1451
  %1453 = vmatpush.msra.mxu0 %v1452
  %v1454 = vand.u32 %v44, 4294901760
  %v1455 = vsub.f32 %v44, %v1454
  %1456 = vmatpush.msra.mxu0 %v1455
  %v1457 = vand.u32 %v42, 4294901760
  %v1458 = vsub.f32 %v42, %v1457
  %1459 = vmatpush.msra.mxu0 %v1458
  %v1460 = vand.u32 %v40, 4294901760
  %v1461 = vsub.f32 %v40, %v1460
  %1462 = vmatpush.msra.mxu0 %v1461
  %v1463 = vand.u32 %v38, 4294901760
  %v1464 = vsub.f32 %v38, %v1463
  %1465 = vmatpush.msra.mxu0 %v1464
  %v1466 = vand.u32 %v36, 4294901760
  %v1467 = vsub.f32 %v36, %v1466
  %1468 = vmatpush.msra.mxu0 %v1467
  %v1469 = vand.u32 %v34, 4294901760
  %v1470 = vsub.f32 %v34, %v1469
  %1471 = vmatpush.msra.mxu0 %v1470
  %v1472 = vand.u32 %v32, 4294901760
  %v1473 = vsub.f32 %v32, %v1472
  %1474 = vmatpush.msra.mxu0 %v1473
  %v1475 = vand.u32 %v30, 4294901760
  %v1476 = vsub.f32 %v30, %v1475
  %1477 = vmatpush.msra.mxu0 %v1476
  %v1478 = vand.u32 %v28, 4294901760
  %v1479 = vsub.f32 %v28, %v1478
  %1480 = vmatpush.msra.mxu0 %v1479
  %v1481 = vand.u32 %v11, 4294901760
  %v1482 = vsub.f32 %v11, %v1481
  %1483 = vmatmul.f32.gmra.mxu0 %v1482
  %v1484 = vpop.f32.mrf.mxu0
  %v1485 = vadd.f32 %v1403, %v1484
  %v1486 = vand.u32 %v13, 4294901760
  %v1487 = vsub.f32 %v13, %v1486
  %1488 = vmatmul.f32.gmra.mxu0 %v1487
  %v1489 = vpop.f32.mrf.mxu0
  %v1490 = vadd.f32 %v1407, %v1489
  %v1491 = vand.u32 %v15, 4294901760
  %v1492 = vsub.f32 %v15, %v1491
  %1493 = vmatmul.f32.gmra.mxu0 %v1492
  %v1494 = vpop.f32.mrf.mxu0
  %v1495 = vadd.f32 %v1411, %v1494
  %v1496 = vand.u32 %v17, 4294901760
  %v1497 = vsub.f32 %v17, %v1496
  %1498 = vmatmul.f32.gmra.mxu0 %v1497
  %v1499 = vpop.f32.mrf.mxu0
  %v1500 = vadd.f32 %v1415, %v1499
  %v1501 = vand.u32 %v19, 4294901760
  %v1502 = vsub.f32 %v19, %v1501
  %1503 = vmatmul.f32.gmra.mxu0 %v1502
  %v1504 = vpop.f32.mrf.mxu0
  %v1505 = vadd.f32 %v1419, %v1504
  %v1506 = vand.u32 %v21, 4294901760
  %v1507 = vsub.f32 %v21, %v1506
  %1508 = vmatmul.f32.gmra.mxu0 %v1507
  %v1509 = vpop.f32.mrf.mxu0
  %v1510 = vadd.f32 %v1423, %v1509
  %v1511 = vand.u32 %v23, 4294901760
  %v1512 = vsub.f32 %v23, %v1511
  %1513 = vmatmul.f32.gmra.mxu0 %v1512
  %v1514 = vpop.f32.mrf.mxu0
  %v1515 = vadd.f32 %v1427, %v1514
  %v1516 = vand.u32 %v25, 4294901760
  %v1517 = vsub.f32 %v25, %v1516
  %1518 = vmatmul.f32.gmra.mxu0 %v1517
  %v1519 = vpop.f32.mrf.mxu0
  %v1520 = vadd.f32 %v1431, %v1519
  %1521 = vdwg.mxu0
  %v1522 = vand.u32 %v58, 4294901760
  %1523 = vmatpush.msra.mxu0 %v1522
  %v1524 = vand.u32 %v56, 4294901760
  %1525 = vmatpush.msra.mxu0 %v1524
  %v1526 = vand.u32 %v54, 4294901760
  %1527 = vmatpush.msra.mxu0 %v1526
  %v1528 = vand.u32 %v52, 4294901760
  %1529 = vmatpush.msra.mxu0 %v1528
  %v1530 = vand.u32 %v50, 4294901760
  %1531 = vmatpush.msra.mxu0 %v1530
  %v1532 = vand.u32 %v48, 4294901760
  %1533 = vmatpush.msra.mxu0 %v1532
  %v1534 = vand.u32 %v46, 4294901760
  %1535 = vmatpush.msra.mxu0 %v1534
  %v1536 = vand.u32 %v44, 4294901760
  %1537 = vmatpush.msra.mxu0 %v1536
  %v1538 = vand.u32 %v42, 4294901760
  %1539 = vmatpush.msra.mxu0 %v1538
  %v1540 = vand.u32 %v40, 4294901760
  %1541 = vmatpush.msra.mxu0 %v1540
  %v1542 = vand.u32 %v38, 4294901760
  %1543 = vmatpush.msra.mxu0 %v1542
  %v1544 = vand.u32 %v36, 4294901760
  %1545 = vmatpush.msra.mxu0 %v1544
  %v1546 = vand.u32 %v34, 4294901760
  %1547 = vmatpush.msra.mxu0 %v1546
  %v1548 = vand.u32 %v32, 4294901760
  %1549 = vmatpush.msra.mxu0 %v1548
  %v1550 = vand.u32 %v30, 4294901760
  %1551 = vmatpush.msra.mxu0 %v1550
  %v1552 = vand.u32 %v28, 4294901760
  %1553 = vmatpush.msra.mxu0 %v1552
  %v1554 = vand.u32 %v11, 4294901760
  %v1555 = vsub.f32 %v11, %v1554
  %v1556 = vand.u32 %v1555, 4294901760
  %1557 = vmatmul.f32.gmra.mxu0 %v1556
  %v1558 = vpop.f32.mrf.mxu0
  %v1559 = vadd.f32 %v1485, %v1558
  %v1560 = vand.u32 %v13, 4294901760
  %v1561 = vsub.f32 %v13, %v1560
  %v1562 = vand.u32 %v1561, 4294901760
  %1563 = vmatmul.f32.gmra.mxu0 %v1562
  %v1564 = vpop.f32.mrf.mxu0
  %v1565 = vadd.f32 %v1490, %v1564
  %v1566 = vand.u32 %v15, 4294901760
  %v1567 = vsub.f32 %v15, %v1566
  %v1568 = vand.u32 %v1567, 4294901760
  %1569 = vmatmul.f32.gmra.mxu0 %v1568
  %v1570 = vpop.f32.mrf.mxu0
  %v1571 = vadd.f32 %v1495, %v1570
  %v1572 = vand.u32 %v17, 4294901760
  %v1573 = vsub.f32 %v17, %v1572
  %v1574 = vand.u32 %v1573, 4294901760
  %1575 = vmatmul.f32.gmra.mxu0 %v1574
  %v1576 = vpop.f32.mrf.mxu0
  %v1577 = vadd.f32 %v1500, %v1576
  %v1578 = vand.u32 %v19, 4294901760
  %v1579 = vsub.f32 %v19, %v1578
  %v1580 = vand.u32 %v1579, 4294901760
  %1581 = vmatmul.f32.gmra.mxu0 %v1580
  %v1582 = vpop.f32.mrf.mxu0
  %v1583 = vadd.f32 %v1505, %v1582
  %v1584 = vand.u32 %v21, 4294901760
  %v1585 = vsub.f32 %v21, %v1584
  %v1586 = vand.u32 %v1585, 4294901760
  %1587 = vmatmul.f32.gmra.mxu0 %v1586
  %v1588 = vpop.f32.mrf.mxu0
  %v1589 = vadd.f32 %v1510, %v1588
  %v1590 = vand.u32 %v23, 4294901760
  %v1591 = vsub.f32 %v23, %v1590
  %v1592 = vand.u32 %v1591, 4294901760
  %1593 = vmatmul.f32.gmra.mxu0 %v1592
  %v1594 = vpop.f32.mrf.mxu0
  %v1595 = vadd.f32 %v1515, %v1594
  %v1596 = vand.u32 %v25, 4294901760
  %v1597 = vsub.f32 %v25, %v1596
  %v1598 = vand.u32 %v1597, 4294901760
  %1599 = vmatmul.f32.gmra.mxu0 %v1598
  %v1600 = vpop.f32.mrf.mxu0
  %v1601 = vadd.f32 %v1520, %v1600
  %1602 = vdwg.mxu0
  %v1603 = vand.u32 %v58, 4294901760
  %v1604 = vsub.f32 %v58, %v1603
  %v1605 = vand.u32 %v1604, 4294901760
  %1606 = vmatpush.msra.mxu0 %v1605
  %v1607 = vand.u32 %v56, 4294901760
  %v1608 = vsub.f32 %v56, %v1607
  %v1609 = vand.u32 %v1608, 4294901760
  %1610 = vmatpush.msra.mxu0 %v1609
  %v1611 = vand.u32 %v54, 4294901760
  %v1612 = vsub.f32 %v54, %v1611
  %v1613 = vand.u32 %v1612, 4294901760
  %1614 = vmatpush.msra.mxu0 %v1613
  %v1615 = vand.u32 %v52, 4294901760
  %v1616 = vsub.f32 %v52, %v1615
  %v1617 = vand.u32 %v1616, 4294901760
  %1618 = vmatpush.msra.mxu0 %v1617
  %v1619 = vand.u32 %v50, 4294901760
  %v1620 = vsub.f32 %v50, %v1619
  %v1621 = vand.u32 %v1620, 4294901760
  %1622 = vmatpush.msra.mxu0 %v1621
  %v1623 = vand.u32 %v48, 4294901760
  %v1624 = vsub.f32 %v48, %v1623
  %v1625 = vand.u32 %v1624, 4294901760
  %1626 = vmatpush.msra.mxu0 %v1625
  %v1627 = vand.u32 %v46, 4294901760
  %v1628 = vsub.f32 %v46, %v1627
  %v1629 = vand.u32 %v1628, 4294901760
  %1630 = vmatpush.msra.mxu0 %v1629
  %v1631 = vand.u32 %v44, 4294901760
  %v1632 = vsub.f32 %v44, %v1631
  %v1633 = vand.u32 %v1632, 4294901760
  %1634 = vmatpush.msra.mxu0 %v1633
  %v1635 = vand.u32 %v42, 4294901760
  %v1636 = vsub.f32 %v42, %v1635
  %v1637 = vand.u32 %v1636, 4294901760
  %1638 = vmatpush.msra.mxu0 %v1637
  %v1639 = vand.u32 %v40, 4294901760
  %v1640 = vsub.f32 %v40, %v1639
  %v1641 = vand.u32 %v1640, 4294901760
  %1642 = vmatpush.msra.mxu0 %v1641
  %v1643 = vand.u32 %v38, 4294901760
  %v1644 = vsub.f32 %v38, %v1643
  %v1645 = vand.u32 %v1644, 4294901760
  %1646 = vmatpush.msra.mxu0 %v1645
  %v1647 = vand.u32 %v36, 4294901760
  %v1648 = vsub.f32 %v36, %v1647
  %v1649 = vand.u32 %v1648, 4294901760
  %1650 = vmatpush.msra.mxu0 %v1649
  %v1651 = vand.u32 %v34, 4294901760
  %v1652 = vsub.f32 %v34, %v1651
  %v1653 = vand.u32 %v1652, 4294901760
  %1654 = vmatpush.msra.mxu0 %v1653
  %v1655 = vand.u32 %v32, 4294901760
  %v1656 = vsub.f32 %v32, %v1655
  %v1657 = vand.u32 %v1656, 4294901760
  %1658 = vmatpush.msra.mxu0 %v1657
  %v1659 = vand.u32 %v30, 4294901760
  %v1660 = vsub.f32 %v30, %v1659
  %v1661 = vand.u32 %v1660, 4294901760
  %1662 = vmatpush.msra.mxu0 %v1661
  %v1663 = vand.u32 %v28, 4294901760
  %v1664 = vsub.f32 %v28, %v1663
  %v1665 = vand.u32 %v1664, 4294901760
  %1666 = vmatpush.msra.mxu0 %v1665
  %v1667 = vand.u32 %v11, 4294901760
  %1668 = vmatmul.f32.gmra.mxu0 %v1667
  %v1669 = vpop.f32.mrf.mxu0
  %v1670 = vadd.f32 %v1559, %v1669
  %v1671 = vand.u32 %v13, 4294901760
  %1672 = vmatmul.f32.gmra.mxu0 %v1671
  %v1673 = vpop.f32.mrf.mxu0
  %v1674 = vadd.f32 %v1565, %v1673
  %v1675 = vand.u32 %v15, 4294901760
  %1676 = vmatmul.f32.gmra.mxu0 %v1675
  %v1677 = vpop.f32.mrf.mxu0
  %v1678 = vadd.f32 %v1571, %v1677
  %v1679 = vand.u32 %v17, 4294901760
  %1680 = vmatmul.f32.gmra.mxu0 %v1679
  %v1681 = vpop.f32.mrf.mxu0
  %v1682 = vadd.f32 %v1577, %v1681
  %v1683 = vand.u32 %v19, 4294901760
  %1684 = vmatmul.f32.gmra.mxu0 %v1683
  %v1685 = vpop.f32.mrf.mxu0
  %v1686 = vadd.f32 %v1583, %v1685
  %v1687 = vand.u32 %v21, 4294901760
  %1688 = vmatmul.f32.gmra.mxu0 %v1687
  %v1689 = vpop.f32.mrf.mxu0
  %v1690 = vadd.f32 %v1589, %v1689
  %v1691 = vand.u32 %v23, 4294901760
  %1692 = vmatmul.f32.gmra.mxu0 %v1691
  %v1693 = vpop.f32.mrf.mxu0
  %v1694 = vadd.f32 %v1595, %v1693
  %v1695 = vand.u32 %v25, 4294901760
  %1696 = vmatmul.f32.gmra.mxu0 %v1695
  %v1697 = vpop.f32.mrf.mxu0
  %v1698 = vadd.f32 %v1601, %v1697
  %1699 = vdwg.mxu0
  %v1700 = vand.u32 %v58, 4294901760
  %1701 = vmatpush.msra.mxu0 %v1700
  %v1702 = vand.u32 %v56, 4294901760
  %1703 = vmatpush.msra.mxu0 %v1702
  %v1704 = vand.u32 %v54, 4294901760
  %1705 = vmatpush.msra.mxu0 %v1704
  %v1706 = vand.u32 %v52, 4294901760
  %1707 = vmatpush.msra.mxu0 %v1706
  %v1708 = vand.u32 %v50, 4294901760
  %1709 = vmatpush.msra.mxu0 %v1708
  %v1710 = vand.u32 %v48, 4294901760
  %1711 = vmatpush.msra.mxu0 %v1710
  %v1712 = vand.u32 %v46, 4294901760
  %1713 = vmatpush.msra.mxu0 %v1712
  %v1714 = vand.u32 %v44, 4294901760
  %1715 = vmatpush.msra.mxu0 %v1714
  %v1716 = vand.u32 %v42, 4294901760
  %1717 = vmatpush.msra.mxu0 %v1716
  %v1718 = vand.u32 %v40, 4294901760
  %1719 = vmatpush.msra.mxu0 %v1718
  %v1720 = vand.u32 %v38, 4294901760
  %1721 = vmatpush.msra.mxu0 %v1720
  %v1722 = vand.u32 %v36, 4294901760
  %1723 = vmatpush.msra.mxu0 %v1722
  %v1724 = vand.u32 %v34, 4294901760
  %1725 = vmatpush.msra.mxu0 %v1724
  %v1726 = vand.u32 %v32, 4294901760
  %1727 = vmatpush.msra.mxu0 %v1726
  %v1728 = vand.u32 %v30, 4294901760
  %1729 = vmatpush.msra.mxu0 %v1728
  %v1730 = vand.u32 %v28, 4294901760
  %1731 = vmatpush.msra.mxu0 %v1730
  %v1732 = vand.u32 %v11, 4294901760
  %1733 = vmatmul.f32.gmra.mxu0 %v1732
  %v1734 = vpop.f32.mrf.mxu0
  %v1735 = vadd.f32 %v1670, %v1734
  %v1736 = vand.u32 %v13, 4294901760
  %1737 = vmatmul.f32.gmra.mxu0 %v1736
  %v1738 = vpop.f32.mrf.mxu0
  %v1739 = vadd.f32 %v1674, %v1738
  %v1740 = vand.u32 %v15, 4294901760
  %1741 = vmatmul.f32.gmra.mxu0 %v1740
  %v1742 = vpop.f32.mrf.mxu0
  %v1743 = vadd.f32 %v1678, %v1742
  %v1744 = vand.u32 %v17, 4294901760
  %1745 = vmatmul.f32.gmra.mxu0 %v1744
  %v1746 = vpop.f32.mrf.mxu0
  %v1747 = vadd.f32 %v1682, %v1746
  %v1748 = vand.u32 %v19, 4294901760
  %1749 = vmatmul.f32.gmra.mxu0 %v1748
  %v1750 = vpop.f32.mrf.mxu0
  %v1751 = vadd.f32 %v1686, %v1750
  %v1752 = vand.u32 %v21, 4294901760
  %1753 = vmatmul.f32.gmra.mxu0 %v1752
  %v1754 = vpop.f32.mrf.mxu0
  %v1755 = vadd.f32 %v1690, %v1754
  %v1756 = vand.u32 %v23, 4294901760
  %1757 = vmatmul.f32.gmra.mxu0 %v1756
  %v1758 = vpop.f32.mrf.mxu0
  %v1759 = vadd.f32 %v1694, %v1758
  %v1760 = vand.u32 %v25, 4294901760
  %1761 = vmatmul.f32.gmra.mxu0 %v1760
  %v1762 = vpop.f32.mrf.mxu0
  %v1763 = vadd.f32 %v1698, %v1762
  %1764 = vdwg.mxu0
  %v1765 = vand.u32 %v90, 4294901760
  %1766 = vmatpush.msra.mxu0 %v1765
  %v1767 = vand.u32 %v88, 4294901760
  %1768 = vmatpush.msra.mxu0 %v1767
  %v1769 = vand.u32 %v86, 4294901760
  %1770 = vmatpush.msra.mxu0 %v1769
  %v1771 = vand.u32 %v84, 4294901760
  %1772 = vmatpush.msra.mxu0 %v1771
  %v1773 = vand.u32 %v82, 4294901760
  %1774 = vmatpush.msra.mxu0 %v1773
  %v1775 = vand.u32 %v80, 4294901760
  %1776 = vmatpush.msra.mxu0 %v1775
  %v1777 = vand.u32 %v78, 4294901760
  %1778 = vmatpush.msra.mxu0 %v1777
  %v1779 = vand.u32 %v76, 4294901760
  %1780 = vmatpush.msra.mxu0 %v1779
  %v1781 = vand.u32 %v74, 4294901760
  %1782 = vmatpush.msra.mxu0 %v1781
  %v1783 = vand.u32 %v72, 4294901760
  %1784 = vmatpush.msra.mxu0 %v1783
  %v1785 = vand.u32 %v70, 4294901760
  %1786 = vmatpush.msra.mxu0 %v1785
  %v1787 = vand.u32 %v68, 4294901760
  %1788 = vmatpush.msra.mxu0 %v1787
  %v1789 = vand.u32 %v66, 4294901760
  %1790 = vmatpush.msra.mxu0 %v1789
  %v1791 = vand.u32 %v64, 4294901760
  %1792 = vmatpush.msra.mxu0 %v1791
  %v1793 = vand.u32 %v62, 4294901760
  %1794 = vmatpush.msra.mxu0 %v1793
  %v1795 = vand.u32 %v60, 4294901760
  %1796 = vmatpush.msra.mxu0 %v1795
  %v1797 = vand.u32 %v12, 4294901760
  %v1798 = vsub.f32 %v12, %v1797
  %v1799 = vand.u32 %v1798, 4294901760
  %v1800 = vsub.f32 %v1798, %v1799
  %v1801 = vand.u32 %v1800, 4294901760
  %1802 = vmatmul.f32.gmra.mxu0 %v1801
  %v1803 = vpop.f32.mrf.mxu0
  %v1804 = vadd.f32 %v1735, %v1803
  %v1805 = vand.u32 %v14, 4294901760
  %v1806 = vsub.f32 %v14, %v1805
  %v1807 = vand.u32 %v1806, 4294901760
  %v1808 = vsub.f32 %v1806, %v1807
  %v1809 = vand.u32 %v1808, 4294901760
  %1810 = vmatmul.f32.gmra.mxu0 %v1809
  %v1811 = vpop.f32.mrf.mxu0
  %v1812 = vadd.f32 %v1739, %v1811
  %v1813 = vand.u32 %v16, 4294901760
  %v1814 = vsub.f32 %v16, %v1813
  %v1815 = vand.u32 %v1814, 4294901760
  %v1816 = vsub.f32 %v1814, %v1815
  %v1817 = vand.u32 %v1816, 4294901760
  %1818 = vmatmul.f32.gmra.mxu0 %v1817
  %v1819 = vpop.f32.mrf.mxu0
  %v1820 = vadd.f32 %v1743, %v1819
  %v1821 = vand.u32 %v18, 4294901760
  %v1822 = vsub.f32 %v18, %v1821
  %v1823 = vand.u32 %v1822, 4294901760
  %v1824 = vsub.f32 %v1822, %v1823
  %v1825 = vand.u32 %v1824, 4294901760
  %1826 = vmatmul.f32.gmra.mxu0 %v1825
  %v1827 = vpop.f32.mrf.mxu0
  %v1828 = vadd.f32 %v1747, %v1827
  %v1829 = vand.u32 %v20, 4294901760
  %v1830 = vsub.f32 %v20, %v1829
  %v1831 = vand.u32 %v1830, 4294901760
  %v1832 = vsub.f32 %v1830, %v1831
  %v1833 = vand.u32 %v1832, 4294901760
  %1834 = vmatmul.f32.gmra.mxu0 %v1833
  %v1835 = vpop.f32.mrf.mxu0
  %v1836 = vadd.f32 %v1751, %v1835
  %v1837 = vand.u32 %v22, 4294901760
  %v1838 = vsub.f32 %v22, %v1837
  %v1839 = vand.u32 %v1838, 4294901760
  %v1840 = vsub.f32 %v1838, %v1839
  %v1841 = vand.u32 %v1840, 4294901760
  %1842 = vmatmul.f32.gmra.mxu0 %v1841
  %v1843 = vpop.f32.mrf.mxu0
  %v1844 = vadd.f32 %v1755, %v1843
  %v1845 = vand.u32 %v24, 4294901760
  %v1846 = vsub.f32 %v24, %v1845
  %v1847 = vand.u32 %v1846, 4294901760
  %v1848 = vsub.f32 %v1846, %v1847
  %v1849 = vand.u32 %v1848, 4294901760
  %1850 = vmatmul.f32.gmra.mxu0 %v1849
  %v1851 = vpop.f32.mrf.mxu0
  %v1852 = vadd.f32 %v1759, %v1851
  %v1853 = vand.u32 %v26, 4294901760
  %v1854 = vsub.f32 %v26, %v1853
  %v1855 = vand.u32 %v1854, 4294901760
  %v1856 = vsub.f32 %v1854, %v1855
  %v1857 = vand.u32 %v1856, 4294901760
  %1858 = vmatmul.f32.gmra.mxu0 %v1857
  %v1859 = vpop.f32.mrf.mxu0
  %v1860 = vadd.f32 %v1763, %v1859
  %1861 = vdwg.mxu0
  %v1862 = vand.u32 %v90, 4294901760
  %v1863 = vsub.f32 %v90, %v1862
  %v1864 = vand.u32 %v1863, 4294901760
  %v1865 = vsub.f32 %v1863, %v1864
  %v1866 = vand.u32 %v1865, 4294901760
  %1867 = vmatpush.msra.mxu0 %v1866
  %v1868 = vand.u32 %v88, 4294901760
  %v1869 = vsub.f32 %v88, %v1868
  %v1870 = vand.u32 %v1869, 4294901760
  %v1871 = vsub.f32 %v1869, %v1870
  %v1872 = vand.u32 %v1871, 4294901760
  %1873 = vmatpush.msra.mxu0 %v1872
  %v1874 = vand.u32 %v86, 4294901760
  %v1875 = vsub.f32 %v86, %v1874
  %v1876 = vand.u32 %v1875, 4294901760
  %v1877 = vsub.f32 %v1875, %v1876
  %v1878 = vand.u32 %v1877, 4294901760
  %1879 = vmatpush.msra.mxu0 %v1878
  %v1880 = vand.u32 %v84, 4294901760
  %v1881 = vsub.f32 %v84, %v1880
  %v1882 = vand.u32 %v1881, 4294901760
  %v1883 = vsub.f32 %v1881, %v1882
  %v1884 = vand.u32 %v1883, 4294901760
  %1885 = vmatpush.msra.mxu0 %v1884
  %v1886 = vand.u32 %v82, 4294901760
  %v1887 = vsub.f32 %v82, %v1886
  %v1888 = vand.u32 %v1887, 4294901760
  %v1889 = vsub.f32 %v1887, %v1888
  %v1890 = vand.u32 %v1889, 4294901760
  %1891 = vmatpush.msra.mxu0 %v1890
  %v1892 = vand.u32 %v80, 4294901760
  %v1893 = vsub.f32 %v80, %v1892
  %v1894 = vand.u32 %v1893, 4294901760
  %v1895 = vsub.f32 %v1893, %v1894
  %v1896 = vand.u32 %v1895, 4294901760
  %1897 = vmatpush.msra.mxu0 %v1896
  %v1898 = vand.u32 %v78, 4294901760
  %v1899 = vsub.f32 %v78, %v1898
  %v1900 = vand.u32 %v1899, 4294901760
  %v1901 = vsub.f32 %v1899, %v1900
  %v1902 = vand.u32 %v1901, 4294901760
  %1903 = vmatpush.msra.mxu0 %v1902
  %v1904 = vand.u32 %v76, 4294901760
  %v1905 = vsub.f32 %v76, %v1904
  %v1906 = vand.u32 %v1905, 4294901760
  %v1907 = vsub.f32 %v1905, %v1906
  %v1908 = vand.u32 %v1907, 4294901760
  %1909 = vmatpush.msra.mxu0 %v1908
  %v1910 = vand.u32 %v74, 4294901760
  %v1911 = vsub.f32 %v74, %v1910
  %v1912 = vand.u32 %v1911, 4294901760
  %v1913 = vsub.f32 %v1911, %v1912
  %v1914 = vand.u32 %v1913, 4294901760
  %1915 = vmatpush.msra.mxu0 %v1914
  %v1916 = vand.u32 %v72, 4294901760
  %v1917 = vsub.f32 %v72, %v1916
  %v1918 = vand.u32 %v1917, 4294901760
  %v1919 = vsub.f32 %v1917, %v1918
  %v1920 = vand.u32 %v1919, 4294901760
  %1921 = vmatpush.msra.mxu0 %v1920
  %v1922 = vand.u32 %v70, 4294901760
  %v1923 = vsub.f32 %v70, %v1922
  %v1924 = vand.u32 %v1923, 4294901760
  %v1925 = vsub.f32 %v1923, %v1924
  %v1926 = vand.u32 %v1925, 4294901760
  %1927 = vmatpush.msra.mxu0 %v1926
  %v1928 = vand.u32 %v68, 4294901760
  %v1929 = vsub.f32 %v68, %v1928
  %v1930 = vand.u32 %v1929, 4294901760
  %v1931 = vsub.f32 %v1929, %v1930
  %v1932 = vand.u32 %v1931, 4294901760
  %1933 = vmatpush.msra.mxu0 %v1932
  %v1934 = vand.u32 %v66, 4294901760
  %v1935 = vsub.f32 %v66, %v1934
  %v1936 = vand.u32 %v1935, 4294901760
  %v1937 = vsub.f32 %v1935, %v1936
  %v1938 = vand.u32 %v1937, 4294901760
  %1939 = vmatpush.msra.mxu0 %v1938
  %v1940 = vand.u32 %v64, 4294901760
  %v1941 = vsub.f32 %v64, %v1940
  %v1942 = vand.u32 %v1941, 4294901760
  %v1943 = vsub.f32 %v1941, %v1942
  %v1944 = vand.u32 %v1943, 4294901760
  %1945 = vmatpush.msra.mxu0 %v1944
  %v1946 = vand.u32 %v62, 4294901760
  %v1947 = vsub.f32 %v62, %v1946
  %v1948 = vand.u32 %v1947, 4294901760
  %v1949 = vsub.f32 %v1947, %v1948
  %v1950 = vand.u32 %v1949, 4294901760
  %1951 = vmatpush.msra.mxu0 %v1950
  %v1952 = vand.u32 %v60, 4294901760
  %v1953 = vsub.f32 %v60, %v1952
  %v1954 = vand.u32 %v1953, 4294901760
  %v1955 = vsub.f32 %v1953, %v1954
  %v1956 = vand.u32 %v1955, 4294901760
  %1957 = vmatpush.msra.mxu0 %v1956
  %v1958 = vand.u32 %v12, 4294901760
  %1959 = vmatmul.f32.gmra.mxu0 %v1958
  %v1960 = vpop.f32.mrf.mxu0
  %v1961 = vadd.f32 %v1804, %v1960
  %v1962 = vand.u32 %v14, 4294901760
  %1963 = vmatmul.f32.gmra.mxu0 %v1962
  %v1964 = vpop.f32.mrf.mxu0
  %v1965 = vadd.f32 %v1812, %v1964
  %v1966 = vand.u32 %v16, 4294901760
  %1967 = vmatmul.f32.gmra.mxu0 %v1966
  %v1968 = vpop.f32.mrf.mxu0
  %v1969 = vadd.f32 %v1820, %v1968
  %v1970 = vand.u32 %v18, 4294901760
  %1971 = vmatmul.f32.gmra.mxu0 %v1970
  %v1972 = vpop.f32.mrf.mxu0
  %v1973 = vadd.f32 %v1828, %v1972
  %v1974 = vand.u32 %v20, 4294901760
  %1975 = vmatmul.f32.gmra.mxu0 %v1974
  %v1976 = vpop.f32.mrf.mxu0
  %v1977 = vadd.f32 %v1836, %v1976
  %v1978 = vand.u32 %v22, 4294901760
  %1979 = vmatmul.f32.gmra.mxu0 %v1978
  %v1980 = vpop.f32.mrf.mxu0
  %v1981 = vadd.f32 %v1844, %v1980
  %v1982 = vand.u32 %v24, 4294901760
  %1983 = vmatmul.f32.gmra.mxu0 %v1982
  %v1984 = vpop.f32.mrf.mxu0
  %v1985 = vadd.f32 %v1852, %v1984
  %v1986 = vand.u32 %v26, 4294901760
  %1987 = vmatmul.f32.gmra.mxu0 %v1986
  %v1988 = vpop.f32.mrf.mxu0
  %v1989 = vadd.f32 %v1860, %v1988
  %1990 = vdwg.mxu0
  %v1991 = vand.u32 %v90, 4294901760
  %v1992 = vsub.f32 %v90, %v1991
  %1993 = vmatpush.msra.mxu0 %v1992
  %v1994 = vand.u32 %v88, 4294901760
  %v1995 = vsub.f32 %v88, %v1994
  %1996 = vmatpush.msra.mxu0 %v1995
  %v1997 = vand.u32 %v86, 4294901760
  %v1998 = vsub.f32 %v86, %v1997
  %1999 = vmatpush.msra.mxu0 %v1998
  %v2000 = vand.u32 %v84, 4294901760
  %v2001 = vsub.f32 %v84, %v2000
  %2002 = vmatpush.msra.mxu0 %v2001
  %v2003 = vand.u32 %v82, 4294901760
  %v2004 = vsub.f32 %v82, %v2003
  %2005 = vmatpush.msra.mxu0 %v2004
  %v2006 = vand.u32 %v80, 4294901760
  %v2007 = vsub.f32 %v80, %v2006
  %2008 = vmatpush.msra.mxu0 %v2007
  %v2009 = vand.u32 %v78, 4294901760
  %v2010 = vsub.f32 %v78, %v2009
  %2011 = vmatpush.msra.mxu0 %v2010
  %v2012 = vand.u32 %v76, 4294901760
  %v2013 = vsub.f32 %v76, %v2012
  %2014 = vmatpush.msra.mxu0 %v2013
  %v2015 = vand.u32 %v74, 4294901760
  %v2016 = vsub.f32 %v74, %v2015
  %2017 = vmatpush.msra.mxu0 %v2016
  %v2018 = vand.u32 %v72, 4294901760
  %v2019 = vsub.f32 %v72, %v2018
  %2020 = vmatpush.msra.mxu0 %v2019
  %v2021 = vand.u32 %v70, 4294901760
  %v2022 = vsub.f32 %v70, %v2021
  %2023 = vmatpush.msra.mxu0 %v2022
  %v2024 = vand.u32 %v68, 4294901760
  %v2025 = vsub.f32 %v68, %v2024
  %2026 = vmatpush.msra.mxu0 %v2025
  %v2027 = vand.u32 %v66, 4294901760
  %v2028 = vsub.f32 %v66, %v2027
  %2029 = vmatpush.msra.mxu0 %v2028
  %v2030 = vand.u32 %v64, 4294901760
  %v2031 = vsub.f32 %v64, %v2030
  %2032 = vmatpush.msra.mxu0 %v2031
  %v2033 = vand.u32 %v62, 4294901760
  %v2034 = vsub.f32 %v62, %v2033
  %2035 = vmatpush.msra.mxu0 %v2034
  %v2036 = vand.u32 %v60, 4294901760
  %v2037 = vsub.f32 %v60, %v2036
  %2038 = vmatpush.msra.mxu0 %v2037
  %v2039 = vand.u32 %v12, 4294901760
  %v2040 = vsub.f32 %v12, %v2039
  %2041 = vmatmul.f32.gmra.mxu0 %v2040
  %v2042 = vpop.f32.mrf.mxu0
  %v2043 = vadd.f32 %v1961, %v2042
  %v2044 = vand.u32 %v14, 4294901760
  %v2045 = vsub.f32 %v14, %v2044
  %2046 = vmatmul.f32.gmra.mxu0 %v2045
  %v2047 = vpop.f32.mrf.mxu0
  %v2048 = vadd.f32 %v1965, %v2047
  %v2049 = vand.u32 %v16, 4294901760
  %v2050 = vsub.f32 %v16, %v2049
  %2051 = vmatmul.f32.gmra.mxu0 %v2050
  %v2052 = vpop.f32.mrf.mxu0
  %v2053 = vadd.f32 %v1969, %v2052
  %v2054 = vand.u32 %v18, 4294901760
  %v2055 = vsub.f32 %v18, %v2054
  %2056 = vmatmul.f32.gmra.mxu0 %v2055
  %v2057 = vpop.f32.mrf.mxu0
  %v2058 = vadd.f32 %v1973, %v2057
  %v2059 = vand.u32 %v20, 4294901760
  %v2060 = vsub.f32 %v20, %v2059
  %2061 = vmatmul.f32.gmra.mxu0 %v2060
  %v2062 = vpop.f32.mrf.mxu0
  %v2063 = vadd.f32 %v1977, %v2062
  %v2064 = vand.u32 %v22, 4294901760
  %v2065 = vsub.f32 %v22, %v2064
  %2066 = vmatmul.f32.gmra.mxu0 %v2065
  %v2067 = vpop.f32.mrf.mxu0
  %v2068 = vadd.f32 %v1981, %v2067
  %v2069 = vand.u32 %v24, 4294901760
  %v2070 = vsub.f32 %v24, %v2069
  %2071 = vmatmul.f32.gmra.mxu0 %v2070
  %v2072 = vpop.f32.mrf.mxu0
  %v2073 = vadd.f32 %v1985, %v2072
  %v2074 = vand.u32 %v26, 4294901760
  %v2075 = vsub.f32 %v26, %v2074
  %2076 = vmatmul.f32.gmra.mxu0 %v2075
  %v2077 = vpop.f32.mrf.mxu0
  %v2078 = vadd.f32 %v1989, %v2077
  %2079 = vdwg.mxu0
  %v2080 = vand.u32 %v90, 4294901760
  %2081 = vmatpush.msra.mxu0 %v2080
  %v2082 = vand.u32 %v88, 4294901760
  %2083 = vmatpush.msra.mxu0 %v2082
  %v2084 = vand.u32 %v86, 4294901760
  %2085 = vmatpush.msra.mxu0 %v2084
  %v2086 = vand.u32 %v84, 4294901760
  %2087 = vmatpush.msra.mxu0 %v2086
  %v2088 = vand.u32 %v82, 4294901760
  %2089 = vmatpush.msra.mxu0 %v2088
  %v2090 = vand.u32 %v80, 4294901760
  %2091 = vmatpush.msra.mxu0 %v2090
  %v2092 = vand.u32 %v78, 4294901760
  %2093 = vmatpush.msra.mxu0 %v2092
  %v2094 = vand.u32 %v76, 4294901760
  %2095 = vmatpush.msra.mxu0 %v2094
  %v2096 = vand.u32 %v74, 4294901760
  %2097 = vmatpush.msra.mxu0 %v2096
  %v2098 = vand.u32 %v72, 4294901760
  %2099 = vmatpush.msra.mxu0 %v2098
  %v2100 = vand.u32 %v70, 4294901760
  %2101 = vmatpush.msra.mxu0 %v2100
  %v2102 = vand.u32 %v68, 4294901760
  %2103 = vmatpush.msra.mxu0 %v2102
  %v2104 = vand.u32 %v66, 4294901760
  %2105 = vmatpush.msra.mxu0 %v2104
  %v2106 = vand.u32 %v64, 4294901760
  %2107 = vmatpush.msra.mxu0 %v2106
  %v2108 = vand.u32 %v62, 4294901760
  %2109 = vmatpush.msra.mxu0 %v2108
  %v2110 = vand.u32 %v60, 4294901760
  %2111 = vmatpush.msra.mxu0 %v2110
  %v2112 = vand.u32 %v12, 4294901760
  %v2113 = vsub.f32 %v12, %v2112
  %v2114 = vand.u32 %v2113, 4294901760
  %2115 = vmatmul.f32.gmra.mxu0 %v2114
  %v2116 = vpop.f32.mrf.mxu0
  %v2117 = vadd.f32 %v2043, %v2116
  %v2118 = vand.u32 %v14, 4294901760
  %v2119 = vsub.f32 %v14, %v2118
  %v2120 = vand.u32 %v2119, 4294901760
  %2121 = vmatmul.f32.gmra.mxu0 %v2120
  %v2122 = vpop.f32.mrf.mxu0
  %v2123 = vadd.f32 %v2048, %v2122
  %v2124 = vand.u32 %v16, 4294901760
  %v2125 = vsub.f32 %v16, %v2124
  %v2126 = vand.u32 %v2125, 4294901760
  %2127 = vmatmul.f32.gmra.mxu0 %v2126
  %v2128 = vpop.f32.mrf.mxu0
  %v2129 = vadd.f32 %v2053, %v2128
  %v2130 = vand.u32 %v18, 4294901760
  %v2131 = vsub.f32 %v18, %v2130
  %v2132 = vand.u32 %v2131, 4294901760
  %2133 = vmatmul.f32.gmra.mxu0 %v2132
  %v2134 = vpop.f32.mrf.mxu0
  %v2135 = vadd.f32 %v2058, %v2134
  %v2136 = vand.u32 %v20, 4294901760
  %v2137 = vsub.f32 %v20, %v2136
  %v2138 = vand.u32 %v2137, 4294901760
  %2139 = vmatmul.f32.gmra.mxu0 %v2138
  %v2140 = vpop.f32.mrf.mxu0
  %v2141 = vadd.f32 %v2063, %v2140
  %v2142 = vand.u32 %v22, 4294901760
  %v2143 = vsub.f32 %v22, %v2142
  %v2144 = vand.u32 %v2143, 4294901760
  %2145 = vmatmul.f32.gmra.mxu0 %v2144
  %v2146 = vpop.f32.mrf.mxu0
  %v2147 = vadd.f32 %v2068, %v2146
  %v2148 = vand.u32 %v24, 4294901760
  %v2149 = vsub.f32 %v24, %v2148
  %v2150 = vand.u32 %v2149, 4294901760
  %2151 = vmatmul.f32.gmra.mxu0 %v2150
  %v2152 = vpop.f32.mrf.mxu0
  %v2153 = vadd.f32 %v2073, %v2152
  %v2154 = vand.u32 %v26, 4294901760
  %v2155 = vsub.f32 %v26, %v2154
  %v2156 = vand.u32 %v2155, 4294901760
  %2157 = vmatmul.f32.gmra.mxu0 %v2156
  %v2158 = vpop.f32.mrf.mxu0
  %v2159 = vadd.f32 %v2078, %v2158
  %2160 = vdwg.mxu0
  %v2161 = vand.u32 %v90, 4294901760
  %v2162 = vsub.f32 %v90, %v2161
  %v2163 = vand.u32 %v2162, 4294901760
  %2164 = vmatpush.msra.mxu0 %v2163
  %v2165 = vand.u32 %v88, 4294901760
  %v2166 = vsub.f32 %v88, %v2165
  %v2167 = vand.u32 %v2166, 4294901760
  %2168 = vmatpush.msra.mxu0 %v2167
  %v2169 = vand.u32 %v86, 4294901760
  %v2170 = vsub.f32 %v86, %v2169
  %v2171 = vand.u32 %v2170, 4294901760
  %2172 = vmatpush.msra.mxu0 %v2171
  %v2173 = vand.u32 %v84, 4294901760
  %v2174 = vsub.f32 %v84, %v2173
  %v2175 = vand.u32 %v2174, 4294901760
  %2176 = vmatpush.msra.mxu0 %v2175
  %v2177 = vand.u32 %v82, 4294901760
  %v2178 = vsub.f32 %v82, %v2177
  %v2179 = vand.u32 %v2178, 4294901760
  %2180 = vmatpush.msra.mxu0 %v2179
  %v2181 = vand.u32 %v80, 4294901760
  %v2182 = vsub.f32 %v80, %v2181
  %v2183 = vand.u32 %v2182, 4294901760
  %2184 = vmatpush.msra.mxu0 %v2183
  %v2185 = vand.u32 %v78, 4294901760
  %v2186 = vsub.f32 %v78, %v2185
  %v2187 = vand.u32 %v2186, 4294901760
  %2188 = vmatpush.msra.mxu0 %v2187
  %v2189 = vand.u32 %v76, 4294901760
  %v2190 = vsub.f32 %v76, %v2189
  %v2191 = vand.u32 %v2190, 4294901760
  %2192 = vmatpush.msra.mxu0 %v2191
  %v2193 = vand.u32 %v74, 4294901760
  %v2194 = vsub.f32 %v74, %v2193
  %v2195 = vand.u32 %v2194, 4294901760
  %2196 = vmatpush.msra.mxu0 %v2195
  %v2197 = vand.u32 %v72, 4294901760
  %v2198 = vsub.f32 %v72, %v2197
  %v2199 = vand.u32 %v2198, 4294901760
  %2200 = vmatpush.msra.mxu0 %v2199
  %v2201 = vand.u32 %v70, 4294901760
  %v2202 = vsub.f32 %v70, %v2201
  %v2203 = vand.u32 %v2202, 4294901760
  %2204 = vmatpush.msra.mxu0 %v2203
  %v2205 = vand.u32 %v68, 4294901760
  %v2206 = vsub.f32 %v68, %v2205
  %v2207 = vand.u32 %v2206, 4294901760
  %2208 = vmatpush.msra.mxu0 %v2207
  %v2209 = vand.u32 %v66, 4294901760
  %v2210 = vsub.f32 %v66, %v2209
  %v2211 = vand.u32 %v2210, 4294901760
  %2212 = vmatpush.msra.mxu0 %v2211
  %v2213 = vand.u32 %v64, 4294901760
  %v2214 = vsub.f32 %v64, %v2213
  %v2215 = vand.u32 %v2214, 4294901760
  %2216 = vmatpush.msra.mxu0 %v2215
  %v2217 = vand.u32 %v62, 4294901760
  %v2218 = vsub.f32 %v62, %v2217
  %v2219 = vand.u32 %v2218, 4294901760
  %2220 = vmatpush.msra.mxu0 %v2219
  %v2221 = vand.u32 %v60, 4294901760
  %v2222 = vsub.f32 %v60, %v2221
  %v2223 = vand.u32 %v2222, 4294901760
  %2224 = vmatpush.msra.mxu0 %v2223
  %v2225 = vand.u32 %v12, 4294901760
  %2226 = vmatmul.f32.gmra.mxu0 %v2225
  %v2227 = vpop.f32.mrf.mxu0
  %v2228 = vadd.f32 %v2117, %v2227
  %v2229 = vand.u32 %v14, 4294901760
  %2230 = vmatmul.f32.gmra.mxu0 %v2229
  %v2231 = vpop.f32.mrf.mxu0
  %v2232 = vadd.f32 %v2123, %v2231
  %v2233 = vand.u32 %v16, 4294901760
  %2234 = vmatmul.f32.gmra.mxu0 %v2233
  %v2235 = vpop.f32.mrf.mxu0
  %v2236 = vadd.f32 %v2129, %v2235
  %v2237 = vand.u32 %v18, 4294901760
  %2238 = vmatmul.f32.gmra.mxu0 %v2237
  %v2239 = vpop.f32.mrf.mxu0
  %v2240 = vadd.f32 %v2135, %v2239
  %v2241 = vand.u32 %v20, 4294901760
  %2242 = vmatmul.f32.gmra.mxu0 %v2241
  %v2243 = vpop.f32.mrf.mxu0
  %v2244 = vadd.f32 %v2141, %v2243
  %v2245 = vand.u32 %v22, 4294901760
  %2246 = vmatmul.f32.gmra.mxu0 %v2245
  %v2247 = vpop.f32.mrf.mxu0
  %v2248 = vadd.f32 %v2147, %v2247
  %v2249 = vand.u32 %v24, 4294901760
  %2250 = vmatmul.f32.gmra.mxu0 %v2249
  %v2251 = vpop.f32.mrf.mxu0
  %v2252 = vadd.f32 %v2153, %v2251
  %v2253 = vand.u32 %v26, 4294901760
  %2254 = vmatmul.f32.gmra.mxu0 %v2253
  %v2255 = vpop.f32.mrf.mxu0
  %v2256 = vadd.f32 %v2159, %v2255
  %2257 = vdwg.mxu0
  %v2258 = vand.u32 %v90, 4294901760
  %2259 = vmatpush.msra.mxu0 %v2258
  %v2260 = vand.u32 %v88, 4294901760
  %2261 = vmatpush.msra.mxu0 %v2260
  %v2262 = vand.u32 %v86, 4294901760
  %2263 = vmatpush.msra.mxu0 %v2262
  %v2264 = vand.u32 %v84, 4294901760
  %2265 = vmatpush.msra.mxu0 %v2264
  %v2266 = vand.u32 %v82, 4294901760
  %2267 = vmatpush.msra.mxu0 %v2266
  %v2268 = vand.u32 %v80, 4294901760
  %2269 = vmatpush.msra.mxu0 %v2268
  %v2270 = vand.u32 %v78, 4294901760
  %2271 = vmatpush.msra.mxu0 %v2270
  %v2272 = vand.u32 %v76, 4294901760
  %2273 = vmatpush.msra.mxu0 %v2272
  %v2274 = vand.u32 %v74, 4294901760
  %2275 = vmatpush.msra.mxu0 %v2274
  %v2276 = vand.u32 %v72, 4294901760
  %2277 = vmatpush.msra.mxu0 %v2276
  %v2278 = vand.u32 %v70, 4294901760
  %2279 = vmatpush.msra.mxu0 %v2278
  %v2280 = vand.u32 %v68, 4294901760
  %2281 = vmatpush.msra.mxu0 %v2280
  %v2282 = vand.u32 %v66, 4294901760
  %2283 = vmatpush.msra.mxu0 %v2282
  %v2284 = vand.u32 %v64, 4294901760
  %2285 = vmatpush.msra.mxu0 %v2284
  %v2286 = vand.u32 %v62, 4294901760
  %2287 = vmatpush.msra.mxu0 %v2286
  %v2288 = vand.u32 %v60, 4294901760
  %2289 = vmatpush.msra.mxu0 %v2288
  %v2290 = vand.u32 %v12, 4294901760
  %2291 = vmatmul.f32.gmra.mxu0 %v2290
  %v2292 = vpop.f32.mrf.mxu0
  %v2293 = vadd.f32 %v2228, %v2292
  %v2294 = vand.u32 %v14, 4294901760
  %2295 = vmatmul.f32.gmra.mxu0 %v2294
  %v2296 = vpop.f32.mrf.mxu0
  %v2297 = vadd.f32 %v2232, %v2296
  %v2298 = vand.u32 %v16, 4294901760
  %2299 = vmatmul.f32.gmra.mxu0 %v2298
  %v2300 = vpop.f32.mrf.mxu0
  %v2301 = vadd.f32 %v2236, %v2300
  %v2302 = vand.u32 %v18, 4294901760
  %2303 = vmatmul.f32.gmra.mxu0 %v2302
  %v2304 = vpop.f32.mrf.mxu0
  %v2305 = vadd.f32 %v2240, %v2304
  %v2306 = vand.u32 %v20, 4294901760
  %2307 = vmatmul.f32.gmra.mxu0 %v2306
  %v2308 = vpop.f32.mrf.mxu0
  %v2309 = vadd.f32 %v2244, %v2308
  %v2310 = vand.u32 %v22, 4294901760
  %2311 = vmatmul.f32.gmra.mxu0 %v2310
  %v2312 = vpop.f32.mrf.mxu0
  %v2313 = vadd.f32 %v2248, %v2312
  %v2314 = vand.u32 %v24, 4294901760
  %2315 = vmatmul.f32.gmra.mxu0 %v2314
  %v2316 = vpop.f32.mrf.mxu0
  %v2317 = vadd.f32 %v2252, %v2316
  %v2318 = vand.u32 %v26, 4294901760
  %2319 = vmatmul.f32.gmra.mxu0 %v2318
  %v2320 = vpop.f32.mrf.mxu0
  %v2321 = vadd.f32 %v2256, %v2320
  %2322 = vdwg.mxu0
  %v2323 = vlaneseq
  %v2324 = vshrl.u32 %v2323, 7
  %v2325 = vadd.s32 %v2324, 8
  %v2326 = vadd.s32 %v2324, 16
  %v2327 = vadd.s32 %v2324, 24
  %v2328 = vadd.s32 %v2324, 32
  %v2329 = vadd.s32 %v2324, 40
  %v2330 = vadd.s32 %v2324, 48
  %v2331 = vadd.s32 %v2324, 56
  %v2332 = vadd.s32 %v2324, 64
  %v2333 = vadd.s32 %v2324, 72
  %v2334 = vadd.s32 %v2324, 80
  %v2335 = vadd.s32 %v2324, 88
  %v2336 = vadd.s32 %v2324, 96
  %v2337 = vadd.s32 %v2324, 104
  %v2338 = vadd.s32 %v2324, 112
  %v2339 = vadd.s32 %v2324, 120
  %v2340 = vadd.s32 %v2324, 128
  %v2341 = vadd.s32 %v2324, 136
  %v2342 = vadd.s32 %v2324, 144
  %v2343 = vadd.s32 %v2324, 152
  %v2344 = vlaneseq
  %v2345 = vand.u32 %v2344, 127
  %v2346 = vadd.s32 %v2345, 128
  %v2347 = vxor.u32 %v2324, %v2345
  %v2348 = vxor.u32 %v2324, %v2346
  %v2349 = vxor.u32 %v2325, %v2345
  %v2350 = vxor.u32 %v2325, %v2346
  %v2351 = vxor.u32 %v2326, %v2345
  %v2352 = vxor.u32 %v2326, %v2346
  %v2353 = vxor.u32 %v2327, %v2345
  %v2354 = vxor.u32 %v2327, %v2346
  %v2355 = vxor.u32 %v2328, %v2345
  %v2356 = vxor.u32 %v2328, %v2346
  %v2357 = vxor.u32 %v2329, %v2345
  %v2358 = vxor.u32 %v2329, %v2346
  %v2359 = vxor.u32 %v2330, %v2345
  %v2360 = vxor.u32 %v2330, %v2346
  %v2361 = vxor.u32 %v2331, %v2345
  %v2362 = vxor.u32 %v2331, %v2346
  %v2363 = vxor.u32 %v2332, %v2345
  %v2364 = vxor.u32 %v2332, %v2346
  %v2365 = vxor.u32 %v2333, %v2345
  %v2366 = vxor.u32 %v2333, %v2346
  %v2367 = vxor.u32 %v2334, %v2345
  %v2368 = vxor.u32 %v2334, %v2346
  %v2369 = vxor.u32 %v2335, %v2345
  %v2370 = vxor.u32 %v2335, %v2346
  %v2371 = vxor.u32 %v2336, %v2345
  %v2372 = vxor.u32 %v2336, %v2346
  %v2373 = vxor.u32 %v2337, %v2345
  %v2374 = vxor.u32 %v2337, %v2346
  %v2375 = vxor.u32 %v2338, %v2345
  %v2376 = vxor.u32 %v2338, %v2346
  %v2377 = vxor.u32 %v2339, %v2345
  %v2378 = vxor.u32 %v2339, %v2346
  %v2379 = vxor.u32 %v2340, %v2345
  %v2380 = vxor.u32 %v2340, %v2346
  %v2381 = vxor.u32 %v2341, %v2345
  %v2382 = vxor.u32 %v2341, %v2346
  %v2383 = vxor.u32 %v2342, %v2345
  %v2384 = vxor.u32 %v2342, %v2346
  %v2385 = vxor.u32 %v2343, %v2345
  %v2386 = vxor.u32 %v2343, %v2346
  %vm2387 = vcmp.lt.s32.totalorder %v2347, 16
  %vm2388 = vcmp.lt.s32.totalorder %v2348, 16
  %vm2389 = vcmp.lt.s32.totalorder %v2349, 16
  %vm2390 = vcmp.lt.s32.totalorder %v2350, 16
  %vm2391 = vcmp.lt.s32.totalorder %v2351, 16
  %vm2392 = vcmp.lt.s32.totalorder %v2352, 16
  %vm2393 = vcmp.lt.s32.totalorder %v2353, 16
  %vm2394 = vcmp.lt.s32.totalorder %v2354, 16
  %vm2395 = vcmp.lt.s32.totalorder %v2355, 16
  %vm2396 = vcmp.lt.s32.totalorder %v2356, 16
  %vm2397 = vcmp.lt.s32.totalorder %v2357, 16
  %vm2398 = vcmp.lt.s32.totalorder %v2358, 16
  %vm2399 = vcmp.lt.s32.totalorder %v2359, 16
  %vm2400 = vcmp.lt.s32.totalorder %v2360, 16
  %vm2401 = vcmp.lt.s32.totalorder %v2361, 16
  %vm2402 = vcmp.lt.s32.totalorder %v2362, 16
  %vm2403 = vcmp.lt.s32.totalorder %v2363, 16
  %vm2404 = vcmp.lt.s32.totalorder %v2364, 16
  %vm2405 = vcmp.lt.s32.totalorder %v2365, 16
  %vm2406 = vcmp.lt.s32.totalorder %v2366, 16
  %vm2407 = vcmp.lt.s32.totalorder %v2367, 16
  %vm2408 = vcmp.lt.s32.totalorder %v2368, 16
  %vm2409 = vcmp.lt.s32.totalorder %v2369, 16
  %vm2410 = vcmp.lt.s32.totalorder %v2370, 16
  %vm2411 = vcmp.lt.s32.totalorder %v2371, 16
  %vm2412 = vcmp.lt.s32.totalorder %v2372, 16
  %vm2413 = vcmp.lt.s32.totalorder %v2373, 16
  %vm2414 = vcmp.lt.s32.totalorder %v2374, 16
  %vm2415 = vcmp.lt.s32.totalorder %v2375, 16
  %vm2416 = vcmp.lt.s32.totalorder %v2376, 16
  %vm2417 = vcmp.lt.s32.totalorder %v2377, 16
  %vm2418 = vcmp.lt.s32.totalorder %v2378, 16
  %vm2419 = vcmp.lt.s32.totalorder %v2379, 16
  %vm2420 = vcmp.lt.s32.totalorder %v2380, 16
  %vm2421 = vcmp.lt.s32.totalorder %v2381, 16
  %vm2422 = vcmp.lt.s32.totalorder %v2382, 16
  %vm2423 = vcmp.lt.s32.totalorder %v2383, 16
  %vm2424 = vcmp.lt.s32.totalorder %v2384, 16
  %vm2425 = vcmp.lt.s32.totalorder %v2385, 16
  %vm2426 = vcmp.lt.s32.totalorder %v2386, 16
  %v2427 = vsel %vm2387, 1, 0
  %v2428 = vsel %vm2388, 1, 0
  %v2429 = vsel %vm2389, 1, 0
  %v2430 = vsel %vm2390, 1, 0
  %v2431 = vsel %vm2391, 1, 0
  %v2432 = vsel %vm2392, 1, 0
  %v2433 = vsel %vm2393, 1, 0
  %v2434 = vsel %vm2394, 1, 0
  %v2435 = vsel %vm2395, 1, 0
  %v2436 = vsel %vm2396, 1, 0
  %v2437 = vsel %vm2397, 1, 0
  %v2438 = vsel %vm2398, 1, 0
  %v2439 = vsel %vm2399, 1, 0
  %v2440 = vsel %vm2400, 1, 0
  %v2441 = vsel %vm2401, 1, 0
  %v2442 = vsel %vm2402, 1, 0
  %v2443 = vsel %vm2403, 1, 0
  %v2444 = vsel %vm2404, 1, 0
  %v2445 = vsel %vm2405, 1, 0
  %v2446 = vsel %vm2406, 1, 0
  %v2447 = vsel %vm2407, 1, 0
  %v2448 = vsel %vm2408, 1, 0
  %v2449 = vsel %vm2409, 1, 0
  %v2450 = vsel %vm2410, 1, 0
  %v2451 = vsel %vm2411, 1, 0
  %v2452 = vsel %vm2412, 1, 0
  %v2453 = vsel %vm2413, 1, 0
  %v2454 = vsel %vm2414, 1, 0
  %v2455 = vsel %vm2415, 1, 0
  %v2456 = vsel %vm2416, 1, 0
  %v2457 = vsel %vm2417, 1, 0
  %v2458 = vsel %vm2418, 1, 0
  %v2459 = vsel %vm2419, 1, 0
  %v2460 = vsel %vm2420, 1, 0
  %v2461 = vsel %vm2421, 1, 0
  %v2462 = vsel %vm2422, 1, 0
  %v2463 = vsel %vm2423, 1, 0
  %v2464 = vsel %vm2424, 1, 0
  %v2465 = vsel %vm2425, 1, 0
  %v2466 = vsel %vm2426, 1, 0
  %v2467 = vcvt.s32.f32 %v2427
  %v2468 = vcvt.s32.f32 %v2428
  %v2469 = vcvt.s32.f32 %v2429
  %v2470 = vcvt.s32.f32 %v2430
  %v2471 = vcvt.s32.f32 %v2431
  %v2472 = vcvt.s32.f32 %v2432
  %v2473 = vcvt.s32.f32 %v2433
  %v2474 = vcvt.s32.f32 %v2434
  %v2475 = vcvt.s32.f32 %v2435
  %v2476 = vcvt.s32.f32 %v2436
  %v2477 = vcvt.s32.f32 %v2437
  %v2478 = vcvt.s32.f32 %v2438
  %v2479 = vcvt.s32.f32 %v2439
  %v2480 = vcvt.s32.f32 %v2440
  %v2481 = vcvt.s32.f32 %v2441
  %v2482 = vcvt.s32.f32 %v2442
  %v2483 = vcvt.s32.f32 %v2443
  %v2484 = vcvt.s32.f32 %v2444
  %v2485 = vcvt.s32.f32 %v2445
  %v2486 = vcvt.s32.f32 %v2446
  %v2487 = vcvt.s32.f32 %v2447
  %v2488 = vcvt.s32.f32 %v2448
  %v2489 = vcvt.s32.f32 %v2449
  %v2490 = vcvt.s32.f32 %v2450
  %v2491 = vcvt.s32.f32 %v2451
  %v2492 = vcvt.s32.f32 %v2452
  %v2493 = vcvt.s32.f32 %v2453
  %v2494 = vcvt.s32.f32 %v2454
  %v2495 = vcvt.s32.f32 %v2455
  %v2496 = vcvt.s32.f32 %v2456
  %v2497 = vcvt.s32.f32 %v2457
  %v2498 = vcvt.s32.f32 %v2458
  %v2499 = vcvt.s32.f32 %v2459
  %v2500 = vcvt.s32.f32 %v2460
  %v2501 = vcvt.s32.f32 %v2461
  %v2502 = vcvt.s32.f32 %v2462
  %v2503 = vcvt.s32.f32 %v2463
  %v2504 = vcvt.s32.f32 %v2464
  %v2505 = vcvt.s32.f32 %v2465
  %v2506 = vcvt.s32.f32 %v2466
  %v2507 = vadd.f32 %v1177, %v1181
  %v2508 = vadd.f32 %v2507, %v1185
  %v2509 = vadd.f32 %v2508, %v1189
  %v2510 = vrot.slane %v2509, 4
  %v2511 = vadd.f32 %v2509, %v2510
  %v2512 = vrot.slane %v2511, 2
  %v2513 = vadd.f32 %v2511, %v2512
  %v2514 = vrot.slane %v2513, 1
  %v2515 = vadd.f32 %v2513, %v2514
  %vm2516 = vcmask 261120
  %v2517 = vsel %vm2516, %v2293, 0.0
  %v2518 = vsel %vm2516, %v2297, 0.0
  %v2519 = vadd.f32 %v2517, %v2518
  %v2520 = vsel %vm2516, %v2301, 0.0
  %v2521 = vadd.f32 %v2519, %v2520
  %v2522 = vsel %vm2516, %v2305, 0.0
  %v2523 = vadd.f32 %v2521, %v2522
  %v2524 = vrot.slane %v2523, 4
  %v2525 = vadd.f32 %v2523, %v2524
  %v2526 = vrot.slane %v2525, 2
  %v2527 = vadd.f32 %v2525, %v2526
  %v2528 = vrot.slane %v2527, 1
  %v2529 = vadd.f32 %v2527, %v2528
  %v2530 = vadd.f32 %v1193, %v1197
  %v2531 = vadd.f32 %v2530, %v1201
  %v2532 = vadd.f32 %v2531, %v1205
  %v2533 = vrot.slane %v2532, 4
  %v2534 = vadd.f32 %v2532, %v2533
  %v2535 = vrot.slane %v2534, 2
  %v2536 = vadd.f32 %v2534, %v2535
  %v2537 = vrot.slane %v2536, 1
  %v2538 = vadd.f32 %v2536, %v2537
  %v2539 = vsel %vm2516, %v2309, 0.0
  %v2540 = vsel %vm2516, %v2313, 0.0
  %v2541 = vadd.f32 %v2539, %v2540
  %v2542 = vsel %vm2516, %v2317, 0.0
  %v2543 = vadd.f32 %v2541, %v2542
  %v2544 = vsel %vm2516, %v2321, 0.0
  %v2545 = vadd.f32 %v2543, %v2544
  %v2546 = vrot.slane %v2545, 4
  %v2547 = vadd.f32 %v2545, %v2546
  %v2548 = vrot.slane %v2547, 2
  %v2549 = vadd.f32 %v2547, %v2548
  %v2550 = vrot.slane %v2549, 1
  %v2551 = vadd.f32 %v2549, %v2550
  %v2552 = vmul.f32 %v2515, 0.03125
  %v2553 = vmul.f32 %v2529, 0.03125
  %v2554 = vmul.f32 %v2538, 0.03125
  %v2555 = vmul.f32 %v2551, 0.03125
  %v2556 = vmul.f32 %v2552, %v2552
  %v2557 = vmul.f32 %v2553, %v2553
  %v2558 = vmul.f32 %v2554, %v2554
  %v2559 = vmul.f32 %v2555, %v2555
  %vm2564 = vcmask 1041409
  %v2565 = vsel %vm2564, %v2558, %v2556
  %v2566 = vsel %vm2564, %v2559, %v2557
  %v2568 = vsel %vm2516, %v2566, 0
  %v2570 = vand.u32 %v2497, 4294901760
  %2571 = vmatpush.msra.mxu0 %v2570
  %v2572 = vand.u32 %v2495, 4294901760
  %2573 = vmatpush.msra.mxu0 %v2572
  %v2574 = vand.u32 %v2493, 4294901760
  %2575 = vmatpush.msra.mxu0 %v2574
  %v2576 = vand.u32 %v2491, 4294901760
  %2577 = vmatpush.msra.mxu0 %v2576
  %v2578 = vand.u32 %v2489, 4294901760
  %2579 = vmatpush.msra.mxu0 %v2578
  %v2580 = vand.u32 %v2487, 4294901760
  %2581 = vmatpush.msra.mxu0 %v2580
  %v2582 = vand.u32 %v2485, 4294901760
  %2583 = vmatpush.msra.mxu0 %v2582
  %v2584 = vand.u32 %v2483, 4294901760
  %2585 = vmatpush.msra.mxu0 %v2584
  %v2586 = vand.u32 %v2481, 4294901760
  %2587 = vmatpush.msra.mxu0 %v2586
  %v2588 = vand.u32 %v2479, 4294901760
  %2589 = vmatpush.msra.mxu0 %v2588
  %v2590 = vand.u32 %v2477, 4294901760
  %2591 = vmatpush.msra.mxu0 %v2590
  %v2592 = vand.u32 %v2475, 4294901760
  %2593 = vmatpush.msra.mxu0 %v2592
  %v2594 = vand.u32 %v2473, 4294901760
  %2595 = vmatpush.msra.mxu0 %v2594
  %v2596 = vand.u32 %v2471, 4294901760
  %2597 = vmatpush.msra.mxu0 %v2596
  %v2598 = vand.u32 %v2469, 4294901760
  %2599 = vmatpush.msra.mxu0 %v2598
  %v2600 = vand.u32 %v2467, 4294901760
  %2601 = vmatpush.msra.mxu0 %v2600
  %v2602 = vand.u32 %v2565, 4294901760
  %v2603 = vsub.f32 %v2565, %v2602
  %v2604 = vand.u32 %v2603, 4294901760
  %v2605 = vsub.f32 %v2603, %v2604
  %v2606 = vand.u32 %v2605, 4294901760
  %2607 = vmatmul.f32.gmra.mxu0 %v2606
  %v2608 = vpop.f32.mrf.mxu0
  %v2609 = vadd.f32 0.0, %v2608
  %2610 = vdwg.mxu0
  %v2611 = vand.u32 %v2497, 4294901760
  %v2612 = vsub.f32 %v2497, %v2611
  %v2613 = vand.u32 %v2612, 4294901760
  %v2614 = vsub.f32 %v2612, %v2613
  %v2615 = vand.u32 %v2614, 4294901760
  %2616 = vmatpush.msra.mxu0 %v2615
  %v2617 = vand.u32 %v2495, 4294901760
  %v2618 = vsub.f32 %v2495, %v2617
  %v2619 = vand.u32 %v2618, 4294901760
  %v2620 = vsub.f32 %v2618, %v2619
  %v2621 = vand.u32 %v2620, 4294901760
  %2622 = vmatpush.msra.mxu0 %v2621
  %v2623 = vand.u32 %v2493, 4294901760
  %v2624 = vsub.f32 %v2493, %v2623
  %v2625 = vand.u32 %v2624, 4294901760
  %v2626 = vsub.f32 %v2624, %v2625
  %v2627 = vand.u32 %v2626, 4294901760
  %2628 = vmatpush.msra.mxu0 %v2627
  %v2629 = vand.u32 %v2491, 4294901760
  %v2630 = vsub.f32 %v2491, %v2629
  %v2631 = vand.u32 %v2630, 4294901760
  %v2632 = vsub.f32 %v2630, %v2631
  %v2633 = vand.u32 %v2632, 4294901760
  %2634 = vmatpush.msra.mxu0 %v2633
  %v2635 = vand.u32 %v2489, 4294901760
  %v2636 = vsub.f32 %v2489, %v2635
  %v2637 = vand.u32 %v2636, 4294901760
  %v2638 = vsub.f32 %v2636, %v2637
  %v2639 = vand.u32 %v2638, 4294901760
  %2640 = vmatpush.msra.mxu0 %v2639
  %v2641 = vand.u32 %v2487, 4294901760
  %v2642 = vsub.f32 %v2487, %v2641
  %v2643 = vand.u32 %v2642, 4294901760
  %v2644 = vsub.f32 %v2642, %v2643
  %v2645 = vand.u32 %v2644, 4294901760
  %2646 = vmatpush.msra.mxu0 %v2645
  %v2647 = vand.u32 %v2485, 4294901760
  %v2648 = vsub.f32 %v2485, %v2647
  %v2649 = vand.u32 %v2648, 4294901760
  %v2650 = vsub.f32 %v2648, %v2649
  %v2651 = vand.u32 %v2650, 4294901760
  %2652 = vmatpush.msra.mxu0 %v2651
  %v2653 = vand.u32 %v2483, 4294901760
  %v2654 = vsub.f32 %v2483, %v2653
  %v2655 = vand.u32 %v2654, 4294901760
  %v2656 = vsub.f32 %v2654, %v2655
  %v2657 = vand.u32 %v2656, 4294901760
  %2658 = vmatpush.msra.mxu0 %v2657
  %v2659 = vand.u32 %v2481, 4294901760
  %v2660 = vsub.f32 %v2481, %v2659
  %v2661 = vand.u32 %v2660, 4294901760
  %v2662 = vsub.f32 %v2660, %v2661
  %v2663 = vand.u32 %v2662, 4294901760
  %2664 = vmatpush.msra.mxu0 %v2663
  %v2665 = vand.u32 %v2479, 4294901760
  %v2666 = vsub.f32 %v2479, %v2665
  %v2667 = vand.u32 %v2666, 4294901760
  %v2668 = vsub.f32 %v2666, %v2667
  %v2669 = vand.u32 %v2668, 4294901760
  %2670 = vmatpush.msra.mxu0 %v2669
  %v2671 = vand.u32 %v2477, 4294901760
  %v2672 = vsub.f32 %v2477, %v2671
  %v2673 = vand.u32 %v2672, 4294901760
  %v2674 = vsub.f32 %v2672, %v2673
  %v2675 = vand.u32 %v2674, 4294901760
  %2676 = vmatpush.msra.mxu0 %v2675
  %v2677 = vand.u32 %v2475, 4294901760
  %v2678 = vsub.f32 %v2475, %v2677
  %v2679 = vand.u32 %v2678, 4294901760
  %v2680 = vsub.f32 %v2678, %v2679
  %v2681 = vand.u32 %v2680, 4294901760
  %2682 = vmatpush.msra.mxu0 %v2681
  %v2683 = vand.u32 %v2473, 4294901760
  %v2684 = vsub.f32 %v2473, %v2683
  %v2685 = vand.u32 %v2684, 4294901760
  %v2686 = vsub.f32 %v2684, %v2685
  %v2687 = vand.u32 %v2686, 4294901760
  %2688 = vmatpush.msra.mxu0 %v2687
  %v2689 = vand.u32 %v2471, 4294901760
  %v2690 = vsub.f32 %v2471, %v2689
  %v2691 = vand.u32 %v2690, 4294901760
  %v2692 = vsub.f32 %v2690, %v2691
  %v2693 = vand.u32 %v2692, 4294901760
  %2694 = vmatpush.msra.mxu0 %v2693
  %v2695 = vand.u32 %v2469, 4294901760
  %v2696 = vsub.f32 %v2469, %v2695
  %v2697 = vand.u32 %v2696, 4294901760
  %v2698 = vsub.f32 %v2696, %v2697
  %v2699 = vand.u32 %v2698, 4294901760
  %2700 = vmatpush.msra.mxu0 %v2699
  %v2701 = vand.u32 %v2467, 4294901760
  %v2702 = vsub.f32 %v2467, %v2701
  %v2703 = vand.u32 %v2702, 4294901760
  %v2704 = vsub.f32 %v2702, %v2703
  %v2705 = vand.u32 %v2704, 4294901760
  %2706 = vmatpush.msra.mxu0 %v2705
  %v2707 = vand.u32 %v2565, 4294901760
  %2708 = vmatmul.f32.gmra.mxu0 %v2707
  %v2709 = vpop.f32.mrf.mxu0
  %v2710 = vadd.f32 %v2609, %v2709
  %2711 = vdwg.mxu0
  %v2712 = vand.u32 %v2497, 4294901760
  %v2713 = vsub.f32 %v2497, %v2712
  %2714 = vmatpush.msra.mxu0 %v2713
  %v2715 = vand.u32 %v2495, 4294901760
  %v2716 = vsub.f32 %v2495, %v2715
  %2717 = vmatpush.msra.mxu0 %v2716
  %v2718 = vand.u32 %v2493, 4294901760
  %v2719 = vsub.f32 %v2493, %v2718
  %2720 = vmatpush.msra.mxu0 %v2719
  %v2721 = vand.u32 %v2491, 4294901760
  %v2722 = vsub.f32 %v2491, %v2721
  %2723 = vmatpush.msra.mxu0 %v2722
  %v2724 = vand.u32 %v2489, 4294901760
  %v2725 = vsub.f32 %v2489, %v2724
  %2726 = vmatpush.msra.mxu0 %v2725
  %v2727 = vand.u32 %v2487, 4294901760
  %v2728 = vsub.f32 %v2487, %v2727
  %2729 = vmatpush.msra.mxu0 %v2728
  %v2730 = vand.u32 %v2485, 4294901760
  %v2731 = vsub.f32 %v2485, %v2730
  %2732 = vmatpush.msra.mxu0 %v2731
  %v2733 = vand.u32 %v2483, 4294901760
  %v2734 = vsub.f32 %v2483, %v2733
  %2735 = vmatpush.msra.mxu0 %v2734
  %v2736 = vand.u32 %v2481, 4294901760
  %v2737 = vsub.f32 %v2481, %v2736
  %2738 = vmatpush.msra.mxu0 %v2737
  %v2739 = vand.u32 %v2479, 4294901760
  %v2740 = vsub.f32 %v2479, %v2739
  %2741 = vmatpush.msra.mxu0 %v2740
  %v2742 = vand.u32 %v2477, 4294901760
  %v2743 = vsub.f32 %v2477, %v2742
  %2744 = vmatpush.msra.mxu0 %v2743
  %v2745 = vand.u32 %v2475, 4294901760
  %v2746 = vsub.f32 %v2475, %v2745
  %2747 = vmatpush.msra.mxu0 %v2746
  %v2748 = vand.u32 %v2473, 4294901760
  %v2749 = vsub.f32 %v2473, %v2748
  %2750 = vmatpush.msra.mxu0 %v2749
  %v2751 = vand.u32 %v2471, 4294901760
  %v2752 = vsub.f32 %v2471, %v2751
  %2753 = vmatpush.msra.mxu0 %v2752
  %v2754 = vand.u32 %v2469, 4294901760
  %v2755 = vsub.f32 %v2469, %v2754
  %2756 = vmatpush.msra.mxu0 %v2755
  %v2757 = vand.u32 %v2467, 4294901760
  %v2758 = vsub.f32 %v2467, %v2757
  %2759 = vmatpush.msra.mxu0 %v2758
  %v2760 = vand.u32 %v2565, 4294901760
  %v2761 = vsub.f32 %v2565, %v2760
  %2762 = vmatmul.f32.gmra.mxu0 %v2761
  %v2763 = vpop.f32.mrf.mxu0
  %v2764 = vadd.f32 %v2710, %v2763
  %2765 = vdwg.mxu0
  %v2766 = vand.u32 %v2497, 4294901760
  %2767 = vmatpush.msra.mxu0 %v2766
  %v2768 = vand.u32 %v2495, 4294901760
  %2769 = vmatpush.msra.mxu0 %v2768
  %v2770 = vand.u32 %v2493, 4294901760
  %2771 = vmatpush.msra.mxu0 %v2770
  %v2772 = vand.u32 %v2491, 4294901760
  %2773 = vmatpush.msra.mxu0 %v2772
  %v2774 = vand.u32 %v2489, 4294901760
  %2775 = vmatpush.msra.mxu0 %v2774
  %v2776 = vand.u32 %v2487, 4294901760
  %2777 = vmatpush.msra.mxu0 %v2776
  %v2778 = vand.u32 %v2485, 4294901760
  %2779 = vmatpush.msra.mxu0 %v2778
  %v2780 = vand.u32 %v2483, 4294901760
  %2781 = vmatpush.msra.mxu0 %v2780
  %v2782 = vand.u32 %v2481, 4294901760
  %2783 = vmatpush.msra.mxu0 %v2782
  %v2784 = vand.u32 %v2479, 4294901760
  %2785 = vmatpush.msra.mxu0 %v2784
  %v2786 = vand.u32 %v2477, 4294901760
  %2787 = vmatpush.msra.mxu0 %v2786
  %v2788 = vand.u32 %v2475, 4294901760
  %2789 = vmatpush.msra.mxu0 %v2788
  %v2790 = vand.u32 %v2473, 4294901760
  %2791 = vmatpush.msra.mxu0 %v2790
  %v2792 = vand.u32 %v2471, 4294901760
  %2793 = vmatpush.msra.mxu0 %v2792
  %v2794 = vand.u32 %v2469, 4294901760
  %2795 = vmatpush.msra.mxu0 %v2794
  %v2796 = vand.u32 %v2467, 4294901760
  %2797 = vmatpush.msra.mxu0 %v2796
  %v2798 = vand.u32 %v2565, 4294901760
  %v2799 = vsub.f32 %v2565, %v2798
  %v2800 = vand.u32 %v2799, 4294901760
  %2801 = vmatmul.f32.gmra.mxu0 %v2800
  %v2802 = vpop.f32.mrf.mxu0
  %v2803 = vadd.f32 %v2764, %v2802
  %2804 = vdwg.mxu0
  %v2805 = vand.u32 %v2497, 4294901760
  %v2806 = vsub.f32 %v2497, %v2805
  %v2807 = vand.u32 %v2806, 4294901760
  %2808 = vmatpush.msra.mxu0 %v2807
  %v2809 = vand.u32 %v2495, 4294901760
  %v2810 = vsub.f32 %v2495, %v2809
  %v2811 = vand.u32 %v2810, 4294901760
  %2812 = vmatpush.msra.mxu0 %v2811
  %v2813 = vand.u32 %v2493, 4294901760
  %v2814 = vsub.f32 %v2493, %v2813
  %v2815 = vand.u32 %v2814, 4294901760
  %2816 = vmatpush.msra.mxu0 %v2815
  %v2817 = vand.u32 %v2491, 4294901760
  %v2818 = vsub.f32 %v2491, %v2817
  %v2819 = vand.u32 %v2818, 4294901760
  %2820 = vmatpush.msra.mxu0 %v2819
  %v2821 = vand.u32 %v2489, 4294901760
  %v2822 = vsub.f32 %v2489, %v2821
  %v2823 = vand.u32 %v2822, 4294901760
  %2824 = vmatpush.msra.mxu0 %v2823
  %v2825 = vand.u32 %v2487, 4294901760
  %v2826 = vsub.f32 %v2487, %v2825
  %v2827 = vand.u32 %v2826, 4294901760
  %2828 = vmatpush.msra.mxu0 %v2827
  %v2829 = vand.u32 %v2485, 4294901760
  %v2830 = vsub.f32 %v2485, %v2829
  %v2831 = vand.u32 %v2830, 4294901760
  %2832 = vmatpush.msra.mxu0 %v2831
  %v2833 = vand.u32 %v2483, 4294901760
  %v2834 = vsub.f32 %v2483, %v2833
  %v2835 = vand.u32 %v2834, 4294901760
  %2836 = vmatpush.msra.mxu0 %v2835
  %v2837 = vand.u32 %v2481, 4294901760
  %v2838 = vsub.f32 %v2481, %v2837
  %v2839 = vand.u32 %v2838, 4294901760
  %2840 = vmatpush.msra.mxu0 %v2839
  %v2841 = vand.u32 %v2479, 4294901760
  %v2842 = vsub.f32 %v2479, %v2841
  %v2843 = vand.u32 %v2842, 4294901760
  %2844 = vmatpush.msra.mxu0 %v2843
  %v2845 = vand.u32 %v2477, 4294901760
  %v2846 = vsub.f32 %v2477, %v2845
  %v2847 = vand.u32 %v2846, 4294901760
  %2848 = vmatpush.msra.mxu0 %v2847
  %v2849 = vand.u32 %v2475, 4294901760
  %v2850 = vsub.f32 %v2475, %v2849
  %v2851 = vand.u32 %v2850, 4294901760
  %2852 = vmatpush.msra.mxu0 %v2851
  %v2853 = vand.u32 %v2473, 4294901760
  %v2854 = vsub.f32 %v2473, %v2853
  %v2855 = vand.u32 %v2854, 4294901760
  %2856 = vmatpush.msra.mxu0 %v2855
  %v2857 = vand.u32 %v2471, 4294901760
  %v2858 = vsub.f32 %v2471, %v2857
  %v2859 = vand.u32 %v2858, 4294901760
  %2860 = vmatpush.msra.mxu0 %v2859
  %v2861 = vand.u32 %v2469, 4294901760
  %v2862 = vsub.f32 %v2469, %v2861
  %v2863 = vand.u32 %v2862, 4294901760
  %2864 = vmatpush.msra.mxu0 %v2863
  %v2865 = vand.u32 %v2467, 4294901760
  %v2866 = vsub.f32 %v2467, %v2865
  %v2867 = vand.u32 %v2866, 4294901760
  %2868 = vmatpush.msra.mxu0 %v2867
  %v2869 = vand.u32 %v2565, 4294901760
  %2870 = vmatmul.f32.gmra.mxu0 %v2869
  %v2871 = vpop.f32.mrf.mxu0
  %v2872 = vadd.f32 %v2803, %v2871
  %2873 = vdwg.mxu0
  %v2874 = vand.u32 %v2497, 4294901760
  %2875 = vmatpush.msra.mxu0 %v2874
  %v2876 = vand.u32 %v2495, 4294901760
  %2877 = vmatpush.msra.mxu0 %v2876
  %v2878 = vand.u32 %v2493, 4294901760
  %2879 = vmatpush.msra.mxu0 %v2878
  %v2880 = vand.u32 %v2491, 4294901760
  %2881 = vmatpush.msra.mxu0 %v2880
  %v2882 = vand.u32 %v2489, 4294901760
  %2883 = vmatpush.msra.mxu0 %v2882
  %v2884 = vand.u32 %v2487, 4294901760
  %2885 = vmatpush.msra.mxu0 %v2884
  %v2886 = vand.u32 %v2485, 4294901760
  %2887 = vmatpush.msra.mxu0 %v2886
  %v2888 = vand.u32 %v2483, 4294901760
  %2889 = vmatpush.msra.mxu0 %v2888
  %v2890 = vand.u32 %v2481, 4294901760
  %2891 = vmatpush.msra.mxu0 %v2890
  %v2892 = vand.u32 %v2479, 4294901760
  %2893 = vmatpush.msra.mxu0 %v2892
  %v2894 = vand.u32 %v2477, 4294901760
  %2895 = vmatpush.msra.mxu0 %v2894
  %v2896 = vand.u32 %v2475, 4294901760
  %2897 = vmatpush.msra.mxu0 %v2896
  %v2898 = vand.u32 %v2473, 4294901760
  %2899 = vmatpush.msra.mxu0 %v2898
  %v2900 = vand.u32 %v2471, 4294901760
  %2901 = vmatpush.msra.mxu0 %v2900
  %v2902 = vand.u32 %v2469, 4294901760
  %2903 = vmatpush.msra.mxu0 %v2902
  %v2904 = vand.u32 %v2467, 4294901760
  %2905 = vmatpush.msra.mxu0 %v2904
  %v2906 = vand.u32 %v2565, 4294901760
  %2907 = vmatmul.f32.gmra.mxu0 %v2906
  %v2908 = vpop.f32.mrf.mxu0
  %v2909 = vadd.f32 %v2872, %v2908
  %2910 = vdwg.mxu0
  %2911 = vmatpush.msra.mxu0 0.0
  %2912 = vmatpush.msra.mxu0 0.0
  %2913 = vmatpush.msra.mxu0 0.0
  %2914 = vmatpush.msra.mxu0 0.0
  %2915 = vmatpush.msra.mxu0 0.0
  %2916 = vmatpush.msra.mxu0 0.0
  %2917 = vmatpush.msra.mxu0 0.0
  %2918 = vmatpush.msra.mxu0 0.0
  %2919 = vmatpush.msra.mxu0 0.0
  %2920 = vmatpush.msra.mxu0 0.0
  %2921 = vmatpush.msra.mxu0 0.0
  %2922 = vmatpush.msra.mxu0 0.0
  %v2923 = vand.u32 %v2505, 4294901760
  %2924 = vmatpush.msra.mxu0 %v2923
  %v2925 = vand.u32 %v2503, 4294901760
  %2926 = vmatpush.msra.mxu0 %v2925
  %v2927 = vand.u32 %v2501, 4294901760
  %2928 = vmatpush.msra.mxu0 %v2927
  %v2929 = vand.u32 %v2499, 4294901760
  %2930 = vmatpush.msra.mxu0 %v2929
  %v2931 = vand.u32 %v2568, 4294901760
  %v2932 = vsub.f32 %v2568, %v2931
  %v2933 = vand.u32 %v2932, 4294901760
  %v2934 = vsub.f32 %v2932, %v2933
  %v2935 = vand.u32 %v2934, 4294901760
  %2936 = vmatmul.f32.gmra.mxu0 %v2935
  %v2937 = vpop.f32.mrf.mxu0
  %v2938 = vadd.f32 %v2909, %v2937
  %2939 = vdwg.mxu0
  %2940 = vmatpush.msra.mxu0 0.0
  %2941 = vmatpush.msra.mxu0 0.0
  %2942 = vmatpush.msra.mxu0 0.0
  %2943 = vmatpush.msra.mxu0 0.0
  %2944 = vmatpush.msra.mxu0 0.0
  %2945 = vmatpush.msra.mxu0 0.0
  %2946 = vmatpush.msra.mxu0 0.0
  %2947 = vmatpush.msra.mxu0 0.0
  %2948 = vmatpush.msra.mxu0 0.0
  %2949 = vmatpush.msra.mxu0 0.0
  %2950 = vmatpush.msra.mxu0 0.0
  %2951 = vmatpush.msra.mxu0 0.0
  %v2952 = vand.u32 %v2505, 4294901760
  %v2953 = vsub.f32 %v2505, %v2952
  %v2954 = vand.u32 %v2953, 4294901760
  %v2955 = vsub.f32 %v2953, %v2954
  %v2956 = vand.u32 %v2955, 4294901760
  %2957 = vmatpush.msra.mxu0 %v2956
  %v2958 = vand.u32 %v2503, 4294901760
  %v2959 = vsub.f32 %v2503, %v2958
  %v2960 = vand.u32 %v2959, 4294901760
  %v2961 = vsub.f32 %v2959, %v2960
  %v2962 = vand.u32 %v2961, 4294901760
  %2963 = vmatpush.msra.mxu0 %v2962
  %v2964 = vand.u32 %v2501, 4294901760
  %v2965 = vsub.f32 %v2501, %v2964
  %v2966 = vand.u32 %v2965, 4294901760
  %v2967 = vsub.f32 %v2965, %v2966
  %v2968 = vand.u32 %v2967, 4294901760
  %2969 = vmatpush.msra.mxu0 %v2968
  %v2970 = vand.u32 %v2499, 4294901760
  %v2971 = vsub.f32 %v2499, %v2970
  %v2972 = vand.u32 %v2971, 4294901760
  %v2973 = vsub.f32 %v2971, %v2972
  %v2974 = vand.u32 %v2973, 4294901760
  %2975 = vmatpush.msra.mxu0 %v2974
  %v2976 = vand.u32 %v2568, 4294901760
  %2977 = vmatmul.f32.gmra.mxu0 %v2976
  %v2978 = vpop.f32.mrf.mxu0
  %v2979 = vadd.f32 %v2938, %v2978
  %2980 = vdwg.mxu0
  %2981 = vmatpush.msra.mxu0 0.0
  %2982 = vmatpush.msra.mxu0 0.0
  %2983 = vmatpush.msra.mxu0 0.0
  %2984 = vmatpush.msra.mxu0 0.0
  %2985 = vmatpush.msra.mxu0 0.0
  %2986 = vmatpush.msra.mxu0 0.0
  %2987 = vmatpush.msra.mxu0 0.0
  %2988 = vmatpush.msra.mxu0 0.0
  %2989 = vmatpush.msra.mxu0 0.0
  %2990 = vmatpush.msra.mxu0 0.0
  %2991 = vmatpush.msra.mxu0 0.0
  %2992 = vmatpush.msra.mxu0 0.0
  %v2993 = vand.u32 %v2505, 4294901760
  %v2994 = vsub.f32 %v2505, %v2993
  %2995 = vmatpush.msra.mxu0 %v2994
  %v2996 = vand.u32 %v2503, 4294901760
  %v2997 = vsub.f32 %v2503, %v2996
  %2998 = vmatpush.msra.mxu0 %v2997
  %v2999 = vand.u32 %v2501, 4294901760
  %v3000 = vsub.f32 %v2501, %v2999
  %3001 = vmatpush.msra.mxu0 %v3000
  %v3002 = vand.u32 %v2499, 4294901760
  %v3003 = vsub.f32 %v2499, %v3002
  %3004 = vmatpush.msra.mxu0 %v3003
  %v3005 = vand.u32 %v2568, 4294901760
  %v3006 = vsub.f32 %v2568, %v3005
  %3007 = vmatmul.f32.gmra.mxu0 %v3006
  %v3008 = vpop.f32.mrf.mxu0
  %v3009 = vadd.f32 %v2979, %v3008
  %3010 = vdwg.mxu0
  %3011 = vmatpush.msra.mxu0 0.0
  %3012 = vmatpush.msra.mxu0 0.0
  %3013 = vmatpush.msra.mxu0 0.0
  %3014 = vmatpush.msra.mxu0 0.0
  %3015 = vmatpush.msra.mxu0 0.0
  %3016 = vmatpush.msra.mxu0 0.0
  %3017 = vmatpush.msra.mxu0 0.0
  %3018 = vmatpush.msra.mxu0 0.0
  %3019 = vmatpush.msra.mxu0 0.0
  %3020 = vmatpush.msra.mxu0 0.0
  %3021 = vmatpush.msra.mxu0 0.0
  %3022 = vmatpush.msra.mxu0 0.0
  %v3023 = vand.u32 %v2505, 4294901760
  %3024 = vmatpush.msra.mxu0 %v3023
  %v3025 = vand.u32 %v2503, 4294901760
  %3026 = vmatpush.msra.mxu0 %v3025
  %v3027 = vand.u32 %v2501, 4294901760
  %3028 = vmatpush.msra.mxu0 %v3027
  %v3029 = vand.u32 %v2499, 4294901760
  %3030 = vmatpush.msra.mxu0 %v3029
  %v3031 = vand.u32 %v2568, 4294901760
  %v3032 = vsub.f32 %v2568, %v3031
  %v3033 = vand.u32 %v3032, 4294901760
  %3034 = vmatmul.f32.gmra.mxu0 %v3033
  %v3035 = vpop.f32.mrf.mxu0
  %v3036 = vadd.f32 %v3009, %v3035
  %3037 = vdwg.mxu0
  %3038 = vmatpush.msra.mxu0 0.0
  %3039 = vmatpush.msra.mxu0 0.0
  %3040 = vmatpush.msra.mxu0 0.0
  %3041 = vmatpush.msra.mxu0 0.0
  %3042 = vmatpush.msra.mxu0 0.0
  %3043 = vmatpush.msra.mxu0 0.0
  %3044 = vmatpush.msra.mxu0 0.0
  %3045 = vmatpush.msra.mxu0 0.0
  %3046 = vmatpush.msra.mxu0 0.0
  %3047 = vmatpush.msra.mxu0 0.0
  %3048 = vmatpush.msra.mxu0 0.0
  %3049 = vmatpush.msra.mxu0 0.0
  %v3050 = vand.u32 %v2505, 4294901760
  %v3051 = vsub.f32 %v2505, %v3050
  %v3052 = vand.u32 %v3051, 4294901760
  %3053 = vmatpush.msra.mxu0 %v3052
  %v3054 = vand.u32 %v2503, 4294901760
  %v3055 = vsub.f32 %v2503, %v3054
  %v3056 = vand.u32 %v3055, 4294901760
  %3057 = vmatpush.msra.mxu0 %v3056
  %v3058 = vand.u32 %v2501, 4294901760
  %v3059 = vsub.f32 %v2501, %v3058
  %v3060 = vand.u32 %v3059, 4294901760
  %3061 = vmatpush.msra.mxu0 %v3060
  %v3062 = vand.u32 %v2499, 4294901760
  %v3063 = vsub.f32 %v2499, %v3062
  %v3064 = vand.u32 %v3063, 4294901760
  %3065 = vmatpush.msra.mxu0 %v3064
  %v3066 = vand.u32 %v2568, 4294901760
  %3067 = vmatmul.f32.gmra.mxu0 %v3066
  %v3068 = vpop.f32.mrf.mxu0
  %v3069 = vadd.f32 %v3036, %v3068
  %3070 = vdwg.mxu0
  %3071 = vmatpush.msra.mxu0 0.0
  %3072 = vmatpush.msra.mxu0 0.0
  %3073 = vmatpush.msra.mxu0 0.0
  %3074 = vmatpush.msra.mxu0 0.0
  %3075 = vmatpush.msra.mxu0 0.0
  %3076 = vmatpush.msra.mxu0 0.0
  %3077 = vmatpush.msra.mxu0 0.0
  %3078 = vmatpush.msra.mxu0 0.0
  %3079 = vmatpush.msra.mxu0 0.0
  %3080 = vmatpush.msra.mxu0 0.0
  %3081 = vmatpush.msra.mxu0 0.0
  %3082 = vmatpush.msra.mxu0 0.0
  %v3083 = vand.u32 %v2505, 4294901760
  %3084 = vmatpush.msra.mxu0 %v3083
  %v3085 = vand.u32 %v2503, 4294901760
  %3086 = vmatpush.msra.mxu0 %v3085
  %v3087 = vand.u32 %v2501, 4294901760
  %3088 = vmatpush.msra.mxu0 %v3087
  %v3089 = vand.u32 %v2499, 4294901760
  %3090 = vmatpush.msra.mxu0 %v3089
  %v3091 = vand.u32 %v2568, 4294901760
  %3092 = vmatmul.f32.gmra.mxu0 %v3091
  %v3093 = vpop.f32.mrf.mxu0
  %v3094 = vadd.f32 %v3069, %v3093
  %3095 = vdwg.mxu0
  %v3096 = vand.u32 %v2498, 4294901760
  %3097 = vmatpush.msra.mxu0 %v3096
  %v3098 = vand.u32 %v2496, 4294901760
  %3099 = vmatpush.msra.mxu0 %v3098
  %v3100 = vand.u32 %v2494, 4294901760
  %3101 = vmatpush.msra.mxu0 %v3100
  %v3102 = vand.u32 %v2492, 4294901760
  %3103 = vmatpush.msra.mxu0 %v3102
  %v3104 = vand.u32 %v2490, 4294901760
  %3105 = vmatpush.msra.mxu0 %v3104
  %v3106 = vand.u32 %v2488, 4294901760
  %3107 = vmatpush.msra.mxu0 %v3106
  %v3108 = vand.u32 %v2486, 4294901760
  %3109 = vmatpush.msra.mxu0 %v3108
  %v3110 = vand.u32 %v2484, 4294901760
  %3111 = vmatpush.msra.mxu0 %v3110
  %v3112 = vand.u32 %v2482, 4294901760
  %3113 = vmatpush.msra.mxu0 %v3112
  %v3114 = vand.u32 %v2480, 4294901760
  %3115 = vmatpush.msra.mxu0 %v3114
  %v3116 = vand.u32 %v2478, 4294901760
  %3117 = vmatpush.msra.mxu0 %v3116
  %v3118 = vand.u32 %v2476, 4294901760
  %3119 = vmatpush.msra.mxu0 %v3118
  %v3120 = vand.u32 %v2474, 4294901760
  %3121 = vmatpush.msra.mxu0 %v3120
  %v3122 = vand.u32 %v2472, 4294901760
  %3123 = vmatpush.msra.mxu0 %v3122
  %v3124 = vand.u32 %v2470, 4294901760
  %3125 = vmatpush.msra.mxu0 %v3124
  %v3126 = vand.u32 %v2468, 4294901760
  %3127 = vmatpush.msra.mxu0 %v3126
  %v3128 = vand.u32 %v2565, 4294901760
  %v3129 = vsub.f32 %v2565, %v3128
  %v3130 = vand.u32 %v3129, 4294901760
  %v3131 = vsub.f32 %v3129, %v3130
  %v3132 = vand.u32 %v3131, 4294901760
  %3133 = vmatmul.f32.gmra.mxu0 %v3132
  %v3134 = vpop.f32.mrf.mxu0
  %v3135 = vadd.f32 0.0, %v3134
  %3136 = vdwg.mxu0
  %v3137 = vand.u32 %v2498, 4294901760
  %v3138 = vsub.f32 %v2498, %v3137
  %v3139 = vand.u32 %v3138, 4294901760
  %v3140 = vsub.f32 %v3138, %v3139
  %v3141 = vand.u32 %v3140, 4294901760
  %3142 = vmatpush.msra.mxu0 %v3141
  %v3143 = vand.u32 %v2496, 4294901760
  %v3144 = vsub.f32 %v2496, %v3143
  %v3145 = vand.u32 %v3144, 4294901760
  %v3146 = vsub.f32 %v3144, %v3145
  %v3147 = vand.u32 %v3146, 4294901760
  %3148 = vmatpush.msra.mxu0 %v3147
  %v3149 = vand.u32 %v2494, 4294901760
  %v3150 = vsub.f32 %v2494, %v3149
  %v3151 = vand.u32 %v3150, 4294901760
  %v3152 = vsub.f32 %v3150, %v3151
  %v3153 = vand.u32 %v3152, 4294901760
  %3154 = vmatpush.msra.mxu0 %v3153
  %v3155 = vand.u32 %v2492, 4294901760
  %v3156 = vsub.f32 %v2492, %v3155
  %v3157 = vand.u32 %v3156, 4294901760
  %v3158 = vsub.f32 %v3156, %v3157
  %v3159 = vand.u32 %v3158, 4294901760
  %3160 = vmatpush.msra.mxu0 %v3159
  %v3161 = vand.u32 %v2490, 4294901760
  %v3162 = vsub.f32 %v2490, %v3161
  %v3163 = vand.u32 %v3162, 4294901760
  %v3164 = vsub.f32 %v3162, %v3163
  %v3165 = vand.u32 %v3164, 4294901760
  %3166 = vmatpush.msra.mxu0 %v3165
  %v3167 = vand.u32 %v2488, 4294901760
  %v3168 = vsub.f32 %v2488, %v3167
  %v3169 = vand.u32 %v3168, 4294901760
  %v3170 = vsub.f32 %v3168, %v3169
  %v3171 = vand.u32 %v3170, 4294901760
  %3172 = vmatpush.msra.mxu0 %v3171
  %v3173 = vand.u32 %v2486, 4294901760
  %v3174 = vsub.f32 %v2486, %v3173
  %v3175 = vand.u32 %v3174, 4294901760
  %v3176 = vsub.f32 %v3174, %v3175
  %v3177 = vand.u32 %v3176, 4294901760
  %3178 = vmatpush.msra.mxu0 %v3177
  %v3179 = vand.u32 %v2484, 4294901760
  %v3180 = vsub.f32 %v2484, %v3179
  %v3181 = vand.u32 %v3180, 4294901760
  %v3182 = vsub.f32 %v3180, %v3181
  %v3183 = vand.u32 %v3182, 4294901760
  %3184 = vmatpush.msra.mxu0 %v3183
  %v3185 = vand.u32 %v2482, 4294901760
  %v3186 = vsub.f32 %v2482, %v3185
  %v3187 = vand.u32 %v3186, 4294901760
  %v3188 = vsub.f32 %v3186, %v3187
  %v3189 = vand.u32 %v3188, 4294901760
  %3190 = vmatpush.msra.mxu0 %v3189
  %v3191 = vand.u32 %v2480, 4294901760
  %v3192 = vsub.f32 %v2480, %v3191
  %v3193 = vand.u32 %v3192, 4294901760
  %v3194 = vsub.f32 %v3192, %v3193
  %v3195 = vand.u32 %v3194, 4294901760
  %3196 = vmatpush.msra.mxu0 %v3195
  %v3197 = vand.u32 %v2478, 4294901760
  %v3198 = vsub.f32 %v2478, %v3197
  %v3199 = vand.u32 %v3198, 4294901760
  %v3200 = vsub.f32 %v3198, %v3199
  %v3201 = vand.u32 %v3200, 4294901760
  %3202 = vmatpush.msra.mxu0 %v3201
  %v3203 = vand.u32 %v2476, 4294901760
  %v3204 = vsub.f32 %v2476, %v3203
  %v3205 = vand.u32 %v3204, 4294901760
  %v3206 = vsub.f32 %v3204, %v3205
  %v3207 = vand.u32 %v3206, 4294901760
  %3208 = vmatpush.msra.mxu0 %v3207
  %v3209 = vand.u32 %v2474, 4294901760
  %v3210 = vsub.f32 %v2474, %v3209
  %v3211 = vand.u32 %v3210, 4294901760
  %v3212 = vsub.f32 %v3210, %v3211
  %v3213 = vand.u32 %v3212, 4294901760
  %3214 = vmatpush.msra.mxu0 %v3213
  %v3215 = vand.u32 %v2472, 4294901760
  %v3216 = vsub.f32 %v2472, %v3215
  %v3217 = vand.u32 %v3216, 4294901760
  %v3218 = vsub.f32 %v3216, %v3217
  %v3219 = vand.u32 %v3218, 4294901760
  %3220 = vmatpush.msra.mxu0 %v3219
  %v3221 = vand.u32 %v2470, 4294901760
  %v3222 = vsub.f32 %v2470, %v3221
  %v3223 = vand.u32 %v3222, 4294901760
  %v3224 = vsub.f32 %v3222, %v3223
  %v3225 = vand.u32 %v3224, 4294901760
  %3226 = vmatpush.msra.mxu0 %v3225
  %v3227 = vand.u32 %v2468, 4294901760
  %v3228 = vsub.f32 %v2468, %v3227
  %v3229 = vand.u32 %v3228, 4294901760
  %v3230 = vsub.f32 %v3228, %v3229
  %v3231 = vand.u32 %v3230, 4294901760
  %3232 = vmatpush.msra.mxu0 %v3231
  %v3233 = vand.u32 %v2565, 4294901760
  %3234 = vmatmul.f32.gmra.mxu0 %v3233
  %v3235 = vpop.f32.mrf.mxu0
  %v3236 = vadd.f32 %v3135, %v3235
  %3237 = vdwg.mxu0
  %v3238 = vand.u32 %v2498, 4294901760
  %v3239 = vsub.f32 %v2498, %v3238
  %3240 = vmatpush.msra.mxu0 %v3239
  %v3241 = vand.u32 %v2496, 4294901760
  %v3242 = vsub.f32 %v2496, %v3241
  %3243 = vmatpush.msra.mxu0 %v3242
  %v3244 = vand.u32 %v2494, 4294901760
  %v3245 = vsub.f32 %v2494, %v3244
  %3246 = vmatpush.msra.mxu0 %v3245
  %v3247 = vand.u32 %v2492, 4294901760
  %v3248 = vsub.f32 %v2492, %v3247
  %3249 = vmatpush.msra.mxu0 %v3248
  %v3250 = vand.u32 %v2490, 4294901760
  %v3251 = vsub.f32 %v2490, %v3250
  %3252 = vmatpush.msra.mxu0 %v3251
  %v3253 = vand.u32 %v2488, 4294901760
  %v3254 = vsub.f32 %v2488, %v3253
  %3255 = vmatpush.msra.mxu0 %v3254
  %v3256 = vand.u32 %v2486, 4294901760
  %v3257 = vsub.f32 %v2486, %v3256
  %3258 = vmatpush.msra.mxu0 %v3257
  %v3259 = vand.u32 %v2484, 4294901760
  %v3260 = vsub.f32 %v2484, %v3259
  %3261 = vmatpush.msra.mxu0 %v3260
  %v3262 = vand.u32 %v2482, 4294901760
  %v3263 = vsub.f32 %v2482, %v3262
  %3264 = vmatpush.msra.mxu0 %v3263
  %v3265 = vand.u32 %v2480, 4294901760
  %v3266 = vsub.f32 %v2480, %v3265
  %3267 = vmatpush.msra.mxu0 %v3266
  %v3268 = vand.u32 %v2478, 4294901760
  %v3269 = vsub.f32 %v2478, %v3268
  %3270 = vmatpush.msra.mxu0 %v3269
  %v3271 = vand.u32 %v2476, 4294901760
  %v3272 = vsub.f32 %v2476, %v3271
  %3273 = vmatpush.msra.mxu0 %v3272
  %v3274 = vand.u32 %v2474, 4294901760
  %v3275 = vsub.f32 %v2474, %v3274
  %3276 = vmatpush.msra.mxu0 %v3275
  %v3277 = vand.u32 %v2472, 4294901760
  %v3278 = vsub.f32 %v2472, %v3277
  %3279 = vmatpush.msra.mxu0 %v3278
  %v3280 = vand.u32 %v2470, 4294901760
  %v3281 = vsub.f32 %v2470, %v3280
  %3282 = vmatpush.msra.mxu0 %v3281
  %v3283 = vand.u32 %v2468, 4294901760
  %v3284 = vsub.f32 %v2468, %v3283
  %3285 = vmatpush.msra.mxu0 %v3284
  %v3286 = vand.u32 %v2565, 4294901760
  %v3287 = vsub.f32 %v2565, %v3286
  %3288 = vmatmul.f32.gmra.mxu0 %v3287
  %v3289 = vpop.f32.mrf.mxu0
  %v3290 = vadd.f32 %v3236, %v3289
  %3291 = vdwg.mxu0
  %v3292 = vand.u32 %v2498, 4294901760
  %3293 = vmatpush.msra.mxu0 %v3292
  %v3294 = vand.u32 %v2496, 4294901760
  %3295 = vmatpush.msra.mxu0 %v3294
  %v3296 = vand.u32 %v2494, 4294901760
  %3297 = vmatpush.msra.mxu0 %v3296
  %v3298 = vand.u32 %v2492, 4294901760
  %3299 = vmatpush.msra.mxu0 %v3298
  %v3300 = vand.u32 %v2490, 4294901760
  %3301 = vmatpush.msra.mxu0 %v3300
  %v3302 = vand.u32 %v2488, 4294901760
  %3303 = vmatpush.msra.mxu0 %v3302
  %v3304 = vand.u32 %v2486, 4294901760
  %3305 = vmatpush.msra.mxu0 %v3304
  %v3306 = vand.u32 %v2484, 4294901760
  %3307 = vmatpush.msra.mxu0 %v3306
  %v3308 = vand.u32 %v2482, 4294901760
  %3309 = vmatpush.msra.mxu0 %v3308
  %v3310 = vand.u32 %v2480, 4294901760
  %3311 = vmatpush.msra.mxu0 %v3310
  %v3312 = vand.u32 %v2478, 4294901760
  %3313 = vmatpush.msra.mxu0 %v3312
  %v3314 = vand.u32 %v2476, 4294901760
  %3315 = vmatpush.msra.mxu0 %v3314
  %v3316 = vand.u32 %v2474, 4294901760
  %3317 = vmatpush.msra.mxu0 %v3316
  %v3318 = vand.u32 %v2472, 4294901760
  %3319 = vmatpush.msra.mxu0 %v3318
  %v3320 = vand.u32 %v2470, 4294901760
  %3321 = vmatpush.msra.mxu0 %v3320
  %v3322 = vand.u32 %v2468, 4294901760
  %3323 = vmatpush.msra.mxu0 %v3322
  %v3324 = vand.u32 %v2565, 4294901760
  %v3325 = vsub.f32 %v2565, %v3324
  %v3326 = vand.u32 %v3325, 4294901760
  %3327 = vmatmul.f32.gmra.mxu0 %v3326
  %v3328 = vpop.f32.mrf.mxu0
  %v3329 = vadd.f32 %v3290, %v3328
  %3330 = vdwg.mxu0
  %v3331 = vand.u32 %v2498, 4294901760
  %v3332 = vsub.f32 %v2498, %v3331
  %v3333 = vand.u32 %v3332, 4294901760
  %3334 = vmatpush.msra.mxu0 %v3333
  %v3335 = vand.u32 %v2496, 4294901760
  %v3336 = vsub.f32 %v2496, %v3335
  %v3337 = vand.u32 %v3336, 4294901760
  %3338 = vmatpush.msra.mxu0 %v3337
  %v3339 = vand.u32 %v2494, 4294901760
  %v3340 = vsub.f32 %v2494, %v3339
  %v3341 = vand.u32 %v3340, 4294901760
  %3342 = vmatpush.msra.mxu0 %v3341
  %v3343 = vand.u32 %v2492, 4294901760
  %v3344 = vsub.f32 %v2492, %v3343
  %v3345 = vand.u32 %v3344, 4294901760
  %3346 = vmatpush.msra.mxu0 %v3345
  %v3347 = vand.u32 %v2490, 4294901760
  %v3348 = vsub.f32 %v2490, %v3347
  %v3349 = vand.u32 %v3348, 4294901760
  %3350 = vmatpush.msra.mxu0 %v3349
  %v3351 = vand.u32 %v2488, 4294901760
  %v3352 = vsub.f32 %v2488, %v3351
  %v3353 = vand.u32 %v3352, 4294901760
  %3354 = vmatpush.msra.mxu0 %v3353
  %v3355 = vand.u32 %v2486, 4294901760
  %v3356 = vsub.f32 %v2486, %v3355
  %v3357 = vand.u32 %v3356, 4294901760
  %3358 = vmatpush.msra.mxu0 %v3357
  %v3359 = vand.u32 %v2484, 4294901760
  %v3360 = vsub.f32 %v2484, %v3359
  %v3361 = vand.u32 %v3360, 4294901760
  %3362 = vmatpush.msra.mxu0 %v3361
  %v3363 = vand.u32 %v2482, 4294901760
  %v3364 = vsub.f32 %v2482, %v3363
  %v3365 = vand.u32 %v3364, 4294901760
  %3366 = vmatpush.msra.mxu0 %v3365
  %v3367 = vand.u32 %v2480, 4294901760
  %v3368 = vsub.f32 %v2480, %v3367
  %v3369 = vand.u32 %v3368, 4294901760
  %3370 = vmatpush.msra.mxu0 %v3369
  %v3371 = vand.u32 %v2478, 4294901760
  %v3372 = vsub.f32 %v2478, %v3371
  %v3373 = vand.u32 %v3372, 4294901760
  %3374 = vmatpush.msra.mxu0 %v3373
  %v3375 = vand.u32 %v2476, 4294901760
  %v3376 = vsub.f32 %v2476, %v3375
  %v3377 = vand.u32 %v3376, 4294901760
  %3378 = vmatpush.msra.mxu0 %v3377
  %v3379 = vand.u32 %v2474, 4294901760
  %v3380 = vsub.f32 %v2474, %v3379
  %v3381 = vand.u32 %v3380, 4294901760
  %3382 = vmatpush.msra.mxu0 %v3381
  %v3383 = vand.u32 %v2472, 4294901760
  %v3384 = vsub.f32 %v2472, %v3383
  %v3385 = vand.u32 %v3384, 4294901760
  %3386 = vmatpush.msra.mxu0 %v3385
  %v3387 = vand.u32 %v2470, 4294901760
  %v3388 = vsub.f32 %v2470, %v3387
  %v3389 = vand.u32 %v3388, 4294901760
  %3390 = vmatpush.msra.mxu0 %v3389
  %v3391 = vand.u32 %v2468, 4294901760
  %v3392 = vsub.f32 %v2468, %v3391
  %v3393 = vand.u32 %v3392, 4294901760
  %3394 = vmatpush.msra.mxu0 %v3393
  %v3395 = vand.u32 %v2565, 4294901760
  %3396 = vmatmul.f32.gmra.mxu0 %v3395
  %v3397 = vpop.f32.mrf.mxu0
  %v3398 = vadd.f32 %v3329, %v3397
  %3399 = vdwg.mxu0
  %v3400 = vand.u32 %v2498, 4294901760
  %3401 = vmatpush.msra.mxu0 %v3400
  %v3402 = vand.u32 %v2496, 4294901760
  %3403 = vmatpush.msra.mxu0 %v3402
  %v3404 = vand.u32 %v2494, 4294901760
  %3405 = vmatpush.msra.mxu0 %v3404
  %v3406 = vand.u32 %v2492, 4294901760
  %3407 = vmatpush.msra.mxu0 %v3406
  %v3408 = vand.u32 %v2490, 4294901760
  %3409 = vmatpush.msra.mxu0 %v3408
  %v3410 = vand.u32 %v2488, 4294901760
  %3411 = vmatpush.msra.mxu0 %v3410
  %v3412 = vand.u32 %v2486, 4294901760
  %3413 = vmatpush.msra.mxu0 %v3412
  %v3414 = vand.u32 %v2484, 4294901760
  %3415 = vmatpush.msra.mxu0 %v3414
  %v3416 = vand.u32 %v2482, 4294901760
  %3417 = vmatpush.msra.mxu0 %v3416
  %v3418 = vand.u32 %v2480, 4294901760
  %3419 = vmatpush.msra.mxu0 %v3418
  %v3420 = vand.u32 %v2478, 4294901760
  %3421 = vmatpush.msra.mxu0 %v3420
  %v3422 = vand.u32 %v2476, 4294901760
  %3423 = vmatpush.msra.mxu0 %v3422
  %v3424 = vand.u32 %v2474, 4294901760
  %3425 = vmatpush.msra.mxu0 %v3424
  %v3426 = vand.u32 %v2472, 4294901760
  %3427 = vmatpush.msra.mxu0 %v3426
  %v3428 = vand.u32 %v2470, 4294901760
  %3429 = vmatpush.msra.mxu0 %v3428
  %v3430 = vand.u32 %v2468, 4294901760
  %3431 = vmatpush.msra.mxu0 %v3430
  %v3432 = vand.u32 %v2565, 4294901760
  %3433 = vmatmul.f32.gmra.mxu0 %v3432
  %v3434 = vpop.f32.mrf.mxu0
  %v3435 = vadd.f32 %v3398, %v3434
  %3436 = vdwg.mxu0
  %3437 = vmatpush.msra.mxu0 0.0
  %3438 = vmatpush.msra.mxu0 0.0
  %3439 = vmatpush.msra.mxu0 0.0
  %3440 = vmatpush.msra.mxu0 0.0
  %3441 = vmatpush.msra.mxu0 0.0
  %3442 = vmatpush.msra.mxu0 0.0
  %3443 = vmatpush.msra.mxu0 0.0
  %3444 = vmatpush.msra.mxu0 0.0
  %3445 = vmatpush.msra.mxu0 0.0
  %3446 = vmatpush.msra.mxu0 0.0
  %3447 = vmatpush.msra.mxu0 0.0
  %3448 = vmatpush.msra.mxu0 0.0
  %v3449 = vand.u32 %v2506, 4294901760
  %3450 = vmatpush.msra.mxu0 %v3449
  %v3451 = vand.u32 %v2504, 4294901760
  %3452 = vmatpush.msra.mxu0 %v3451
  %v3453 = vand.u32 %v2502, 4294901760
  %3454 = vmatpush.msra.mxu0 %v3453
  %v3455 = vand.u32 %v2500, 4294901760
  %3456 = vmatpush.msra.mxu0 %v3455
  %v3457 = vand.u32 %v2568, 4294901760
  %v3458 = vsub.f32 %v2568, %v3457
  %v3459 = vand.u32 %v3458, 4294901760
  %v3460 = vsub.f32 %v3458, %v3459
  %v3461 = vand.u32 %v3460, 4294901760
  %3462 = vmatmul.f32.gmra.mxu0 %v3461
  %v3463 = vpop.f32.mrf.mxu0
  %v3464 = vadd.f32 %v3435, %v3463
  %3465 = vdwg.mxu0
  %3466 = vmatpush.msra.mxu0 0.0
  %3467 = vmatpush.msra.mxu0 0.0
  %3468 = vmatpush.msra.mxu0 0.0
  %3469 = vmatpush.msra.mxu0 0.0
  %3470 = vmatpush.msra.mxu0 0.0
  %3471 = vmatpush.msra.mxu0 0.0
  %3472 = vmatpush.msra.mxu0 0.0
  %3473 = vmatpush.msra.mxu0 0.0
  %3474 = vmatpush.msra.mxu0 0.0
  %3475 = vmatpush.msra.mxu0 0.0
  %3476 = vmatpush.msra.mxu0 0.0
  %3477 = vmatpush.msra.mxu0 0.0
  %v3478 = vand.u32 %v2506, 4294901760
  %v3479 = vsub.f32 %v2506, %v3478
  %v3480 = vand.u32 %v3479, 4294901760
  %v3481 = vsub.f32 %v3479, %v3480
  %v3482 = vand.u32 %v3481, 4294901760
  %3483 = vmatpush.msra.mxu0 %v3482
  %v3484 = vand.u32 %v2504, 4294901760
  %v3485 = vsub.f32 %v2504, %v3484
  %v3486 = vand.u32 %v3485, 4294901760
  %v3487 = vsub.f32 %v3485, %v3486
  %v3488 = vand.u32 %v3487, 4294901760
  %3489 = vmatpush.msra.mxu0 %v3488
  %v3490 = vand.u32 %v2502, 4294901760
  %v3491 = vsub.f32 %v2502, %v3490
  %v3492 = vand.u32 %v3491, 4294901760
  %v3493 = vsub.f32 %v3491, %v3492
  %v3494 = vand.u32 %v3493, 4294901760
  %3495 = vmatpush.msra.mxu0 %v3494
  %v3496 = vand.u32 %v2500, 4294901760
  %v3497 = vsub.f32 %v2500, %v3496
  %v3498 = vand.u32 %v3497, 4294901760
  %v3499 = vsub.f32 %v3497, %v3498
  %v3500 = vand.u32 %v3499, 4294901760
  %3501 = vmatpush.msra.mxu0 %v3500
  %v3502 = vand.u32 %v2568, 4294901760
  %3503 = vmatmul.f32.gmra.mxu0 %v3502
  %v3504 = vpop.f32.mrf.mxu0
  %v3505 = vadd.f32 %v3464, %v3504
  %3506 = vdwg.mxu0
  %3507 = vmatpush.msra.mxu0 0.0
  %3508 = vmatpush.msra.mxu0 0.0
  %3509 = vmatpush.msra.mxu0 0.0
  %3510 = vmatpush.msra.mxu0 0.0
  %3511 = vmatpush.msra.mxu0 0.0
  %3512 = vmatpush.msra.mxu0 0.0
  %3513 = vmatpush.msra.mxu0 0.0
  %3514 = vmatpush.msra.mxu0 0.0
  %3515 = vmatpush.msra.mxu0 0.0
  %3516 = vmatpush.msra.mxu0 0.0
  %3517 = vmatpush.msra.mxu0 0.0
  %3518 = vmatpush.msra.mxu0 0.0
  %v3519 = vand.u32 %v2506, 4294901760
  %v3520 = vsub.f32 %v2506, %v3519
  %3521 = vmatpush.msra.mxu0 %v3520
  %v3522 = vand.u32 %v2504, 4294901760
  %v3523 = vsub.f32 %v2504, %v3522
  %3524 = vmatpush.msra.mxu0 %v3523
  %v3525 = vand.u32 %v2502, 4294901760
  %v3526 = vsub.f32 %v2502, %v3525
  %3527 = vmatpush.msra.mxu0 %v3526
  %v3528 = vand.u32 %v2500, 4294901760
  %v3529 = vsub.f32 %v2500, %v3528
  %3530 = vmatpush.msra.mxu0 %v3529
  %v3531 = vand.u32 %v2568, 4294901760
  %v3532 = vsub.f32 %v2568, %v3531
  %3533 = vmatmul.f32.gmra.mxu0 %v3532
  %v3534 = vpop.f32.mrf.mxu0
  %v3535 = vadd.f32 %v3505, %v3534
  %3536 = vdwg.mxu0
  %3537 = vmatpush.msra.mxu0 0.0
  %3538 = vmatpush.msra.mxu0 0.0
  %3539 = vmatpush.msra.mxu0 0.0
  %3540 = vmatpush.msra.mxu0 0.0
  %3541 = vmatpush.msra.mxu0 0.0
  %3542 = vmatpush.msra.mxu0 0.0
  %3543 = vmatpush.msra.mxu0 0.0
  %3544 = vmatpush.msra.mxu0 0.0
  %3545 = vmatpush.msra.mxu0 0.0
  %3546 = vmatpush.msra.mxu0 0.0
  %3547 = vmatpush.msra.mxu0 0.0
  %3548 = vmatpush.msra.mxu0 0.0
  %v3549 = vand.u32 %v2506, 4294901760
  %3550 = vmatpush.msra.mxu0 %v3549
  %v3551 = vand.u32 %v2504, 4294901760
  %3552 = vmatpush.msra.mxu0 %v3551
  %v3553 = vand.u32 %v2502, 4294901760
  %3554 = vmatpush.msra.mxu0 %v3553
  %v3555 = vand.u32 %v2500, 4294901760
  %3556 = vmatpush.msra.mxu0 %v3555
  %v3557 = vand.u32 %v2568, 4294901760
  %v3558 = vsub.f32 %v2568, %v3557
  %v3559 = vand.u32 %v3558, 4294901760
  %3560 = vmatmul.f32.gmra.mxu0 %v3559
  %v3561 = vpop.f32.mrf.mxu0
  %v3562 = vadd.f32 %v3535, %v3561
  %3563 = vdwg.mxu0
  %3564 = vmatpush.msra.mxu0 0.0
  %3565 = vmatpush.msra.mxu0 0.0
  %3566 = vmatpush.msra.mxu0 0.0
  %3567 = vmatpush.msra.mxu0 0.0
  %3568 = vmatpush.msra.mxu0 0.0
  %3569 = vmatpush.msra.mxu0 0.0
  %3570 = vmatpush.msra.mxu0 0.0
  %3571 = vmatpush.msra.mxu0 0.0
  %3572 = vmatpush.msra.mxu0 0.0
  %3573 = vmatpush.msra.mxu0 0.0
  %3574 = vmatpush.msra.mxu0 0.0
  %3575 = vmatpush.msra.mxu0 0.0
  %v3576 = vand.u32 %v2506, 4294901760
  %v3577 = vsub.f32 %v2506, %v3576
  %v3578 = vand.u32 %v3577, 4294901760
  %3579 = vmatpush.msra.mxu0 %v3578
  %v3580 = vand.u32 %v2504, 4294901760
  %v3581 = vsub.f32 %v2504, %v3580
  %v3582 = vand.u32 %v3581, 4294901760
  %3583 = vmatpush.msra.mxu0 %v3582
  %v3584 = vand.u32 %v2502, 4294901760
  %v3585 = vsub.f32 %v2502, %v3584
  %v3586 = vand.u32 %v3585, 4294901760
  %3587 = vmatpush.msra.mxu0 %v3586
  %v3588 = vand.u32 %v2500, 4294901760
  %v3589 = vsub.f32 %v2500, %v3588
  %v3590 = vand.u32 %v3589, 4294901760
  %3591 = vmatpush.msra.mxu0 %v3590
  %v3592 = vand.u32 %v2568, 4294901760
  %3593 = vmatmul.f32.gmra.mxu0 %v3592
  %v3594 = vpop.f32.mrf.mxu0
  %v3595 = vadd.f32 %v3562, %v3594
  %3596 = vdwg.mxu0
  %3597 = vmatpush.msra.mxu0 0.0
  %3598 = vmatpush.msra.mxu0 0.0
  %3599 = vmatpush.msra.mxu0 0.0
  %3600 = vmatpush.msra.mxu0 0.0
  %3601 = vmatpush.msra.mxu0 0.0
  %3602 = vmatpush.msra.mxu0 0.0
  %3603 = vmatpush.msra.mxu0 0.0
  %3604 = vmatpush.msra.mxu0 0.0
  %3605 = vmatpush.msra.mxu0 0.0
  %3606 = vmatpush.msra.mxu0 0.0
  %3607 = vmatpush.msra.mxu0 0.0
  %3608 = vmatpush.msra.mxu0 0.0
  %v3609 = vand.u32 %v2506, 4294901760
  %3610 = vmatpush.msra.mxu0 %v3609
  %v3611 = vand.u32 %v2504, 4294901760
  %3612 = vmatpush.msra.mxu0 %v3611
  %v3613 = vand.u32 %v2502, 4294901760
  %3614 = vmatpush.msra.mxu0 %v3613
  %v3615 = vand.u32 %v2500, 4294901760
  %3616 = vmatpush.msra.mxu0 %v3615
  %v3617 = vand.u32 %v2568, 4294901760
  %3618 = vmatmul.f32.gmra.mxu0 %v3617
  %v3619 = vpop.f32.mrf.mxu0
  %v3620 = vadd.f32 %v3595, %v3619
  %3621 = vdwg.mxu0
  %v3622 = vadd.f32 %v3094, 1.0
  %v3623 = vadd.f32 %v3620, 1.0
  %v3624 = vrcp.pop %v3622
  %v3625 = vmul.f32 %v3622, %v3624
  %v3626 = vsub.f32 1.0, %v3625
  %v3627 = vmul.f32 %v3624, %v3626
  %v3628 = vadd.f32 %v3624, %v3627
  %vm3629 = vweird.f32 %v3622
  %vm3630 = vweird.f32 %v3624
  %vm3631 = vmor %vm3629, %vm3630
  %v3632 = vsel %vm3631, %v3624, %v3628
  %v3633 = vand.u32 2147483647, %v3622
  %vm3634 = vcmp.eq.f32.partialorder %v3633, 8.507059e+37
  %v3635 = vand.u32 %v3622, 2147483648
  %v3636 = vor.u32 1.1754944e-38, %v3635
  %v3637 = vsel %vm3634, %v3636, %v3632
  %v3638 = vmul.f32 %v3094, %v3637
  %v3639 = vrcp.pop %v3623
  %v3640 = vmul.f32 %v3623, %v3639
  %v3641 = vsub.f32 1.0, %v3640
  %v3642 = vmul.f32 %v3639, %v3641
  %v3643 = vadd.f32 %v3639, %v3642
  %vm3644 = vweird.f32 %v3623
  %vm3645 = vweird.f32 %v3639
  %vm3646 = vmor %vm3644, %vm3645
  %v3647 = vsel %vm3646, %v3639, %v3643
  %v3648 = vand.u32 2147483647, %v3623
  %vm3649 = vcmp.eq.f32.partialorder %v3648, 8.507059e+37
  %v3650 = vand.u32 %v3623, 2147483648
  %v3651 = vor.u32 1.1754944e-38, %v3650
  %v3652 = vsel %vm3649, %v3651, %v3647
  %v3653 = vmul.f32 %v3620, %v3652
  %v3658 = vsel %vm2564, %v2554, %v2552
  %v3659 = vsel %vm2564, %v2555, %v2553
  %v3662 = vmul.f32 %v3638, %v3658
  %v3663 = vmul.f32 %v3653, %v3659
  %v3664 = vrsqrt.pop %v3094
  %v3665 = vmul.f32 %v3664, %v3094
  %v3666 = vmul.f32 %v3665, %v3664
  %v3667 = vmul.f32 0.5, %v3666
  %v3668 = vsub.f32 1.5, %v3667
  %v3669 = vmul.f32 %v3664, %v3668
  %vm3670 = vweird.f32 %v3094
  %vm3671 = vweird.f32 %v3664
  %vm3672 = vmor %vm3670, %vm3671
  %v3673 = vsel %vm3672, %v3664, %v3669
  %v3674 = vrsqrt.pop %v3620
  %v3675 = vmul.f32 %v3674, %v3620
  %v3676 = vmul.f32 %v3675, %v3674
  %v3677 = vmul.f32 0.5, %v3676
  %v3678 = vsub.f32 1.5, %v3677
  %v3679 = vmul.f32 %v3674, %v3678
  %vm3680 = vweird.f32 %v3620
  %vm3681 = vweird.f32 %v3674
  %vm3682 = vmor %vm3680, %vm3681
  %v3683 = vsel %vm3682, %v3674, %v3679
  %v3684 = vmul.f32 %v3662, %v3673
  %v3685 = vmul.f32 %v3663, %v3683
  %v3688 = vrot.slane %v3685, 7
  %vm3689 = vcmask 1040384
  %v3690 = vsel %vm3689, %v3684, %v3688
  %v3691 = vsel %vm2564, %v3684, %v3688
  %v3692 = vrot.slane %v3691, 1
  %v3693 = vperm.slane %v3690, 0
  %v3694 = vperm.slane %v3690, 1
  %v3695 = vperm.slane %v3692, 0
  %v3696 = vperm.slane %v3692, 1
  %v3701 = vmul.f32 %v1177, %v3693
  %v3702 = vmul.f32 %v2293, %v3694
  %v3703 = vmul.f32 %v1181, %v3693
  %v3704 = vmul.f32 %v2297, %v3694
  %v3705 = vmul.f32 %v1185, %v3693
  %v3706 = vmul.f32 %v2301, %v3694
  %v3707 = vmul.f32 %v1189, %v3693
  %v3708 = vmul.f32 %v2305, %v3694
  %v3709 = vmul.f32 %v1193, %v3695
  %v3710 = vmul.f32 %v2309, %v3696
  %v3711 = vmul.f32 %v1197, %v3695
  %v3712 = vmul.f32 %v2313, %v3696
  %v3713 = vmul.f32 %v1201, %v3695
  %v3714 = vmul.f32 %v2317, %v3696
  %v3715 = vmul.f32 %v1205, %v3695
  %v3716 = vmul.f32 %v2321, %v3696
  %v3718 = vsel %vm2516, %v3702, 0
  %v3721 = vsel %vm2516, %v3704, 0
  %v3724 = vsel %vm2516, %v3706, 0
  %v3727 = vsel %vm2516, %v3708, 0
  %v3730 = vsel %vm2516, %v3710, 0
  %v3733 = vsel %vm2516, %v3712, 0
  %v3736 = vsel %vm2516, %v3714, 0
  %v3739 = vsel %vm2516, %v3716, 0
  %v3741 = vand.u32 %v2497, 4294901760
  %3742 = vmatpush.msra.mxu0 %v3741
  %v3743 = vand.u32 %v2495, 4294901760
  %3744 = vmatpush.msra.mxu0 %v3743
  %v3745 = vand.u32 %v2493, 4294901760
  %3746 = vmatpush.msra.mxu0 %v3745
  %v3747 = vand.u32 %v2491, 4294901760
  %3748 = vmatpush.msra.mxu0 %v3747
  %v3749 = vand.u32 %v2489, 4294901760
  %3750 = vmatpush.msra.mxu0 %v3749
  %v3751 = vand.u32 %v2487, 4294901760
  %3752 = vmatpush.msra.mxu0 %v3751
  %v3753 = vand.u32 %v2485, 4294901760
  %3754 = vmatpush.msra.mxu0 %v3753
  %v3755 = vand.u32 %v2483, 4294901760
  %3756 = vmatpush.msra.mxu0 %v3755
  %v3757 = vand.u32 %v2481, 4294901760
  %3758 = vmatpush.msra.mxu0 %v3757
  %v3759 = vand.u32 %v2479, 4294901760
  %3760 = vmatpush.msra.mxu0 %v3759
  %v3761 = vand.u32 %v2477, 4294901760
  %3762 = vmatpush.msra.mxu0 %v3761
  %v3763 = vand.u32 %v2475, 4294901760
  %3764 = vmatpush.msra.mxu0 %v3763
  %v3765 = vand.u32 %v2473, 4294901760
  %3766 = vmatpush.msra.mxu0 %v3765
  %v3767 = vand.u32 %v2471, 4294901760
  %3768 = vmatpush.msra.mxu0 %v3767
  %v3769 = vand.u32 %v2469, 4294901760
  %3770 = vmatpush.msra.mxu0 %v3769
  %v3771 = vand.u32 %v2467, 4294901760
  %3772 = vmatpush.msra.mxu0 %v3771
  %v3773 = vand.u32 %v3701, 4294901760
  %v3774 = vsub.f32 %v3701, %v3773
  %v3775 = vand.u32 %v3774, 4294901760
  %v3776 = vsub.f32 %v3774, %v3775
  %v3777 = vand.u32 %v3776, 4294901760
  %3778 = vmatmul.f32.gmra.mxu0 %v3777
  %v3779 = vpop.f32.mrf.mxu0
  %v3780 = vadd.f32 0.0, %v3779
  %v3781 = vand.u32 %v3703, 4294901760
  %v3782 = vsub.f32 %v3703, %v3781
  %v3783 = vand.u32 %v3782, 4294901760
  %v3784 = vsub.f32 %v3782, %v3783
  %v3785 = vand.u32 %v3784, 4294901760
  %3786 = vmatmul.f32.gmra.mxu0 %v3785
  %v3787 = vpop.f32.mrf.mxu0
  %v3788 = vadd.f32 0.0, %v3787
  %v3789 = vand.u32 %v3705, 4294901760
  %v3790 = vsub.f32 %v3705, %v3789
  %v3791 = vand.u32 %v3790, 4294901760
  %v3792 = vsub.f32 %v3790, %v3791
  %v3793 = vand.u32 %v3792, 4294901760
  %3794 = vmatmul.f32.gmra.mxu0 %v3793
  %v3795 = vpop.f32.mrf.mxu0
  %v3796 = vadd.f32 0.0, %v3795
  %v3797 = vand.u32 %v3707, 4294901760
  %v3798 = vsub.f32 %v3707, %v3797
  %v3799 = vand.u32 %v3798, 4294901760
  %v3800 = vsub.f32 %v3798, %v3799
  %v3801 = vand.u32 %v3800, 4294901760
  %3802 = vmatmul.f32.gmra.mxu0 %v3801
  %v3803 = vpop.f32.mrf.mxu0
  %v3804 = vadd.f32 0.0, %v3803
  %v3805 = vand.u32 %v3709, 4294901760
  %v3806 = vsub.f32 %v3709, %v3805
  %v3807 = vand.u32 %v3806, 4294901760
  %v3808 = vsub.f32 %v3806, %v3807
  %v3809 = vand.u32 %v3808, 4294901760
  %3810 = vmatmul.f32.gmra.mxu0 %v3809
  %v3811 = vpop.f32.mrf.mxu0
  %v3812 = vadd.f32 0.0, %v3811
  %v3813 = vand.u32 %v3711, 4294901760
  %v3814 = vsub.f32 %v3711, %v3813
  %v3815 = vand.u32 %v3814, 4294901760
  %v3816 = vsub.f32 %v3814, %v3815
  %v3817 = vand.u32 %v3816, 4294901760
  %3818 = vmatmul.f32.gmra.mxu0 %v3817
  %v3819 = vpop.f32.mrf.mxu0
  %v3820 = vadd.f32 0.0, %v3819
  %v3821 = vand.u32 %v3713, 4294901760
  %v3822 = vsub.f32 %v3713, %v3821
  %v3823 = vand.u32 %v3822, 4294901760
  %v3824 = vsub.f32 %v3822, %v3823
  %v3825 = vand.u32 %v3824, 4294901760
  %3826 = vmatmul.f32.gmra.mxu0 %v3825
  %v3827 = vpop.f32.mrf.mxu0
  %v3828 = vadd.f32 0.0, %v3827
  %v3829 = vand.u32 %v3715, 4294901760
  %v3830 = vsub.f32 %v3715, %v3829
  %v3831 = vand.u32 %v3830, 4294901760
  %v3832 = vsub.f32 %v3830, %v3831
  %v3833 = vand.u32 %v3832, 4294901760
  %3834 = vmatmul.f32.gmra.mxu0 %v3833
  %v3835 = vpop.f32.mrf.mxu0
  %v3836 = vadd.f32 0.0, %v3835
  %3837 = vdwg.mxu0
  %v3838 = vand.u32 %v2497, 4294901760
  %v3839 = vsub.f32 %v2497, %v3838
  %v3840 = vand.u32 %v3839, 4294901760
  %v3841 = vsub.f32 %v3839, %v3840
  %v3842 = vand.u32 %v3841, 4294901760
  %3843 = vmatpush.msra.mxu0 %v3842
  %v3844 = vand.u32 %v2495, 4294901760
  %v3845 = vsub.f32 %v2495, %v3844
  %v3846 = vand.u32 %v3845, 4294901760
  %v3847 = vsub.f32 %v3845, %v3846
  %v3848 = vand.u32 %v3847, 4294901760
  %3849 = vmatpush.msra.mxu0 %v3848
  %v3850 = vand.u32 %v2493, 4294901760
  %v3851 = vsub.f32 %v2493, %v3850
  %v3852 = vand.u32 %v3851, 4294901760
  %v3853 = vsub.f32 %v3851, %v3852
  %v3854 = vand.u32 %v3853, 4294901760
  %3855 = vmatpush.msra.mxu0 %v3854
  %v3856 = vand.u32 %v2491, 4294901760
  %v3857 = vsub.f32 %v2491, %v3856
  %v3858 = vand.u32 %v3857, 4294901760
  %v3859 = vsub.f32 %v3857, %v3858
  %v3860 = vand.u32 %v3859, 4294901760
  %3861 = vmatpush.msra.mxu0 %v3860
  %v3862 = vand.u32 %v2489, 4294901760
  %v3863 = vsub.f32 %v2489, %v3862
  %v3864 = vand.u32 %v3863, 4294901760
  %v3865 = vsub.f32 %v3863, %v3864
  %v3866 = vand.u32 %v3865, 4294901760
  %3867 = vmatpush.msra.mxu0 %v3866
  %v3868 = vand.u32 %v2487, 4294901760
  %v3869 = vsub.f32 %v2487, %v3868
  %v3870 = vand.u32 %v3869, 4294901760
  %v3871 = vsub.f32 %v3869, %v3870
  %v3872 = vand.u32 %v3871, 4294901760
  %3873 = vmatpush.msra.mxu0 %v3872
  %v3874 = vand.u32 %v2485, 4294901760
  %v3875 = vsub.f32 %v2485, %v3874
  %v3876 = vand.u32 %v3875, 4294901760
  %v3877 = vsub.f32 %v3875, %v3876
  %v3878 = vand.u32 %v3877, 4294901760
  %3879 = vmatpush.msra.mxu0 %v3878
  %v3880 = vand.u32 %v2483, 4294901760
  %v3881 = vsub.f32 %v2483, %v3880
  %v3882 = vand.u32 %v3881, 4294901760
  %v3883 = vsub.f32 %v3881, %v3882
  %v3884 = vand.u32 %v3883, 4294901760
  %3885 = vmatpush.msra.mxu0 %v3884
  %v3886 = vand.u32 %v2481, 4294901760
  %v3887 = vsub.f32 %v2481, %v3886
  %v3888 = vand.u32 %v3887, 4294901760
  %v3889 = vsub.f32 %v3887, %v3888
  %v3890 = vand.u32 %v3889, 4294901760
  %3891 = vmatpush.msra.mxu0 %v3890
  %v3892 = vand.u32 %v2479, 4294901760
  %v3893 = vsub.f32 %v2479, %v3892
  %v3894 = vand.u32 %v3893, 4294901760
  %v3895 = vsub.f32 %v3893, %v3894
  %v3896 = vand.u32 %v3895, 4294901760
  %3897 = vmatpush.msra.mxu0 %v3896
  %v3898 = vand.u32 %v2477, 4294901760
  %v3899 = vsub.f32 %v2477, %v3898
  %v3900 = vand.u32 %v3899, 4294901760
  %v3901 = vsub.f32 %v3899, %v3900
  %v3902 = vand.u32 %v3901, 4294901760
  %3903 = vmatpush.msra.mxu0 %v3902
  %v3904 = vand.u32 %v2475, 4294901760
  %v3905 = vsub.f32 %v2475, %v3904
  %v3906 = vand.u32 %v3905, 4294901760
  %v3907 = vsub.f32 %v3905, %v3906
  %v3908 = vand.u32 %v3907, 4294901760
  %3909 = vmatpush.msra.mxu0 %v3908
  %v3910 = vand.u32 %v2473, 4294901760
  %v3911 = vsub.f32 %v2473, %v3910
  %v3912 = vand.u32 %v3911, 4294901760
  %v3913 = vsub.f32 %v3911, %v3912
  %v3914 = vand.u32 %v3913, 4294901760
  %3915 = vmatpush.msra.mxu0 %v3914
  %v3916 = vand.u32 %v2471, 4294901760
  %v3917 = vsub.f32 %v2471, %v3916
  %v3918 = vand.u32 %v3917, 4294901760
  %v3919 = vsub.f32 %v3917, %v3918
  %v3920 = vand.u32 %v3919, 4294901760
  %3921 = vmatpush.msra.mxu0 %v3920
  %v3922 = vand.u32 %v2469, 4294901760
  %v3923 = vsub.f32 %v2469, %v3922
  %v3924 = vand.u32 %v3923, 4294901760
  %v3925 = vsub.f32 %v3923, %v3924
  %v3926 = vand.u32 %v3925, 4294901760
  %3927 = vmatpush.msra.mxu0 %v3926
  %v3928 = vand.u32 %v2467, 4294901760
  %v3929 = vsub.f32 %v2467, %v3928
  %v3930 = vand.u32 %v3929, 4294901760
  %v3931 = vsub.f32 %v3929, %v3930
  %v3932 = vand.u32 %v3931, 4294901760
  %3933 = vmatpush.msra.mxu0 %v3932
  %v3934 = vand.u32 %v3701, 4294901760
  %3935 = vmatmul.f32.gmra.mxu0 %v3934
  %v3936 = vpop.f32.mrf.mxu0
  %v3937 = vadd.f32 %v3780, %v3936
  %v3938 = vand.u32 %v3703, 4294901760
  %3939 = vmatmul.f32.gmra.mxu0 %v3938
  %v3940 = vpop.f32.mrf.mxu0
  %v3941 = vadd.f32 %v3788, %v3940
  %v3942 = vand.u32 %v3705, 4294901760
  %3943 = vmatmul.f32.gmra.mxu0 %v3942
  %v3944 = vpop.f32.mrf.mxu0
  %v3945 = vadd.f32 %v3796, %v3944
  %v3946 = vand.u32 %v3707, 4294901760
  %3947 = vmatmul.f32.gmra.mxu0 %v3946
  %v3948 = vpop.f32.mrf.mxu0
  %v3949 = vadd.f32 %v3804, %v3948
  %v3950 = vand.u32 %v3709, 4294901760
  %3951 = vmatmul.f32.gmra.mxu0 %v3950
  %v3952 = vpop.f32.mrf.mxu0
  %v3953 = vadd.f32 %v3812, %v3952
  %v3954 = vand.u32 %v3711, 4294901760
  %3955 = vmatmul.f32.gmra.mxu0 %v3954
  %v3956 = vpop.f32.mrf.mxu0
  %v3957 = vadd.f32 %v3820, %v3956
  %v3958 = vand.u32 %v3713, 4294901760
  %3959 = vmatmul.f32.gmra.mxu0 %v3958
  %v3960 = vpop.f32.mrf.mxu0
  %v3961 = vadd.f32 %v3828, %v3960
  %v3962 = vand.u32 %v3715, 4294901760
  %3963 = vmatmul.f32.gmra.mxu0 %v3962
  %v3964 = vpop.f32.mrf.mxu0
  %v3965 = vadd.f32 %v3836, %v3964
  %3966 = vdwg.mxu0
  %v3967 = vand.u32 %v2497, 4294901760
  %v3968 = vsub.f32 %v2497, %v3967
  %3969 = vmatpush.msra.mxu0 %v3968
  %v3970 = vand.u32 %v2495, 4294901760
  %v3971 = vsub.f32 %v2495, %v3970
  %3972 = vmatpush.msra.mxu0 %v3971
  %v3973 = vand.u32 %v2493, 4294901760
  %v3974 = vsub.f32 %v2493, %v3973
  %3975 = vmatpush.msra.mxu0 %v3974
  %v3976 = vand.u32 %v2491, 4294901760
  %v3977 = vsub.f32 %v2491, %v3976
  %3978 = vmatpush.msra.mxu0 %v3977
  %v3979 = vand.u32 %v2489, 4294901760
  %v3980 = vsub.f32 %v2489, %v3979
  %3981 = vmatpush.msra.mxu0 %v3980
  %v3982 = vand.u32 %v2487, 4294901760
  %v3983 = vsub.f32 %v2487, %v3982
  %3984 = vmatpush.msra.mxu0 %v3983
  %v3985 = vand.u32 %v2485, 4294901760
  %v3986 = vsub.f32 %v2485, %v3985
  %3987 = vmatpush.msra.mxu0 %v3986
  %v3988 = vand.u32 %v2483, 4294901760
  %v3989 = vsub.f32 %v2483, %v3988
  %3990 = vmatpush.msra.mxu0 %v3989
  %v3991 = vand.u32 %v2481, 4294901760
  %v3992 = vsub.f32 %v2481, %v3991
  %3993 = vmatpush.msra.mxu0 %v3992
  %v3994 = vand.u32 %v2479, 4294901760
  %v3995 = vsub.f32 %v2479, %v3994
  %3996 = vmatpush.msra.mxu0 %v3995
  %v3997 = vand.u32 %v2477, 4294901760
  %v3998 = vsub.f32 %v2477, %v3997
  %3999 = vmatpush.msra.mxu0 %v3998
  %v4000 = vand.u32 %v2475, 4294901760
  %v4001 = vsub.f32 %v2475, %v4000
  %4002 = vmatpush.msra.mxu0 %v4001
  %v4003 = vand.u32 %v2473, 4294901760
  %v4004 = vsub.f32 %v2473, %v4003
  %4005 = vmatpush.msra.mxu0 %v4004
  %v4006 = vand.u32 %v2471, 4294901760
  %v4007 = vsub.f32 %v2471, %v4006
  %4008 = vmatpush.msra.mxu0 %v4007
  %v4009 = vand.u32 %v2469, 4294901760
  %v4010 = vsub.f32 %v2469, %v4009
  %4011 = vmatpush.msra.mxu0 %v4010
  %v4012 = vand.u32 %v2467, 4294901760
  %v4013 = vsub.f32 %v2467, %v4012
  %4014 = vmatpush.msra.mxu0 %v4013
  %v4015 = vand.u32 %v3701, 4294901760
  %v4016 = vsub.f32 %v3701, %v4015
  %4017 = vmatmul.f32.gmra.mxu0 %v4016
  %v4018 = vpop.f32.mrf.mxu0
  %v4019 = vadd.f32 %v3937, %v4018
  %v4020 = vand.u32 %v3703, 4294901760
  %v4021 = vsub.f32 %v3703, %v4020
  %4022 = vmatmul.f32.gmra.mxu0 %v4021
  %v4023 = vpop.f32.mrf.mxu0
  %v4024 = vadd.f32 %v3941, %v4023
  %v4025 = vand.u32 %v3705, 4294901760
  %v4026 = vsub.f32 %v3705, %v4025
  %4027 = vmatmul.f32.gmra.mxu0 %v4026
  %v4028 = vpop.f32.mrf.mxu0
  %v4029 = vadd.f32 %v3945, %v4028
  %v4030 = vand.u32 %v3707, 4294901760
  %v4031 = vsub.f32 %v3707, %v4030
  %4032 = vmatmul.f32.gmra.mxu0 %v4031
  %v4033 = vpop.f32.mrf.mxu0
  %v4034 = vadd.f32 %v3949, %v4033
  %v4035 = vand.u32 %v3709, 4294901760
  %v4036 = vsub.f32 %v3709, %v4035
  %4037 = vmatmul.f32.gmra.mxu0 %v4036
  %v4038 = vpop.f32.mrf.mxu0
  %v4039 = vadd.f32 %v3953, %v4038
  %v4040 = vand.u32 %v3711, 4294901760
  %v4041 = vsub.f32 %v3711, %v4040
  %4042 = vmatmul.f32.gmra.mxu0 %v4041
  %v4043 = vpop.f32.mrf.mxu0
  %v4044 = vadd.f32 %v3957, %v4043
  %v4045 = vand.u32 %v3713, 4294901760
  %v4046 = vsub.f32 %v3713, %v4045
  %4047 = vmatmul.f32.gmra.mxu0 %v4046
  %v4048 = vpop.f32.mrf.mxu0
  %v4049 = vadd.f32 %v3961, %v4048
  %v4050 = vand.u32 %v3715, 4294901760
  %v4051 = vsub.f32 %v3715, %v4050
  %4052 = vmatmul.f32.gmra.mxu0 %v4051
  %v4053 = vpop.f32.mrf.mxu0
  %v4054 = vadd.f32 %v3965, %v4053
  %4055 = vdwg.mxu0
  %v4056 = vand.u32 %v2497, 4294901760
  %4057 = vmatpush.msra.mxu0 %v4056
  %v4058 = vand.u32 %v2495, 4294901760
  %4059 = vmatpush.msra.mxu0 %v4058
  %v4060 = vand.u32 %v2493, 4294901760
  %4061 = vmatpush.msra.mxu0 %v4060
  %v4062 = vand.u32 %v2491, 4294901760
  %4063 = vmatpush.msra.mxu0 %v4062
  %v4064 = vand.u32 %v2489, 4294901760
  %4065 = vmatpush.msra.mxu0 %v4064
  %v4066 = vand.u32 %v2487, 4294901760
  %4067 = vmatpush.msra.mxu0 %v4066
  %v4068 = vand.u32 %v2485, 4294901760
  %4069 = vmatpush.msra.mxu0 %v4068
  %v4070 = vand.u32 %v2483, 4294901760
  %4071 = vmatpush.msra.mxu0 %v4070
  %v4072 = vand.u32 %v2481, 4294901760
  %4073 = vmatpush.msra.mxu0 %v4072
  %v4074 = vand.u32 %v2479, 4294901760
  %4075 = vmatpush.msra.mxu0 %v4074
  %v4076 = vand.u32 %v2477, 4294901760
  %4077 = vmatpush.msra.mxu0 %v4076
  %v4078 = vand.u32 %v2475, 4294901760
  %4079 = vmatpush.msra.mxu0 %v4078
  %v4080 = vand.u32 %v2473, 4294901760
  %4081 = vmatpush.msra.mxu0 %v4080
  %v4082 = vand.u32 %v2471, 4294901760
  %4083 = vmatpush.msra.mxu0 %v4082
  %v4084 = vand.u32 %v2469, 4294901760
  %4085 = vmatpush.msra.mxu0 %v4084
  %v4086 = vand.u32 %v2467, 4294901760
  %4087 = vmatpush.msra.mxu0 %v4086
  %v4088 = vand.u32 %v3701, 4294901760
  %v4089 = vsub.f32 %v3701, %v4088
  %v4090 = vand.u32 %v4089, 4294901760
  %4091 = vmatmul.f32.gmra.mxu0 %v4090
  %v4092 = vpop.f32.mrf.mxu0
  %v4093 = vadd.f32 %v4019, %v4092
  %v4094 = vand.u32 %v3703, 4294901760
  %v4095 = vsub.f32 %v3703, %v4094
  %v4096 = vand.u32 %v4095, 4294901760
  %4097 = vmatmul.f32.gmra.mxu0 %v4096
  %v4098 = vpop.f32.mrf.mxu0
  %v4099 = vadd.f32 %v4024, %v4098
  %v4100 = vand.u32 %v3705, 4294901760
  %v4101 = vsub.f32 %v3705, %v4100
  %v4102 = vand.u32 %v4101, 4294901760
  %4103 = vmatmul.f32.gmra.mxu0 %v4102
  %v4104 = vpop.f32.mrf.mxu0
  %v4105 = vadd.f32 %v4029, %v4104
  %v4106 = vand.u32 %v3707, 4294901760
  %v4107 = vsub.f32 %v3707, %v4106
  %v4108 = vand.u32 %v4107, 4294901760
  %4109 = vmatmul.f32.gmra.mxu0 %v4108
  %v4110 = vpop.f32.mrf.mxu0
  %v4111 = vadd.f32 %v4034, %v4110
  %v4112 = vand.u32 %v3709, 4294901760
  %v4113 = vsub.f32 %v3709, %v4112
  %v4114 = vand.u32 %v4113, 4294901760
  %4115 = vmatmul.f32.gmra.mxu0 %v4114
  %v4116 = vpop.f32.mrf.mxu0
  %v4117 = vadd.f32 %v4039, %v4116
  %v4118 = vand.u32 %v3711, 4294901760
  %v4119 = vsub.f32 %v3711, %v4118
  %v4120 = vand.u32 %v4119, 4294901760
  %4121 = vmatmul.f32.gmra.mxu0 %v4120
  %v4122 = vpop.f32.mrf.mxu0
  %v4123 = vadd.f32 %v4044, %v4122
  %v4124 = vand.u32 %v3713, 4294901760
  %v4125 = vsub.f32 %v3713, %v4124
  %v4126 = vand.u32 %v4125, 4294901760
  %4127 = vmatmul.f32.gmra.mxu0 %v4126
  %v4128 = vpop.f32.mrf.mxu0
  %v4129 = vadd.f32 %v4049, %v4128
  %v4130 = vand.u32 %v3715, 4294901760
  %v4131 = vsub.f32 %v3715, %v4130
  %v4132 = vand.u32 %v4131, 4294901760
  %4133 = vmatmul.f32.gmra.mxu0 %v4132
  %v4134 = vpop.f32.mrf.mxu0
  %v4135 = vadd.f32 %v4054, %v4134
  %4136 = vdwg.mxu0
  %v4137 = vand.u32 %v2497, 4294901760
  %v4138 = vsub.f32 %v2497, %v4137
  %v4139 = vand.u32 %v4138, 4294901760
  %4140 = vmatpush.msra.mxu0 %v4139
  %v4141 = vand.u32 %v2495, 4294901760
  %v4142 = vsub.f32 %v2495, %v4141
  %v4143 = vand.u32 %v4142, 4294901760
  %4144 = vmatpush.msra.mxu0 %v4143
  %v4145 = vand.u32 %v2493, 4294901760
  %v4146 = vsub.f32 %v2493, %v4145
  %v4147 = vand.u32 %v4146, 4294901760
  %4148 = vmatpush.msra.mxu0 %v4147
  %v4149 = vand.u32 %v2491, 4294901760
  %v4150 = vsub.f32 %v2491, %v4149
  %v4151 = vand.u32 %v4150, 4294901760
  %4152 = vmatpush.msra.mxu0 %v4151
  %v4153 = vand.u32 %v2489, 4294901760
  %v4154 = vsub.f32 %v2489, %v4153
  %v4155 = vand.u32 %v4154, 4294901760
  %4156 = vmatpush.msra.mxu0 %v4155
  %v4157 = vand.u32 %v2487, 4294901760
  %v4158 = vsub.f32 %v2487, %v4157
  %v4159 = vand.u32 %v4158, 4294901760
  %4160 = vmatpush.msra.mxu0 %v4159
  %v4161 = vand.u32 %v2485, 4294901760
  %v4162 = vsub.f32 %v2485, %v4161
  %v4163 = vand.u32 %v4162, 4294901760
  %4164 = vmatpush.msra.mxu0 %v4163
  %v4165 = vand.u32 %v2483, 4294901760
  %v4166 = vsub.f32 %v2483, %v4165
  %v4167 = vand.u32 %v4166, 4294901760
  %4168 = vmatpush.msra.mxu0 %v4167
  %v4169 = vand.u32 %v2481, 4294901760
  %v4170 = vsub.f32 %v2481, %v4169
  %v4171 = vand.u32 %v4170, 4294901760
  %4172 = vmatpush.msra.mxu0 %v4171
  %v4173 = vand.u32 %v2479, 4294901760
  %v4174 = vsub.f32 %v2479, %v4173
  %v4175 = vand.u32 %v4174, 4294901760
  %4176 = vmatpush.msra.mxu0 %v4175
  %v4177 = vand.u32 %v2477, 4294901760
  %v4178 = vsub.f32 %v2477, %v4177
  %v4179 = vand.u32 %v4178, 4294901760
  %4180 = vmatpush.msra.mxu0 %v4179
  %v4181 = vand.u32 %v2475, 4294901760
  %v4182 = vsub.f32 %v2475, %v4181
  %v4183 = vand.u32 %v4182, 4294901760
  %4184 = vmatpush.msra.mxu0 %v4183
  %v4185 = vand.u32 %v2473, 4294901760
  %v4186 = vsub.f32 %v2473, %v4185
  %v4187 = vand.u32 %v4186, 4294901760
  %4188 = vmatpush.msra.mxu0 %v4187
  %v4189 = vand.u32 %v2471, 4294901760
  %v4190 = vsub.f32 %v2471, %v4189
  %v4191 = vand.u32 %v4190, 4294901760
  %4192 = vmatpush.msra.mxu0 %v4191
  %v4193 = vand.u32 %v2469, 4294901760
  %v4194 = vsub.f32 %v2469, %v4193
  %v4195 = vand.u32 %v4194, 4294901760
  %4196 = vmatpush.msra.mxu0 %v4195
  %v4197 = vand.u32 %v2467, 4294901760
  %v4198 = vsub.f32 %v2467, %v4197
  %v4199 = vand.u32 %v4198, 4294901760
  %4200 = vmatpush.msra.mxu0 %v4199
  %v4201 = vand.u32 %v3701, 4294901760
  %4202 = vmatmul.f32.gmra.mxu0 %v4201
  %v4203 = vpop.f32.mrf.mxu0
  %v4204 = vadd.f32 %v4093, %v4203
  %v4205 = vand.u32 %v3703, 4294901760
  %4206 = vmatmul.f32.gmra.mxu0 %v4205
  %v4207 = vpop.f32.mrf.mxu0
  %v4208 = vadd.f32 %v4099, %v4207
  %v4209 = vand.u32 %v3705, 4294901760
  %4210 = vmatmul.f32.gmra.mxu0 %v4209
  %v4211 = vpop.f32.mrf.mxu0
  %v4212 = vadd.f32 %v4105, %v4211
  %v4213 = vand.u32 %v3707, 4294901760
  %4214 = vmatmul.f32.gmra.mxu0 %v4213
  %v4215 = vpop.f32.mrf.mxu0
  %v4216 = vadd.f32 %v4111, %v4215
  %v4217 = vand.u32 %v3709, 4294901760
  %4218 = vmatmul.f32.gmra.mxu0 %v4217
  %v4219 = vpop.f32.mrf.mxu0
  %v4220 = vadd.f32 %v4117, %v4219
  %v4221 = vand.u32 %v3711, 4294901760
  %4222 = vmatmul.f32.gmra.mxu0 %v4221
  %v4223 = vpop.f32.mrf.mxu0
  %v4224 = vadd.f32 %v4123, %v4223
  %v4225 = vand.u32 %v3713, 4294901760
  %4226 = vmatmul.f32.gmra.mxu0 %v4225
  %v4227 = vpop.f32.mrf.mxu0
  %v4228 = vadd.f32 %v4129, %v4227
  %v4229 = vand.u32 %v3715, 4294901760
  %4230 = vmatmul.f32.gmra.mxu0 %v4229
  %v4231 = vpop.f32.mrf.mxu0
  %v4232 = vadd.f32 %v4135, %v4231
  %4233 = vdwg.mxu0
  %v4234 = vand.u32 %v2497, 4294901760
  %4235 = vmatpush.msra.mxu0 %v4234
  %v4236 = vand.u32 %v2495, 4294901760
  %4237 = vmatpush.msra.mxu0 %v4236
  %v4238 = vand.u32 %v2493, 4294901760
  %4239 = vmatpush.msra.mxu0 %v4238
  %v4240 = vand.u32 %v2491, 4294901760
  %4241 = vmatpush.msra.mxu0 %v4240
  %v4242 = vand.u32 %v2489, 4294901760
  %4243 = vmatpush.msra.mxu0 %v4242
  %v4244 = vand.u32 %v2487, 4294901760
  %4245 = vmatpush.msra.mxu0 %v4244
  %v4246 = vand.u32 %v2485, 4294901760
  %4247 = vmatpush.msra.mxu0 %v4246
  %v4248 = vand.u32 %v2483, 4294901760
  %4249 = vmatpush.msra.mxu0 %v4248
  %v4250 = vand.u32 %v2481, 4294901760
  %4251 = vmatpush.msra.mxu0 %v4250
  %v4252 = vand.u32 %v2479, 4294901760
  %4253 = vmatpush.msra.mxu0 %v4252
  %v4254 = vand.u32 %v2477, 4294901760
  %4255 = vmatpush.msra.mxu0 %v4254
  %v4256 = vand.u32 %v2475, 4294901760
  %4257 = vmatpush.msra.mxu0 %v4256
  %v4258 = vand.u32 %v2473, 4294901760
  %4259 = vmatpush.msra.mxu0 %v4258
  %v4260 = vand.u32 %v2471, 4294901760
  %4261 = vmatpush.msra.mxu0 %v4260
  %v4262 = vand.u32 %v2469, 4294901760
  %4263 = vmatpush.msra.mxu0 %v4262
  %v4264 = vand.u32 %v2467, 4294901760
  %4265 = vmatpush.msra.mxu0 %v4264
  %v4266 = vand.u32 %v3701, 4294901760
  %4267 = vmatmul.f32.gmra.mxu0 %v4266
  %v4268 = vpop.f32.mrf.mxu0
  %v4269 = vadd.f32 %v4204, %v4268
  %v4270 = vand.u32 %v3703, 4294901760
  %4271 = vmatmul.f32.gmra.mxu0 %v4270
  %v4272 = vpop.f32.mrf.mxu0
  %v4273 = vadd.f32 %v4208, %v4272
  %v4274 = vand.u32 %v3705, 4294901760
  %4275 = vmatmul.f32.gmra.mxu0 %v4274
  %v4276 = vpop.f32.mrf.mxu0
  %v4277 = vadd.f32 %v4212, %v4276
  %v4278 = vand.u32 %v3707, 4294901760
  %4279 = vmatmul.f32.gmra.mxu0 %v4278
  %v4280 = vpop.f32.mrf.mxu0
  %v4281 = vadd.f32 %v4216, %v4280
  %v4282 = vand.u32 %v3709, 4294901760
  %4283 = vmatmul.f32.gmra.mxu0 %v4282
  %v4284 = vpop.f32.mrf.mxu0
  %v4285 = vadd.f32 %v4220, %v4284
  %v4286 = vand.u32 %v3711, 4294901760
  %4287 = vmatmul.f32.gmra.mxu0 %v4286
  %v4288 = vpop.f32.mrf.mxu0
  %v4289 = vadd.f32 %v4224, %v4288
  %v4290 = vand.u32 %v3713, 4294901760
  %4291 = vmatmul.f32.gmra.mxu0 %v4290
  %v4292 = vpop.f32.mrf.mxu0
  %v4293 = vadd.f32 %v4228, %v4292
  %v4294 = vand.u32 %v3715, 4294901760
  %4295 = vmatmul.f32.gmra.mxu0 %v4294
  %v4296 = vpop.f32.mrf.mxu0
  %v4297 = vadd.f32 %v4232, %v4296
  %4298 = vdwg.mxu0
  %4299 = vmatpush.msra.mxu0 0.0
  %4300 = vmatpush.msra.mxu0 0.0
  %4301 = vmatpush.msra.mxu0 0.0
  %4302 = vmatpush.msra.mxu0 0.0
  %4303 = vmatpush.msra.mxu0 0.0
  %4304 = vmatpush.msra.mxu0 0.0
  %4305 = vmatpush.msra.mxu0 0.0
  %4306 = vmatpush.msra.mxu0 0.0
  %4307 = vmatpush.msra.mxu0 0.0
  %4308 = vmatpush.msra.mxu0 0.0
  %4309 = vmatpush.msra.mxu0 0.0
  %4310 = vmatpush.msra.mxu0 0.0
  %v4311 = vand.u32 %v2505, 4294901760
  %4312 = vmatpush.msra.mxu0 %v4311
  %v4313 = vand.u32 %v2503, 4294901760
  %4314 = vmatpush.msra.mxu0 %v4313
  %v4315 = vand.u32 %v2501, 4294901760
  %4316 = vmatpush.msra.mxu0 %v4315
  %v4317 = vand.u32 %v2499, 4294901760
  %4318 = vmatpush.msra.mxu0 %v4317
  %v4319 = vand.u32 %v3718, 4294901760
  %v4320 = vsub.f32 %v3718, %v4319
  %v4321 = vand.u32 %v4320, 4294901760
  %v4322 = vsub.f32 %v4320, %v4321
  %v4323 = vand.u32 %v4322, 4294901760
  %4324 = vmatmul.f32.gmra.mxu0 %v4323
  %v4325 = vpop.f32.mrf.mxu0
  %v4326 = vadd.f32 %v4269, %v4325
  %v4327 = vand.u32 %v3721, 4294901760
  %v4328 = vsub.f32 %v3721, %v4327
  %v4329 = vand.u32 %v4328, 4294901760
  %v4330 = vsub.f32 %v4328, %v4329
  %v4331 = vand.u32 %v4330, 4294901760
  %4332 = vmatmul.f32.gmra.mxu0 %v4331
  %v4333 = vpop.f32.mrf.mxu0
  %v4334 = vadd.f32 %v4273, %v4333
  %v4335 = vand.u32 %v3724, 4294901760
  %v4336 = vsub.f32 %v3724, %v4335
  %v4337 = vand.u32 %v4336, 4294901760
  %v4338 = vsub.f32 %v4336, %v4337
  %v4339 = vand.u32 %v4338, 4294901760
  %4340 = vmatmul.f32.gmra.mxu0 %v4339
  %v4341 = vpop.f32.mrf.mxu0
  %v4342 = vadd.f32 %v4277, %v4341
  %v4343 = vand.u32 %v3727, 4294901760
  %v4344 = vsub.f32 %v3727, %v4343
  %v4345 = vand.u32 %v4344, 4294901760
  %v4346 = vsub.f32 %v4344, %v4345
  %v4347 = vand.u32 %v4346, 4294901760
  %4348 = vmatmul.f32.gmra.mxu0 %v4347
  %v4349 = vpop.f32.mrf.mxu0
  %v4350 = vadd.f32 %v4281, %v4349
  %v4351 = vand.u32 %v3730, 4294901760
  %v4352 = vsub.f32 %v3730, %v4351
  %v4353 = vand.u32 %v4352, 4294901760
  %v4354 = vsub.f32 %v4352, %v4353
  %v4355 = vand.u32 %v4354, 4294901760
  %4356 = vmatmul.f32.gmra.mxu0 %v4355
  %v4357 = vpop.f32.mrf.mxu0
  %v4358 = vadd.f32 %v4285, %v4357
  %v4359 = vand.u32 %v3733, 4294901760
  %v4360 = vsub.f32 %v3733, %v4359
  %v4361 = vand.u32 %v4360, 4294901760
  %v4362 = vsub.f32 %v4360, %v4361
  %v4363 = vand.u32 %v4362, 4294901760
  %4364 = vmatmul.f32.gmra.mxu0 %v4363
  %v4365 = vpop.f32.mrf.mxu0
  %v4366 = vadd.f32 %v4289, %v4365
  %v4367 = vand.u32 %v3736, 4294901760
  %v4368 = vsub.f32 %v3736, %v4367
  %v4369 = vand.u32 %v4368, 4294901760
  %v4370 = vsub.f32 %v4368, %v4369
  %v4371 = vand.u32 %v4370, 4294901760
  %4372 = vmatmul.f32.gmra.mxu0 %v4371
  %v4373 = vpop.f32.mrf.mxu0
  %v4374 = vadd.f32 %v4293, %v4373
  %v4375 = vand.u32 %v3739, 4294901760
  %v4376 = vsub.f32 %v3739, %v4375
  %v4377 = vand.u32 %v4376, 4294901760
  %v4378 = vsub.f32 %v4376, %v4377
  %v4379 = vand.u32 %v4378, 4294901760
  %4380 = vmatmul.f32.gmra.mxu0 %v4379
  %v4381 = vpop.f32.mrf.mxu0
  %v4382 = vadd.f32 %v4297, %v4381
  %4383 = vdwg.mxu0
  %4384 = vmatpush.msra.mxu0 0.0
  %4385 = vmatpush.msra.mxu0 0.0
  %4386 = vmatpush.msra.mxu0 0.0
  %4387 = vmatpush.msra.mxu0 0.0
  %4388 = vmatpush.msra.mxu0 0.0
  %4389 = vmatpush.msra.mxu0 0.0
  %4390 = vmatpush.msra.mxu0 0.0
  %4391 = vmatpush.msra.mxu0 0.0
  %4392 = vmatpush.msra.mxu0 0.0
  %4393 = vmatpush.msra.mxu0 0.0
  %4394 = vmatpush.msra.mxu0 0.0
  %4395 = vmatpush.msra.mxu0 0.0
  %v4396 = vand.u32 %v2505, 4294901760
  %v4397 = vsub.f32 %v2505, %v4396
  %v4398 = vand.u32 %v4397, 4294901760
  %v4399 = vsub.f32 %v4397, %v4398
  %v4400 = vand.u32 %v4399, 4294901760
  %4401 = vmatpush.msra.mxu0 %v4400
  %v4402 = vand.u32 %v2503, 4294901760
  %v4403 = vsub.f32 %v2503, %v4402
  %v4404 = vand.u32 %v4403, 4294901760
  %v4405 = vsub.f32 %v4403, %v4404
  %v4406 = vand.u32 %v4405, 4294901760
  %4407 = vmatpush.msra.mxu0 %v4406
  %v4408 = vand.u32 %v2501, 4294901760
  %v4409 = vsub.f32 %v2501, %v4408
  %v4410 = vand.u32 %v4409, 4294901760
  %v4411 = vsub.f32 %v4409, %v4410
  %v4412 = vand.u32 %v4411, 4294901760
  %4413 = vmatpush.msra.mxu0 %v4412
  %v4414 = vand.u32 %v2499, 4294901760
  %v4415 = vsub.f32 %v2499, %v4414
  %v4416 = vand.u32 %v4415, 4294901760
  %v4417 = vsub.f32 %v4415, %v4416
  %v4418 = vand.u32 %v4417, 4294901760
  %4419 = vmatpush.msra.mxu0 %v4418
  %v4420 = vand.u32 %v3718, 4294901760
  %4421 = vmatmul.f32.gmra.mxu0 %v4420
  %v4422 = vpop.f32.mrf.mxu0
  %v4423 = vadd.f32 %v4326, %v4422
  %v4424 = vand.u32 %v3721, 4294901760
  %4425 = vmatmul.f32.gmra.mxu0 %v4424
  %v4426 = vpop.f32.mrf.mxu0
  %v4427 = vadd.f32 %v4334, %v4426
  %v4428 = vand.u32 %v3724, 4294901760
  %4429 = vmatmul.f32.gmra.mxu0 %v4428
  %v4430 = vpop.f32.mrf.mxu0
  %v4431 = vadd.f32 %v4342, %v4430
  %v4432 = vand.u32 %v3727, 4294901760
  %4433 = vmatmul.f32.gmra.mxu0 %v4432
  %v4434 = vpop.f32.mrf.mxu0
  %v4435 = vadd.f32 %v4350, %v4434
  %v4436 = vand.u32 %v3730, 4294901760
  %4437 = vmatmul.f32.gmra.mxu0 %v4436
  %v4438 = vpop.f32.mrf.mxu0
  %v4439 = vadd.f32 %v4358, %v4438
  %v4440 = vand.u32 %v3733, 4294901760
  %4441 = vmatmul.f32.gmra.mxu0 %v4440
  %v4442 = vpop.f32.mrf.mxu0
  %v4443 = vadd.f32 %v4366, %v4442
  %v4444 = vand.u32 %v3736, 4294901760
  %4445 = vmatmul.f32.gmra.mxu0 %v4444
  %v4446 = vpop.f32.mrf.mxu0
  %v4447 = vadd.f32 %v4374, %v4446
  %v4448 = vand.u32 %v3739, 4294901760
  %4449 = vmatmul.f32.gmra.mxu0 %v4448
  %v4450 = vpop.f32.mrf.mxu0
  %v4451 = vadd.f32 %v4382, %v4450
  %4452 = vdwg.mxu0
  %4453 = vmatpush.msra.mxu0 0.0
  %4454 = vmatpush.msra.mxu0 0.0
  %4455 = vmatpush.msra.mxu0 0.0
  %4456 = vmatpush.msra.mxu0 0.0
  %4457 = vmatpush.msra.mxu0 0.0
  %4458 = vmatpush.msra.mxu0 0.0
  %4459 = vmatpush.msra.mxu0 0.0
  %4460 = vmatpush.msra.mxu0 0.0
  %4461 = vmatpush.msra.mxu0 0.0
  %4462 = vmatpush.msra.mxu0 0.0
  %4463 = vmatpush.msra.mxu0 0.0
  %4464 = vmatpush.msra.mxu0 0.0
  %v4465 = vand.u32 %v2505, 4294901760
  %v4466 = vsub.f32 %v2505, %v4465
  %4467 = vmatpush.msra.mxu0 %v4466
  %v4468 = vand.u32 %v2503, 4294901760
  %v4469 = vsub.f32 %v2503, %v4468
  %4470 = vmatpush.msra.mxu0 %v4469
  %v4471 = vand.u32 %v2501, 4294901760
  %v4472 = vsub.f32 %v2501, %v4471
  %4473 = vmatpush.msra.mxu0 %v4472
  %v4474 = vand.u32 %v2499, 4294901760
  %v4475 = vsub.f32 %v2499, %v4474
  %4476 = vmatpush.msra.mxu0 %v4475
  %v4477 = vand.u32 %v3718, 4294901760
  %v4478 = vsub.f32 %v3718, %v4477
  %4479 = vmatmul.f32.gmra.mxu0 %v4478
  %v4480 = vpop.f32.mrf.mxu0
  %v4481 = vadd.f32 %v4423, %v4480
  %v4482 = vand.u32 %v3721, 4294901760
  %v4483 = vsub.f32 %v3721, %v4482
  %4484 = vmatmul.f32.gmra.mxu0 %v4483
  %v4485 = vpop.f32.mrf.mxu0
  %v4486 = vadd.f32 %v4427, %v4485
  %v4487 = vand.u32 %v3724, 4294901760
  %v4488 = vsub.f32 %v3724, %v4487
  %4489 = vmatmul.f32.gmra.mxu0 %v4488
  %v4490 = vpop.f32.mrf.mxu0
  %v4491 = vadd.f32 %v4431, %v4490
  %v4492 = vand.u32 %v3727, 4294901760
  %v4493 = vsub.f32 %v3727, %v4492
  %4494 = vmatmul.f32.gmra.mxu0 %v4493
  %v4495 = vpop.f32.mrf.mxu0
  %v4496 = vadd.f32 %v4435, %v4495
  %v4497 = vand.u32 %v3730, 4294901760
  %v4498 = vsub.f32 %v3730, %v4497
  %4499 = vmatmul.f32.gmra.mxu0 %v4498
  %v4500 = vpop.f32.mrf.mxu0
  %v4501 = vadd.f32 %v4439, %v4500
  %v4502 = vand.u32 %v3733, 4294901760
  %v4503 = vsub.f32 %v3733, %v4502
  %4504 = vmatmul.f32.gmra.mxu0 %v4503
  %v4505 = vpop.f32.mrf.mxu0
  %v4506 = vadd.f32 %v4443, %v4505
  %v4507 = vand.u32 %v3736, 4294901760
  %v4508 = vsub.f32 %v3736, %v4507
  %4509 = vmatmul.f32.gmra.mxu0 %v4508
  %v4510 = vpop.f32.mrf.mxu0
  %v4511 = vadd.f32 %v4447, %v4510
  %v4512 = vand.u32 %v3739, 4294901760
  %v4513 = vsub.f32 %v3739, %v4512
  %4514 = vmatmul.f32.gmra.mxu0 %v4513
  %v4515 = vpop.f32.mrf.mxu0
  %v4516 = vadd.f32 %v4451, %v4515
  %4517 = vdwg.mxu0
  %4518 = vmatpush.msra.mxu0 0.0
  %4519 = vmatpush.msra.mxu0 0.0
  %4520 = vmatpush.msra.mxu0 0.0
  %4521 = vmatpush.msra.mxu0 0.0
  %4522 = vmatpush.msra.mxu0 0.0
  %4523 = vmatpush.msra.mxu0 0.0
  %4524 = vmatpush.msra.mxu0 0.0
  %4525 = vmatpush.msra.mxu0 0.0
  %4526 = vmatpush.msra.mxu0 0.0
  %4527 = vmatpush.msra.mxu0 0.0
  %4528 = vmatpush.msra.mxu0 0.0
  %4529 = vmatpush.msra.mxu0 0.0
  %v4530 = vand.u32 %v2505, 4294901760
  %4531 = vmatpush.msra.mxu0 %v4530
  %v4532 = vand.u32 %v2503, 4294901760
  %4533 = vmatpush.msra.mxu0 %v4532
  %v4534 = vand.u32 %v2501, 4294901760
  %4535 = vmatpush.msra.mxu0 %v4534
  %v4536 = vand.u32 %v2499, 4294901760
  %4537 = vmatpush.msra.mxu0 %v4536
  %v4538 = vand.u32 %v3718, 4294901760
  %v4539 = vsub.f32 %v3718, %v4538
  %v4540 = vand.u32 %v4539, 4294901760
  %4541 = vmatmul.f32.gmra.mxu0 %v4540
  %v4542 = vpop.f32.mrf.mxu0
  %v4543 = vadd.f32 %v4481, %v4542
  %v4544 = vand.u32 %v3721, 4294901760
  %v4545 = vsub.f32 %v3721, %v4544
  %v4546 = vand.u32 %v4545, 4294901760
  %4547 = vmatmul.f32.gmra.mxu0 %v4546
  %v4548 = vpop.f32.mrf.mxu0
  %v4549 = vadd.f32 %v4486, %v4548
  %v4550 = vand.u32 %v3724, 4294901760
  %v4551 = vsub.f32 %v3724, %v4550
  %v4552 = vand.u32 %v4551, 4294901760
  %4553 = vmatmul.f32.gmra.mxu0 %v4552
  %v4554 = vpop.f32.mrf.mxu0
  %v4555 = vadd.f32 %v4491, %v4554
  %v4556 = vand.u32 %v3727, 4294901760
  %v4557 = vsub.f32 %v3727, %v4556
  %v4558 = vand.u32 %v4557, 4294901760
  %4559 = vmatmul.f32.gmra.mxu0 %v4558
  %v4560 = vpop.f32.mrf.mxu0
  %v4561 = vadd.f32 %v4496, %v4560
  %v4562 = vand.u32 %v3730, 4294901760
  %v4563 = vsub.f32 %v3730, %v4562
  %v4564 = vand.u32 %v4563, 4294901760
  %4565 = vmatmul.f32.gmra.mxu0 %v4564
  %v4566 = vpop.f32.mrf.mxu0
  %v4567 = vadd.f32 %v4501, %v4566
  %v4568 = vand.u32 %v3733, 4294901760
  %v4569 = vsub.f32 %v3733, %v4568
  %v4570 = vand.u32 %v4569, 4294901760
  %4571 = vmatmul.f32.gmra.mxu0 %v4570
  %v4572 = vpop.f32.mrf.mxu0
  %v4573 = vadd.f32 %v4506, %v4572
  %v4574 = vand.u32 %v3736, 4294901760
  %v4575 = vsub.f32 %v3736, %v4574
  %v4576 = vand.u32 %v4575, 4294901760
  %4577 = vmatmul.f32.gmra.mxu0 %v4576
  %v4578 = vpop.f32.mrf.mxu0
  %v4579 = vadd.f32 %v4511, %v4578
  %v4580 = vand.u32 %v3739, 4294901760
  %v4581 = vsub.f32 %v3739, %v4580
  %v4582 = vand.u32 %v4581, 4294901760
  %4583 = vmatmul.f32.gmra.mxu0 %v4582
  %v4584 = vpop.f32.mrf.mxu0
  %v4585 = vadd.f32 %v4516, %v4584
  %4586 = vdwg.mxu0
  %4587 = vmatpush.msra.mxu0 0.0
  %4588 = vmatpush.msra.mxu0 0.0
  %4589 = vmatpush.msra.mxu0 0.0
  %4590 = vmatpush.msra.mxu0 0.0
  %4591 = vmatpush.msra.mxu0 0.0
  %4592 = vmatpush.msra.mxu0 0.0
  %4593 = vmatpush.msra.mxu0 0.0
  %4594 = vmatpush.msra.mxu0 0.0
  %4595 = vmatpush.msra.mxu0 0.0
  %4596 = vmatpush.msra.mxu0 0.0
  %4597 = vmatpush.msra.mxu0 0.0
  %4598 = vmatpush.msra.mxu0 0.0
  %v4599 = vand.u32 %v2505, 4294901760
  %v4600 = vsub.f32 %v2505, %v4599
  %v4601 = vand.u32 %v4600, 4294901760
  %4602 = vmatpush.msra.mxu0 %v4601
  %v4603 = vand.u32 %v2503, 4294901760
  %v4604 = vsub.f32 %v2503, %v4603
  %v4605 = vand.u32 %v4604, 4294901760
  %4606 = vmatpush.msra.mxu0 %v4605
  %v4607 = vand.u32 %v2501, 4294901760
  %v4608 = vsub.f32 %v2501, %v4607
  %v4609 = vand.u32 %v4608, 4294901760
  %4610 = vmatpush.msra.mxu0 %v4609
  %v4611 = vand.u32 %v2499, 4294901760
  %v4612 = vsub.f32 %v2499, %v4611
  %v4613 = vand.u32 %v4612, 4294901760
  %4614 = vmatpush.msra.mxu0 %v4613
  %v4615 = vand.u32 %v3718, 4294901760
  %4616 = vmatmul.f32.gmra.mxu0 %v4615
  %v4617 = vpop.f32.mrf.mxu0
  %v4618 = vadd.f32 %v4543, %v4617
  %v4619 = vand.u32 %v3721, 4294901760
  %4620 = vmatmul.f32.gmra.mxu0 %v4619
  %v4621 = vpop.f32.mrf.mxu0
  %v4622 = vadd.f32 %v4549, %v4621
  %v4623 = vand.u32 %v3724, 4294901760
  %4624 = vmatmul.f32.gmra.mxu0 %v4623
  %v4625 = vpop.f32.mrf.mxu0
  %v4626 = vadd.f32 %v4555, %v4625
  %v4627 = vand.u32 %v3727, 4294901760
  %4628 = vmatmul.f32.gmra.mxu0 %v4627
  %v4629 = vpop.f32.mrf.mxu0
  %v4630 = vadd.f32 %v4561, %v4629
  %v4631 = vand.u32 %v3730, 4294901760
  %4632 = vmatmul.f32.gmra.mxu0 %v4631
  %v4633 = vpop.f32.mrf.mxu0
  %v4634 = vadd.f32 %v4567, %v4633
  %v4635 = vand.u32 %v3733, 4294901760
  %4636 = vmatmul.f32.gmra.mxu0 %v4635
  %v4637 = vpop.f32.mrf.mxu0
  %v4638 = vadd.f32 %v4573, %v4637
  %v4639 = vand.u32 %v3736, 4294901760
  %4640 = vmatmul.f32.gmra.mxu0 %v4639
  %v4641 = vpop.f32.mrf.mxu0
  %v4642 = vadd.f32 %v4579, %v4641
  %v4643 = vand.u32 %v3739, 4294901760
  %4644 = vmatmul.f32.gmra.mxu0 %v4643
  %v4645 = vpop.f32.mrf.mxu0
  %v4646 = vadd.f32 %v4585, %v4645
  %4647 = vdwg.mxu0
  %4648 = vmatpush.msra.mxu0 0.0
  %4649 = vmatpush.msra.mxu0 0.0
  %4650 = vmatpush.msra.mxu0 0.0
  %4651 = vmatpush.msra.mxu0 0.0
  %4652 = vmatpush.msra.mxu0 0.0
  %4653 = vmatpush.msra.mxu0 0.0
  %4654 = vmatpush.msra.mxu0 0.0
  %4655 = vmatpush.msra.mxu0 0.0
  %4656 = vmatpush.msra.mxu0 0.0
  %4657 = vmatpush.msra.mxu0 0.0
  %4658 = vmatpush.msra.mxu0 0.0
  %4659 = vmatpush.msra.mxu0 0.0
  %v4660 = vand.u32 %v2505, 4294901760
  %4661 = vmatpush.msra.mxu0 %v4660
  %v4662 = vand.u32 %v2503, 4294901760
  %4663 = vmatpush.msra.mxu0 %v4662
  %v4664 = vand.u32 %v2501, 4294901760
  %4665 = vmatpush.msra.mxu0 %v4664
  %v4666 = vand.u32 %v2499, 4294901760
  %4667 = vmatpush.msra.mxu0 %v4666
  %v4668 = vand.u32 %v3718, 4294901760
  %4669 = vmatmul.f32.gmra.mxu0 %v4668
  %v4670 = vpop.f32.mrf.mxu0
  %v4671 = vadd.f32 %v4618, %v4670
  %v4672 = vand.u32 %v3721, 4294901760
  %4673 = vmatmul.f32.gmra.mxu0 %v4672
  %v4674 = vpop.f32.mrf.mxu0
  %v4675 = vadd.f32 %v4622, %v4674
  %v4676 = vand.u32 %v3724, 4294901760
  %4677 = vmatmul.f32.gmra.mxu0 %v4676
  %v4678 = vpop.f32.mrf.mxu0
  %v4679 = vadd.f32 %v4626, %v4678
  %v4680 = vand.u32 %v3727, 4294901760
  %4681 = vmatmul.f32.gmra.mxu0 %v4680
  %v4682 = vpop.f32.mrf.mxu0
  %v4683 = vadd.f32 %v4630, %v4682
  %v4684 = vand.u32 %v3730, 4294901760
  %4685 = vmatmul.f32.gmra.mxu0 %v4684
  %v4686 = vpop.f32.mrf.mxu0
  %v4687 = vadd.f32 %v4634, %v4686
  %v4688 = vand.u32 %v3733, 4294901760
  %4689 = vmatmul.f32.gmra.mxu0 %v4688
  %v4690 = vpop.f32.mrf.mxu0
  %v4691 = vadd.f32 %v4638, %v4690
  %v4692 = vand.u32 %v3736, 4294901760
  %4693 = vmatmul.f32.gmra.mxu0 %v4692
  %v4694 = vpop.f32.mrf.mxu0
  %v4695 = vadd.f32 %v4642, %v4694
  %v4696 = vand.u32 %v3739, 4294901760
  %4697 = vmatmul.f32.gmra.mxu0 %v4696
  %v4698 = vpop.f32.mrf.mxu0
  %v4699 = vadd.f32 %v4646, %v4698
  %4700 = vdwg.mxu0
  %v4701 = vand.u32 %v2498, 4294901760
  %4702 = vmatpush.msra.mxu0 %v4701
  %v4703 = vand.u32 %v2496, 4294901760
  %4704 = vmatpush.msra.mxu0 %v4703
  %v4705 = vand.u32 %v2494, 4294901760
  %4706 = vmatpush.msra.mxu0 %v4705
  %v4707 = vand.u32 %v2492, 4294901760
  %4708 = vmatpush.msra.mxu0 %v4707
  %v4709 = vand.u32 %v2490, 4294901760
  %4710 = vmatpush.msra.mxu0 %v4709
  %v4711 = vand.u32 %v2488, 4294901760
  %4712 = vmatpush.msra.mxu0 %v4711
  %v4713 = vand.u32 %v2486, 4294901760
  %4714 = vmatpush.msra.mxu0 %v4713
  %v4715 = vand.u32 %v2484, 4294901760
  %4716 = vmatpush.msra.mxu0 %v4715
  %v4717 = vand.u32 %v2482, 4294901760
  %4718 = vmatpush.msra.mxu0 %v4717
  %v4719 = vand.u32 %v2480, 4294901760
  %4720 = vmatpush.msra.mxu0 %v4719
  %v4721 = vand.u32 %v2478, 4294901760
  %4722 = vmatpush.msra.mxu0 %v4721
  %v4723 = vand.u32 %v2476, 4294901760
  %4724 = vmatpush.msra.mxu0 %v4723
  %v4725 = vand.u32 %v2474, 4294901760
  %4726 = vmatpush.msra.mxu0 %v4725
  %v4727 = vand.u32 %v2472, 4294901760
  %4728 = vmatpush.msra.mxu0 %v4727
  %v4729 = vand.u32 %v2470, 4294901760
  %4730 = vmatpush.msra.mxu0 %v4729
  %v4731 = vand.u32 %v2468, 4294901760
  %4732 = vmatpush.msra.mxu0 %v4731
  %v4733 = vand.u32 %v3701, 4294901760
  %v4734 = vsub.f32 %v3701, %v4733
  %v4735 = vand.u32 %v4734, 4294901760
  %v4736 = vsub.f32 %v4734, %v4735
  %v4737 = vand.u32 %v4736, 4294901760
  %4738 = vmatmul.f32.gmra.mxu0 %v4737
  %v4739 = vpop.f32.mrf.mxu0
  %v4740 = vadd.f32 0.0, %v4739
  %v4741 = vand.u32 %v3703, 4294901760
  %v4742 = vsub.f32 %v3703, %v4741
  %v4743 = vand.u32 %v4742, 4294901760
  %v4744 = vsub.f32 %v4742, %v4743
  %v4745 = vand.u32 %v4744, 4294901760
  %4746 = vmatmul.f32.gmra.mxu0 %v4745
  %v4747 = vpop.f32.mrf.mxu0
  %v4748 = vadd.f32 0.0, %v4747
  %v4749 = vand.u32 %v3705, 4294901760
  %v4750 = vsub.f32 %v3705, %v4749
  %v4751 = vand.u32 %v4750, 4294901760
  %v4752 = vsub.f32 %v4750, %v4751
  %v4753 = vand.u32 %v4752, 4294901760
  %4754 = vmatmul.f32.gmra.mxu0 %v4753
  %v4755 = vpop.f32.mrf.mxu0
  %v4756 = vadd.f32 0.0, %v4755
  %v4757 = vand.u32 %v3707, 4294901760
  %v4758 = vsub.f32 %v3707, %v4757
  %v4759 = vand.u32 %v4758, 4294901760
  %v4760 = vsub.f32 %v4758, %v4759
  %v4761 = vand.u32 %v4760, 4294901760
  %4762 = vmatmul.f32.gmra.mxu0 %v4761
  %v4763 = vpop.f32.mrf.mxu0
  %v4764 = vadd.f32 0.0, %v4763
  %v4765 = vand.u32 %v3709, 4294901760
  %v4766 = vsub.f32 %v3709, %v4765
  %v4767 = vand.u32 %v4766, 4294901760
  %v4768 = vsub.f32 %v4766, %v4767
  %v4769 = vand.u32 %v4768, 4294901760
  %4770 = vmatmul.f32.gmra.mxu0 %v4769
  %v4771 = vpop.f32.mrf.mxu0
  %v4772 = vadd.f32 0.0, %v4771
  %v4773 = vand.u32 %v3711, 4294901760
  %v4774 = vsub.f32 %v3711, %v4773
  %v4775 = vand.u32 %v4774, 4294901760
  %v4776 = vsub.f32 %v4774, %v4775
  %v4777 = vand.u32 %v4776, 4294901760
  %4778 = vmatmul.f32.gmra.mxu0 %v4777
  %v4779 = vpop.f32.mrf.mxu0
  %v4780 = vadd.f32 0.0, %v4779
  %v4781 = vand.u32 %v3713, 4294901760
  %v4782 = vsub.f32 %v3713, %v4781
  %v4783 = vand.u32 %v4782, 4294901760
  %v4784 = vsub.f32 %v4782, %v4783
  %v4785 = vand.u32 %v4784, 4294901760
  %4786 = vmatmul.f32.gmra.mxu0 %v4785
  %v4787 = vpop.f32.mrf.mxu0
  %v4788 = vadd.f32 0.0, %v4787
  %v4789 = vand.u32 %v3715, 4294901760
  %v4790 = vsub.f32 %v3715, %v4789
  %v4791 = vand.u32 %v4790, 4294901760
  %v4792 = vsub.f32 %v4790, %v4791
  %v4793 = vand.u32 %v4792, 4294901760
  %4794 = vmatmul.f32.gmra.mxu0 %v4793
  %v4795 = vpop.f32.mrf.mxu0
  %v4796 = vadd.f32 0.0, %v4795
  %4797 = vdwg.mxu0
  %v4798 = vand.u32 %v2498, 4294901760
  %v4799 = vsub.f32 %v2498, %v4798
  %v4800 = vand.u32 %v4799, 4294901760
  %v4801 = vsub.f32 %v4799, %v4800
  %v4802 = vand.u32 %v4801, 4294901760
  %4803 = vmatpush.msra.mxu0 %v4802
  %v4804 = vand.u32 %v2496, 4294901760
  %v4805 = vsub.f32 %v2496, %v4804
  %v4806 = vand.u32 %v4805, 4294901760
  %v4807 = vsub.f32 %v4805, %v4806
  %v4808 = vand.u32 %v4807, 4294901760
  %4809 = vmatpush.msra.mxu0 %v4808
  %v4810 = vand.u32 %v2494, 4294901760
  %v4811 = vsub.f32 %v2494, %v4810
  %v4812 = vand.u32 %v4811, 4294901760
  %v4813 = vsub.f32 %v4811, %v4812
  %v4814 = vand.u32 %v4813, 4294901760
  %4815 = vmatpush.msra.mxu0 %v4814
  %v4816 = vand.u32 %v2492, 4294901760
  %v4817 = vsub.f32 %v2492, %v4816
  %v4818 = vand.u32 %v4817, 4294901760
  %v4819 = vsub.f32 %v4817, %v4818
  %v4820 = vand.u32 %v4819, 4294901760
  %4821 = vmatpush.msra.mxu0 %v4820
  %v4822 = vand.u32 %v2490, 4294901760
  %v4823 = vsub.f32 %v2490, %v4822
  %v4824 = vand.u32 %v4823, 4294901760
  %v4825 = vsub.f32 %v4823, %v4824
  %v4826 = vand.u32 %v4825, 4294901760
  %4827 = vmatpush.msra.mxu0 %v4826
  %v4828 = vand.u32 %v2488, 4294901760
  %v4829 = vsub.f32 %v2488, %v4828
  %v4830 = vand.u32 %v4829, 4294901760
  %v4831 = vsub.f32 %v4829, %v4830
  %v4832 = vand.u32 %v4831, 4294901760
  %4833 = vmatpush.msra.mxu0 %v4832
  %v4834 = vand.u32 %v2486, 4294901760
  %v4835 = vsub.f32 %v2486, %v4834
  %v4836 = vand.u32 %v4835, 4294901760
  %v4837 = vsub.f32 %v4835, %v4836
  %v4838 = vand.u32 %v4837, 4294901760
  %4839 = vmatpush.msra.mxu0 %v4838
  %v4840 = vand.u32 %v2484, 4294901760
  %v4841 = vsub.f32 %v2484, %v4840
  %v4842 = vand.u32 %v4841, 4294901760
  %v4843 = vsub.f32 %v4841, %v4842
  %v4844 = vand.u32 %v4843, 4294901760
  %4845 = vmatpush.msra.mxu0 %v4844
  %v4846 = vand.u32 %v2482, 4294901760
  %v4847 = vsub.f32 %v2482, %v4846
  %v4848 = vand.u32 %v4847, 4294901760
  %v4849 = vsub.f32 %v4847, %v4848
  %v4850 = vand.u32 %v4849, 4294901760
  %4851 = vmatpush.msra.mxu0 %v4850
  %v4852 = vand.u32 %v2480, 4294901760
  %v4853 = vsub.f32 %v2480, %v4852
  %v4854 = vand.u32 %v4853, 4294901760
  %v4855 = vsub.f32 %v4853, %v4854
  %v4856 = vand.u32 %v4855, 4294901760
  %4857 = vmatpush.msra.mxu0 %v4856
  %v4858 = vand.u32 %v2478, 4294901760
  %v4859 = vsub.f32 %v2478, %v4858
  %v4860 = vand.u32 %v4859, 4294901760
  %v4861 = vsub.f32 %v4859, %v4860
  %v4862 = vand.u32 %v4861, 4294901760
  %4863 = vmatpush.msra.mxu0 %v4862
  %v4864 = vand.u32 %v2476, 4294901760
  %v4865 = vsub.f32 %v2476, %v4864
  %v4866 = vand.u32 %v4865, 4294901760
  %v4867 = vsub.f32 %v4865, %v4866
  %v4868 = vand.u32 %v4867, 4294901760
  %4869 = vmatpush.msra.mxu0 %v4868
  %v4870 = vand.u32 %v2474, 4294901760
  %v4871 = vsub.f32 %v2474, %v4870
  %v4872 = vand.u32 %v4871, 4294901760
  %v4873 = vsub.f32 %v4871, %v4872
  %v4874 = vand.u32 %v4873, 4294901760
  %4875 = vmatpush.msra.mxu0 %v4874
  %v4876 = vand.u32 %v2472, 4294901760
  %v4877 = vsub.f32 %v2472, %v4876
  %v4878 = vand.u32 %v4877, 4294901760
  %v4879 = vsub.f32 %v4877, %v4878
  %v4880 = vand.u32 %v4879, 4294901760
  %4881 = vmatpush.msra.mxu0 %v4880
  %v4882 = vand.u32 %v2470, 4294901760
  %v4883 = vsub.f32 %v2470, %v4882
  %v4884 = vand.u32 %v4883, 4294901760
  %v4885 = vsub.f32 %v4883, %v4884
  %v4886 = vand.u32 %v4885, 4294901760
  %4887 = vmatpush.msra.mxu0 %v4886
  %v4888 = vand.u32 %v2468, 4294901760
  %v4889 = vsub.f32 %v2468, %v4888
  %v4890 = vand.u32 %v4889, 4294901760
  %v4891 = vsub.f32 %v4889, %v4890
  %v4892 = vand.u32 %v4891, 4294901760
  %4893 = vmatpush.msra.mxu0 %v4892
  %v4894 = vand.u32 %v3701, 4294901760
  %4895 = vmatmul.f32.gmra.mxu0 %v4894
  %v4896 = vpop.f32.mrf.mxu0
  %v4897 = vadd.f32 %v4740, %v4896
  %v4898 = vand.u32 %v3703, 4294901760
  %4899 = vmatmul.f32.gmra.mxu0 %v4898
  %v4900 = vpop.f32.mrf.mxu0
  %v4901 = vadd.f32 %v4748, %v4900
  %v4902 = vand.u32 %v3705, 4294901760
  %4903 = vmatmul.f32.gmra.mxu0 %v4902
  %v4904 = vpop.f32.mrf.mxu0
  %v4905 = vadd.f32 %v4756, %v4904
  %v4906 = vand.u32 %v3707, 4294901760
  %4907 = vmatmul.f32.gmra.mxu0 %v4906
  %v4908 = vpop.f32.mrf.mxu0
  %v4909 = vadd.f32 %v4764, %v4908
  %v4910 = vand.u32 %v3709, 4294901760
  %4911 = vmatmul.f32.gmra.mxu0 %v4910
  %v4912 = vpop.f32.mrf.mxu0
  %v4913 = vadd.f32 %v4772, %v4912
  %v4914 = vand.u32 %v3711, 4294901760
  %4915 = vmatmul.f32.gmra.mxu0 %v4914
  %v4916 = vpop.f32.mrf.mxu0
  %v4917 = vadd.f32 %v4780, %v4916
  %v4918 = vand.u32 %v3713, 4294901760
  %4919 = vmatmul.f32.gmra.mxu0 %v4918
  %v4920 = vpop.f32.mrf.mxu0
  %v4921 = vadd.f32 %v4788, %v4920
  %v4922 = vand.u32 %v3715, 4294901760
  %4923 = vmatmul.f32.gmra.mxu0 %v4922
  %v4924 = vpop.f32.mrf.mxu0
  %v4925 = vadd.f32 %v4796, %v4924
  %4926 = vdwg.mxu0
  %v4927 = vand.u32 %v2498, 4294901760
  %v4928 = vsub.f32 %v2498, %v4927
  %4929 = vmatpush.msra.mxu0 %v4928
  %v4930 = vand.u32 %v2496, 4294901760
  %v4931 = vsub.f32 %v2496, %v4930
  %4932 = vmatpush.msra.mxu0 %v4931
  %v4933 = vand.u32 %v2494, 4294901760
  %v4934 = vsub.f32 %v2494, %v4933
  %4935 = vmatpush.msra.mxu0 %v4934
  %v4936 = vand.u32 %v2492, 4294901760
  %v4937 = vsub.f32 %v2492, %v4936
  %4938 = vmatpush.msra.mxu0 %v4937
  %v4939 = vand.u32 %v2490, 4294901760
  %v4940 = vsub.f32 %v2490, %v4939
  %4941 = vmatpush.msra.mxu0 %v4940
  %v4942 = vand.u32 %v2488, 4294901760
  %v4943 = vsub.f32 %v2488, %v4942
  %4944 = vmatpush.msra.mxu0 %v4943
  %v4945 = vand.u32 %v2486, 4294901760
  %v4946 = vsub.f32 %v2486, %v4945
  %4947 = vmatpush.msra.mxu0 %v4946
  %v4948 = vand.u32 %v2484, 4294901760
  %v4949 = vsub.f32 %v2484, %v4948
  %4950 = vmatpush.msra.mxu0 %v4949
  %v4951 = vand.u32 %v2482, 4294901760
  %v4952 = vsub.f32 %v2482, %v4951
  %4953 = vmatpush.msra.mxu0 %v4952
  %v4954 = vand.u32 %v2480, 4294901760
  %v4955 = vsub.f32 %v2480, %v4954
  %4956 = vmatpush.msra.mxu0 %v4955
  %v4957 = vand.u32 %v2478, 4294901760
  %v4958 = vsub.f32 %v2478, %v4957
  %4959 = vmatpush.msra.mxu0 %v4958
  %v4960 = vand.u32 %v2476, 4294901760
  %v4961 = vsub.f32 %v2476, %v4960
  %4962 = vmatpush.msra.mxu0 %v4961
  %v4963 = vand.u32 %v2474, 4294901760
  %v4964 = vsub.f32 %v2474, %v4963
  %4965 = vmatpush.msra.mxu0 %v4964
  %v4966 = vand.u32 %v2472, 4294901760
  %v4967 = vsub.f32 %v2472, %v4966
  %4968 = vmatpush.msra.mxu0 %v4967
  %v4969 = vand.u32 %v2470, 4294901760
  %v4970 = vsub.f32 %v2470, %v4969
  %4971 = vmatpush.msra.mxu0 %v4970
  %v4972 = vand.u32 %v2468, 4294901760
  %v4973 = vsub.f32 %v2468, %v4972
  %4974 = vmatpush.msra.mxu0 %v4973
  %v4975 = vand.u32 %v3701, 4294901760
  %v4976 = vsub.f32 %v3701, %v4975
  %4977 = vmatmul.f32.gmra.mxu0 %v4976
  %v4978 = vpop.f32.mrf.mxu0
  %v4979 = vadd.f32 %v4897, %v4978
  %v4980 = vand.u32 %v3703, 4294901760
  %v4981 = vsub.f32 %v3703, %v4980
  %4982 = vmatmul.f32.gmra.mxu0 %v4981
  %v4983 = vpop.f32.mrf.mxu0
  %v4984 = vadd.f32 %v4901, %v4983
  %v4985 = vand.u32 %v3705, 4294901760
  %v4986 = vsub.f32 %v3705, %v4985
  %4987 = vmatmul.f32.gmra.mxu0 %v4986
  %v4988 = vpop.f32.mrf.mxu0
  %v4989 = vadd.f32 %v4905, %v4988
  %v4990 = vand.u32 %v3707, 4294901760
  %v4991 = vsub.f32 %v3707, %v4990
  %4992 = vmatmul.f32.gmra.mxu0 %v4991
  %v4993 = vpop.f32.mrf.mxu0
  %v4994 = vadd.f32 %v4909, %v4993
  %v4995 = vand.u32 %v3709, 4294901760
  %v4996 = vsub.f32 %v3709, %v4995
  %4997 = vmatmul.f32.gmra.mxu0 %v4996
  %v4998 = vpop.f32.mrf.mxu0
  %v4999 = vadd.f32 %v4913, %v4998
  %v5000 = vand.u32 %v3711, 4294901760
  %v5001 = vsub.f32 %v3711, %v5000
  %5002 = vmatmul.f32.gmra.mxu0 %v5001
  %v5003 = vpop.f32.mrf.mxu0
  %v5004 = vadd.f32 %v4917, %v5003
  %v5005 = vand.u32 %v3713, 4294901760
  %v5006 = vsub.f32 %v3713, %v5005
  %5007 = vmatmul.f32.gmra.mxu0 %v5006
  %v5008 = vpop.f32.mrf.mxu0
  %v5009 = vadd.f32 %v4921, %v5008
  %v5010 = vand.u32 %v3715, 4294901760
  %v5011 = vsub.f32 %v3715, %v5010
  %5012 = vmatmul.f32.gmra.mxu0 %v5011
  %v5013 = vpop.f32.mrf.mxu0
  %v5014 = vadd.f32 %v4925, %v5013
  %5015 = vdwg.mxu0
  %v5016 = vand.u32 %v2498, 4294901760
  %5017 = vmatpush.msra.mxu0 %v5016
  %v5018 = vand.u32 %v2496, 4294901760
  %5019 = vmatpush.msra.mxu0 %v5018
  %v5020 = vand.u32 %v2494, 4294901760
  %5021 = vmatpush.msra.mxu0 %v5020
  %v5022 = vand.u32 %v2492, 4294901760
  %5023 = vmatpush.msra.mxu0 %v5022
  %v5024 = vand.u32 %v2490, 4294901760
  %5025 = vmatpush.msra.mxu0 %v5024
  %v5026 = vand.u32 %v2488, 4294901760
  %5027 = vmatpush.msra.mxu0 %v5026
  %v5028 = vand.u32 %v2486, 4294901760
  %5029 = vmatpush.msra.mxu0 %v5028
  %v5030 = vand.u32 %v2484, 4294901760
  %5031 = vmatpush.msra.mxu0 %v5030
  %v5032 = vand.u32 %v2482, 4294901760
  %5033 = vmatpush.msra.mxu0 %v5032
  %v5034 = vand.u32 %v2480, 4294901760
  %5035 = vmatpush.msra.mxu0 %v5034
  %v5036 = vand.u32 %v2478, 4294901760
  %5037 = vmatpush.msra.mxu0 %v5036
  %v5038 = vand.u32 %v2476, 4294901760
  %5039 = vmatpush.msra.mxu0 %v5038
  %v5040 = vand.u32 %v2474, 4294901760
  %5041 = vmatpush.msra.mxu0 %v5040
  %v5042 = vand.u32 %v2472, 4294901760
  %5043 = vmatpush.msra.mxu0 %v5042
  %v5044 = vand.u32 %v2470, 4294901760
  %5045 = vmatpush.msra.mxu0 %v5044
  %v5046 = vand.u32 %v2468, 4294901760
  %5047 = vmatpush.msra.mxu0 %v5046
  %v5048 = vand.u32 %v3701, 4294901760
  %v5049 = vsub.f32 %v3701, %v5048
  %v5050 = vand.u32 %v5049, 4294901760
  %5051 = vmatmul.f32.gmra.mxu0 %v5050
  %v5052 = vpop.f32.mrf.mxu0
  %v5053 = vadd.f32 %v4979, %v5052
  %v5054 = vand.u32 %v3703, 4294901760
  %v5055 = vsub.f32 %v3703, %v5054
  %v5056 = vand.u32 %v5055, 4294901760
  %5057 = vmatmul.f32.gmra.mxu0 %v5056
  %v5058 = vpop.f32.mrf.mxu0
  %v5059 = vadd.f32 %v4984, %v5058
  %v5060 = vand.u32 %v3705, 4294901760
  %v5061 = vsub.f32 %v3705, %v5060
  %v5062 = vand.u32 %v5061, 4294901760
  %5063 = vmatmul.f32.gmra.mxu0 %v5062
  %v5064 = vpop.f32.mrf.mxu0
  %v5065 = vadd.f32 %v4989, %v5064
  %v5066 = vand.u32 %v3707, 4294901760
  %v5067 = vsub.f32 %v3707, %v5066
  %v5068 = vand.u32 %v5067, 4294901760
  %5069 = vmatmul.f32.gmra.mxu0 %v5068
  %v5070 = vpop.f32.mrf.mxu0
  %v5071 = vadd.f32 %v4994, %v5070
  %v5072 = vand.u32 %v3709, 4294901760
  %v5073 = vsub.f32 %v3709, %v5072
  %v5074 = vand.u32 %v5073, 4294901760
  %5075 = vmatmul.f32.gmra.mxu0 %v5074
  %v5076 = vpop.f32.mrf.mxu0
  %v5077 = vadd.f32 %v4999, %v5076
  %v5078 = vand.u32 %v3711, 4294901760
  %v5079 = vsub.f32 %v3711, %v5078
  %v5080 = vand.u32 %v5079, 4294901760
  %5081 = vmatmul.f32.gmra.mxu0 %v5080
  %v5082 = vpop.f32.mrf.mxu0
  %v5083 = vadd.f32 %v5004, %v5082
  %v5084 = vand.u32 %v3713, 4294901760
  %v5085 = vsub.f32 %v3713, %v5084
  %v5086 = vand.u32 %v5085, 4294901760
  %5087 = vmatmul.f32.gmra.mxu0 %v5086
  %v5088 = vpop.f32.mrf.mxu0
  %v5089 = vadd.f32 %v5009, %v5088
  %v5090 = vand.u32 %v3715, 4294901760
  %v5091 = vsub.f32 %v3715, %v5090
  %v5092 = vand.u32 %v5091, 4294901760
  %5093 = vmatmul.f32.gmra.mxu0 %v5092
  %v5094 = vpop.f32.mrf.mxu0
  %v5095 = vadd.f32 %v5014, %v5094
  %5096 = vdwg.mxu0
  %v5097 = vand.u32 %v2498, 4294901760
  %v5098 = vsub.f32 %v2498, %v5097
  %v5099 = vand.u32 %v5098, 4294901760
  %5100 = vmatpush.msra.mxu0 %v5099
  %v5101 = vand.u32 %v2496, 4294901760
  %v5102 = vsub.f32 %v2496, %v5101
  %v5103 = vand.u32 %v5102, 4294901760
  %5104 = vmatpush.msra.mxu0 %v5103
  %v5105 = vand.u32 %v2494, 4294901760
  %v5106 = vsub.f32 %v2494, %v5105
  %v5107 = vand.u32 %v5106, 4294901760
  %5108 = vmatpush.msra.mxu0 %v5107
  %v5109 = vand.u32 %v2492, 4294901760
  %v5110 = vsub.f32 %v2492, %v5109
  %v5111 = vand.u32 %v5110, 4294901760
  %5112 = vmatpush.msra.mxu0 %v5111
  %v5113 = vand.u32 %v2490, 4294901760
  %v5114 = vsub.f32 %v2490, %v5113
  %v5115 = vand.u32 %v5114, 4294901760
  %5116 = vmatpush.msra.mxu0 %v5115
  %v5117 = vand.u32 %v2488, 4294901760
  %v5118 = vsub.f32 %v2488, %v5117
  %v5119 = vand.u32 %v5118, 4294901760
  %5120 = vmatpush.msra.mxu0 %v5119
  %v5121 = vand.u32 %v2486, 4294901760
  %v5122 = vsub.f32 %v2486, %v5121
  %v5123 = vand.u32 %v5122, 4294901760
  %5124 = vmatpush.msra.mxu0 %v5123
  %v5125 = vand.u32 %v2484, 4294901760
  %v5126 = vsub.f32 %v2484, %v5125
  %v5127 = vand.u32 %v5126, 4294901760
  %5128 = vmatpush.msra.mxu0 %v5127
  %v5129 = vand.u32 %v2482, 4294901760
  %v5130 = vsub.f32 %v2482, %v5129
  %v5131 = vand.u32 %v5130, 4294901760
  %5132 = vmatpush.msra.mxu0 %v5131
  %v5133 = vand.u32 %v2480, 4294901760
  %v5134 = vsub.f32 %v2480, %v5133
  %v5135 = vand.u32 %v5134, 4294901760
  %5136 = vmatpush.msra.mxu0 %v5135
  %v5137 = vand.u32 %v2478, 4294901760
  %v5138 = vsub.f32 %v2478, %v5137
  %v5139 = vand.u32 %v5138, 4294901760
  %5140 = vmatpush.msra.mxu0 %v5139
  %v5141 = vand.u32 %v2476, 4294901760
  %v5142 = vsub.f32 %v2476, %v5141
  %v5143 = vand.u32 %v5142, 4294901760
  %5144 = vmatpush.msra.mxu0 %v5143
  %v5145 = vand.u32 %v2474, 4294901760
  %v5146 = vsub.f32 %v2474, %v5145
  %v5147 = vand.u32 %v5146, 4294901760
  %5148 = vmatpush.msra.mxu0 %v5147
  %v5149 = vand.u32 %v2472, 4294901760
  %v5150 = vsub.f32 %v2472, %v5149
  %v5151 = vand.u32 %v5150, 4294901760
  %5152 = vmatpush.msra.mxu0 %v5151
  %v5153 = vand.u32 %v2470, 4294901760
  %v5154 = vsub.f32 %v2470, %v5153
  %v5155 = vand.u32 %v5154, 4294901760
  %5156 = vmatpush.msra.mxu0 %v5155
  %v5157 = vand.u32 %v2468, 4294901760
  %v5158 = vsub.f32 %v2468, %v5157
  %v5159 = vand.u32 %v5158, 4294901760
  %5160 = vmatpush.msra.mxu0 %v5159
  %v5161 = vand.u32 %v3701, 4294901760
  %5162 = vmatmul.f32.gmra.mxu0 %v5161
  %v5163 = vpop.f32.mrf.mxu0
  %v5164 = vadd.f32 %v5053, %v5163
  %v5165 = vand.u32 %v3703, 4294901760
  %5166 = vmatmul.f32.gmra.mxu0 %v5165
  %v5167 = vpop.f32.mrf.mxu0
  %v5168 = vadd.f32 %v5059, %v5167
  %v5169 = vand.u32 %v3705, 4294901760
  %5170 = vmatmul.f32.gmra.mxu0 %v5169
  %v5171 = vpop.f32.mrf.mxu0
  %v5172 = vadd.f32 %v5065, %v5171
  %v5173 = vand.u32 %v3707, 4294901760
  %5174 = vmatmul.f32.gmra.mxu0 %v5173
  %v5175 = vpop.f32.mrf.mxu0
  %v5176 = vadd.f32 %v5071, %v5175
  %v5177 = vand.u32 %v3709, 4294901760
  %5178 = vmatmul.f32.gmra.mxu0 %v5177
  %v5179 = vpop.f32.mrf.mxu0
  %v5180 = vadd.f32 %v5077, %v5179
  %v5181 = vand.u32 %v3711, 4294901760
  %5182 = vmatmul.f32.gmra.mxu0 %v5181
  %v5183 = vpop.f32.mrf.mxu0
  %v5184 = vadd.f32 %v5083, %v5183
  %v5185 = vand.u32 %v3713, 4294901760
  %5186 = vmatmul.f32.gmra.mxu0 %v5185
  %v5187 = vpop.f32.mrf.mxu0
  %v5188 = vadd.f32 %v5089, %v5187
  %v5189 = vand.u32 %v3715, 4294901760
  %5190 = vmatmul.f32.gmra.mxu0 %v5189
  %v5191 = vpop.f32.mrf.mxu0
  %v5192 = vadd.f32 %v5095, %v5191
  %5193 = vdwg.mxu0
  %v5194 = vand.u32 %v2498, 4294901760
  %5195 = vmatpush.msra.mxu0 %v5194
  %v5196 = vand.u32 %v2496, 4294901760
  %5197 = vmatpush.msra.mxu0 %v5196
  %v5198 = vand.u32 %v2494, 4294901760
  %5199 = vmatpush.msra.mxu0 %v5198
  %v5200 = vand.u32 %v2492, 4294901760
  %5201 = vmatpush.msra.mxu0 %v5200
  %v5202 = vand.u32 %v2490, 4294901760
  %5203 = vmatpush.msra.mxu0 %v5202
  %v5204 = vand.u32 %v2488, 4294901760
  %5205 = vmatpush.msra.mxu0 %v5204
  %v5206 = vand.u32 %v2486, 4294901760
  %5207 = vmatpush.msra.mxu0 %v5206
  %v5208 = vand.u32 %v2484, 4294901760
  %5209 = vmatpush.msra.mxu0 %v5208
  %v5210 = vand.u32 %v2482, 4294901760
  %5211 = vmatpush.msra.mxu0 %v5210
  %v5212 = vand.u32 %v2480, 4294901760
  %5213 = vmatpush.msra.mxu0 %v5212
  %v5214 = vand.u32 %v2478, 4294901760
  %5215 = vmatpush.msra.mxu0 %v5214
  %v5216 = vand.u32 %v2476, 4294901760
  %5217 = vmatpush.msra.mxu0 %v5216
  %v5218 = vand.u32 %v2474, 4294901760
  %5219 = vmatpush.msra.mxu0 %v5218
  %v5220 = vand.u32 %v2472, 4294901760
  %5221 = vmatpush.msra.mxu0 %v5220
  %v5222 = vand.u32 %v2470, 4294901760
  %5223 = vmatpush.msra.mxu0 %v5222
  %v5224 = vand.u32 %v2468, 4294901760
  %5225 = vmatpush.msra.mxu0 %v5224
  %v5226 = vand.u32 %v3701, 4294901760
  %5227 = vmatmul.f32.gmra.mxu0 %v5226
  %v5228 = vpop.f32.mrf.mxu0
  %v5229 = vadd.f32 %v5164, %v5228
  %v5230 = vand.u32 %v3703, 4294901760
  %5231 = vmatmul.f32.gmra.mxu0 %v5230
  %v5232 = vpop.f32.mrf.mxu0
  %v5233 = vadd.f32 %v5168, %v5232
  %v5234 = vand.u32 %v3705, 4294901760
  %5235 = vmatmul.f32.gmra.mxu0 %v5234
  %v5236 = vpop.f32.mrf.mxu0
  %v5237 = vadd.f32 %v5172, %v5236
  %v5238 = vand.u32 %v3707, 4294901760
  %5239 = vmatmul.f32.gmra.mxu0 %v5238
  %v5240 = vpop.f32.mrf.mxu0
  %v5241 = vadd.f32 %v5176, %v5240
  %v5242 = vand.u32 %v3709, 4294901760
  %5243 = vmatmul.f32.gmra.mxu0 %v5242
  %v5244 = vpop.f32.mrf.mxu0
  %v5245 = vadd.f32 %v5180, %v5244
  %v5246 = vand.u32 %v3711, 4294901760
  %5247 = vmatmul.f32.gmra.mxu0 %v5246
  %v5248 = vpop.f32.mrf.mxu0
  %v5249 = vadd.f32 %v5184, %v5248
  %v5250 = vand.u32 %v3713, 4294901760
  %5251 = vmatmul.f32.gmra.mxu0 %v5250
  %v5252 = vpop.f32.mrf.mxu0
  %v5253 = vadd.f32 %v5188, %v5252
  %v5254 = vand.u32 %v3715, 4294901760
  %5255 = vmatmul.f32.gmra.mxu0 %v5254
  %v5256 = vpop.f32.mrf.mxu0
  %v5257 = vadd.f32 %v5192, %v5256
  %5258 = vdwg.mxu0
  %5259 = vmatpush.msra.mxu0 0.0
  %5260 = vmatpush.msra.mxu0 0.0
  %5261 = vmatpush.msra.mxu0 0.0
  %5262 = vmatpush.msra.mxu0 0.0
  %5263 = vmatpush.msra.mxu0 0.0
  %5264 = vmatpush.msra.mxu0 0.0
  %5265 = vmatpush.msra.mxu0 0.0
  %5266 = vmatpush.msra.mxu0 0.0
  %5267 = vmatpush.msra.mxu0 0.0
  %5268 = vmatpush.msra.mxu0 0.0
  %5269 = vmatpush.msra.mxu0 0.0
  %5270 = vmatpush.msra.mxu0 0.0
  %v5271 = vand.u32 %v2506, 4294901760
  %5272 = vmatpush.msra.mxu0 %v5271
  %v5273 = vand.u32 %v2504, 4294901760
  %5274 = vmatpush.msra.mxu0 %v5273
  %v5275 = vand.u32 %v2502, 4294901760
  %5276 = vmatpush.msra.mxu0 %v5275
  %v5277 = vand.u32 %v2500, 4294901760
  %5278 = vmatpush.msra.mxu0 %v5277
  %v5279 = vand.u32 %v3718, 4294901760
  %v5280 = vsub.f32 %v3718, %v5279
  %v5281 = vand.u32 %v5280, 4294901760
  %v5282 = vsub.f32 %v5280, %v5281
  %v5283 = vand.u32 %v5282, 4294901760
  %5284 = vmatmul.f32.gmra.mxu0 %v5283
  %v5285 = vpop.f32.mrf.mxu0
  %v5286 = vadd.f32 %v5229, %v5285
  %v5287 = vand.u32 %v3721, 4294901760
  %v5288 = vsub.f32 %v3721, %v5287
  %v5289 = vand.u32 %v5288, 4294901760
  %v5290 = vsub.f32 %v5288, %v5289
  %v5291 = vand.u32 %v5290, 4294901760
  %5292 = vmatmul.f32.gmra.mxu0 %v5291
  %v5293 = vpop.f32.mrf.mxu0
  %v5294 = vadd.f32 %v5233, %v5293
  %v5295 = vand.u32 %v3724, 4294901760
  %v5296 = vsub.f32 %v3724, %v5295
  %v5297 = vand.u32 %v5296, 4294901760
  %v5298 = vsub.f32 %v5296, %v5297
  %v5299 = vand.u32 %v5298, 4294901760
  %5300 = vmatmul.f32.gmra.mxu0 %v5299
  %v5301 = vpop.f32.mrf.mxu0
  %v5302 = vadd.f32 %v5237, %v5301
  %v5303 = vand.u32 %v3727, 4294901760
  %v5304 = vsub.f32 %v3727, %v5303
  %v5305 = vand.u32 %v5304, 4294901760
  %v5306 = vsub.f32 %v5304, %v5305
  %v5307 = vand.u32 %v5306, 4294901760
  %5308 = vmatmul.f32.gmra.mxu0 %v5307
  %v5309 = vpop.f32.mrf.mxu0
  %v5310 = vadd.f32 %v5241, %v5309
  %v5311 = vand.u32 %v3730, 4294901760
  %v5312 = vsub.f32 %v3730, %v5311
  %v5313 = vand.u32 %v5312, 4294901760
  %v5314 = vsub.f32 %v5312, %v5313
  %v5315 = vand.u32 %v5314, 4294901760
  %5316 = vmatmul.f32.gmra.mxu0 %v5315
  %v5317 = vpop.f32.mrf.mxu0
  %v5318 = vadd.f32 %v5245, %v5317
  %v5319 = vand.u32 %v3733, 4294901760
  %v5320 = vsub.f32 %v3733, %v5319
  %v5321 = vand.u32 %v5320, 4294901760
  %v5322 = vsub.f32 %v5320, %v5321
  %v5323 = vand.u32 %v5322, 4294901760
  %5324 = vmatmul.f32.gmra.mxu0 %v5323
  %v5325 = vpop.f32.mrf.mxu0
  %v5326 = vadd.f32 %v5249, %v5325
  %v5327 = vand.u32 %v3736, 4294901760
  %v5328 = vsub.f32 %v3736, %v5327
  %v5329 = vand.u32 %v5328, 4294901760
  %v5330 = vsub.f32 %v5328, %v5329
  %v5331 = vand.u32 %v5330, 4294901760
  %5332 = vmatmul.f32.gmra.mxu0 %v5331
  %v5333 = vpop.f32.mrf.mxu0
  %v5334 = vadd.f32 %v5253, %v5333
  %v5335 = vand.u32 %v3739, 4294901760
  %v5336 = vsub.f32 %v3739, %v5335
  %v5337 = vand.u32 %v5336, 4294901760
  %v5338 = vsub.f32 %v5336, %v5337
  %v5339 = vand.u32 %v5338, 4294901760
  %5340 = vmatmul.f32.gmra.mxu0 %v5339
  %v5341 = vpop.f32.mrf.mxu0
  %v5342 = vadd.f32 %v5257, %v5341
  %5343 = vdwg.mxu0
  %5344 = vmatpush.msra.mxu0 0.0
  %5345 = vmatpush.msra.mxu0 0.0
  %5346 = vmatpush.msra.mxu0 0.0
  %5347 = vmatpush.msra.mxu0 0.0
  %5348 = vmatpush.msra.mxu0 0.0
  %5349 = vmatpush.msra.mxu0 0.0
  %5350 = vmatpush.msra.mxu0 0.0
  %5351 = vmatpush.msra.mxu0 0.0
  %5352 = vmatpush.msra.mxu0 0.0
  %5353 = vmatpush.msra.mxu0 0.0
  %5354 = vmatpush.msra.mxu0 0.0
  %5355 = vmatpush.msra.mxu0 0.0
  %v5356 = vand.u32 %v2506, 4294901760
  %v5357 = vsub.f32 %v2506, %v5356
  %v5358 = vand.u32 %v5357, 4294901760
  %v5359 = vsub.f32 %v5357, %v5358
  %v5360 = vand.u32 %v5359, 4294901760
  %5361 = vmatpush.msra.mxu0 %v5360
  %v5362 = vand.u32 %v2504, 4294901760
  %v5363 = vsub.f32 %v2504, %v5362
  %v5364 = vand.u32 %v5363, 4294901760
  %v5365 = vsub.f32 %v5363, %v5364
  %v5366 = vand.u32 %v5365, 4294901760
  %5367 = vmatpush.msra.mxu0 %v5366
  %v5368 = vand.u32 %v2502, 4294901760
  %v5369 = vsub.f32 %v2502, %v5368
  %v5370 = vand.u32 %v5369, 4294901760
  %v5371 = vsub.f32 %v5369, %v5370
  %v5372 = vand.u32 %v5371, 4294901760
  %5373 = vmatpush.msra.mxu0 %v5372
  %v5374 = vand.u32 %v2500, 4294901760
  %v5375 = vsub.f32 %v2500, %v5374
  %v5376 = vand.u32 %v5375, 4294901760
  %v5377 = vsub.f32 %v5375, %v5376
  %v5378 = vand.u32 %v5377, 4294901760
  %5379 = vmatpush.msra.mxu0 %v5378
  %v5380 = vand.u32 %v3718, 4294901760
  %5381 = vmatmul.f32.gmra.mxu0 %v5380
  %v5382 = vpop.f32.mrf.mxu0
  %v5383 = vadd.f32 %v5286, %v5382
  %v5384 = vand.u32 %v3721, 4294901760
  %5385 = vmatmul.f32.gmra.mxu0 %v5384
  %v5386 = vpop.f32.mrf.mxu0
  %v5387 = vadd.f32 %v5294, %v5386
  %v5388 = vand.u32 %v3724, 4294901760
  %5389 = vmatmul.f32.gmra.mxu0 %v5388
  %v5390 = vpop.f32.mrf.mxu0
  %v5391 = vadd.f32 %v5302, %v5390
  %v5392 = vand.u32 %v3727, 4294901760
  %5393 = vmatmul.f32.gmra.mxu0 %v5392
  %v5394 = vpop.f32.mrf.mxu0
  %v5395 = vadd.f32 %v5310, %v5394
  %v5396 = vand.u32 %v3730, 4294901760
  %5397 = vmatmul.f32.gmra.mxu0 %v5396
  %v5398 = vpop.f32.mrf.mxu0
  %v5399 = vadd.f32 %v5318, %v5398
  %v5400 = vand.u32 %v3733, 4294901760
  %5401 = vmatmul.f32.gmra.mxu0 %v5400
  %v5402 = vpop.f32.mrf.mxu0
  %v5403 = vadd.f32 %v5326, %v5402
  %v5404 = vand.u32 %v3736, 4294901760
  %5405 = vmatmul.f32.gmra.mxu0 %v5404
  %v5406 = vpop.f32.mrf.mxu0
  %v5407 = vadd.f32 %v5334, %v5406
  %v5408 = vand.u32 %v3739, 4294901760
  %5409 = vmatmul.f32.gmra.mxu0 %v5408
  %v5410 = vpop.f32.mrf.mxu0
  %v5411 = vadd.f32 %v5342, %v5410
  %5412 = vdwg.mxu0
  %5413 = vmatpush.msra.mxu0 0.0
  %5414 = vmatpush.msra.mxu0 0.0
  %5415 = vmatpush.msra.mxu0 0.0
  %5416 = vmatpush.msra.mxu0 0.0
  %5417 = vmatpush.msra.mxu0 0.0
  %5418 = vmatpush.msra.mxu0 0.0
  %5419 = vmatpush.msra.mxu0 0.0
  %5420 = vmatpush.msra.mxu0 0.0
  %5421 = vmatpush.msra.mxu0 0.0
  %5422 = vmatpush.msra.mxu0 0.0
  %5423 = vmatpush.msra.mxu0 0.0
  %5424 = vmatpush.msra.mxu0 0.0
  %v5425 = vand.u32 %v2506, 4294901760
  %v5426 = vsub.f32 %v2506, %v5425
  %5427 = vmatpush.msra.mxu0 %v5426
  %v5428 = vand.u32 %v2504, 4294901760
  %v5429 = vsub.f32 %v2504, %v5428
  %5430 = vmatpush.msra.mxu0 %v5429
  %v5431 = vand.u32 %v2502, 4294901760
  %v5432 = vsub.f32 %v2502, %v5431
  %5433 = vmatpush.msra.mxu0 %v5432
  %v5434 = vand.u32 %v2500, 4294901760
  %v5435 = vsub.f32 %v2500, %v5434
  %5436 = vmatpush.msra.mxu0 %v5435
  %v5437 = vand.u32 %v3718, 4294901760
  %v5438 = vsub.f32 %v3718, %v5437
  %5439 = vmatmul.f32.gmra.mxu0 %v5438
  %v5440 = vpop.f32.mrf.mxu0
  %v5441 = vadd.f32 %v5383, %v5440
  %v5442 = vand.u32 %v3721, 4294901760
  %v5443 = vsub.f32 %v3721, %v5442
  %5444 = vmatmul.f32.gmra.mxu0 %v5443
  %v5445 = vpop.f32.mrf.mxu0
  %v5446 = vadd.f32 %v5387, %v5445
  %v5447 = vand.u32 %v3724, 4294901760
  %v5448 = vsub.f32 %v3724, %v5447
  %5449 = vmatmul.f32.gmra.mxu0 %v5448
  %v5450 = vpop.f32.mrf.mxu0
  %v5451 = vadd.f32 %v5391, %v5450
  %v5452 = vand.u32 %v3727, 4294901760
  %v5453 = vsub.f32 %v3727, %v5452
  %5454 = vmatmul.f32.gmra.mxu0 %v5453
  %v5455 = vpop.f32.mrf.mxu0
  %v5456 = vadd.f32 %v5395, %v5455
  %v5457 = vand.u32 %v3730, 4294901760
  %v5458 = vsub.f32 %v3730, %v5457
  %5459 = vmatmul.f32.gmra.mxu0 %v5458
  %v5460 = vpop.f32.mrf.mxu0
  %v5461 = vadd.f32 %v5399, %v5460
  %v5462 = vand.u32 %v3733, 4294901760
  %v5463 = vsub.f32 %v3733, %v5462
  %5464 = vmatmul.f32.gmra.mxu0 %v5463
  %v5465 = vpop.f32.mrf.mxu0
  %v5466 = vadd.f32 %v5403, %v5465
  %v5467 = vand.u32 %v3736, 4294901760
  %v5468 = vsub.f32 %v3736, %v5467
  %5469 = vmatmul.f32.gmra.mxu0 %v5468
  %v5470 = vpop.f32.mrf.mxu0
  %v5471 = vadd.f32 %v5407, %v5470
  %v5472 = vand.u32 %v3739, 4294901760
  %v5473 = vsub.f32 %v3739, %v5472
  %5474 = vmatmul.f32.gmra.mxu0 %v5473
  %v5475 = vpop.f32.mrf.mxu0
  %v5476 = vadd.f32 %v5411, %v5475
  %5477 = vdwg.mxu0
  %5478 = vmatpush.msra.mxu0 0.0
  %5479 = vmatpush.msra.mxu0 0.0
  %5480 = vmatpush.msra.mxu0 0.0
  %5481 = vmatpush.msra.mxu0 0.0
  %5482 = vmatpush.msra.mxu0 0.0
  %5483 = vmatpush.msra.mxu0 0.0
  %5484 = vmatpush.msra.mxu0 0.0
  %5485 = vmatpush.msra.mxu0 0.0
  %5486 = vmatpush.msra.mxu0 0.0
  %5487 = vmatpush.msra.mxu0 0.0
  %5488 = vmatpush.msra.mxu0 0.0
  %5489 = vmatpush.msra.mxu0 0.0
  %v5490 = vand.u32 %v2506, 4294901760
  %5491 = vmatpush.msra.mxu0 %v5490
  %v5492 = vand.u32 %v2504, 4294901760
  %5493 = vmatpush.msra.mxu0 %v5492
  %v5494 = vand.u32 %v2502, 4294901760
  %5495 = vmatpush.msra.mxu0 %v5494
  %v5496 = vand.u32 %v2500, 4294901760
  %5497 = vmatpush.msra.mxu0 %v5496
  %v5498 = vand.u32 %v3718, 4294901760
  %v5499 = vsub.f32 %v3718, %v5498
  %v5500 = vand.u32 %v5499, 4294901760
  %5501 = vmatmul.f32.gmra.mxu0 %v5500
  %v5502 = vpop.f32.mrf.mxu0
  %v5503 = vadd.f32 %v5441, %v5502
  %v5504 = vand.u32 %v3721, 4294901760
  %v5505 = vsub.f32 %v3721, %v5504
  %v5506 = vand.u32 %v5505, 4294901760
  %5507 = vmatmul.f32.gmra.mxu0 %v5506
  %v5508 = vpop.f32.mrf.mxu0
  %v5509 = vadd.f32 %v5446, %v5508
  %v5510 = vand.u32 %v3724, 4294901760
  %v5511 = vsub.f32 %v3724, %v5510
  %v5512 = vand.u32 %v5511, 4294901760
  %5513 = vmatmul.f32.gmra.mxu0 %v5512
  %v5514 = vpop.f32.mrf.mxu0
  %v5515 = vadd.f32 %v5451, %v5514
  %v5516 = vand.u32 %v3727, 4294901760
  %v5517 = vsub.f32 %v3727, %v5516
  %v5518 = vand.u32 %v5517, 4294901760
  %5519 = vmatmul.f32.gmra.mxu0 %v5518
  %v5520 = vpop.f32.mrf.mxu0
  %v5521 = vadd.f32 %v5456, %v5520
  %v5522 = vand.u32 %v3730, 4294901760
  %v5523 = vsub.f32 %v3730, %v5522
  %v5524 = vand.u32 %v5523, 4294901760
  %5525 = vmatmul.f32.gmra.mxu0 %v5524
  %v5526 = vpop.f32.mrf.mxu0
  %v5527 = vadd.f32 %v5461, %v5526
  %v5528 = vand.u32 %v3733, 4294901760
  %v5529 = vsub.f32 %v3733, %v5528
  %v5530 = vand.u32 %v5529, 4294901760
  %5531 = vmatmul.f32.gmra.mxu0 %v5530
  %v5532 = vpop.f32.mrf.mxu0
  %v5533 = vadd.f32 %v5466, %v5532
  %v5534 = vand.u32 %v3736, 4294901760
  %v5535 = vsub.f32 %v3736, %v5534
  %v5536 = vand.u32 %v5535, 4294901760
  %5537 = vmatmul.f32.gmra.mxu0 %v5536
  %v5538 = vpop.f32.mrf.mxu0
  %v5539 = vadd.f32 %v5471, %v5538
  %v5540 = vand.u32 %v3739, 4294901760
  %v5541 = vsub.f32 %v3739, %v5540
  %v5542 = vand.u32 %v5541, 4294901760
  %5543 = vmatmul.f32.gmra.mxu0 %v5542
  %v5544 = vpop.f32.mrf.mxu0
  %v5545 = vadd.f32 %v5476, %v5544
  %5546 = vdwg.mxu0
  %5547 = vmatpush.msra.mxu0 0.0
  %5548 = vmatpush.msra.mxu0 0.0
  %5549 = vmatpush.msra.mxu0 0.0
  %5550 = vmatpush.msra.mxu0 0.0
  %5551 = vmatpush.msra.mxu0 0.0
  %5552 = vmatpush.msra.mxu0 0.0
  %5553 = vmatpush.msra.mxu0 0.0
  %5554 = vmatpush.msra.mxu0 0.0
  %5555 = vmatpush.msra.mxu0 0.0
  %5556 = vmatpush.msra.mxu0 0.0
  %5557 = vmatpush.msra.mxu0 0.0
  %5558 = vmatpush.msra.mxu0 0.0
  %v5559 = vand.u32 %v2506, 4294901760
  %v5560 = vsub.f32 %v2506, %v5559
  %v5561 = vand.u32 %v5560, 4294901760
  %5562 = vmatpush.msra.mxu0 %v5561
  %v5563 = vand.u32 %v2504, 4294901760
  %v5564 = vsub.f32 %v2504, %v5563
  %v5565 = vand.u32 %v5564, 4294901760
  %5566 = vmatpush.msra.mxu0 %v5565
  %v5567 = vand.u32 %v2502, 4294901760
  %v5568 = vsub.f32 %v2502, %v5567
  %v5569 = vand.u32 %v5568, 4294901760
  %5570 = vmatpush.msra.mxu0 %v5569
  %v5571 = vand.u32 %v2500, 4294901760
  %v5572 = vsub.f32 %v2500, %v5571
  %v5573 = vand.u32 %v5572, 4294901760
  %5574 = vmatpush.msra.mxu0 %v5573
  %v5575 = vand.u32 %v3718, 4294901760
  %5576 = vmatmul.f32.gmra.mxu0 %v5575
  %v5577 = vpop.f32.mrf.mxu0
  %v5578 = vadd.f32 %v5503, %v5577
  %v5579 = vand.u32 %v3721, 4294901760
  %5580 = vmatmul.f32.gmra.mxu0 %v5579
  %v5581 = vpop.f32.mrf.mxu0
  %v5582 = vadd.f32 %v5509, %v5581
  %v5583 = vand.u32 %v3724, 4294901760
  %5584 = vmatmul.f32.gmra.mxu0 %v5583
  %v5585 = vpop.f32.mrf.mxu0
  %v5586 = vadd.f32 %v5515, %v5585
  %v5587 = vand.u32 %v3727, 4294901760
  %5588 = vmatmul.f32.gmra.mxu0 %v5587
  %v5589 = vpop.f32.mrf.mxu0
  %v5590 = vadd.f32 %v5521, %v5589
  %v5591 = vand.u32 %v3730, 4294901760
  %5592 = vmatmul.f32.gmra.mxu0 %v5591
  %v5593 = vpop.f32.mrf.mxu0
  %v5594 = vadd.f32 %v5527, %v5593
  %v5595 = vand.u32 %v3733, 4294901760
  %5596 = vmatmul.f32.gmra.mxu0 %v5595
  %v5597 = vpop.f32.mrf.mxu0
  %v5598 = vadd.f32 %v5533, %v5597
  %v5599 = vand.u32 %v3736, 4294901760
  %5600 = vmatmul.f32.gmra.mxu0 %v5599
  %v5601 = vpop.f32.mrf.mxu0
  %v5602 = vadd.f32 %v5539, %v5601
  %v5603 = vand.u32 %v3739, 4294901760
  %5604 = vmatmul.f32.gmra.mxu0 %v5603
  %v5605 = vpop.f32.mrf.mxu0
  %v5606 = vadd.f32 %v5545, %v5605
  %5607 = vdwg.mxu0
  %5608 = vmatpush.msra.mxu0 0.0
  %5609 = vmatpush.msra.mxu0 0.0
  %5610 = vmatpush.msra.mxu0 0.0
  %5611 = vmatpush.msra.mxu0 0.0
  %5612 = vmatpush.msra.mxu0 0.0
  %5613 = vmatpush.msra.mxu0 0.0
  %5614 = vmatpush.msra.mxu0 0.0
  %5615 = vmatpush.msra.mxu0 0.0
  %5616 = vmatpush.msra.mxu0 0.0
  %5617 = vmatpush.msra.mxu0 0.0
  %5618 = vmatpush.msra.mxu0 0.0
  %5619 = vmatpush.msra.mxu0 0.0
  %v5620 = vand.u32 %v2506, 4294901760
  %5621 = vmatpush.msra.mxu0 %v5620
  %v5622 = vand.u32 %v2504, 4294901760
  %5623 = vmatpush.msra.mxu0 %v5622
  %v5624 = vand.u32 %v2502, 4294901760
  %5625 = vmatpush.msra.mxu0 %v5624
  %v5626 = vand.u32 %v2500, 4294901760
  %5627 = vmatpush.msra.mxu0 %v5626
  %v5628 = vand.u32 %v3718, 4294901760
  %5629 = vmatmul.f32.gmra.mxu0 %v5628
  %v5630 = vpop.f32.mrf.mxu0
  %v5631 = vadd.f32 %v5578, %v5630
  %v5632 = vand.u32 %v3721, 4294901760
  %5633 = vmatmul.f32.gmra.mxu0 %v5632
  %v5634 = vpop.f32.mrf.mxu0
  %v5635 = vadd.f32 %v5582, %v5634
  %v5636 = vand.u32 %v3724, 4294901760
  %5637 = vmatmul.f32.gmra.mxu0 %v5636
  %v5638 = vpop.f32.mrf.mxu0
  %v5639 = vadd.f32 %v5586, %v5638
  %v5640 = vand.u32 %v3727, 4294901760
  %5641 = vmatmul.f32.gmra.mxu0 %v5640
  %v5642 = vpop.f32.mrf.mxu0
  %v5643 = vadd.f32 %v5590, %v5642
  %v5644 = vand.u32 %v3730, 4294901760
  %5645 = vmatmul.f32.gmra.mxu0 %v5644
  %v5646 = vpop.f32.mrf.mxu0
  %v5647 = vadd.f32 %v5594, %v5646
  %v5648 = vand.u32 %v3733, 4294901760
  %5649 = vmatmul.f32.gmra.mxu0 %v5648
  %v5650 = vpop.f32.mrf.mxu0
  %v5651 = vadd.f32 %v5598, %v5650
  %v5652 = vand.u32 %v3736, 4294901760
  %5653 = vmatmul.f32.gmra.mxu0 %v5652
  %v5654 = vpop.f32.mrf.mxu0
  %v5655 = vadd.f32 %v5602, %v5654
  %v5656 = vand.u32 %v3739, 4294901760
  %5657 = vmatmul.f32.gmra.mxu0 %v5656
  %v5658 = vpop.f32.mrf.mxu0
  %v5659 = vadd.f32 %v5606, %v5658
  %5660 = vdwg.mxu0
  %v5661 = vadd.f32 %v4671, 0.0
  %v5662 = vadd.f32 %v5631, 0.0
  %v5663 = vadd.f32 %v4675, 0.0
  %v5664 = vadd.f32 %v5635, 0.0
  %v5665 = vadd.f32 %v4679, 0.0
  %v5666 = vadd.f32 %v5639, 0.0
  %v5667 = vadd.f32 %v4683, 0.0
  %v5668 = vadd.f32 %v5643, 0.0
  %v5669 = vadd.f32 %v4687, 0.0
  %v5670 = vadd.f32 %v5647, 0.0
  %v5671 = vadd.f32 %v4691, 0.0
  %v5672 = vadd.f32 %v5651, 0.0
  %v5673 = vadd.f32 %v4695, 0.0
  %v5674 = vadd.f32 %v5655, 0.0
  %v5675 = vadd.f32 %v4699, 0.0
  %v5676 = vadd.f32 %v5659, 0.0
  %v5677 = vmax.f32 %v5661, %v5663
  %v5678 = vmax.f32 %v5677, %v5665
  %v5679 = vmax.f32 %v5678, %v5667
  %v5680 = vrot.slane %v5679, 4
  %v5681 = vmax.f32 %v5679, %v5680
  %v5682 = vrot.slane %v5681, 2
  %v5683 = vmax.f32 %v5681, %v5682
  %v5684 = vrot.slane %v5683, 1
  %v5685 = vmax.f32 %v5683, %v5684
  %v5686 = vsel %vm2516, %v5662, -inf
  %v5687 = vsel %vm2516, %v5664, -inf
  %v5688 = vmax.f32 %v5686, %v5687
  %v5689 = vsel %vm2516, %v5666, -inf
  %v5690 = vmax.f32 %v5688, %v5689
  %v5691 = vsel %vm2516, %v5668, -inf
  %v5692 = vmax.f32 %v5690, %v5691
  %v5693 = vrot.slane %v5692, 4
  %v5694 = vmax.f32 %v5692, %v5693
  %v5695 = vrot.slane %v5694, 2
  %v5696 = vmax.f32 %v5694, %v5695
  %v5697 = vrot.slane %v5696, 1
  %v5698 = vmax.f32 %v5696, %v5697
  %v5699 = vmax.f32 %v5669, %v5671
  %v5700 = vmax.f32 %v5699, %v5673
  %v5701 = vmax.f32 %v5700, %v5675
  %v5702 = vrot.slane %v5701, 4
  %v5703 = vmax.f32 %v5701, %v5702
  %v5704 = vrot.slane %v5703, 2
  %v5705 = vmax.f32 %v5703, %v5704
  %v5706 = vrot.slane %v5705, 1
  %v5707 = vmax.f32 %v5705, %v5706
  %v5708 = vsel %vm2516, %v5670, -inf
  %v5709 = vsel %vm2516, %v5672, -inf
  %v5710 = vmax.f32 %v5708, %v5709
  %v5711 = vsel %vm2516, %v5674, -inf
  %v5712 = vmax.f32 %v5710, %v5711
  %v5713 = vsel %vm2516, %v5676, -inf
  %v5714 = vmax.f32 %v5712, %v5713
  %v5715 = vrot.slane %v5714, 4
  %v5716 = vmax.f32 %v5714, %v5715
  %v5717 = vrot.slane %v5716, 2
  %v5718 = vmax.f32 %v5716, %v5717
  %v5719 = vrot.slane %v5718, 1
  %v5720 = vmax.f32 %v5718, %v5719
  %v5721 = vsub.f32 %v5661, %v5685
  %v5722 = vsub.f32 %v5662, %v5698
  %v5723 = vsub.f32 %v5663, %v5685
  %v5724 = vsub.f32 %v5664, %v5698
  %v5725 = vsub.f32 %v5665, %v5685
  %v5726 = vsub.f32 %v5666, %v5698
  %v5727 = vsub.f32 %v5667, %v5685
  %v5728 = vsub.f32 %v5668, %v5698
  %v5729 = vsub.f32 %v5669, %v5707
  %v5730 = vsub.f32 %v5670, %v5720
  %v5731 = vsub.f32 %v5671, %v5707
  %v5732 = vsub.f32 %v5672, %v5720
  %v5733 = vsub.f32 %v5673, %v5707
  %v5734 = vsub.f32 %v5674, %v5720
  %v5735 = vsub.f32 %v5675, %v5707
  %v5736 = vsub.f32 %v5676, %v5720
  %v5737 = vmul.f32 %v5721, 1.442695
  %v5738 = vpow.pop %v5737
  %v5739 = vmul.f32 %v5722, 1.442695
  %v5740 = vpow.pop %v5739
  %v5741 = vmul.f32 %v5723, 1.442695
  %v5742 = vpow.pop %v5741
  %v5743 = vmul.f32 %v5724, 1.442695
  %v5744 = vpow.pop %v5743
  %v5745 = vmul.f32 %v5725, 1.442695
  %v5746 = vpow.pop %v5745
  %v5747 = vmul.f32 %v5726, 1.442695
  %v5748 = vpow.pop %v5747
  %v5749 = vmul.f32 %v5727, 1.442695
  %v5750 = vpow.pop %v5749
  %v5751 = vmul.f32 %v5728, 1.442695
  %v5752 = vpow.pop %v5751
  %v5753 = vmul.f32 %v5729, 1.442695
  %v5754 = vpow.pop %v5753
  %v5755 = vmul.f32 %v5730, 1.442695
  %v5756 = vpow.pop %v5755
  %v5757 = vmul.f32 %v5731, 1.442695
  %v5758 = vpow.pop %v5757
  %v5759 = vmul.f32 %v5732, 1.442695
  %v5760 = vpow.pop %v5759
  %v5761 = vmul.f32 %v5733, 1.442695
  %v5762 = vpow.pop %v5761
  %v5763 = vmul.f32 %v5734, 1.442695
  %v5764 = vpow.pop %v5763
  %v5765 = vmul.f32 %v5735, 1.442695
  %v5766 = vpow.pop %v5765
  %v5767 = vmul.f32 %v5736, 1.442695
  %v5768 = vpow.pop %v5767
  %v5769 = vadd.f32 %v5738, %v5742
  %v5770 = vadd.f32 %v5769, %v5746
  %v5771 = vadd.f32 %v5770, %v5750
  %v5772 = vrot.slane %v5771, 4
  %v5773 = vadd.f32 %v5771, %v5772
  %v5774 = vrot.slane %v5773, 2
  %v5775 = vadd.f32 %v5773, %v5774
  %v5776 = vrot.slane %v5775, 1
  %v5777 = vadd.f32 %v5775, %v5776
  %v5778 = vsel %vm2516, %v5740, 0.0
  %v5779 = vsel %vm2516, %v5744, 0.0
  %v5780 = vadd.f32 %v5778, %v5779
  %v5781 = vsel %vm2516, %v5748, 0.0
  %v5782 = vadd.f32 %v5780, %v5781
  %v5783 = vsel %vm2516, %v5752, 0.0
  %v5784 = vadd.f32 %v5782, %v5783
  %v5785 = vrot.slane %v5784, 4
  %v5786 = vadd.f32 %v5784, %v5785
  %v5787 = vrot.slane %v5786, 2
  %v5788 = vadd.f32 %v5786, %v5787
  %v5789 = vrot.slane %v5788, 1
  %v5790 = vadd.f32 %v5788, %v5789
  %v5791 = vadd.f32 %v5754, %v5758
  %v5792 = vadd.f32 %v5791, %v5762
  %v5793 = vadd.f32 %v5792, %v5766
  %v5794 = vrot.slane %v5793, 4
  %v5795 = vadd.f32 %v5793, %v5794
  %v5796 = vrot.slane %v5795, 2
  %v5797 = vadd.f32 %v5795, %v5796
  %v5798 = vrot.slane %v5797, 1
  %v5799 = vadd.f32 %v5797, %v5798
  %v5800 = vsel %vm2516, %v5756, 0.0
  %v5801 = vsel %vm2516, %v5760, 0.0
  %v5802 = vadd.f32 %v5800, %v5801
  %v5803 = vsel %vm2516, %v5764, 0.0
  %v5804 = vadd.f32 %v5802, %v5803
  %v5805 = vsel %vm2516, %v5768, 0.0
  %v5806 = vadd.f32 %v5804, %v5805
  %v5807 = vrot.slane %v5806, 4
  %v5808 = vadd.f32 %v5806, %v5807
  %v5809 = vrot.slane %v5808, 2
  %v5810 = vadd.f32 %v5808, %v5809
  %v5811 = vrot.slane %v5810, 1
  %v5812 = vadd.f32 %v5810, %v5811
  %v5813 = vrcp.pop %v5777
  %v5814 = vmul.f32 %v5777, %v5813
  %v5815 = vsub.f32 1.0, %v5814
  %v5816 = vmul.f32 %v5813, %v5815
  %v5817 = vadd.f32 %v5813, %v5816
  %vm5818 = vweird.f32 %v5777
  %vm5819 = vweird.f32 %v5813
  %vm5820 = vmor %vm5818, %vm5819
  %v5821 = vsel %vm5820, %v5813, %v5817
  %v5822 = vand.u32 2147483647, %v5777
  %vm5823 = vcmp.eq.f32.partialorder %v5822, 8.507059e+37
  %v5824 = vand.u32 %v5777, 2147483648
  %v5825 = vor.u32 1.1754944e-38, %v5824
  %v5826 = vsel %vm5823, %v5825, %v5821
  %v5827 = vmul.f32 %v5738, %v5826
  %v5828 = vrcp.pop %v5790
  %v5829 = vmul.f32 %v5790, %v5828
  %v5830 = vsub.f32 1.0, %v5829
  %v5831 = vmul.f32 %v5828, %v5830
  %v5832 = vadd.f32 %v5828, %v5831
  %vm5833 = vweird.f32 %v5790
  %vm5834 = vweird.f32 %v5828
  %vm5835 = vmor %vm5833, %vm5834
  %v5836 = vsel %vm5835, %v5828, %v5832
  %v5837 = vand.u32 2147483647, %v5790
  %vm5838 = vcmp.eq.f32.partialorder %v5837, 8.507059e+37
  %v5839 = vand.u32 %v5790, 2147483648
  %v5840 = vor.u32 1.1754944e-38, %v5839
  %v5841 = vsel %vm5838, %v5840, %v5836
  %v5842 = vmul.f32 %v5740, %v5841
  %v5843 = vmul.f32 %v5742, %v5826
  %v5844 = vmul.f32 %v5744, %v5841
  %v5845 = vmul.f32 %v5746, %v5826
  %v5846 = vmul.f32 %v5748, %v5841
  %v5847 = vmul.f32 %v5750, %v5826
  %v5848 = vmul.f32 %v5752, %v5841
  %v5849 = vrcp.pop %v5799
  %v5850 = vmul.f32 %v5799, %v5849
  %v5851 = vsub.f32 1.0, %v5850
  %v5852 = vmul.f32 %v5849, %v5851
  %v5853 = vadd.f32 %v5849, %v5852
  %vm5854 = vweird.f32 %v5799
  %vm5855 = vweird.f32 %v5849
  %vm5856 = vmor %vm5854, %vm5855
  %v5857 = vsel %vm5856, %v5849, %v5853
  %v5858 = vand.u32 2147483647, %v5799
  %vm5859 = vcmp.eq.f32.partialorder %v5858, 8.507059e+37
  %v5860 = vand.u32 %v5799, 2147483648
  %v5861 = vor.u32 1.1754944e-38, %v5860
  %v5862 = vsel %vm5859, %v5861, %v5857
  %v5863 = vmul.f32 %v5754, %v5862
  %v5864 = vrcp.pop %v5812
  %v5865 = vmul.f32 %v5812, %v5864
  %v5866 = vsub.f32 1.0, %v5865
  %v5867 = vmul.f32 %v5864, %v5866
  %v5868 = vadd.f32 %v5864, %v5867
  %vm5869 = vweird.f32 %v5812
  %vm5870 = vweird.f32 %v5864
  %vm5871 = vmor %vm5869, %vm5870
  %v5872 = vsel %vm5871, %v5864, %v5868
  %v5873 = vand.u32 2147483647, %v5812
  %vm5874 = vcmp.eq.f32.partialorder %v5873, 8.507059e+37
  %v5875 = vand.u32 %v5812, 2147483648
  %v5876 = vor.u32 1.1754944e-38, %v5875
  %v5877 = vsel %vm5874, %v5876, %v5872
  %v5878 = vmul.f32 %v5756, %v5877
  %v5879 = vmul.f32 %v5758, %v5862
  %v5880 = vmul.f32 %v5760, %v5877
  %v5881 = vmul.f32 %v5762, %v5862
  %v5882 = vmul.f32 %v5764, %v5877
  %v5883 = vmul.f32 %v5766, %v5862
  %v5884 = vmul.f32 %v5768, %v5877
  %v5885 = vmul.f32 %v5827, %v1177
  %v5886 = vmul.f32 %v5842, %v2293
  %v5887 = vmul.f32 %v5843, %v1181
  %v5888 = vmul.f32 %v5844, %v2297
  %v5889 = vmul.f32 %v5845, %v1185
  %v5890 = vmul.f32 %v5846, %v2301
  %v5891 = vmul.f32 %v5847, %v1189
  %v5892 = vmul.f32 %v5848, %v2305
  %v5893 = vmul.f32 %v5863, %v1193
  %v5894 = vmul.f32 %v5878, %v2309
  %v5895 = vmul.f32 %v5879, %v1197
  %v5896 = vmul.f32 %v5880, %v2313
  %v5897 = vmul.f32 %v5881, %v1201
  %v5898 = vmul.f32 %v5882, %v2317
  %v5899 = vmul.f32 %v5883, %v1205
  %v5900 = vmul.f32 %v5884, %v2321
  %v5901 = vadd.f32 %v5885, %v5887
  %v5902 = vadd.f32 %v5901, %v5889
  %v5903 = vadd.f32 %v5902, %v5891
  %v5904 = vrot.slane %v5903, 4
  %v5905 = vadd.f32 %v5903, %v5904
  %v5906 = vrot.slane %v5905, 2
  %v5907 = vadd.f32 %v5905, %v5906
  %v5908 = vrot.slane %v5907, 1
  %v5909 = vadd.f32 %v5907, %v5908
  %v5910 = vsel %vm2516, %v5886, 0.0
  %v5911 = vsel %vm2516, %v5888, 0.0
  %v5912 = vadd.f32 %v5910, %v5911
  %v5913 = vsel %vm2516, %v5890, 0.0
  %v5914 = vadd.f32 %v5912, %v5913
  %v5915 = vsel %vm2516, %v5892, 0.0
  %v5916 = vadd.f32 %v5914, %v5915
  %v5917 = vrot.slane %v5916, 4
  %v5918 = vadd.f32 %v5916, %v5917
  %v5919 = vrot.slane %v5918, 2
  %v5920 = vadd.f32 %v5918, %v5919
  %v5921 = vrot.slane %v5920, 1
  %v5922 = vadd.f32 %v5920, %v5921
  %v5923 = vadd.f32 %v5893, %v5895
  %v5924 = vadd.f32 %v5923, %v5897
  %v5925 = vadd.f32 %v5924, %v5899
  %v5926 = vrot.slane %v5925, 4
  %v5927 = vadd.f32 %v5925, %v5926
  %v5928 = vrot.slane %v5927, 2
  %v5929 = vadd.f32 %v5927, %v5928
  %v5930 = vrot.slane %v5929, 1
  %v5931 = vadd.f32 %v5929, %v5930
  %v5932 = vsel %vm2516, %v5894, 0.0
  %v5933 = vsel %vm2516, %v5896, 0.0
  %v5934 = vadd.f32 %v5932, %v5933
  %v5935 = vsel %vm2516, %v5898, 0.0
  %v5936 = vadd.f32 %v5934, %v5935
  %v5937 = vsel %vm2516, %v5900, 0.0
  %v5938 = vadd.f32 %v5936, %v5937
  %v5939 = vrot.slane %v5938, 4
  %v5940 = vadd.f32 %v5938, %v5939
  %v5941 = vrot.slane %v5940, 2
  %v5942 = vadd.f32 %v5940, %v5941
  %v5943 = vrot.slane %v5942, 1
  %v5944 = vadd.f32 %v5942, %v5943
  %v5945 = vmul.f32 %v5909, %v5909
  %v5946 = vmul.f32 %v5922, %v5922
  %v5947 = vmul.f32 %v5931, %v5931
  %v5948 = vmul.f32 %v5944, %v5944
  %v5953 = vsel %vm2564, %v5947, %v5945
  %v5954 = vsel %vm2564, %v5948, %v5946
  %v5956 = vsel %vm2516, %v5954, 0
  %v5958 = vand.u32 %v2497, 4294901760
  %5959 = vmatpush.msra.mxu0 %v5958
  %v5960 = vand.u32 %v2495, 4294901760
  %5961 = vmatpush.msra.mxu0 %v5960
  %v5962 = vand.u32 %v2493, 4294901760
  %5963 = vmatpush.msra.mxu0 %v5962
  %v5964 = vand.u32 %v2491, 4294901760
  %5965 = vmatpush.msra.mxu0 %v5964
  %v5966 = vand.u32 %v2489, 4294901760
  %5967 = vmatpush.msra.mxu0 %v5966
  %v5968 = vand.u32 %v2487, 4294901760
  %5969 = vmatpush.msra.mxu0 %v5968
  %v5970 = vand.u32 %v2485, 4294901760
  %5971 = vmatpush.msra.mxu0 %v5970
  %v5972 = vand.u32 %v2483, 4294901760
  %5973 = vmatpush.msra.mxu0 %v5972
  %v5974 = vand.u32 %v2481, 4294901760
  %5975 = vmatpush.msra.mxu0 %v5974
  %v5976 = vand.u32 %v2479, 4294901760
  %5977 = vmatpush.msra.mxu0 %v5976
  %v5978 = vand.u32 %v2477, 4294901760
  %5979 = vmatpush.msra.mxu0 %v5978
  %v5980 = vand.u32 %v2475, 4294901760
  %5981 = vmatpush.msra.mxu0 %v5980
  %v5982 = vand.u32 %v2473, 4294901760
  %5983 = vmatpush.msra.mxu0 %v5982
  %v5984 = vand.u32 %v2471, 4294901760
  %5985 = vmatpush.msra.mxu0 %v5984
  %v5986 = vand.u32 %v2469, 4294901760
  %5987 = vmatpush.msra.mxu0 %v5986
  %v5988 = vand.u32 %v2467, 4294901760
  %5989 = vmatpush.msra.mxu0 %v5988
  %v5990 = vand.u32 %v5953, 4294901760
  %v5991 = vsub.f32 %v5953, %v5990
  %v5992 = vand.u32 %v5991, 4294901760
  %v5993 = vsub.f32 %v5991, %v5992
  %v5994 = vand.u32 %v5993, 4294901760
  %5995 = vmatmul.f32.gmra.mxu0 %v5994
  %v5996 = vpop.f32.mrf.mxu0
  %v5997 = vadd.f32 0.0, %v5996
  %5998 = vdwg.mxu0
  %v5999 = vand.u32 %v2497, 4294901760
  %v6000 = vsub.f32 %v2497, %v5999
  %v6001 = vand.u32 %v6000, 4294901760
  %v6002 = vsub.f32 %v6000, %v6001
  %v6003 = vand.u32 %v6002, 4294901760
  %6004 = vmatpush.msra.mxu0 %v6003
  %v6005 = vand.u32 %v2495, 4294901760
  %v6006 = vsub.f32 %v2495, %v6005
  %v6007 = vand.u32 %v6006, 4294901760
  %v6008 = vsub.f32 %v6006, %v6007
  %v6009 = vand.u32 %v6008, 4294901760
  %6010 = vmatpush.msra.mxu0 %v6009
  %v6011 = vand.u32 %v2493, 4294901760
  %v6012 = vsub.f32 %v2493, %v6011
  %v6013 = vand.u32 %v6012, 4294901760
  %v6014 = vsub.f32 %v6012, %v6013
  %v6015 = vand.u32 %v6014, 4294901760
  %6016 = vmatpush.msra.mxu0 %v6015
  %v6017 = vand.u32 %v2491, 4294901760
  %v6018 = vsub.f32 %v2491, %v6017
  %v6019 = vand.u32 %v6018, 4294901760
  %v6020 = vsub.f32 %v6018, %v6019
  %v6021 = vand.u32 %v6020, 4294901760
  %6022 = vmatpush.msra.mxu0 %v6021
  %v6023 = vand.u32 %v2489, 4294901760
  %v6024 = vsub.f32 %v2489, %v6023
  %v6025 = vand.u32 %v6024, 4294901760
  %v6026 = vsub.f32 %v6024, %v6025
  %v6027 = vand.u32 %v6026, 4294901760
  %6028 = vmatpush.msra.mxu0 %v6027
  %v6029 = vand.u32 %v2487, 4294901760
  %v6030 = vsub.f32 %v2487, %v6029
  %v6031 = vand.u32 %v6030, 4294901760
  %v6032 = vsub.f32 %v6030, %v6031
  %v6033 = vand.u32 %v6032, 4294901760
  %6034 = vmatpush.msra.mxu0 %v6033
  %v6035 = vand.u32 %v2485, 4294901760
  %v6036 = vsub.f32 %v2485, %v6035
  %v6037 = vand.u32 %v6036, 4294901760
  %v6038 = vsub.f32 %v6036, %v6037
  %v6039 = vand.u32 %v6038, 4294901760
  %6040 = vmatpush.msra.mxu0 %v6039
  %v6041 = vand.u32 %v2483, 4294901760
  %v6042 = vsub.f32 %v2483, %v6041
  %v6043 = vand.u32 %v6042, 4294901760
  %v6044 = vsub.f32 %v6042, %v6043
  %v6045 = vand.u32 %v6044, 4294901760
  %6046 = vmatpush.msra.mxu0 %v6045
  %v6047 = vand.u32 %v2481, 4294901760
  %v6048 = vsub.f32 %v2481, %v6047
  %v6049 = vand.u32 %v6048, 4294901760
  %v6050 = vsub.f32 %v6048, %v6049
  %v6051 = vand.u32 %v6050, 4294901760
  %6052 = vmatpush.msra.mxu0 %v6051
  %v6053 = vand.u32 %v2479, 4294901760
  %v6054 = vsub.f32 %v2479, %v6053
  %v6055 = vand.u32 %v6054, 4294901760
  %v6056 = vsub.f32 %v6054, %v6055
  %v6057 = vand.u32 %v6056, 4294901760
  %6058 = vmatpush.msra.mxu0 %v6057
  %v6059 = vand.u32 %v2477, 4294901760
  %v6060 = vsub.f32 %v2477, %v6059
  %v6061 = vand.u32 %v6060, 4294901760
  %v6062 = vsub.f32 %v6060, %v6061
  %v6063 = vand.u32 %v6062, 4294901760
  %6064 = vmatpush.msra.mxu0 %v6063
  %v6065 = vand.u32 %v2475, 4294901760
  %v6066 = vsub.f32 %v2475, %v6065
  %v6067 = vand.u32 %v6066, 4294901760
  %v6068 = vsub.f32 %v6066, %v6067
  %v6069 = vand.u32 %v6068, 4294901760
  %6070 = vmatpush.msra.mxu0 %v6069
  %v6071 = vand.u32 %v2473, 4294901760
  %v6072 = vsub.f32 %v2473, %v6071
  %v6073 = vand.u32 %v6072, 4294901760
  %v6074 = vsub.f32 %v6072, %v6073
  %v6075 = vand.u32 %v6074, 4294901760
  %6076 = vmatpush.msra.mxu0 %v6075
  %v6077 = vand.u32 %v2471, 4294901760
  %v6078 = vsub.f32 %v2471, %v6077
  %v6079 = vand.u32 %v6078, 4294901760
  %v6080 = vsub.f32 %v6078, %v6079
  %v6081 = vand.u32 %v6080, 4294901760
  %6082 = vmatpush.msra.mxu0 %v6081
  %v6083 = vand.u32 %v2469, 4294901760
  %v6084 = vsub.f32 %v2469, %v6083
  %v6085 = vand.u32 %v6084, 4294901760
  %v6086 = vsub.f32 %v6084, %v6085
  %v6087 = vand.u32 %v6086, 4294901760
  %6088 = vmatpush.msra.mxu0 %v6087
  %v6089 = vand.u32 %v2467, 4294901760
  %v6090 = vsub.f32 %v2467, %v6089
  %v6091 = vand.u32 %v6090, 4294901760
  %v6092 = vsub.f32 %v6090, %v6091
  %v6093 = vand.u32 %v6092, 4294901760
  %6094 = vmatpush.msra.mxu0 %v6093
  %v6095 = vand.u32 %v5953, 4294901760
  %6096 = vmatmul.f32.gmra.mxu0 %v6095
  %v6097 = vpop.f32.mrf.mxu0
  %v6098 = vadd.f32 %v5997, %v6097
  %6099 = vdwg.mxu0
  %v6100 = vand.u32 %v2497, 4294901760
  %v6101 = vsub.f32 %v2497, %v6100
  %6102 = vmatpush.msra.mxu0 %v6101
  %v6103 = vand.u32 %v2495, 4294901760
  %v6104 = vsub.f32 %v2495, %v6103
  %6105 = vmatpush.msra.mxu0 %v6104
  %v6106 = vand.u32 %v2493, 4294901760
  %v6107 = vsub.f32 %v2493, %v6106
  %6108 = vmatpush.msra.mxu0 %v6107
  %v6109 = vand.u32 %v2491, 4294901760
  %v6110 = vsub.f32 %v2491, %v6109
  %6111 = vmatpush.msra.mxu0 %v6110
  %v6112 = vand.u32 %v2489, 4294901760
  %v6113 = vsub.f32 %v2489, %v6112
  %6114 = vmatpush.msra.mxu0 %v6113
  %v6115 = vand.u32 %v2487, 4294901760
  %v6116 = vsub.f32 %v2487, %v6115
  %6117 = vmatpush.msra.mxu0 %v6116
  %v6118 = vand.u32 %v2485, 4294901760
  %v6119 = vsub.f32 %v2485, %v6118
  %6120 = vmatpush.msra.mxu0 %v6119
  %v6121 = vand.u32 %v2483, 4294901760
  %v6122 = vsub.f32 %v2483, %v6121
  %6123 = vmatpush.msra.mxu0 %v6122
  %v6124 = vand.u32 %v2481, 4294901760
  %v6125 = vsub.f32 %v2481, %v6124
  %6126 = vmatpush.msra.mxu0 %v6125
  %v6127 = vand.u32 %v2479, 4294901760
  %v6128 = vsub.f32 %v2479, %v6127
  %6129 = vmatpush.msra.mxu0 %v6128
  %v6130 = vand.u32 %v2477, 4294901760
  %v6131 = vsub.f32 %v2477, %v6130
  %6132 = vmatpush.msra.mxu0 %v6131
  %v6133 = vand.u32 %v2475, 4294901760
  %v6134 = vsub.f32 %v2475, %v6133
  %6135 = vmatpush.msra.mxu0 %v6134
  %v6136 = vand.u32 %v2473, 4294901760
  %v6137 = vsub.f32 %v2473, %v6136
  %6138 = vmatpush.msra.mxu0 %v6137
  %v6139 = vand.u32 %v2471, 4294901760
  %v6140 = vsub.f32 %v2471, %v6139
  %6141 = vmatpush.msra.mxu0 %v6140
  %v6142 = vand.u32 %v2469, 4294901760
  %v6143 = vsub.f32 %v2469, %v6142
  %6144 = vmatpush.msra.mxu0 %v6143
  %v6145 = vand.u32 %v2467, 4294901760
  %v6146 = vsub.f32 %v2467, %v6145
  %6147 = vmatpush.msra.mxu0 %v6146
  %v6148 = vand.u32 %v5953, 4294901760
  %v6149 = vsub.f32 %v5953, %v6148
  %6150 = vmatmul.f32.gmra.mxu0 %v6149
  %v6151 = vpop.f32.mrf.mxu0
  %v6152 = vadd.f32 %v6098, %v6151
  %6153 = vdwg.mxu0
  %v6154 = vand.u32 %v2497, 4294901760
  %6155 = vmatpush.msra.mxu0 %v6154
  %v6156 = vand.u32 %v2495, 4294901760
  %6157 = vmatpush.msra.mxu0 %v6156
  %v6158 = vand.u32 %v2493, 4294901760
  %6159 = vmatpush.msra.mxu0 %v6158
  %v6160 = vand.u32 %v2491, 4294901760
  %6161 = vmatpush.msra.mxu0 %v6160
  %v6162 = vand.u32 %v2489, 4294901760
  %6163 = vmatpush.msra.mxu0 %v6162
  %v6164 = vand.u32 %v2487, 4294901760
  %6165 = vmatpush.msra.mxu0 %v6164
  %v6166 = vand.u32 %v2485, 4294901760
  %6167 = vmatpush.msra.mxu0 %v6166
  %v6168 = vand.u32 %v2483, 4294901760
  %6169 = vmatpush.msra.mxu0 %v6168
  %v6170 = vand.u32 %v2481, 4294901760
  %6171 = vmatpush.msra.mxu0 %v6170
  %v6172 = vand.u32 %v2479, 4294901760
  %6173 = vmatpush.msra.mxu0 %v6172
  %v6174 = vand.u32 %v2477, 4294901760
  %6175 = vmatpush.msra.mxu0 %v6174
  %v6176 = vand.u32 %v2475, 4294901760
  %6177 = vmatpush.msra.mxu0 %v6176
  %v6178 = vand.u32 %v2473, 4294901760
  %6179 = vmatpush.msra.mxu0 %v6178
  %v6180 = vand.u32 %v2471, 4294901760
  %6181 = vmatpush.msra.mxu0 %v6180
  %v6182 = vand.u32 %v2469, 4294901760
  %6183 = vmatpush.msra.mxu0 %v6182
  %v6184 = vand.u32 %v2467, 4294901760
  %6185 = vmatpush.msra.mxu0 %v6184
  %v6186 = vand.u32 %v5953, 4294901760
  %v6187 = vsub.f32 %v5953, %v6186
  %v6188 = vand.u32 %v6187, 4294901760
  %6189 = vmatmul.f32.gmra.mxu0 %v6188
  %v6190 = vpop.f32.mrf.mxu0
  %v6191 = vadd.f32 %v6152, %v6190
  %6192 = vdwg.mxu0
  %v6193 = vand.u32 %v2497, 4294901760
  %v6194 = vsub.f32 %v2497, %v6193
  %v6195 = vand.u32 %v6194, 4294901760
  %6196 = vmatpush.msra.mxu0 %v6195
  %v6197 = vand.u32 %v2495, 4294901760
  %v6198 = vsub.f32 %v2495, %v6197
  %v6199 = vand.u32 %v6198, 4294901760
  %6200 = vmatpush.msra.mxu0 %v6199
  %v6201 = vand.u32 %v2493, 4294901760
  %v6202 = vsub.f32 %v2493, %v6201
  %v6203 = vand.u32 %v6202, 4294901760
  %6204 = vmatpush.msra.mxu0 %v6203
  %v6205 = vand.u32 %v2491, 4294901760
  %v6206 = vsub.f32 %v2491, %v6205
  %v6207 = vand.u32 %v6206, 4294901760
  %6208 = vmatpush.msra.mxu0 %v6207
  %v6209 = vand.u32 %v2489, 4294901760
  %v6210 = vsub.f32 %v2489, %v6209
  %v6211 = vand.u32 %v6210, 4294901760
  %6212 = vmatpush.msra.mxu0 %v6211
  %v6213 = vand.u32 %v2487, 4294901760
  %v6214 = vsub.f32 %v2487, %v6213
  %v6215 = vand.u32 %v6214, 4294901760
  %6216 = vmatpush.msra.mxu0 %v6215
  %v6217 = vand.u32 %v2485, 4294901760
  %v6218 = vsub.f32 %v2485, %v6217
  %v6219 = vand.u32 %v6218, 4294901760
  %6220 = vmatpush.msra.mxu0 %v6219
  %v6221 = vand.u32 %v2483, 4294901760
  %v6222 = vsub.f32 %v2483, %v6221
  %v6223 = vand.u32 %v6222, 4294901760
  %6224 = vmatpush.msra.mxu0 %v6223
  %v6225 = vand.u32 %v2481, 4294901760
  %v6226 = vsub.f32 %v2481, %v6225
  %v6227 = vand.u32 %v6226, 4294901760
  %6228 = vmatpush.msra.mxu0 %v6227
  %v6229 = vand.u32 %v2479, 4294901760
  %v6230 = vsub.f32 %v2479, %v6229
  %v6231 = vand.u32 %v6230, 4294901760
  %6232 = vmatpush.msra.mxu0 %v6231
  %v6233 = vand.u32 %v2477, 4294901760
  %v6234 = vsub.f32 %v2477, %v6233
  %v6235 = vand.u32 %v6234, 4294901760
  %6236 = vmatpush.msra.mxu0 %v6235
  %v6237 = vand.u32 %v2475, 4294901760
  %v6238 = vsub.f32 %v2475, %v6237
  %v6239 = vand.u32 %v6238, 4294901760
  %6240 = vmatpush.msra.mxu0 %v6239
  %v6241 = vand.u32 %v2473, 4294901760
  %v6242 = vsub.f32 %v2473, %v6241
  %v6243 = vand.u32 %v6242, 4294901760
  %6244 = vmatpush.msra.mxu0 %v6243
  %v6245 = vand.u32 %v2471, 4294901760
  %v6246 = vsub.f32 %v2471, %v6245
  %v6247 = vand.u32 %v6246, 4294901760
  %6248 = vmatpush.msra.mxu0 %v6247
  %v6249 = vand.u32 %v2469, 4294901760
  %v6250 = vsub.f32 %v2469, %v6249
  %v6251 = vand.u32 %v6250, 4294901760
  %6252 = vmatpush.msra.mxu0 %v6251
  %v6253 = vand.u32 %v2467, 4294901760
  %v6254 = vsub.f32 %v2467, %v6253
  %v6255 = vand.u32 %v6254, 4294901760
  %6256 = vmatpush.msra.mxu0 %v6255
  %v6257 = vand.u32 %v5953, 4294901760
  %6258 = vmatmul.f32.gmra.mxu0 %v6257
  %v6259 = vpop.f32.mrf.mxu0
  %v6260 = vadd.f32 %v6191, %v6259
  %6261 = vdwg.mxu0
  %v6262 = vand.u32 %v2497, 4294901760
  %6263 = vmatpush.msra.mxu0 %v6262
  %v6264 = vand.u32 %v2495, 4294901760
  %6265 = vmatpush.msra.mxu0 %v6264
  %v6266 = vand.u32 %v2493, 4294901760
  %6267 = vmatpush.msra.mxu0 %v6266
  %v6268 = vand.u32 %v2491, 4294901760
  %6269 = vmatpush.msra.mxu0 %v6268
  %v6270 = vand.u32 %v2489, 4294901760
  %6271 = vmatpush.msra.mxu0 %v6270
  %v6272 = vand.u32 %v2487, 4294901760
  %6273 = vmatpush.msra.mxu0 %v6272
  %v6274 = vand.u32 %v2485, 4294901760
  %6275 = vmatpush.msra.mxu0 %v6274
  %v6276 = vand.u32 %v2483, 4294901760
  %6277 = vmatpush.msra.mxu0 %v6276
  %v6278 = vand.u32 %v2481, 4294901760
  %6279 = vmatpush.msra.mxu0 %v6278
  %v6280 = vand.u32 %v2479, 4294901760
  %6281 = vmatpush.msra.mxu0 %v6280
  %v6282 = vand.u32 %v2477, 4294901760
  %6283 = vmatpush.msra.mxu0 %v6282
  %v6284 = vand.u32 %v2475, 4294901760
  %6285 = vmatpush.msra.mxu0 %v6284
  %v6286 = vand.u32 %v2473, 4294901760
  %6287 = vmatpush.msra.mxu0 %v6286
  %v6288 = vand.u32 %v2471, 4294901760
  %6289 = vmatpush.msra.mxu0 %v6288
  %v6290 = vand.u32 %v2469, 4294901760
  %6291 = vmatpush.msra.mxu0 %v6290
  %v6292 = vand.u32 %v2467, 4294901760
  %6293 = vmatpush.msra.mxu0 %v6292
  %v6294 = vand.u32 %v5953, 4294901760
  %6295 = vmatmul.f32.gmra.mxu0 %v6294
  %v6296 = vpop.f32.mrf.mxu0
  %v6297 = vadd.f32 %v6260, %v6296
  %6298 = vdwg.mxu0
  %6299 = vmatpush.msra.mxu0 0.0
  %6300 = vmatpush.msra.mxu0 0.0
  %6301 = vmatpush.msra.mxu0 0.0
  %6302 = vmatpush.msra.mxu0 0.0
  %6303 = vmatpush.msra.mxu0 0.0
  %6304 = vmatpush.msra.mxu0 0.0
  %6305 = vmatpush.msra.mxu0 0.0
  %6306 = vmatpush.msra.mxu0 0.0
  %6307 = vmatpush.msra.mxu0 0.0
  %6308 = vmatpush.msra.mxu0 0.0
  %6309 = vmatpush.msra.mxu0 0.0
  %6310 = vmatpush.msra.mxu0 0.0
  %v6311 = vand.u32 %v2505, 4294901760
  %6312 = vmatpush.msra.mxu0 %v6311
  %v6313 = vand.u32 %v2503, 4294901760
  %6314 = vmatpush.msra.mxu0 %v6313
  %v6315 = vand.u32 %v2501, 4294901760
  %6316 = vmatpush.msra.mxu0 %v6315
  %v6317 = vand.u32 %v2499, 4294901760
  %6318 = vmatpush.msra.mxu0 %v6317
  %v6319 = vand.u32 %v5956, 4294901760
  %v6320 = vsub.f32 %v5956, %v6319
  %v6321 = vand.u32 %v6320, 4294901760
  %v6322 = vsub.f32 %v6320, %v6321
  %v6323 = vand.u32 %v6322, 4294901760
  %6324 = vmatmul.f32.gmra.mxu0 %v6323
  %v6325 = vpop.f32.mrf.mxu0
  %v6326 = vadd.f32 %v6297, %v6325
  %6327 = vdwg.mxu0
  %6328 = vmatpush.msra.mxu0 0.0
  %6329 = vmatpush.msra.mxu0 0.0
  %6330 = vmatpush.msra.mxu0 0.0
  %6331 = vmatpush.msra.mxu0 0.0
  %6332 = vmatpush.msra.mxu0 0.0
  %6333 = vmatpush.msra.mxu0 0.0
  %6334 = vmatpush.msra.mxu0 0.0
  %6335 = vmatpush.msra.mxu0 0.0
  %6336 = vmatpush.msra.mxu0 0.0
  %6337 = vmatpush.msra.mxu0 0.0
  %6338 = vmatpush.msra.mxu0 0.0
  %6339 = vmatpush.msra.mxu0 0.0
  %v6340 = vand.u32 %v2505, 4294901760
  %v6341 = vsub.f32 %v2505, %v6340
  %v6342 = vand.u32 %v6341, 4294901760
  %v6343 = vsub.f32 %v6341, %v6342
  %v6344 = vand.u32 %v6343, 4294901760
  %6345 = vmatpush.msra.mxu0 %v6344
  %v6346 = vand.u32 %v2503, 4294901760
  %v6347 = vsub.f32 %v2503, %v6346
  %v6348 = vand.u32 %v6347, 4294901760
  %v6349 = vsub.f32 %v6347, %v6348
  %v6350 = vand.u32 %v6349, 4294901760
  %6351 = vmatpush.msra.mxu0 %v6350
  %v6352 = vand.u32 %v2501, 4294901760
  %v6353 = vsub.f32 %v2501, %v6352
  %v6354 = vand.u32 %v6353, 4294901760
  %v6355 = vsub.f32 %v6353, %v6354
  %v6356 = vand.u32 %v6355, 4294901760
  %6357 = vmatpush.msra.mxu0 %v6356
  %v6358 = vand.u32 %v2499, 4294901760
  %v6359 = vsub.f32 %v2499, %v6358
  %v6360 = vand.u32 %v6359, 4294901760
  %v6361 = vsub.f32 %v6359, %v6360
  %v6362 = vand.u32 %v6361, 4294901760
  %6363 = vmatpush.msra.mxu0 %v6362
  %v6364 = vand.u32 %v5956, 4294901760
  %6365 = vmatmul.f32.gmra.mxu0 %v6364
  %v6366 = vpop.f32.mrf.mxu0
  %v6367 = vadd.f32 %v6326, %v6366
  %6368 = vdwg.mxu0
  %6369 = vmatpush.msra.mxu0 0.0
  %6370 = vmatpush.msra.mxu0 0.0
  %6371 = vmatpush.msra.mxu0 0.0
  %6372 = vmatpush.msra.mxu0 0.0
  %6373 = vmatpush.msra.mxu0 0.0
  %6374 = vmatpush.msra.mxu0 0.0
  %6375 = vmatpush.msra.mxu0 0.0
  %6376 = vmatpush.msra.mxu0 0.0
  %6377 = vmatpush.msra.mxu0 0.0
  %6378 = vmatpush.msra.mxu0 0.0
  %6379 = vmatpush.msra.mxu0 0.0
  %6380 = vmatpush.msra.mxu0 0.0
  %v6381 = vand.u32 %v2505, 4294901760
  %v6382 = vsub.f32 %v2505, %v6381
  %6383 = vmatpush.msra.mxu0 %v6382
  %v6384 = vand.u32 %v2503, 4294901760
  %v6385 = vsub.f32 %v2503, %v6384
  %6386 = vmatpush.msra.mxu0 %v6385
  %v6387 = vand.u32 %v2501, 4294901760
  %v6388 = vsub.f32 %v2501, %v6387
  %6389 = vmatpush.msra.mxu0 %v6388
  %v6390 = vand.u32 %v2499, 4294901760
  %v6391 = vsub.f32 %v2499, %v6390
  %6392 = vmatpush.msra.mxu0 %v6391
  %v6393 = vand.u32 %v5956, 4294901760
  %v6394 = vsub.f32 %v5956, %v6393
  %6395 = vmatmul.f32.gmra.mxu0 %v6394
  %v6396 = vpop.f32.mrf.mxu0
  %v6397 = vadd.f32 %v6367, %v6396
  %6398 = vdwg.mxu0
  %6399 = vmatpush.msra.mxu0 0.0
  %6400 = vmatpush.msra.mxu0 0.0
  %6401 = vmatpush.msra.mxu0 0.0
  %6402 = vmatpush.msra.mxu0 0.0
  %6403 = vmatpush.msra.mxu0 0.0
  %6404 = vmatpush.msra.mxu0 0.0
  %6405 = vmatpush.msra.mxu0 0.0
  %6406 = vmatpush.msra.mxu0 0.0
  %6407 = vmatpush.msra.mxu0 0.0
  %6408 = vmatpush.msra.mxu0 0.0
  %6409 = vmatpush.msra.mxu0 0.0
  %6410 = vmatpush.msra.mxu0 0.0
  %v6411 = vand.u32 %v2505, 4294901760
  %6412 = vmatpush.msra.mxu0 %v6411
  %v6413 = vand.u32 %v2503, 4294901760
  %6414 = vmatpush.msra.mxu0 %v6413
  %v6415 = vand.u32 %v2501, 4294901760
  %6416 = vmatpush.msra.mxu0 %v6415
  %v6417 = vand.u32 %v2499, 4294901760
  %6418 = vmatpush.msra.mxu0 %v6417
  %v6419 = vand.u32 %v5956, 4294901760
  %v6420 = vsub.f32 %v5956, %v6419
  %v6421 = vand.u32 %v6420, 4294901760
  %6422 = vmatmul.f32.gmra.mxu0 %v6421
  %v6423 = vpop.f32.mrf.mxu0
  %v6424 = vadd.f32 %v6397, %v6423
  %6425 = vdwg.mxu0
  %6426 = vmatpush.msra.mxu0 0.0
  %6427 = vmatpush.msra.mxu0 0.0
  %6428 = vmatpush.msra.mxu0 0.0
  %6429 = vmatpush.msra.mxu0 0.0
  %6430 = vmatpush.msra.mxu0 0.0
  %6431 = vmatpush.msra.mxu0 0.0
  %6432 = vmatpush.msra.mxu0 0.0
  %6433 = vmatpush.msra.mxu0 0.0
  %6434 = vmatpush.msra.mxu0 0.0
  %6435 = vmatpush.msra.mxu0 0.0
  %6436 = vmatpush.msra.mxu0 0.0
  %6437 = vmatpush.msra.mxu0 0.0
  %v6438 = vand.u32 %v2505, 4294901760
  %v6439 = vsub.f32 %v2505, %v6438
  %v6440 = vand.u32 %v6439, 4294901760
  %6441 = vmatpush.msra.mxu0 %v6440
  %v6442 = vand.u32 %v2503, 4294901760
  %v6443 = vsub.f32 %v2503, %v6442
  %v6444 = vand.u32 %v6443, 4294901760
  %6445 = vmatpush.msra.mxu0 %v6444
  %v6446 = vand.u32 %v2501, 4294901760
  %v6447 = vsub.f32 %v2501, %v6446
  %v6448 = vand.u32 %v6447, 4294901760
  %6449 = vmatpush.msra.mxu0 %v6448
  %v6450 = vand.u32 %v2499, 4294901760
  %v6451 = vsub.f32 %v2499, %v6450
  %v6452 = vand.u32 %v6451, 4294901760
  %6453 = vmatpush.msra.mxu0 %v6452
  %v6454 = vand.u32 %v5956, 4294901760
  %6455 = vmatmul.f32.gmra.mxu0 %v6454
  %v6456 = vpop.f32.mrf.mxu0
  %v6457 = vadd.f32 %v6424, %v6456
  %6458 = vdwg.mxu0
  %6459 = vmatpush.msra.mxu0 0.0
  %6460 = vmatpush.msra.mxu0 0.0
  %6461 = vmatpush.msra.mxu0 0.0
  %6462 = vmatpush.msra.mxu0 0.0
  %6463 = vmatpush.msra.mxu0 0.0
  %6464 = vmatpush.msra.mxu0 0.0
  %6465 = vmatpush.msra.mxu0 0.0
  %6466 = vmatpush.msra.mxu0 0.0
  %6467 = vmatpush.msra.mxu0 0.0
  %6468 = vmatpush.msra.mxu0 0.0
  %6469 = vmatpush.msra.mxu0 0.0
  %6470 = vmatpush.msra.mxu0 0.0
  %v6471 = vand.u32 %v2505, 4294901760
  %6472 = vmatpush.msra.mxu0 %v6471
  %v6473 = vand.u32 %v2503, 4294901760
  %6474 = vmatpush.msra.mxu0 %v6473
  %v6475 = vand.u32 %v2501, 4294901760
  %6476 = vmatpush.msra.mxu0 %v6475
  %v6477 = vand.u32 %v2499, 4294901760
  %6478 = vmatpush.msra.mxu0 %v6477
  %v6479 = vand.u32 %v5956, 4294901760
  %6480 = vmatmul.f32.gmra.mxu0 %v6479
  %v6481 = vpop.f32.mrf.mxu0
  %v6482 = vadd.f32 %v6457, %v6481
  %6483 = vdwg.mxu0
  %v6484 = vand.u32 %v2498, 4294901760
  %6485 = vmatpush.msra.mxu0 %v6484
  %v6486 = vand.u32 %v2496, 4294901760
  %6487 = vmatpush.msra.mxu0 %v6486
  %v6488 = vand.u32 %v2494, 4294901760
  %6489 = vmatpush.msra.mxu0 %v6488
  %v6490 = vand.u32 %v2492, 4294901760
  %6491 = vmatpush.msra.mxu0 %v6490
  %v6492 = vand.u32 %v2490, 4294901760
  %6493 = vmatpush.msra.mxu0 %v6492
  %v6494 = vand.u32 %v2488, 4294901760
  %6495 = vmatpush.msra.mxu0 %v6494
  %v6496 = vand.u32 %v2486, 4294901760
  %6497 = vmatpush.msra.mxu0 %v6496
  %v6498 = vand.u32 %v2484, 4294901760
  %6499 = vmatpush.msra.mxu0 %v6498
  %v6500 = vand.u32 %v2482, 4294901760
  %6501 = vmatpush.msra.mxu0 %v6500
  %v6502 = vand.u32 %v2480, 4294901760
  %6503 = vmatpush.msra.mxu0 %v6502
  %v6504 = vand.u32 %v2478, 4294901760
  %6505 = vmatpush.msra.mxu0 %v6504
  %v6506 = vand.u32 %v2476, 4294901760
  %6507 = vmatpush.msra.mxu0 %v6506
  %v6508 = vand.u32 %v2474, 4294901760
  %6509 = vmatpush.msra.mxu0 %v6508
  %v6510 = vand.u32 %v2472, 4294901760
  %6511 = vmatpush.msra.mxu0 %v6510
  %v6512 = vand.u32 %v2470, 4294901760
  %6513 = vmatpush.msra.mxu0 %v6512
  %v6514 = vand.u32 %v2468, 4294901760
  %6515 = vmatpush.msra.mxu0 %v6514
  %v6516 = vand.u32 %v5953, 4294901760
  %v6517 = vsub.f32 %v5953, %v6516
  %v6518 = vand.u32 %v6517, 4294901760
  %v6519 = vsub.f32 %v6517, %v6518
  %v6520 = vand.u32 %v6519, 4294901760
  %6521 = vmatmul.f32.gmra.mxu0 %v6520
  %v6522 = vpop.f32.mrf.mxu0
  %v6523 = vadd.f32 0.0, %v6522
  %6524 = vdwg.mxu0
  %v6525 = vand.u32 %v2498, 4294901760
  %v6526 = vsub.f32 %v2498, %v6525
  %v6527 = vand.u32 %v6526, 4294901760
  %v6528 = vsub.f32 %v6526, %v6527
  %v6529 = vand.u32 %v6528, 4294901760
  %6530 = vmatpush.msra.mxu0 %v6529
  %v6531 = vand.u32 %v2496, 4294901760
  %v6532 = vsub.f32 %v2496, %v6531
  %v6533 = vand.u32 %v6532, 4294901760
  %v6534 = vsub.f32 %v6532, %v6533
  %v6535 = vand.u32 %v6534, 4294901760
  %6536 = vmatpush.msra.mxu0 %v6535
  %v6537 = vand.u32 %v2494, 4294901760
  %v6538 = vsub.f32 %v2494, %v6537
  %v6539 = vand.u32 %v6538, 4294901760
  %v6540 = vsub.f32 %v6538, %v6539
  %v6541 = vand.u32 %v6540, 4294901760
  %6542 = vmatpush.msra.mxu0 %v6541
  %v6543 = vand.u32 %v2492, 4294901760
  %v6544 = vsub.f32 %v2492, %v6543
  %v6545 = vand.u32 %v6544, 4294901760
  %v6546 = vsub.f32 %v6544, %v6545
  %v6547 = vand.u32 %v6546, 4294901760
  %6548 = vmatpush.msra.mxu0 %v6547
  %v6549 = vand.u32 %v2490, 4294901760
  %v6550 = vsub.f32 %v2490, %v6549
  %v6551 = vand.u32 %v6550, 4294901760
  %v6552 = vsub.f32 %v6550, %v6551
  %v6553 = vand.u32 %v6552, 4294901760
  %6554 = vmatpush.msra.mxu0 %v6553
  %v6555 = vand.u32 %v2488, 4294901760
  %v6556 = vsub.f32 %v2488, %v6555
  %v6557 = vand.u32 %v6556, 4294901760
  %v6558 = vsub.f32 %v6556, %v6557
  %v6559 = vand.u32 %v6558, 4294901760
  %6560 = vmatpush.msra.mxu0 %v6559
  %v6561 = vand.u32 %v2486, 4294901760
  %v6562 = vsub.f32 %v2486, %v6561
  %v6563 = vand.u32 %v6562, 4294901760
  %v6564 = vsub.f32 %v6562, %v6563
  %v6565 = vand.u32 %v6564, 4294901760
  %6566 = vmatpush.msra.mxu0 %v6565
  %v6567 = vand.u32 %v2484, 4294901760
  %v6568 = vsub.f32 %v2484, %v6567
  %v6569 = vand.u32 %v6568, 4294901760
  %v6570 = vsub.f32 %v6568, %v6569
  %v6571 = vand.u32 %v6570, 4294901760
  %6572 = vmatpush.msra.mxu0 %v6571
  %v6573 = vand.u32 %v2482, 4294901760
  %v6574 = vsub.f32 %v2482, %v6573
  %v6575 = vand.u32 %v6574, 4294901760
  %v6576 = vsub.f32 %v6574, %v6575
  %v6577 = vand.u32 %v6576, 4294901760
  %6578 = vmatpush.msra.mxu0 %v6577
  %v6579 = vand.u32 %v2480, 4294901760
  %v6580 = vsub.f32 %v2480, %v6579
  %v6581 = vand.u32 %v6580, 4294901760
  %v6582 = vsub.f32 %v6580, %v6581
  %v6583 = vand.u32 %v6582, 4294901760
  %6584 = vmatpush.msra.mxu0 %v6583
  %v6585 = vand.u32 %v2478, 4294901760
  %v6586 = vsub.f32 %v2478, %v6585
  %v6587 = vand.u32 %v6586, 4294901760
  %v6588 = vsub.f32 %v6586, %v6587
  %v6589 = vand.u32 %v6588, 4294901760
  %6590 = vmatpush.msra.mxu0 %v6589
  %v6591 = vand.u32 %v2476, 4294901760
  %v6592 = vsub.f32 %v2476, %v6591
  %v6593 = vand.u32 %v6592, 4294901760
  %v6594 = vsub.f32 %v6592, %v6593
  %v6595 = vand.u32 %v6594, 4294901760
  %6596 = vmatpush.msra.mxu0 %v6595
  %v6597 = vand.u32 %v2474, 4294901760
  %v6598 = vsub.f32 %v2474, %v6597
  %v6599 = vand.u32 %v6598, 4294901760
  %v6600 = vsub.f32 %v6598, %v6599
  %v6601 = vand.u32 %v6600, 4294901760
  %6602 = vmatpush.msra.mxu0 %v6601
  %v6603 = vand.u32 %v2472, 4294901760
  %v6604 = vsub.f32 %v2472, %v6603
  %v6605 = vand.u32 %v6604, 4294901760
  %v6606 = vsub.f32 %v6604, %v6605
  %v6607 = vand.u32 %v6606, 4294901760
  %6608 = vmatpush.msra.mxu0 %v6607
  %v6609 = vand.u32 %v2470, 4294901760
  %v6610 = vsub.f32 %v2470, %v6609
  %v6611 = vand.u32 %v6610, 4294901760
  %v6612 = vsub.f32 %v6610, %v6611
  %v6613 = vand.u32 %v6612, 4294901760
  %6614 = vmatpush.msra.mxu0 %v6613
  %v6615 = vand.u32 %v2468, 4294901760
  %v6616 = vsub.f32 %v2468, %v6615
  %v6617 = vand.u32 %v6616, 4294901760
  %v6618 = vsub.f32 %v6616, %v6617
  %v6619 = vand.u32 %v6618, 4294901760
  %6620 = vmatpush.msra.mxu0 %v6619
  %v6621 = vand.u32 %v5953, 4294901760
  %6622 = vmatmul.f32.gmra.mxu0 %v6621
  %v6623 = vpop.f32.mrf.mxu0
  %v6624 = vadd.f32 %v6523, %v6623
  %6625 = vdwg.mxu0
  %v6626 = vand.u32 %v2498, 4294901760
  %v6627 = vsub.f32 %v2498, %v6626
  %6628 = vmatpush.msra.mxu0 %v6627
  %v6629 = vand.u32 %v2496, 4294901760
  %v6630 = vsub.f32 %v2496, %v6629
  %6631 = vmatpush.msra.mxu0 %v6630
  %v6632 = vand.u32 %v2494, 4294901760
  %v6633 = vsub.f32 %v2494, %v6632
  %6634 = vmatpush.msra.mxu0 %v6633
  %v6635 = vand.u32 %v2492, 4294901760
  %v6636 = vsub.f32 %v2492, %v6635
  %6637 = vmatpush.msra.mxu0 %v6636
  %v6638 = vand.u32 %v2490, 4294901760
  %v6639 = vsub.f32 %v2490, %v6638
  %6640 = vmatpush.msra.mxu0 %v6639
  %v6641 = vand.u32 %v2488, 4294901760
  %v6642 = vsub.f32 %v2488, %v6641
  %6643 = vmatpush.msra.mxu0 %v6642
  %v6644 = vand.u32 %v2486, 4294901760
  %v6645 = vsub.f32 %v2486, %v6644
  %6646 = vmatpush.msra.mxu0 %v6645
  %v6647 = vand.u32 %v2484, 4294901760
  %v6648 = vsub.f32 %v2484, %v6647
  %6649 = vmatpush.msra.mxu0 %v6648
  %v6650 = vand.u32 %v2482, 4294901760
  %v6651 = vsub.f32 %v2482, %v6650
  %6652 = vmatpush.msra.mxu0 %v6651
  %v6653 = vand.u32 %v2480, 4294901760
  %v6654 = vsub.f32 %v2480, %v6653
  %6655 = vmatpush.msra.mxu0 %v6654
  %v6656 = vand.u32 %v2478, 4294901760
  %v6657 = vsub.f32 %v2478, %v6656
  %6658 = vmatpush.msra.mxu0 %v6657
  %v6659 = vand.u32 %v2476, 4294901760
  %v6660 = vsub.f32 %v2476, %v6659
  %6661 = vmatpush.msra.mxu0 %v6660
  %v6662 = vand.u32 %v2474, 4294901760
  %v6663 = vsub.f32 %v2474, %v6662
  %6664 = vmatpush.msra.mxu0 %v6663
  %v6665 = vand.u32 %v2472, 4294901760
  %v6666 = vsub.f32 %v2472, %v6665
  %6667 = vmatpush.msra.mxu0 %v6666
  %v6668 = vand.u32 %v2470, 4294901760
  %v6669 = vsub.f32 %v2470, %v6668
  %6670 = vmatpush.msra.mxu0 %v6669
  %v6671 = vand.u32 %v2468, 4294901760
  %v6672 = vsub.f32 %v2468, %v6671
  %6673 = vmatpush.msra.mxu0 %v6672
  %v6674 = vand.u32 %v5953, 4294901760
  %v6675 = vsub.f32 %v5953, %v6674
  %6676 = vmatmul.f32.gmra.mxu0 %v6675
  %v6677 = vpop.f32.mrf.mxu0
  %v6678 = vadd.f32 %v6624, %v6677
  %6679 = vdwg.mxu0
  %v6680 = vand.u32 %v2498, 4294901760
  %6681 = vmatpush.msra.mxu0 %v6680
  %v6682 = vand.u32 %v2496, 4294901760
  %6683 = vmatpush.msra.mxu0 %v6682
  %v6684 = vand.u32 %v2494, 4294901760
  %6685 = vmatpush.msra.mxu0 %v6684
  %v6686 = vand.u32 %v2492, 4294901760
  %6687 = vmatpush.msra.mxu0 %v6686
  %v6688 = vand.u32 %v2490, 4294901760
  %6689 = vmatpush.msra.mxu0 %v6688
  %v6690 = vand.u32 %v2488, 4294901760
  %6691 = vmatpush.msra.mxu0 %v6690
  %v6692 = vand.u32 %v2486, 4294901760
  %6693 = vmatpush.msra.mxu0 %v6692
  %v6694 = vand.u32 %v2484, 4294901760
  %6695 = vmatpush.msra.mxu0 %v6694
  %v6696 = vand.u32 %v2482, 4294901760
  %6697 = vmatpush.msra.mxu0 %v6696
  %v6698 = vand.u32 %v2480, 4294901760
  %6699 = vmatpush.msra.mxu0 %v6698
  %v6700 = vand.u32 %v2478, 4294901760
  %6701 = vmatpush.msra.mxu0 %v6700
  %v6702 = vand.u32 %v2476, 4294901760
  %6703 = vmatpush.msra.mxu0 %v6702
  %v6704 = vand.u32 %v2474, 4294901760
  %6705 = vmatpush.msra.mxu0 %v6704
  %v6706 = vand.u32 %v2472, 4294901760
  %6707 = vmatpush.msra.mxu0 %v6706
  %v6708 = vand.u32 %v2470, 4294901760
  %6709 = vmatpush.msra.mxu0 %v6708
  %v6710 = vand.u32 %v2468, 4294901760
  %6711 = vmatpush.msra.mxu0 %v6710
  %v6712 = vand.u32 %v5953, 4294901760
  %v6713 = vsub.f32 %v5953, %v6712
  %v6714 = vand.u32 %v6713, 4294901760
  %6715 = vmatmul.f32.gmra.mxu0 %v6714
  %v6716 = vpop.f32.mrf.mxu0
  %v6717 = vadd.f32 %v6678, %v6716
  %6718 = vdwg.mxu0
  %v6719 = vand.u32 %v2498, 4294901760
  %v6720 = vsub.f32 %v2498, %v6719
  %v6721 = vand.u32 %v6720, 4294901760
  %6722 = vmatpush.msra.mxu0 %v6721
  %v6723 = vand.u32 %v2496, 4294901760
  %v6724 = vsub.f32 %v2496, %v6723
  %v6725 = vand.u32 %v6724, 4294901760
  %6726 = vmatpush.msra.mxu0 %v6725
  %v6727 = vand.u32 %v2494, 4294901760
  %v6728 = vsub.f32 %v2494, %v6727
  %v6729 = vand.u32 %v6728, 4294901760
  %6730 = vmatpush.msra.mxu0 %v6729
  %v6731 = vand.u32 %v2492, 4294901760
  %v6732 = vsub.f32 %v2492, %v6731
  %v6733 = vand.u32 %v6732, 4294901760
  %6734 = vmatpush.msra.mxu0 %v6733
  %v6735 = vand.u32 %v2490, 4294901760
  %v6736 = vsub.f32 %v2490, %v6735
  %v6737 = vand.u32 %v6736, 4294901760
  %6738 = vmatpush.msra.mxu0 %v6737
  %v6739 = vand.u32 %v2488, 4294901760
  %v6740 = vsub.f32 %v2488, %v6739
  %v6741 = vand.u32 %v6740, 4294901760
  %6742 = vmatpush.msra.mxu0 %v6741
  %v6743 = vand.u32 %v2486, 4294901760
  %v6744 = vsub.f32 %v2486, %v6743
  %v6745 = vand.u32 %v6744, 4294901760
  %6746 = vmatpush.msra.mxu0 %v6745
  %v6747 = vand.u32 %v2484, 4294901760
  %v6748 = vsub.f32 %v2484, %v6747
  %v6749 = vand.u32 %v6748, 4294901760
  %6750 = vmatpush.msra.mxu0 %v6749
  %v6751 = vand.u32 %v2482, 4294901760
  %v6752 = vsub.f32 %v2482, %v6751
  %v6753 = vand.u32 %v6752, 4294901760
  %6754 = vmatpush.msra.mxu0 %v6753
  %v6755 = vand.u32 %v2480, 4294901760
  %v6756 = vsub.f32 %v2480, %v6755
  %v6757 = vand.u32 %v6756, 4294901760
  %6758 = vmatpush.msra.mxu0 %v6757
  %v6759 = vand.u32 %v2478, 4294901760
  %v6760 = vsub.f32 %v2478, %v6759
  %v6761 = vand.u32 %v6760, 4294901760
  %6762 = vmatpush.msra.mxu0 %v6761
  %v6763 = vand.u32 %v2476, 4294901760
  %v6764 = vsub.f32 %v2476, %v6763
  %v6765 = vand.u32 %v6764, 4294901760
  %6766 = vmatpush.msra.mxu0 %v6765
  %v6767 = vand.u32 %v2474, 4294901760
  %v6768 = vsub.f32 %v2474, %v6767
  %v6769 = vand.u32 %v6768, 4294901760
  %6770 = vmatpush.msra.mxu0 %v6769
  %v6771 = vand.u32 %v2472, 4294901760
  %v6772 = vsub.f32 %v2472, %v6771
  %v6773 = vand.u32 %v6772, 4294901760
  %6774 = vmatpush.msra.mxu0 %v6773
  %v6775 = vand.u32 %v2470, 4294901760
  %v6776 = vsub.f32 %v2470, %v6775
  %v6777 = vand.u32 %v6776, 4294901760
  %6778 = vmatpush.msra.mxu0 %v6777
  %v6779 = vand.u32 %v2468, 4294901760
  %v6780 = vsub.f32 %v2468, %v6779
  %v6781 = vand.u32 %v6780, 4294901760
  %6782 = vmatpush.msra.mxu0 %v6781
  %v6783 = vand.u32 %v5953, 4294901760
  %6784 = vmatmul.f32.gmra.mxu0 %v6783
  %v6785 = vpop.f32.mrf.mxu0
  %v6786 = vadd.f32 %v6717, %v6785
  %6787 = vdwg.mxu0
  %v6788 = vand.u32 %v2498, 4294901760
  %6789 = vmatpush.msra.mxu0 %v6788
  %v6790 = vand.u32 %v2496, 4294901760
  %6791 = vmatpush.msra.mxu0 %v6790
  %v6792 = vand.u32 %v2494, 4294901760
  %6793 = vmatpush.msra.mxu0 %v6792
  %v6794 = vand.u32 %v2492, 4294901760
  %6795 = vmatpush.msra.mxu0 %v6794
  %v6796 = vand.u32 %v2490, 4294901760
  %6797 = vmatpush.msra.mxu0 %v6796
  %v6798 = vand.u32 %v2488, 4294901760
  %6799 = vmatpush.msra.mxu0 %v6798
  %v6800 = vand.u32 %v2486, 4294901760
  %6801 = vmatpush.msra.mxu0 %v6800
  %v6802 = vand.u32 %v2484, 4294901760
  %6803 = vmatpush.msra.mxu0 %v6802
  %v6804 = vand.u32 %v2482, 4294901760
  %6805 = vmatpush.msra.mxu0 %v6804
  %v6806 = vand.u32 %v2480, 4294901760
  %6807 = vmatpush.msra.mxu0 %v6806
  %v6808 = vand.u32 %v2478, 4294901760
  %6809 = vmatpush.msra.mxu0 %v6808
  %v6810 = vand.u32 %v2476, 4294901760
  %6811 = vmatpush.msra.mxu0 %v6810
  %v6812 = vand.u32 %v2474, 4294901760
  %6813 = vmatpush.msra.mxu0 %v6812
  %v6814 = vand.u32 %v2472, 4294901760
  %6815 = vmatpush.msra.mxu0 %v6814
  %v6816 = vand.u32 %v2470, 4294901760
  %6817 = vmatpush.msra.mxu0 %v6816
  %v6818 = vand.u32 %v2468, 4294901760
  %6819 = vmatpush.msra.mxu0 %v6818
  %v6820 = vand.u32 %v5953, 4294901760
  %6821 = vmatmul.f32.gmra.mxu0 %v6820
  %v6822 = vpop.f32.mrf.mxu0
  %v6823 = vadd.f32 %v6786, %v6822
  %6824 = vdwg.mxu0
  %6825 = vmatpush.msra.mxu0 0.0
  %6826 = vmatpush.msra.mxu0 0.0
  %6827 = vmatpush.msra.mxu0 0.0
  %6828 = vmatpush.msra.mxu0 0.0
  %6829 = vmatpush.msra.mxu0 0.0
  %6830 = vmatpush.msra.mxu0 0.0
  %6831 = vmatpush.msra.mxu0 0.0
  %6832 = vmatpush.msra.mxu0 0.0
  %6833 = vmatpush.msra.mxu0 0.0
  %6834 = vmatpush.msra.mxu0 0.0
  %6835 = vmatpush.msra.mxu0 0.0
  %6836 = vmatpush.msra.mxu0 0.0
  %v6837 = vand.u32 %v2506, 4294901760
  %6838 = vmatpush.msra.mxu0 %v6837
  %v6839 = vand.u32 %v2504, 4294901760
  %6840 = vmatpush.msra.mxu0 %v6839
  %v6841 = vand.u32 %v2502, 4294901760
  %6842 = vmatpush.msra.mxu0 %v6841
  %v6843 = vand.u32 %v2500, 4294901760
  %6844 = vmatpush.msra.mxu0 %v6843
  %v6845 = vand.u32 %v5956, 4294901760
  %v6846 = vsub.f32 %v5956, %v6845
  %v6847 = vand.u32 %v6846, 4294901760
  %v6848 = vsub.f32 %v6846, %v6847
  %v6849 = vand.u32 %v6848, 4294901760
  %6850 = vmatmul.f32.gmra.mxu0 %v6849
  %v6851 = vpop.f32.mrf.mxu0
  %v6852 = vadd.f32 %v6823, %v6851
  %6853 = vdwg.mxu0
  %6854 = vmatpush.msra.mxu0 0.0
  %6855 = vmatpush.msra.mxu0 0.0
  %6856 = vmatpush.msra.mxu0 0.0
  %6857 = vmatpush.msra.mxu0 0.0
  %6858 = vmatpush.msra.mxu0 0.0
  %6859 = vmatpush.msra.mxu0 0.0
  %6860 = vmatpush.msra.mxu0 0.0
  %6861 = vmatpush.msra.mxu0 0.0
  %6862 = vmatpush.msra.mxu0 0.0
  %6863 = vmatpush.msra.mxu0 0.0
  %6864 = vmatpush.msra.mxu0 0.0
  %6865 = vmatpush.msra.mxu0 0.0
  %v6866 = vand.u32 %v2506, 4294901760
  %v6867 = vsub.f32 %v2506, %v6866
  %v6868 = vand.u32 %v6867, 4294901760
  %v6869 = vsub.f32 %v6867, %v6868
  %v6870 = vand.u32 %v6869, 4294901760
  %6871 = vmatpush.msra.mxu0 %v6870
  %v6872 = vand.u32 %v2504, 4294901760
  %v6873 = vsub.f32 %v2504, %v6872
  %v6874 = vand.u32 %v6873, 4294901760
  %v6875 = vsub.f32 %v6873, %v6874
  %v6876 = vand.u32 %v6875, 4294901760
  %6877 = vmatpush.msra.mxu0 %v6876
  %v6878 = vand.u32 %v2502, 4294901760
  %v6879 = vsub.f32 %v2502, %v6878
  %v6880 = vand.u32 %v6879, 4294901760
  %v6881 = vsub.f32 %v6879, %v6880
  %v6882 = vand.u32 %v6881, 4294901760
  %6883 = vmatpush.msra.mxu0 %v6882
  %v6884 = vand.u32 %v2500, 4294901760
  %v6885 = vsub.f32 %v2500, %v6884
  %v6886 = vand.u32 %v6885, 4294901760
  %v6887 = vsub.f32 %v6885, %v6886
  %v6888 = vand.u32 %v6887, 4294901760
  %6889 = vmatpush.msra.mxu0 %v6888
  %v6890 = vand.u32 %v5956, 4294901760
  %6891 = vmatmul.f32.gmra.mxu0 %v6890
  %v6892 = vpop.f32.mrf.mxu0
  %v6893 = vadd.f32 %v6852, %v6892
  %6894 = vdwg.mxu0
  %6895 = vmatpush.msra.mxu0 0.0
  %6896 = vmatpush.msra.mxu0 0.0
  %6897 = vmatpush.msra.mxu0 0.0
  %6898 = vmatpush.msra.mxu0 0.0
  %6899 = vmatpush.msra.mxu0 0.0
  %6900 = vmatpush.msra.mxu0 0.0
  %6901 = vmatpush.msra.mxu0 0.0
  %6902 = vmatpush.msra.mxu0 0.0
  %6903 = vmatpush.msra.mxu0 0.0
  %6904 = vmatpush.msra.mxu0 0.0
  %6905 = vmatpush.msra.mxu0 0.0
  %6906 = vmatpush.msra.mxu0 0.0
  %v6907 = vand.u32 %v2506, 4294901760
  %v6908 = vsub.f32 %v2506, %v6907
  %6909 = vmatpush.msra.mxu0 %v6908
  %v6910 = vand.u32 %v2504, 4294901760
  %v6911 = vsub.f32 %v2504, %v6910
  %6912 = vmatpush.msra.mxu0 %v6911
  %v6913 = vand.u32 %v2502, 4294901760
  %v6914 = vsub.f32 %v2502, %v6913
  %6915 = vmatpush.msra.mxu0 %v6914
  %v6916 = vand.u32 %v2500, 4294901760
  %v6917 = vsub.f32 %v2500, %v6916
  %6918 = vmatpush.msra.mxu0 %v6917
  %v6919 = vand.u32 %v5956, 4294901760
  %v6920 = vsub.f32 %v5956, %v6919
  %6921 = vmatmul.f32.gmra.mxu0 %v6920
  %v6922 = vpop.f32.mrf.mxu0
  %v6923 = vadd.f32 %v6893, %v6922
  %6924 = vdwg.mxu0
  %6925 = vmatpush.msra.mxu0 0.0
  %6926 = vmatpush.msra.mxu0 0.0
  %6927 = vmatpush.msra.mxu0 0.0
  %6928 = vmatpush.msra.mxu0 0.0
  %6929 = vmatpush.msra.mxu0 0.0
  %6930 = vmatpush.msra.mxu0 0.0
  %6931 = vmatpush.msra.mxu0 0.0
  %6932 = vmatpush.msra.mxu0 0.0
  %6933 = vmatpush.msra.mxu0 0.0
  %6934 = vmatpush.msra.mxu0 0.0
  %6935 = vmatpush.msra.mxu0 0.0
  %6936 = vmatpush.msra.mxu0 0.0
  %v6937 = vand.u32 %v2506, 4294901760
  %6938 = vmatpush.msra.mxu0 %v6937
  %v6939 = vand.u32 %v2504, 4294901760
  %6940 = vmatpush.msra.mxu0 %v6939
  %v6941 = vand.u32 %v2502, 4294901760
  %6942 = vmatpush.msra.mxu0 %v6941
  %v6943 = vand.u32 %v2500, 4294901760
  %6944 = vmatpush.msra.mxu0 %v6943
  %v6945 = vand.u32 %v5956, 4294901760
  %v6946 = vsub.f32 %v5956, %v6945
  %v6947 = vand.u32 %v6946, 4294901760
  %6948 = vmatmul.f32.gmra.mxu0 %v6947
  %v6949 = vpop.f32.mrf.mxu0
  %v6950 = vadd.f32 %v6923, %v6949
  %6951 = vdwg.mxu0
  %6952 = vmatpush.msra.mxu0 0.0
  %6953 = vmatpush.msra.mxu0 0.0
  %6954 = vmatpush.msra.mxu0 0.0
  %6955 = vmatpush.msra.mxu0 0.0
  %6956 = vmatpush.msra.mxu0 0.0
  %6957 = vmatpush.msra.mxu0 0.0
  %6958 = vmatpush.msra.mxu0 0.0
  %6959 = vmatpush.msra.mxu0 0.0
  %6960 = vmatpush.msra.mxu0 0.0
  %6961 = vmatpush.msra.mxu0 0.0
  %6962 = vmatpush.msra.mxu0 0.0
  %6963 = vmatpush.msra.mxu0 0.0
  %v6964 = vand.u32 %v2506, 4294901760
  %v6965 = vsub.f32 %v2506, %v6964
  %v6966 = vand.u32 %v6965, 4294901760
  %6967 = vmatpush.msra.mxu0 %v6966
  %v6968 = vand.u32 %v2504, 4294901760
  %v6969 = vsub.f32 %v2504, %v6968
  %v6970 = vand.u32 %v6969, 4294901760
  %6971 = vmatpush.msra.mxu0 %v6970
  %v6972 = vand.u32 %v2502, 4294901760
  %v6973 = vsub.f32 %v2502, %v6972
  %v6974 = vand.u32 %v6973, 4294901760
  %6975 = vmatpush.msra.mxu0 %v6974
  %v6976 = vand.u32 %v2500, 4294901760
  %v6977 = vsub.f32 %v2500, %v6976
  %v6978 = vand.u32 %v6977, 4294901760
  %6979 = vmatpush.msra.mxu0 %v6978
  %v6980 = vand.u32 %v5956, 4294901760
  %6981 = vmatmul.f32.gmra.mxu0 %v6980
  %v6982 = vpop.f32.mrf.mxu0
  %v6983 = vadd.f32 %v6950, %v6982
  %6984 = vdwg.mxu0
  %6985 = vmatpush.msra.mxu0 0.0
  %6986 = vmatpush.msra.mxu0 0.0
  %6987 = vmatpush.msra.mxu0 0.0
  %6988 = vmatpush.msra.mxu0 0.0
  %6989 = vmatpush.msra.mxu0 0.0
  %6990 = vmatpush.msra.mxu0 0.0
  %6991 = vmatpush.msra.mxu0 0.0
  %6992 = vmatpush.msra.mxu0 0.0
  %6993 = vmatpush.msra.mxu0 0.0
  %6994 = vmatpush.msra.mxu0 0.0
  %6995 = vmatpush.msra.mxu0 0.0
  %6996 = vmatpush.msra.mxu0 0.0
  %v6997 = vand.u32 %v2506, 4294901760
  %6998 = vmatpush.msra.mxu0 %v6997
  %v6999 = vand.u32 %v2504, 4294901760
  %7000 = vmatpush.msra.mxu0 %v6999
  %v7001 = vand.u32 %v2502, 4294901760
  %7002 = vmatpush.msra.mxu0 %v7001
  %v7003 = vand.u32 %v2500, 4294901760
  %7004 = vmatpush.msra.mxu0 %v7003
  %v7005 = vand.u32 %v5956, 4294901760
  %7006 = vmatmul.f32.gmra.mxu0 %v7005
  %v7007 = vpop.f32.mrf.mxu0
  %v7008 = vadd.f32 %v6983, %v7007
  %7009 = vdwg.mxu0
  %v7010 = vadd.f32 %v6482, 1.0
  %v7011 = vadd.f32 %v7008, 1.0
  %v7012 = vrcp.pop %v7010
  %v7013 = vmul.f32 %v7010, %v7012
  %v7014 = vsub.f32 1.0, %v7013
  %v7015 = vmul.f32 %v7012, %v7014
  %v7016 = vadd.f32 %v7012, %v7015
  %vm7017 = vweird.f32 %v7010
  %vm7018 = vweird.f32 %v7012
  %vm7019 = vmor %vm7017, %vm7018
  %v7020 = vsel %vm7019, %v7012, %v7016
  %v7021 = vand.u32 2147483647, %v7010
  %vm7022 = vcmp.eq.f32.partialorder %v7021, 8.507059e+37
  %v7023 = vand.u32 %v7010, 2147483648
  %v7024 = vor.u32 1.1754944e-38, %v7023
  %v7025 = vsel %vm7022, %v7024, %v7020
  %v7026 = vmul.f32 %v6482, %v7025
  %v7027 = vrcp.pop %v7011
  %v7028 = vmul.f32 %v7011, %v7027
  %v7029 = vsub.f32 1.0, %v7028
  %v7030 = vmul.f32 %v7027, %v7029
  %v7031 = vadd.f32 %v7027, %v7030
  %vm7032 = vweird.f32 %v7011
  %vm7033 = vweird.f32 %v7027
  %vm7034 = vmor %vm7032, %vm7033
  %v7035 = vsel %vm7034, %v7027, %v7031
  %v7036 = vand.u32 2147483647, %v7011
  %vm7037 = vcmp.eq.f32.partialorder %v7036, 8.507059e+37
  %v7038 = vand.u32 %v7011, 2147483648
  %v7039 = vor.u32 1.1754944e-38, %v7038
  %v7040 = vsel %vm7037, %v7039, %v7035
  %v7041 = vmul.f32 %v7008, %v7040
  %v7046 = vsel %vm2564, %v5931, %v5909
  %v7047 = vsel %vm2564, %v5944, %v5922
  %v7050 = vmul.f32 %v7026, %v7046
  %v7051 = vmul.f32 %v7041, %v7047
  %v7052 = vrsqrt.pop %v6482
  %v7053 = vmul.f32 %v7052, %v6482
  %v7054 = vmul.f32 %v7053, %v7052
  %v7055 = vmul.f32 0.5, %v7054
  %v7056 = vsub.f32 1.5, %v7055
  %v7057 = vmul.f32 %v7052, %v7056
  %vm7058 = vweird.f32 %v6482
  %vm7059 = vweird.f32 %v7052
  %vm7060 = vmor %vm7058, %vm7059
  %v7061 = vsel %vm7060, %v7052, %v7057
  %v7062 = vrsqrt.pop %v7008
  %v7063 = vmul.f32 %v7062, %v7008
  %v7064 = vmul.f32 %v7063, %v7062
  %v7065 = vmul.f32 0.5, %v7064
  %v7066 = vsub.f32 1.5, %v7065
  %v7067 = vmul.f32 %v7062, %v7066
  %vm7068 = vweird.f32 %v7008
  %vm7069 = vweird.f32 %v7062
  %vm7070 = vmor %vm7068, %vm7069
  %v7071 = vsel %vm7070, %v7062, %v7067
  %v7072 = vmul.f32 %v7050, %v7061
  %v7073 = vmul.f32 %v7051, %v7071
  %v7076 = vrot.slane %v7073, 7
  %v7077 = vsel %vm3689, %v7072, %v7076
  %v7078 = vsel %vm2564, %v7072, %v7076
  %v7079 = vrot.slane %v7078, 1
  %v7080 = vperm.slane %v7077, 0
  %v7081 = vperm.slane %v7077, 1
  %v7082 = vperm.slane %v7079, 0
  %v7083 = vperm.slane %v7079, 1
  %v7088 = vmul.f32 %v1177, %v7080
  %v7089 = vmul.f32 %v2293, %v7081
  %v7090 = vmul.f32 %v1181, %v7080
  %v7091 = vmul.f32 %v2297, %v7081
  %v7092 = vmul.f32 %v1185, %v7080
  %v7093 = vmul.f32 %v2301, %v7081
  %v7094 = vmul.f32 %v1189, %v7080
  %v7095 = vmul.f32 %v2305, %v7081
  %v7096 = vmul.f32 %v1193, %v7082
  %v7097 = vmul.f32 %v2309, %v7083
  %v7098 = vmul.f32 %v1197, %v7082
  %v7099 = vmul.f32 %v2313, %v7083
  %v7100 = vmul.f32 %v1201, %v7082
  %v7101 = vmul.f32 %v2317, %v7083
  %v7102 = vmul.f32 %v1205, %v7082
  %v7103 = vmul.f32 %v2321, %v7083
  %v7105 = vsel %vm2516, %v7089, 0
  %v7108 = vsel %vm2516, %v7091, 0
  %v7111 = vsel %vm2516, %v7093, 0
  %v7114 = vsel %vm2516, %v7095, 0
  %v7117 = vsel %vm2516, %v7097, 0
  %v7120 = vsel %vm2516, %v7099, 0
  %v7123 = vsel %vm2516, %v7101, 0
  %v7126 = vsel %vm2516, %v7103, 0
  %v7128 = vand.u32 %v2497, 4294901760
  %7129 = vmatpush.msra.mxu0 %v7128
  %v7130 = vand.u32 %v2495, 4294901760
  %7131 = vmatpush.msra.mxu0 %v7130
  %v7132 = vand.u32 %v2493, 4294901760
  %7133 = vmatpush.msra.mxu0 %v7132
  %v7134 = vand.u32 %v2491, 4294901760
  %7135 = vmatpush.msra.mxu0 %v7134
  %v7136 = vand.u32 %v2489, 4294901760
  %7137 = vmatpush.msra.mxu0 %v7136
  %v7138 = vand.u32 %v2487, 4294901760
  %7139 = vmatpush.msra.mxu0 %v7138
  %v7140 = vand.u32 %v2485, 4294901760
  %7141 = vmatpush.msra.mxu0 %v7140
  %v7142 = vand.u32 %v2483, 4294901760
  %7143 = vmatpush.msra.mxu0 %v7142
  %v7144 = vand.u32 %v2481, 4294901760
  %7145 = vmatpush.msra.mxu0 %v7144
  %v7146 = vand.u32 %v2479, 4294901760
  %7147 = vmatpush.msra.mxu0 %v7146
  %v7148 = vand.u32 %v2477, 4294901760
  %7149 = vmatpush.msra.mxu0 %v7148
  %v7150 = vand.u32 %v2475, 4294901760
  %7151 = vmatpush.msra.mxu0 %v7150
  %v7152 = vand.u32 %v2473, 4294901760
  %7153 = vmatpush.msra.mxu0 %v7152
  %v7154 = vand.u32 %v2471, 4294901760
  %7155 = vmatpush.msra.mxu0 %v7154
  %v7156 = vand.u32 %v2469, 4294901760
  %7157 = vmatpush.msra.mxu0 %v7156
  %v7158 = vand.u32 %v2467, 4294901760
  %7159 = vmatpush.msra.mxu0 %v7158
  %v7160 = vand.u32 %v7088, 4294901760
  %v7161 = vsub.f32 %v7088, %v7160
  %v7162 = vand.u32 %v7161, 4294901760
  %v7163 = vsub.f32 %v7161, %v7162
  %v7164 = vand.u32 %v7163, 4294901760
  %7165 = vmatmul.f32.gmra.mxu0 %v7164
  %v7166 = vpop.f32.mrf.mxu0
  %v7167 = vadd.f32 0.0, %v7166
  %v7168 = vand.u32 %v7090, 4294901760
  %v7169 = vsub.f32 %v7090, %v7168
  %v7170 = vand.u32 %v7169, 4294901760
  %v7171 = vsub.f32 %v7169, %v7170
  %v7172 = vand.u32 %v7171, 4294901760
  %7173 = vmatmul.f32.gmra.mxu0 %v7172
  %v7174 = vpop.f32.mrf.mxu0
  %v7175 = vadd.f32 0.0, %v7174
  %v7176 = vand.u32 %v7092, 4294901760
  %v7177 = vsub.f32 %v7092, %v7176
  %v7178 = vand.u32 %v7177, 4294901760
  %v7179 = vsub.f32 %v7177, %v7178
  %v7180 = vand.u32 %v7179, 4294901760
  %7181 = vmatmul.f32.gmra.mxu0 %v7180
  %v7182 = vpop.f32.mrf.mxu0
  %v7183 = vadd.f32 0.0, %v7182
  %v7184 = vand.u32 %v7094, 4294901760
  %v7185 = vsub.f32 %v7094, %v7184
  %v7186 = vand.u32 %v7185, 4294901760
  %v7187 = vsub.f32 %v7185, %v7186
  %v7188 = vand.u32 %v7187, 4294901760
  %7189 = vmatmul.f32.gmra.mxu0 %v7188
  %v7190 = vpop.f32.mrf.mxu0
  %v7191 = vadd.f32 0.0, %v7190
  %v7192 = vand.u32 %v7096, 4294901760
  %v7193 = vsub.f32 %v7096, %v7192
  %v7194 = vand.u32 %v7193, 4294901760
  %v7195 = vsub.f32 %v7193, %v7194
  %v7196 = vand.u32 %v7195, 4294901760
  %7197 = vmatmul.f32.gmra.mxu0 %v7196
  %v7198 = vpop.f32.mrf.mxu0
  %v7199 = vadd.f32 0.0, %v7198
  %v7200 = vand.u32 %v7098, 4294901760
  %v7201 = vsub.f32 %v7098, %v7200
  %v7202 = vand.u32 %v7201, 4294901760
  %v7203 = vsub.f32 %v7201, %v7202
  %v7204 = vand.u32 %v7203, 4294901760
  %7205 = vmatmul.f32.gmra.mxu0 %v7204
  %v7206 = vpop.f32.mrf.mxu0
  %v7207 = vadd.f32 0.0, %v7206
  %v7208 = vand.u32 %v7100, 4294901760
  %v7209 = vsub.f32 %v7100, %v7208
  %v7210 = vand.u32 %v7209, 4294901760
  %v7211 = vsub.f32 %v7209, %v7210
  %v7212 = vand.u32 %v7211, 4294901760
  %7213 = vmatmul.f32.gmra.mxu0 %v7212
  %v7214 = vpop.f32.mrf.mxu0
  %v7215 = vadd.f32 0.0, %v7214
  %v7216 = vand.u32 %v7102, 4294901760
  %v7217 = vsub.f32 %v7102, %v7216
  %v7218 = vand.u32 %v7217, 4294901760
  %v7219 = vsub.f32 %v7217, %v7218
  %v7220 = vand.u32 %v7219, 4294901760
  %7221 = vmatmul.f32.gmra.mxu0 %v7220
  %v7222 = vpop.f32.mrf.mxu0
  %v7223 = vadd.f32 0.0, %v7222
  %7224 = vdwg.mxu0
  %v7225 = vand.u32 %v2497, 4294901760
  %v7226 = vsub.f32 %v2497, %v7225
  %v7227 = vand.u32 %v7226, 4294901760
  %v7228 = vsub.f32 %v7226, %v7227
  %v7229 = vand.u32 %v7228, 4294901760
  %7230 = vmatpush.msra.mxu0 %v7229
  %v7231 = vand.u32 %v2495, 4294901760
  %v7232 = vsub.f32 %v2495, %v7231
  %v7233 = vand.u32 %v7232, 4294901760
  %v7234 = vsub.f32 %v7232, %v7233
  %v7235 = vand.u32 %v7234, 4294901760
  %7236 = vmatpush.msra.mxu0 %v7235
  %v7237 = vand.u32 %v2493, 4294901760
  %v7238 = vsub.f32 %v2493, %v7237
  %v7239 = vand.u32 %v7238, 4294901760
  %v7240 = vsub.f32 %v7238, %v7239
  %v7241 = vand.u32 %v7240, 4294901760
  %7242 = vmatpush.msra.mxu0 %v7241
  %v7243 = vand.u32 %v2491, 4294901760
  %v7244 = vsub.f32 %v2491, %v7243
  %v7245 = vand.u32 %v7244, 4294901760
  %v7246 = vsub.f32 %v7244, %v7245
  %v7247 = vand.u32 %v7246, 4294901760
  %7248 = vmatpush.msra.mxu0 %v7247
  %v7249 = vand.u32 %v2489, 4294901760
  %v7250 = vsub.f32 %v2489, %v7249
  %v7251 = vand.u32 %v7250, 4294901760
  %v7252 = vsub.f32 %v7250, %v7251
  %v7253 = vand.u32 %v7252, 4294901760
  %7254 = vmatpush.msra.mxu0 %v7253
  %v7255 = vand.u32 %v2487, 4294901760
  %v7256 = vsub.f32 %v2487, %v7255
  %v7257 = vand.u32 %v7256, 4294901760
  %v7258 = vsub.f32 %v7256, %v7257
  %v7259 = vand.u32 %v7258, 4294901760
  %7260 = vmatpush.msra.mxu0 %v7259
  %v7261 = vand.u32 %v2485, 4294901760
  %v7262 = vsub.f32 %v2485, %v7261
  %v7263 = vand.u32 %v7262, 4294901760
  %v7264 = vsub.f32 %v7262, %v7263
  %v7265 = vand.u32 %v7264, 4294901760
  %7266 = vmatpush.msra.mxu0 %v7265
  %v7267 = vand.u32 %v2483, 4294901760
  %v7268 = vsub.f32 %v2483, %v7267
  %v7269 = vand.u32 %v7268, 4294901760
  %v7270 = vsub.f32 %v7268, %v7269
  %v7271 = vand.u32 %v7270, 4294901760
  %7272 = vmatpush.msra.mxu0 %v7271
  %v7273 = vand.u32 %v2481, 4294901760
  %v7274 = vsub.f32 %v2481, %v7273
  %v7275 = vand.u32 %v7274, 4294901760
  %v7276 = vsub.f32 %v7274, %v7275
  %v7277 = vand.u32 %v7276, 4294901760
  %7278 = vmatpush.msra.mxu0 %v7277
  %v7279 = vand.u32 %v2479, 4294901760
  %v7280 = vsub.f32 %v2479, %v7279
  %v7281 = vand.u32 %v7280, 4294901760
  %v7282 = vsub.f32 %v7280, %v7281
  %v7283 = vand.u32 %v7282, 4294901760
  %7284 = vmatpush.msra.mxu0 %v7283
  %v7285 = vand.u32 %v2477, 4294901760
  %v7286 = vsub.f32 %v2477, %v7285
  %v7287 = vand.u32 %v7286, 4294901760
  %v7288 = vsub.f32 %v7286, %v7287
  %v7289 = vand.u32 %v7288, 4294901760
  %7290 = vmatpush.msra.mxu0 %v7289
  %v7291 = vand.u32 %v2475, 4294901760
  %v7292 = vsub.f32 %v2475, %v7291
  %v7293 = vand.u32 %v7292, 4294901760
  %v7294 = vsub.f32 %v7292, %v7293
  %v7295 = vand.u32 %v7294, 4294901760
  %7296 = vmatpush.msra.mxu0 %v7295
  %v7297 = vand.u32 %v2473, 4294901760
  %v7298 = vsub.f32 %v2473, %v7297
  %v7299 = vand.u32 %v7298, 4294901760
  %v7300 = vsub.f32 %v7298, %v7299
  %v7301 = vand.u32 %v7300, 4294901760
  %7302 = vmatpush.msra.mxu0 %v7301
  %v7303 = vand.u32 %v2471, 4294901760
  %v7304 = vsub.f32 %v2471, %v7303
  %v7305 = vand.u32 %v7304, 4294901760
  %v7306 = vsub.f32 %v7304, %v7305
  %v7307 = vand.u32 %v7306, 4294901760
  %7308 = vmatpush.msra.mxu0 %v7307
  %v7309 = vand.u32 %v2469, 4294901760
  %v7310 = vsub.f32 %v2469, %v7309
  %v7311 = vand.u32 %v7310, 4294901760
  %v7312 = vsub.f32 %v7310, %v7311
  %v7313 = vand.u32 %v7312, 4294901760
  %7314 = vmatpush.msra.mxu0 %v7313
  %v7315 = vand.u32 %v2467, 4294901760
  %v7316 = vsub.f32 %v2467, %v7315
  %v7317 = vand.u32 %v7316, 4294901760
  %v7318 = vsub.f32 %v7316, %v7317
  %v7319 = vand.u32 %v7318, 4294901760
  %7320 = vmatpush.msra.mxu0 %v7319
  %v7321 = vand.u32 %v7088, 4294901760
  %7322 = vmatmul.f32.gmra.mxu0 %v7321
  %v7323 = vpop.f32.mrf.mxu0
  %v7324 = vadd.f32 %v7167, %v7323
  %v7325 = vand.u32 %v7090, 4294901760
  %7326 = vmatmul.f32.gmra.mxu0 %v7325
  %v7327 = vpop.f32.mrf.mxu0
  %v7328 = vadd.f32 %v7175, %v7327
  %v7329 = vand.u32 %v7092, 4294901760
  %7330 = vmatmul.f32.gmra.mxu0 %v7329
  %v7331 = vpop.f32.mrf.mxu0
  %v7332 = vadd.f32 %v7183, %v7331
  %v7333 = vand.u32 %v7094, 4294901760
  %7334 = vmatmul.f32.gmra.mxu0 %v7333
  %v7335 = vpop.f32.mrf.mxu0
  %v7336 = vadd.f32 %v7191, %v7335
  %v7337 = vand.u32 %v7096, 4294901760
  %7338 = vmatmul.f32.gmra.mxu0 %v7337
  %v7339 = vpop.f32.mrf.mxu0
  %v7340 = vadd.f32 %v7199, %v7339
  %v7341 = vand.u32 %v7098, 4294901760
  %7342 = vmatmul.f32.gmra.mxu0 %v7341
  %v7343 = vpop.f32.mrf.mxu0
  %v7344 = vadd.f32 %v7207, %v7343
  %v7345 = vand.u32 %v7100, 4294901760
  %7346 = vmatmul.f32.gmra.mxu0 %v7345
  %v7347 = vpop.f32.mrf.mxu0
  %v7348 = vadd.f32 %v7215, %v7347
  %v7349 = vand.u32 %v7102, 4294901760
  %7350 = vmatmul.f32.gmra.mxu0 %v7349
  %v7351 = vpop.f32.mrf.mxu0
  %v7352 = vadd.f32 %v7223, %v7351
  %7353 = vdwg.mxu0
  %v7354 = vand.u32 %v2497, 4294901760
  %v7355 = vsub.f32 %v2497, %v7354
  %7356 = vmatpush.msra.mxu0 %v7355
  %v7357 = vand.u32 %v2495, 4294901760
  %v7358 = vsub.f32 %v2495, %v7357
  %7359 = vmatpush.msra.mxu0 %v7358
  %v7360 = vand.u32 %v2493, 4294901760
  %v7361 = vsub.f32 %v2493, %v7360
  %7362 = vmatpush.msra.mxu0 %v7361
  %v7363 = vand.u32 %v2491, 4294901760
  %v7364 = vsub.f32 %v2491, %v7363
  %7365 = vmatpush.msra.mxu0 %v7364
  %v7366 = vand.u32 %v2489, 4294901760
  %v7367 = vsub.f32 %v2489, %v7366
  %7368 = vmatpush.msra.mxu0 %v7367
  %v7369 = vand.u32 %v2487, 4294901760
  %v7370 = vsub.f32 %v2487, %v7369
  %7371 = vmatpush.msra.mxu0 %v7370
  %v7372 = vand.u32 %v2485, 4294901760
  %v7373 = vsub.f32 %v2485, %v7372
  %7374 = vmatpush.msra.mxu0 %v7373
  %v7375 = vand.u32 %v2483, 4294901760
  %v7376 = vsub.f32 %v2483, %v7375
  %7377 = vmatpush.msra.mxu0 %v7376
  %v7378 = vand.u32 %v2481, 4294901760
  %v7379 = vsub.f32 %v2481, %v7378
  %7380 = vmatpush.msra.mxu0 %v7379
  %v7381 = vand.u32 %v2479, 4294901760
  %v7382 = vsub.f32 %v2479, %v7381
  %7383 = vmatpush.msra.mxu0 %v7382
  %v7384 = vand.u32 %v2477, 4294901760
  %v7385 = vsub.f32 %v2477, %v7384
  %7386 = vmatpush.msra.mxu0 %v7385
  %v7387 = vand.u32 %v2475, 4294901760
  %v7388 = vsub.f32 %v2475, %v7387
  %7389 = vmatpush.msra.mxu0 %v7388
  %v7390 = vand.u32 %v2473, 4294901760
  %v7391 = vsub.f32 %v2473, %v7390
  %7392 = vmatpush.msra.mxu0 %v7391
  %v7393 = vand.u32 %v2471, 4294901760
  %v7394 = vsub.f32 %v2471, %v7393
  %7395 = vmatpush.msra.mxu0 %v7394
  %v7396 = vand.u32 %v2469, 4294901760
  %v7397 = vsub.f32 %v2469, %v7396
  %7398 = vmatpush.msra.mxu0 %v7397
  %v7399 = vand.u32 %v2467, 4294901760
  %v7400 = vsub.f32 %v2467, %v7399
  %7401 = vmatpush.msra.mxu0 %v7400
  %v7402 = vand.u32 %v7088, 4294901760
  %v7403 = vsub.f32 %v7088, %v7402
  %7404 = vmatmul.f32.gmra.mxu0 %v7403
  %v7405 = vpop.f32.mrf.mxu0
  %v7406 = vadd.f32 %v7324, %v7405
  %v7407 = vand.u32 %v7090, 4294901760
  %v7408 = vsub.f32 %v7090, %v7407
  %7409 = vmatmul.f32.gmra.mxu0 %v7408
  %v7410 = vpop.f32.mrf.mxu0
  %v7411 = vadd.f32 %v7328, %v7410
  %v7412 = vand.u32 %v7092, 4294901760
  %v7413 = vsub.f32 %v7092, %v7412
  %7414 = vmatmul.f32.gmra.mxu0 %v7413
  %v7415 = vpop.f32.mrf.mxu0
  %v7416 = vadd.f32 %v7332, %v7415
  %v7417 = vand.u32 %v7094, 4294901760
  %v7418 = vsub.f32 %v7094, %v7417
  %7419 = vmatmul.f32.gmra.mxu0 %v7418
  %v7420 = vpop.f32.mrf.mxu0
  %v7421 = vadd.f32 %v7336, %v7420
  %v7422 = vand.u32 %v7096, 4294901760
  %v7423 = vsub.f32 %v7096, %v7422
  %7424 = vmatmul.f32.gmra.mxu0 %v7423
  %v7425 = vpop.f32.mrf.mxu0
  %v7426 = vadd.f32 %v7340, %v7425
  %v7427 = vand.u32 %v7098, 4294901760
  %v7428 = vsub.f32 %v7098, %v7427
  %7429 = vmatmul.f32.gmra.mxu0 %v7428
  %v7430 = vpop.f32.mrf.mxu0
  %v7431 = vadd.f32 %v7344, %v7430
  %v7432 = vand.u32 %v7100, 4294901760
  %v7433 = vsub.f32 %v7100, %v7432
  %7434 = vmatmul.f32.gmra.mxu0 %v7433
  %v7435 = vpop.f32.mrf.mxu0
  %v7436 = vadd.f32 %v7348, %v7435
  %v7437 = vand.u32 %v7102, 4294901760
  %v7438 = vsub.f32 %v7102, %v7437
  %7439 = vmatmul.f32.gmra.mxu0 %v7438
  %v7440 = vpop.f32.mrf.mxu0
  %v7441 = vadd.f32 %v7352, %v7440
  %7442 = vdwg.mxu0
  %v7443 = vand.u32 %v2497, 4294901760
  %7444 = vmatpush.msra.mxu0 %v7443
  %v7445 = vand.u32 %v2495, 4294901760
  %7446 = vmatpush.msra.mxu0 %v7445
  %v7447 = vand.u32 %v2493, 4294901760
  %7448 = vmatpush.msra.mxu0 %v7447
  %v7449 = vand.u32 %v2491, 4294901760
  %7450 = vmatpush.msra.mxu0 %v7449
  %v7451 = vand.u32 %v2489, 4294901760
  %7452 = vmatpush.msra.mxu0 %v7451
  %v7453 = vand.u32 %v2487, 4294901760
  %7454 = vmatpush.msra.mxu0 %v7453
  %v7455 = vand.u32 %v2485, 4294901760
  %7456 = vmatpush.msra.mxu0 %v7455
  %v7457 = vand.u32 %v2483, 4294901760
  %7458 = vmatpush.msra.mxu0 %v7457
  %v7459 = vand.u32 %v2481, 4294901760
  %7460 = vmatpush.msra.mxu0 %v7459
  %v7461 = vand.u32 %v2479, 4294901760
  %7462 = vmatpush.msra.mxu0 %v7461
  %v7463 = vand.u32 %v2477, 4294901760
  %7464 = vmatpush.msra.mxu0 %v7463
  %v7465 = vand.u32 %v2475, 4294901760
  %7466 = vmatpush.msra.mxu0 %v7465
  %v7467 = vand.u32 %v2473, 4294901760
  %7468 = vmatpush.msra.mxu0 %v7467
  %v7469 = vand.u32 %v2471, 4294901760
  %7470 = vmatpush.msra.mxu0 %v7469
  %v7471 = vand.u32 %v2469, 4294901760
  %7472 = vmatpush.msra.mxu0 %v7471
  %v7473 = vand.u32 %v2467, 4294901760
  %7474 = vmatpush.msra.mxu0 %v7473
  %v7475 = vand.u32 %v7088, 4294901760
  %v7476 = vsub.f32 %v7088, %v7475
  %v7477 = vand.u32 %v7476, 4294901760
  %7478 = vmatmul.f32.gmra.mxu0 %v7477
  %v7479 = vpop.f32.mrf.mxu0
  %v7480 = vadd.f32 %v7406, %v7479
  %v7481 = vand.u32 %v7090, 4294901760
  %v7482 = vsub.f32 %v7090, %v7481
  %v7483 = vand.u32 %v7482, 4294901760
  %7484 = vmatmul.f32.gmra.mxu0 %v7483
  %v7485 = vpop.f32.mrf.mxu0
  %v7486 = vadd.f32 %v7411, %v7485
  %v7487 = vand.u32 %v7092, 4294901760
  %v7488 = vsub.f32 %v7092, %v7487
  %v7489 = vand.u32 %v7488, 4294901760
  %7490 = vmatmul.f32.gmra.mxu0 %v7489
  %v7491 = vpop.f32.mrf.mxu0
  %v7492 = vadd.f32 %v7416, %v7491
  %v7493 = vand.u32 %v7094, 4294901760
  %v7494 = vsub.f32 %v7094, %v7493
  %v7495 = vand.u32 %v7494, 4294901760
  %7496 = vmatmul.f32.gmra.mxu0 %v7495
  %v7497 = vpop.f32.mrf.mxu0
  %v7498 = vadd.f32 %v7421, %v7497
  %v7499 = vand.u32 %v7096, 4294901760
  %v7500 = vsub.f32 %v7096, %v7499
  %v7501 = vand.u32 %v7500, 4294901760
  %7502 = vmatmul.f32.gmra.mxu0 %v7501
  %v7503 = vpop.f32.mrf.mxu0
  %v7504 = vadd.f32 %v7426, %v7503
  %v7505 = vand.u32 %v7098, 4294901760
  %v7506 = vsub.f32 %v7098, %v7505
  %v7507 = vand.u32 %v7506, 4294901760
  %7508 = vmatmul.f32.gmra.mxu0 %v7507
  %v7509 = vpop.f32.mrf.mxu0
  %v7510 = vadd.f32 %v7431, %v7509
  %v7511 = vand.u32 %v7100, 4294901760
  %v7512 = vsub.f32 %v7100, %v7511
  %v7513 = vand.u32 %v7512, 4294901760
  %7514 = vmatmul.f32.gmra.mxu0 %v7513
  %v7515 = vpop.f32.mrf.mxu0
  %v7516 = vadd.f32 %v7436, %v7515
  %v7517 = vand.u32 %v7102, 4294901760
  %v7518 = vsub.f32 %v7102, %v7517
  %v7519 = vand.u32 %v7518, 4294901760
  %7520 = vmatmul.f32.gmra.mxu0 %v7519
  %v7521 = vpop.f32.mrf.mxu0
  %v7522 = vadd.f32 %v7441, %v7521
  %7523 = vdwg.mxu0
  %v7524 = vand.u32 %v2497, 4294901760
  %v7525 = vsub.f32 %v2497, %v7524
  %v7526 = vand.u32 %v7525, 4294901760
  %7527 = vmatpush.msra.mxu0 %v7526
  %v7528 = vand.u32 %v2495, 4294901760
  %v7529 = vsub.f32 %v2495, %v7528
  %v7530 = vand.u32 %v7529, 4294901760
  %7531 = vmatpush.msra.mxu0 %v7530
  %v7532 = vand.u32 %v2493, 4294901760
  %v7533 = vsub.f32 %v2493, %v7532
  %v7534 = vand.u32 %v7533, 4294901760
  %7535 = vmatpush.msra.mxu0 %v7534
  %v7536 = vand.u32 %v2491, 4294901760
  %v7537 = vsub.f32 %v2491, %v7536
  %v7538 = vand.u32 %v7537, 4294901760
  %7539 = vmatpush.msra.mxu0 %v7538
  %v7540 = vand.u32 %v2489, 4294901760
  %v7541 = vsub.f32 %v2489, %v7540
  %v7542 = vand.u32 %v7541, 4294901760
  %7543 = vmatpush.msra.mxu0 %v7542
  %v7544 = vand.u32 %v2487, 4294901760
  %v7545 = vsub.f32 %v2487, %v7544
  %v7546 = vand.u32 %v7545, 4294901760
  %7547 = vmatpush.msra.mxu0 %v7546
  %v7548 = vand.u32 %v2485, 4294901760
  %v7549 = vsub.f32 %v2485, %v7548
  %v7550 = vand.u32 %v7549, 4294901760
  %7551 = vmatpush.msra.mxu0 %v7550
  %v7552 = vand.u32 %v2483, 4294901760
  %v7553 = vsub.f32 %v2483, %v7552
  %v7554 = vand.u32 %v7553, 4294901760
  %7555 = vmatpush.msra.mxu0 %v7554
  %v7556 = vand.u32 %v2481, 4294901760
  %v7557 = vsub.f32 %v2481, %v7556
  %v7558 = vand.u32 %v7557, 4294901760
  %7559 = vmatpush.msra.mxu0 %v7558
  %v7560 = vand.u32 %v2479, 4294901760
  %v7561 = vsub.f32 %v2479, %v7560
  %v7562 = vand.u32 %v7561, 4294901760
  %7563 = vmatpush.msra.mxu0 %v7562
  %v7564 = vand.u32 %v2477, 4294901760
  %v7565 = vsub.f32 %v2477, %v7564
  %v7566 = vand.u32 %v7565, 4294901760
  %7567 = vmatpush.msra.mxu0 %v7566
  %v7568 = vand.u32 %v2475, 4294901760
  %v7569 = vsub.f32 %v2475, %v7568
  %v7570 = vand.u32 %v7569, 4294901760
  %7571 = vmatpush.msra.mxu0 %v7570
  %v7572 = vand.u32 %v2473, 4294901760
  %v7573 = vsub.f32 %v2473, %v7572
  %v7574 = vand.u32 %v7573, 4294901760
  %7575 = vmatpush.msra.mxu0 %v7574
  %v7576 = vand.u32 %v2471, 4294901760
  %v7577 = vsub.f32 %v2471, %v7576
  %v7578 = vand.u32 %v7577, 4294901760
  %7579 = vmatpush.msra.mxu0 %v7578
  %v7580 = vand.u32 %v2469, 4294901760
  %v7581 = vsub.f32 %v2469, %v7580
  %v7582 = vand.u32 %v7581, 4294901760
  %7583 = vmatpush.msra.mxu0 %v7582
  %v7584 = vand.u32 %v2467, 4294901760
  %v7585 = vsub.f32 %v2467, %v7584
  %v7586 = vand.u32 %v7585, 4294901760
  %7587 = vmatpush.msra.mxu0 %v7586
  %v7588 = vand.u32 %v7088, 4294901760
  %7589 = vmatmul.f32.gmra.mxu0 %v7588
  %v7590 = vpop.f32.mrf.mxu0
  %v7591 = vadd.f32 %v7480, %v7590
  %v7592 = vand.u32 %v7090, 4294901760
  %7593 = vmatmul.f32.gmra.mxu0 %v7592
  %v7594 = vpop.f32.mrf.mxu0
  %v7595 = vadd.f32 %v7486, %v7594
  %v7596 = vand.u32 %v7092, 4294901760
  %7597 = vmatmul.f32.gmra.mxu0 %v7596
  %v7598 = vpop.f32.mrf.mxu0
  %v7599 = vadd.f32 %v7492, %v7598
  %v7600 = vand.u32 %v7094, 4294901760
  %7601 = vmatmul.f32.gmra.mxu0 %v7600
  %v7602 = vpop.f32.mrf.mxu0
  %v7603 = vadd.f32 %v7498, %v7602
  %v7604 = vand.u32 %v7096, 4294901760
  %7605 = vmatmul.f32.gmra.mxu0 %v7604
  %v7606 = vpop.f32.mrf.mxu0
  %v7607 = vadd.f32 %v7504, %v7606
  %v7608 = vand.u32 %v7098, 4294901760
  %7609 = vmatmul.f32.gmra.mxu0 %v7608
  %v7610 = vpop.f32.mrf.mxu0
  %v7611 = vadd.f32 %v7510, %v7610
  %v7612 = vand.u32 %v7100, 4294901760
  %7613 = vmatmul.f32.gmra.mxu0 %v7612
  %v7614 = vpop.f32.mrf.mxu0
  %v7615 = vadd.f32 %v7516, %v7614
  %v7616 = vand.u32 %v7102, 4294901760
  %7617 = vmatmul.f32.gmra.mxu0 %v7616
  %v7618 = vpop.f32.mrf.mxu0
  %v7619 = vadd.f32 %v7522, %v7618
  %7620 = vdwg.mxu0
  %v7621 = vand.u32 %v2497, 4294901760
  %7622 = vmatpush.msra.mxu0 %v7621
  %v7623 = vand.u32 %v2495, 4294901760
  %7624 = vmatpush.msra.mxu0 %v7623
  %v7625 = vand.u32 %v2493, 4294901760
  %7626 = vmatpush.msra.mxu0 %v7625
  %v7627 = vand.u32 %v2491, 4294901760
  %7628 = vmatpush.msra.mxu0 %v7627
  %v7629 = vand.u32 %v2489, 4294901760
  %7630 = vmatpush.msra.mxu0 %v7629
  %v7631 = vand.u32 %v2487, 4294901760
  %7632 = vmatpush.msra.mxu0 %v7631
  %v7633 = vand.u32 %v2485, 4294901760
  %7634 = vmatpush.msra.mxu0 %v7633
  %v7635 = vand.u32 %v2483, 4294901760
  %7636 = vmatpush.msra.mxu0 %v7635
  %v7637 = vand.u32 %v2481, 4294901760
  %7638 = vmatpush.msra.mxu0 %v7637
  %v7639 = vand.u32 %v2479, 4294901760
  %7640 = vmatpush.msra.mxu0 %v7639
  %v7641 = vand.u32 %v2477, 4294901760
  %7642 = vmatpush.msra.mxu0 %v7641
  %v7643 = vand.u32 %v2475, 4294901760
  %7644 = vmatpush.msra.mxu0 %v7643
  %v7645 = vand.u32 %v2473, 4294901760
  %7646 = vmatpush.msra.mxu0 %v7645
  %v7647 = vand.u32 %v2471, 4294901760
  %7648 = vmatpush.msra.mxu0 %v7647
  %v7649 = vand.u32 %v2469, 4294901760
  %7650 = vmatpush.msra.mxu0 %v7649
  %v7651 = vand.u32 %v2467, 4294901760
  %7652 = vmatpush.msra.mxu0 %v7651
  %v7653 = vand.u32 %v7088, 4294901760
  %7654 = vmatmul.f32.gmra.mxu0 %v7653
  %v7655 = vpop.f32.mrf.mxu0
  %v7656 = vadd.f32 %v7591, %v7655
  %v7657 = vand.u32 %v7090, 4294901760
  %7658 = vmatmul.f32.gmra.mxu0 %v7657
  %v7659 = vpop.f32.mrf.mxu0
  %v7660 = vadd.f32 %v7595, %v7659
  %v7661 = vand.u32 %v7092, 4294901760
  %7662 = vmatmul.f32.gmra.mxu0 %v7661
  %v7663 = vpop.f32.mrf.mxu0
  %v7664 = vadd.f32 %v7599, %v7663
  %v7665 = vand.u32 %v7094, 4294901760
  %7666 = vmatmul.f32.gmra.mxu0 %v7665
  %v7667 = vpop.f32.mrf.mxu0
  %v7668 = vadd.f32 %v7603, %v7667
  %v7669 = vand.u32 %v7096, 4294901760
  %7670 = vmatmul.f32.gmra.mxu0 %v7669
  %v7671 = vpop.f32.mrf.mxu0
  %v7672 = vadd.f32 %v7607, %v7671
  %v7673 = vand.u32 %v7098, 4294901760
  %7674 = vmatmul.f32.gmra.mxu0 %v7673
  %v7675 = vpop.f32.mrf.mxu0
  %v7676 = vadd.f32 %v7611, %v7675
  %v7677 = vand.u32 %v7100, 4294901760
  %7678 = vmatmul.f32.gmra.mxu0 %v7677
  %v7679 = vpop.f32.mrf.mxu0
  %v7680 = vadd.f32 %v7615, %v7679
  %v7681 = vand.u32 %v7102, 4294901760
  %7682 = vmatmul.f32.gmra.mxu0 %v7681
  %v7683 = vpop.f32.mrf.mxu0
  %v7684 = vadd.f32 %v7619, %v7683
  %7685 = vdwg.mxu0
  %7686 = vmatpush.msra.mxu0 0.0
  %7687 = vmatpush.msra.mxu0 0.0
  %7688 = vmatpush.msra.mxu0 0.0
  %7689 = vmatpush.msra.mxu0 0.0
  %7690 = vmatpush.msra.mxu0 0.0
  %7691 = vmatpush.msra.mxu0 0.0
  %7692 = vmatpush.msra.mxu0 0.0
  %7693 = vmatpush.msra.mxu0 0.0
  %7694 = vmatpush.msra.mxu0 0.0
  %7695 = vmatpush.msra.mxu0 0.0
  %7696 = vmatpush.msra.mxu0 0.0
  %7697 = vmatpush.msra.mxu0 0.0
  %v7698 = vand.u32 %v2505, 4294901760
  %7699 = vmatpush.msra.mxu0 %v7698
  %v7700 = vand.u32 %v2503, 4294901760
  %7701 = vmatpush.msra.mxu0 %v7700
  %v7702 = vand.u32 %v2501, 4294901760
  %7703 = vmatpush.msra.mxu0 %v7702
  %v7704 = vand.u32 %v2499, 4294901760
  %7705 = vmatpush.msra.mxu0 %v7704
  %v7706 = vand.u32 %v7105, 4294901760
  %v7707 = vsub.f32 %v7105, %v7706
  %v7708 = vand.u32 %v7707, 4294901760
  %v7709 = vsub.f32 %v7707, %v7708
  %v7710 = vand.u32 %v7709, 4294901760
  %7711 = vmatmul.f32.gmra.mxu0 %v7710
  %v7712 = vpop.f32.mrf.mxu0
  %v7713 = vadd.f32 %v7656, %v7712
  %v7714 = vand.u32 %v7108, 4294901760
  %v7715 = vsub.f32 %v7108, %v7714
  %v7716 = vand.u32 %v7715, 4294901760
  %v7717 = vsub.f32 %v7715, %v7716
  %v7718 = vand.u32 %v7717, 4294901760
  %7719 = vmatmul.f32.gmra.mxu0 %v7718
  %v7720 = vpop.f32.mrf.mxu0
  %v7721 = vadd.f32 %v7660, %v7720
  %v7722 = vand.u32 %v7111, 4294901760
  %v7723 = vsub.f32 %v7111, %v7722
  %v7724 = vand.u32 %v7723, 4294901760
  %v7725 = vsub.f32 %v7723, %v7724
  %v7726 = vand.u32 %v7725, 4294901760
  %7727 = vmatmul.f32.gmra.mxu0 %v7726
  %v7728 = vpop.f32.mrf.mxu0
  %v7729 = vadd.f32 %v7664, %v7728
  %v7730 = vand.u32 %v7114, 4294901760
  %v7731 = vsub.f32 %v7114, %v7730
  %v7732 = vand.u32 %v7731, 4294901760
  %v7733 = vsub.f32 %v7731, %v7732
  %v7734 = vand.u32 %v7733, 4294901760
  %7735 = vmatmul.f32.gmra.mxu0 %v7734
  %v7736 = vpop.f32.mrf.mxu0
  %v7737 = vadd.f32 %v7668, %v7736
  %v7738 = vand.u32 %v7117, 4294901760
  %v7739 = vsub.f32 %v7117, %v7738
  %v7740 = vand.u32 %v7739, 4294901760
  %v7741 = vsub.f32 %v7739, %v7740
  %v7742 = vand.u32 %v7741, 4294901760
  %7743 = vmatmul.f32.gmra.mxu0 %v7742
  %v7744 = vpop.f32.mrf.mxu0
  %v7745 = vadd.f32 %v7672, %v7744
  %v7746 = vand.u32 %v7120, 4294901760
  %v7747 = vsub.f32 %v7120, %v7746
  %v7748 = vand.u32 %v7747, 4294901760
  %v7749 = vsub.f32 %v7747, %v7748
  %v7750 = vand.u32 %v7749, 4294901760
  %7751 = vmatmul.f32.gmra.mxu0 %v7750
  %v7752 = vpop.f32.mrf.mxu0
  %v7753 = vadd.f32 %v7676, %v7752
  %v7754 = vand.u32 %v7123, 4294901760
  %v7755 = vsub.f32 %v7123, %v7754
  %v7756 = vand.u32 %v7755, 4294901760
  %v7757 = vsub.f32 %v7755, %v7756
  %v7758 = vand.u32 %v7757, 4294901760
  %7759 = vmatmul.f32.gmra.mxu0 %v7758
  %v7760 = vpop.f32.mrf.mxu0
  %v7761 = vadd.f32 %v7680, %v7760
  %v7762 = vand.u32 %v7126, 4294901760
  %v7763 = vsub.f32 %v7126, %v7762
  %v7764 = vand.u32 %v7763, 4294901760
  %v7765 = vsub.f32 %v7763, %v7764
  %v7766 = vand.u32 %v7765, 4294901760
  %7767 = vmatmul.f32.gmra.mxu0 %v7766
  %v7768 = vpop.f32.mrf.mxu0
  %v7769 = vadd.f32 %v7684, %v7768
  %7770 = vdwg.mxu0
  %7771 = vmatpush.msra.mxu0 0.0
  %7772 = vmatpush.msra.mxu0 0.0
  %7773 = vmatpush.msra.mxu0 0.0
  %7774 = vmatpush.msra.mxu0 0.0
  %7775 = vmatpush.msra.mxu0 0.0
  %7776 = vmatpush.msra.mxu0 0.0
  %7777 = vmatpush.msra.mxu0 0.0
  %7778 = vmatpush.msra.mxu0 0.0
  %7779 = vmatpush.msra.mxu0 0.0
  %7780 = vmatpush.msra.mxu0 0.0
  %7781 = vmatpush.msra.mxu0 0.0
  %7782 = vmatpush.msra.mxu0 0.0
  %v7783 = vand.u32 %v2505, 4294901760
  %v7784 = vsub.f32 %v2505, %v7783
  %v7785 = vand.u32 %v7784, 4294901760
  %v7786 = vsub.f32 %v7784, %v7785
  %v7787 = vand.u32 %v7786, 4294901760
  %7788 = vmatpush.msra.mxu0 %v7787
  %v7789 = vand.u32 %v2503, 4294901760
  %v7790 = vsub.f32 %v2503, %v7789
  %v7791 = vand.u32 %v7790, 4294901760
  %v7792 = vsub.f32 %v7790, %v7791
  %v7793 = vand.u32 %v7792, 4294901760
  %7794 = vmatpush.msra.mxu0 %v7793
  %v7795 = vand.u32 %v2501, 4294901760
  %v7796 = vsub.f32 %v2501, %v7795
  %v7797 = vand.u32 %v7796, 4294901760
  %v7798 = vsub.f32 %v7796, %v7797
  %v7799 = vand.u32 %v7798, 4294901760
  %7800 = vmatpush.msra.mxu0 %v7799
  %v7801 = vand.u32 %v2499, 4294901760
  %v7802 = vsub.f32 %v2499, %v7801
  %v7803 = vand.u32 %v7802, 4294901760
  %v7804 = vsub.f32 %v7802, %v7803
  %v7805 = vand.u32 %v7804, 4294901760
  %7806 = vmatpush.msra.mxu0 %v7805
  %v7807 = vand.u32 %v7105, 4294901760
  %7808 = vmatmul.f32.gmra.mxu0 %v7807
  %v7809 = vpop.f32.mrf.mxu0
  %v7810 = vadd.f32 %v7713, %v7809
  %v7811 = vand.u32 %v7108, 4294901760
  %7812 = vmatmul.f32.gmra.mxu0 %v7811
  %v7813 = vpop.f32.mrf.mxu0
  %v7814 = vadd.f32 %v7721, %v7813
  %v7815 = vand.u32 %v7111, 4294901760
  %7816 = vmatmul.f32.gmra.mxu0 %v7815
  %v7817 = vpop.f32.mrf.mxu0
  %v7818 = vadd.f32 %v7729, %v7817
  %v7819 = vand.u32 %v7114, 4294901760
  %7820 = vmatmul.f32.gmra.mxu0 %v7819
  %v7821 = vpop.f32.mrf.mxu0
  %v7822 = vadd.f32 %v7737, %v7821
  %v7823 = vand.u32 %v7117, 4294901760
  %7824 = vmatmul.f32.gmra.mxu0 %v7823
  %v7825 = vpop.f32.mrf.mxu0
  %v7826 = vadd.f32 %v7745, %v7825
  %v7827 = vand.u32 %v7120, 4294901760
  %7828 = vmatmul.f32.gmra.mxu0 %v7827
  %v7829 = vpop.f32.mrf.mxu0
  %v7830 = vadd.f32 %v7753, %v7829
  %v7831 = vand.u32 %v7123, 4294901760
  %7832 = vmatmul.f32.gmra.mxu0 %v7831
  %v7833 = vpop.f32.mrf.mxu0
  %v7834 = vadd.f32 %v7761, %v7833
  %v7835 = vand.u32 %v7126, 4294901760
  %7836 = vmatmul.f32.gmra.mxu0 %v7835
  %v7837 = vpop.f32.mrf.mxu0
  %v7838 = vadd.f32 %v7769, %v7837
  %7839 = vdwg.mxu0
  %7840 = vmatpush.msra.mxu0 0.0
  %7841 = vmatpush.msra.mxu0 0.0
  %7842 = vmatpush.msra.mxu0 0.0
  %7843 = vmatpush.msra.mxu0 0.0
  %7844 = vmatpush.msra.mxu0 0.0
  %7845 = vmatpush.msra.mxu0 0.0
  %7846 = vmatpush.msra.mxu0 0.0
  %7847 = vmatpush.msra.mxu0 0.0
  %7848 = vmatpush.msra.mxu0 0.0
  %7849 = vmatpush.msra.mxu0 0.0
  %7850 = vmatpush.msra.mxu0 0.0
  %7851 = vmatpush.msra.mxu0 0.0
  %v7852 = vand.u32 %v2505, 4294901760
  %v7853 = vsub.f32 %v2505, %v7852
  %7854 = vmatpush.msra.mxu0 %v7853
  %v7855 = vand.u32 %v2503, 4294901760
  %v7856 = vsub.f32 %v2503, %v7855
  %7857 = vmatpush.msra.mxu0 %v7856
  %v7858 = vand.u32 %v2501, 4294901760
  %v7859 = vsub.f32 %v2501, %v7858
  %7860 = vmatpush.msra.mxu0 %v7859
  %v7861 = vand.u32 %v2499, 4294901760
  %v7862 = vsub.f32 %v2499, %v7861
  %7863 = vmatpush.msra.mxu0 %v7862
  %v7864 = vand.u32 %v7105, 4294901760
  %v7865 = vsub.f32 %v7105, %v7864
  %7866 = vmatmul.f32.gmra.mxu0 %v7865
  %v7867 = vpop.f32.mrf.mxu0
  %v7868 = vadd.f32 %v7810, %v7867
  %v7869 = vand.u32 %v7108, 4294901760
  %v7870 = vsub.f32 %v7108, %v7869
  %7871 = vmatmul.f32.gmra.mxu0 %v7870
  %v7872 = vpop.f32.mrf.mxu0
  %v7873 = vadd.f32 %v7814, %v7872
  %v7874 = vand.u32 %v7111, 4294901760
  %v7875 = vsub.f32 %v7111, %v7874
  %7876 = vmatmul.f32.gmra.mxu0 %v7875
  %v7877 = vpop.f32.mrf.mxu0
  %v7878 = vadd.f32 %v7818, %v7877
  %v7879 = vand.u32 %v7114, 4294901760
  %v7880 = vsub.f32 %v7114, %v7879
  %7881 = vmatmul.f32.gmra.mxu0 %v7880
  %v7882 = vpop.f32.mrf.mxu0
  %v7883 = vadd.f32 %v7822, %v7882
  %v7884 = vand.u32 %v7117, 4294901760
  %v7885 = vsub.f32 %v7117, %v7884
  %7886 = vmatmul.f32.gmra.mxu0 %v7885
  %v7887 = vpop.f32.mrf.mxu0
  %v7888 = vadd.f32 %v7826, %v7887
  %v7889 = vand.u32 %v7120, 4294901760
  %v7890 = vsub.f32 %v7120, %v7889
  %7891 = vmatmul.f32.gmra.mxu0 %v7890
  %v7892 = vpop.f32.mrf.mxu0
  %v7893 = vadd.f32 %v7830, %v7892
  %v7894 = vand.u32 %v7123, 4294901760
  %v7895 = vsub.f32 %v7123, %v7894
  %7896 = vmatmul.f32.gmra.mxu0 %v7895
  %v7897 = vpop.f32.mrf.mxu0
  %v7898 = vadd.f32 %v7834, %v7897
  %v7899 = vand.u32 %v7126, 4294901760
  %v7900 = vsub.f32 %v7126, %v7899
  %7901 = vmatmul.f32.gmra.mxu0 %v7900
  %v7902 = vpop.f32.mrf.mxu0
  %v7903 = vadd.f32 %v7838, %v7902
  %7904 = vdwg.mxu0
  %7905 = vmatpush.msra.mxu0 0.0
  %7906 = vmatpush.msra.mxu0 0.0
  %7907 = vmatpush.msra.mxu0 0.0
  %7908 = vmatpush.msra.mxu0 0.0
  %7909 = vmatpush.msra.mxu0 0.0
  %7910 = vmatpush.msra.mxu0 0.0
  %7911 = vmatpush.msra.mxu0 0.0
  %7912 = vmatpush.msra.mxu0 0.0
  %7913 = vmatpush.msra.mxu0 0.0
  %7914 = vmatpush.msra.mxu0 0.0
  %7915 = vmatpush.msra.mxu0 0.0
  %7916 = vmatpush.msra.mxu0 0.0
  %v7917 = vand.u32 %v2505, 4294901760
  %7918 = vmatpush.msra.mxu0 %v7917
  %v7919 = vand.u32 %v2503, 4294901760
  %7920 = vmatpush.msra.mxu0 %v7919
  %v7921 = vand.u32 %v2501, 4294901760
  %7922 = vmatpush.msra.mxu0 %v7921
  %v7923 = vand.u32 %v2499, 4294901760
  %7924 = vmatpush.msra.mxu0 %v7923
  %v7925 = vand.u32 %v7105, 4294901760
  %v7926 = vsub.f32 %v7105, %v7925
  %v7927 = vand.u32 %v7926, 4294901760
  %7928 = vmatmul.f32.gmra.mxu0 %v7927
  %v7929 = vpop.f32.mrf.mxu0
  %v7930 = vadd.f32 %v7868, %v7929
  %v7931 = vand.u32 %v7108, 4294901760
  %v7932 = vsub.f32 %v7108, %v7931
  %v7933 = vand.u32 %v7932, 4294901760
  %7934 = vmatmul.f32.gmra.mxu0 %v7933
  %v7935 = vpop.f32.mrf.mxu0
  %v7936 = vadd.f32 %v7873, %v7935
  %v7937 = vand.u32 %v7111, 4294901760
  %v7938 = vsub.f32 %v7111, %v7937
  %v7939 = vand.u32 %v7938, 4294901760
  %7940 = vmatmul.f32.gmra.mxu0 %v7939
  %v7941 = vpop.f32.mrf.mxu0
  %v7942 = vadd.f32 %v7878, %v7941
  %v7943 = vand.u32 %v7114, 4294901760
  %v7944 = vsub.f32 %v7114, %v7943
  %v7945 = vand.u32 %v7944, 4294901760
  %7946 = vmatmul.f32.gmra.mxu0 %v7945
  %v7947 = vpop.f32.mrf.mxu0
  %v7948 = vadd.f32 %v7883, %v7947
  %v7949 = vand.u32 %v7117, 4294901760
  %v7950 = vsub.f32 %v7117, %v7949
  %v7951 = vand.u32 %v7950, 4294901760
  %7952 = vmatmul.f32.gmra.mxu0 %v7951
  %v7953 = vpop.f32.mrf.mxu0
  %v7954 = vadd.f32 %v7888, %v7953
  %v7955 = vand.u32 %v7120, 4294901760
  %v7956 = vsub.f32 %v7120, %v7955
  %v7957 = vand.u32 %v7956, 4294901760
  %7958 = vmatmul.f32.gmra.mxu0 %v7957
  %v7959 = vpop.f32.mrf.mxu0
  %v7960 = vadd.f32 %v7893, %v7959
  %v7961 = vand.u32 %v7123, 4294901760
  %v7962 = vsub.f32 %v7123, %v7961
  %v7963 = vand.u32 %v7962, 4294901760
  %7964 = vmatmul.f32.gmra.mxu0 %v7963
  %v7965 = vpop.f32.mrf.mxu0
  %v7966 = vadd.f32 %v7898, %v7965
  %v7967 = vand.u32 %v7126, 4294901760
  %v7968 = vsub.f32 %v7126, %v7967
  %v7969 = vand.u32 %v7968, 4294901760
  %7970 = vmatmul.f32.gmra.mxu0 %v7969
  %v7971 = vpop.f32.mrf.mxu0
  %v7972 = vadd.f32 %v7903, %v7971
  %7973 = vdwg.mxu0
  %7974 = vmatpush.msra.mxu0 0.0
  %7975 = vmatpush.msra.mxu0 0.0
  %7976 = vmatpush.msra.mxu0 0.0
  %7977 = vmatpush.msra.mxu0 0.0
  %7978 = vmatpush.msra.mxu0 0.0
  %7979 = vmatpush.msra.mxu0 0.0
  %7980 = vmatpush.msra.mxu0 0.0
  %7981 = vmatpush.msra.mxu0 0.0
  %7982 = vmatpush.msra.mxu0 0.0
  %7983 = vmatpush.msra.mxu0 0.0
  %7984 = vmatpush.msra.mxu0 0.0
  %7985 = vmatpush.msra.mxu0 0.0
  %v7986 = vand.u32 %v2505, 4294901760
  %v7987 = vsub.f32 %v2505, %v7986
  %v7988 = vand.u32 %v7987, 4294901760
  %7989 = vmatpush.msra.mxu0 %v7988
  %v7990 = vand.u32 %v2503, 4294901760
  %v7991 = vsub.f32 %v2503, %v7990
  %v7992 = vand.u32 %v7991, 4294901760
  %7993 = vmatpush.msra.mxu0 %v7992
  %v7994 = vand.u32 %v2501, 4294901760
  %v7995 = vsub.f32 %v2501, %v7994
  %v7996 = vand.u32 %v7995, 4294901760
  %7997 = vmatpush.msra.mxu0 %v7996
  %v7998 = vand.u32 %v2499, 4294901760
  %v7999 = vsub.f32 %v2499, %v7998
  %v8000 = vand.u32 %v7999, 4294901760
  %8001 = vmatpush.msra.mxu0 %v8000
  %v8002 = vand.u32 %v7105, 4294901760
  %8003 = vmatmul.f32.gmra.mxu0 %v8002
  %v8004 = vpop.f32.mrf.mxu0
  %v8005 = vadd.f32 %v7930, %v8004
  %v8006 = vand.u32 %v7108, 4294901760
  %8007 = vmatmul.f32.gmra.mxu0 %v8006
  %v8008 = vpop.f32.mrf.mxu0
  %v8009 = vadd.f32 %v7936, %v8008
  %v8010 = vand.u32 %v7111, 4294901760
  %8011 = vmatmul.f32.gmra.mxu0 %v8010
  %v8012 = vpop.f32.mrf.mxu0
  %v8013 = vadd.f32 %v7942, %v8012
  %v8014 = vand.u32 %v7114, 4294901760
  %8015 = vmatmul.f32.gmra.mxu0 %v8014
  %v8016 = vpop.f32.mrf.mxu0
  %v8017 = vadd.f32 %v7948, %v8016
  %v8018 = vand.u32 %v7117, 4294901760
  %8019 = vmatmul.f32.gmra.mxu0 %v8018
  %v8020 = vpop.f32.mrf.mxu0
  %v8021 = vadd.f32 %v7954, %v8020
  %v8022 = vand.u32 %v7120, 4294901760
  %8023 = vmatmul.f32.gmra.mxu0 %v8022
  %v8024 = vpop.f32.mrf.mxu0
  %v8025 = vadd.f32 %v7960, %v8024
  %v8026 = vand.u32 %v7123, 4294901760
  %8027 = vmatmul.f32.gmra.mxu0 %v8026
  %v8028 = vpop.f32.mrf.mxu0
  %v8029 = vadd.f32 %v7966, %v8028
  %v8030 = vand.u32 %v7126, 4294901760
  %8031 = vmatmul.f32.gmra.mxu0 %v8030
  %v8032 = vpop.f32.mrf.mxu0
  %v8033 = vadd.f32 %v7972, %v8032
  %8034 = vdwg.mxu0
  %8035 = vmatpush.msra.mxu0 0.0
  %8036 = vmatpush.msra.mxu0 0.0
  %8037 = vmatpush.msra.mxu0 0.0
  %8038 = vmatpush.msra.mxu0 0.0
  %8039 = vmatpush.msra.mxu0 0.0
  %8040 = vmatpush.msra.mxu0 0.0
  %8041 = vmatpush.msra.mxu0 0.0
  %8042 = vmatpush.msra.mxu0 0.0
  %8043 = vmatpush.msra.mxu0 0.0
  %8044 = vmatpush.msra.mxu0 0.0
  %8045 = vmatpush.msra.mxu0 0.0
  %8046 = vmatpush.msra.mxu0 0.0
  %v8047 = vand.u32 %v2505, 4294901760
  %8048 = vmatpush.msra.mxu0 %v8047
  %v8049 = vand.u32 %v2503, 4294901760
  %8050 = vmatpush.msra.mxu0 %v8049
  %v8051 = vand.u32 %v2501, 4294901760
  %8052 = vmatpush.msra.mxu0 %v8051
  %v8053 = vand.u32 %v2499, 4294901760
  %8054 = vmatpush.msra.mxu0 %v8053
  %v8055 = vand.u32 %v7105, 4294901760
  %8056 = vmatmul.f32.gmra.mxu0 %v8055
  %v8057 = vpop.f32.mrf.mxu0
  %v8058 = vadd.f32 %v8005, %v8057
  %v8059 = vand.u32 %v7108, 4294901760
  %8060 = vmatmul.f32.gmra.mxu0 %v8059
  %v8061 = vpop.f32.mrf.mxu0
  %v8062 = vadd.f32 %v8009, %v8061
  %v8063 = vand.u32 %v7111, 4294901760
  %8064 = vmatmul.f32.gmra.mxu0 %v8063
  %v8065 = vpop.f32.mrf.mxu0
  %v8066 = vadd.f32 %v8013, %v8065
  %v8067 = vand.u32 %v7114, 4294901760
  %8068 = vmatmul.f32.gmra.mxu0 %v8067
  %v8069 = vpop.f32.mrf.mxu0
  %v8070 = vadd.f32 %v8017, %v8069
  %v8071 = vand.u32 %v7117, 4294901760
  %8072 = vmatmul.f32.gmra.mxu0 %v8071
  %v8073 = vpop.f32.mrf.mxu0
  %v8074 = vadd.f32 %v8021, %v8073
  %v8075 = vand.u32 %v7120, 4294901760
  %8076 = vmatmul.f32.gmra.mxu0 %v8075
  %v8077 = vpop.f32.mrf.mxu0
  %v8078 = vadd.f32 %v8025, %v8077
  %v8079 = vand.u32 %v7123, 4294901760
  %8080 = vmatmul.f32.gmra.mxu0 %v8079
  %v8081 = vpop.f32.mrf.mxu0
  %v8082 = vadd.f32 %v8029, %v8081
  %v8083 = vand.u32 %v7126, 4294901760
  %8084 = vmatmul.f32.gmra.mxu0 %v8083
  %v8085 = vpop.f32.mrf.mxu0
  %v8086 = vadd.f32 %v8033, %v8085
  %8087 = vdwg.mxu0
  %v8088 = vand.u32 %v2498, 4294901760
  %8089 = vmatpush.msra.mxu0 %v8088
  %v8090 = vand.u32 %v2496, 4294901760
  %8091 = vmatpush.msra.mxu0 %v8090
  %v8092 = vand.u32 %v2494, 4294901760
  %8093 = vmatpush.msra.mxu0 %v8092
  %v8094 = vand.u32 %v2492, 4294901760
  %8095 = vmatpush.msra.mxu0 %v8094
  %v8096 = vand.u32 %v2490, 4294901760
  %8097 = vmatpush.msra.mxu0 %v8096
  %v8098 = vand.u32 %v2488, 4294901760
  %8099 = vmatpush.msra.mxu0 %v8098
  %v8100 = vand.u32 %v2486, 4294901760
  %8101 = vmatpush.msra.mxu0 %v8100
  %v8102 = vand.u32 %v2484, 4294901760
  %8103 = vmatpush.msra.mxu0 %v8102
  %v8104 = vand.u32 %v2482, 4294901760
  %8105 = vmatpush.msra.mxu0 %v8104
  %v8106 = vand.u32 %v2480, 4294901760
  %8107 = vmatpush.msra.mxu0 %v8106
  %v8108 = vand.u32 %v2478, 4294901760
  %8109 = vmatpush.msra.mxu0 %v8108
  %v8110 = vand.u32 %v2476, 4294901760
  %8111 = vmatpush.msra.mxu0 %v8110
  %v8112 = vand.u32 %v2474, 4294901760
  %8113 = vmatpush.msra.mxu0 %v8112
  %v8114 = vand.u32 %v2472, 4294901760
  %8115 = vmatpush.msra.mxu0 %v8114
  %v8116 = vand.u32 %v2470, 4294901760
  %8117 = vmatpush.msra.mxu0 %v8116
  %v8118 = vand.u32 %v2468, 4294901760
  %8119 = vmatpush.msra.mxu0 %v8118
  %v8120 = vand.u32 %v7088, 4294901760
  %v8121 = vsub.f32 %v7088, %v8120
  %v8122 = vand.u32 %v8121, 4294901760
  %v8123 = vsub.f32 %v8121, %v8122
  %v8124 = vand.u32 %v8123, 4294901760
  %8125 = vmatmul.f32.gmra.mxu0 %v8124
  %v8126 = vpop.f32.mrf.mxu0
  %v8127 = vadd.f32 0.0, %v8126
  %v8128 = vand.u32 %v7090, 4294901760
  %v8129 = vsub.f32 %v7090, %v8128
  %v8130 = vand.u32 %v8129, 4294901760
  %v8131 = vsub.f32 %v8129, %v8130
  %v8132 = vand.u32 %v8131, 4294901760
  %8133 = vmatmul.f32.gmra.mxu0 %v8132
  %v8134 = vpop.f32.mrf.mxu0
  %v8135 = vadd.f32 0.0, %v8134
  %v8136 = vand.u32 %v7092, 4294901760
  %v8137 = vsub.f32 %v7092, %v8136
  %v8138 = vand.u32 %v8137, 4294901760
  %v8139 = vsub.f32 %v8137, %v8138
  %v8140 = vand.u32 %v8139, 4294901760
  %8141 = vmatmul.f32.gmra.mxu0 %v8140
  %v8142 = vpop.f32.mrf.mxu0
  %v8143 = vadd.f32 0.0, %v8142
  %v8144 = vand.u32 %v7094, 4294901760
  %v8145 = vsub.f32 %v7094, %v8144
  %v8146 = vand.u32 %v8145, 4294901760
  %v8147 = vsub.f32 %v8145, %v8146
  %v8148 = vand.u32 %v8147, 4294901760
  %8149 = vmatmul.f32.gmra.mxu0 %v8148
  %v8150 = vpop.f32.mrf.mxu0
  %v8151 = vadd.f32 0.0, %v8150
  %v8152 = vand.u32 %v7096, 4294901760
  %v8153 = vsub.f32 %v7096, %v8152
  %v8154 = vand.u32 %v8153, 4294901760
  %v8155 = vsub.f32 %v8153, %v8154
  %v8156 = vand.u32 %v8155, 4294901760
  %8157 = vmatmul.f32.gmra.mxu0 %v8156
  %v8158 = vpop.f32.mrf.mxu0
  %v8159 = vadd.f32 0.0, %v8158
  %v8160 = vand.u32 %v7098, 4294901760
  %v8161 = vsub.f32 %v7098, %v8160
  %v8162 = vand.u32 %v8161, 4294901760
  %v8163 = vsub.f32 %v8161, %v8162
  %v8164 = vand.u32 %v8163, 4294901760
  %8165 = vmatmul.f32.gmra.mxu0 %v8164
  %v8166 = vpop.f32.mrf.mxu0
  %v8167 = vadd.f32 0.0, %v8166
  %v8168 = vand.u32 %v7100, 4294901760
  %v8169 = vsub.f32 %v7100, %v8168
  %v8170 = vand.u32 %v8169, 4294901760
  %v8171 = vsub.f32 %v8169, %v8170
  %v8172 = vand.u32 %v8171, 4294901760
  %8173 = vmatmul.f32.gmra.mxu0 %v8172
  %v8174 = vpop.f32.mrf.mxu0
  %v8175 = vadd.f32 0.0, %v8174
  %v8176 = vand.u32 %v7102, 4294901760
  %v8177 = vsub.f32 %v7102, %v8176
  %v8178 = vand.u32 %v8177, 4294901760
  %v8179 = vsub.f32 %v8177, %v8178
  %v8180 = vand.u32 %v8179, 4294901760
  %8181 = vmatmul.f32.gmra.mxu0 %v8180
  %v8182 = vpop.f32.mrf.mxu0
  %v8183 = vadd.f32 0.0, %v8182
  %8184 = vdwg.mxu0
  %v8185 = vand.u32 %v2498, 4294901760
  %v8186 = vsub.f32 %v2498, %v8185
  %v8187 = vand.u32 %v8186, 4294901760
  %v8188 = vsub.f32 %v8186, %v8187
  %v8189 = vand.u32 %v8188, 4294901760
  %8190 = vmatpush.msra.mxu0 %v8189
  %v8191 = vand.u32 %v2496, 4294901760
  %v8192 = vsub.f32 %v2496, %v8191
  %v8193 = vand.u32 %v8192, 4294901760
  %v8194 = vsub.f32 %v8192, %v8193
  %v8195 = vand.u32 %v8194, 4294901760
  %8196 = vmatpush.msra.mxu0 %v8195
  %v8197 = vand.u32 %v2494, 4294901760
  %v8198 = vsub.f32 %v2494, %v8197
  %v8199 = vand.u32 %v8198, 4294901760
  %v8200 = vsub.f32 %v8198, %v8199
  %v8201 = vand.u32 %v8200, 4294901760
  %8202 = vmatpush.msra.mxu0 %v8201
  %v8203 = vand.u32 %v2492, 4294901760
  %v8204 = vsub.f32 %v2492, %v8203
  %v8205 = vand.u32 %v8204, 4294901760
  %v8206 = vsub.f32 %v8204, %v8205
  %v8207 = vand.u32 %v8206, 4294901760
  %8208 = vmatpush.msra.mxu0 %v8207
  %v8209 = vand.u32 %v2490, 4294901760
  %v8210 = vsub.f32 %v2490, %v8209
  %v8211 = vand.u32 %v8210, 4294901760
  %v8212 = vsub.f32 %v8210, %v8211
  %v8213 = vand.u32 %v8212, 4294901760
  %8214 = vmatpush.msra.mxu0 %v8213
  %v8215 = vand.u32 %v2488, 4294901760
  %v8216 = vsub.f32 %v2488, %v8215
  %v8217 = vand.u32 %v8216, 4294901760
  %v8218 = vsub.f32 %v8216, %v8217
  %v8219 = vand.u32 %v8218, 4294901760
  %8220 = vmatpush.msra.mxu0 %v8219
  %v8221 = vand.u32 %v2486, 4294901760
  %v8222 = vsub.f32 %v2486, %v8221
  %v8223 = vand.u32 %v8222, 4294901760
  %v8224 = vsub.f32 %v8222, %v8223
  %v8225 = vand.u32 %v8224, 4294901760
  %8226 = vmatpush.msra.mxu0 %v8225
  %v8227 = vand.u32 %v2484, 4294901760
  %v8228 = vsub.f32 %v2484, %v8227
  %v8229 = vand.u32 %v8228, 4294901760
  %v8230 = vsub.f32 %v8228, %v8229
  %v8231 = vand.u32 %v8230, 4294901760
  %8232 = vmatpush.msra.mxu0 %v8231
  %v8233 = vand.u32 %v2482, 4294901760
  %v8234 = vsub.f32 %v2482, %v8233
  %v8235 = vand.u32 %v8234, 4294901760
  %v8236 = vsub.f32 %v8234, %v8235
  %v8237 = vand.u32 %v8236, 4294901760
  %8238 = vmatpush.msra.mxu0 %v8237
  %v8239 = vand.u32 %v2480, 4294901760
  %v8240 = vsub.f32 %v2480, %v8239
  %v8241 = vand.u32 %v8240, 4294901760
  %v8242 = vsub.f32 %v8240, %v8241
  %v8243 = vand.u32 %v8242, 4294901760
  %8244 = vmatpush.msra.mxu0 %v8243
  %v8245 = vand.u32 %v2478, 4294901760
  %v8246 = vsub.f32 %v2478, %v8245
  %v8247 = vand.u32 %v8246, 4294901760
  %v8248 = vsub.f32 %v8246, %v8247
  %v8249 = vand.u32 %v8248, 4294901760
  %8250 = vmatpush.msra.mxu0 %v8249
  %v8251 = vand.u32 %v2476, 4294901760
  %v8252 = vsub.f32 %v2476, %v8251
  %v8253 = vand.u32 %v8252, 4294901760
  %v8254 = vsub.f32 %v8252, %v8253
  %v8255 = vand.u32 %v8254, 4294901760
  %8256 = vmatpush.msra.mxu0 %v8255
  %v8257 = vand.u32 %v2474, 4294901760
  %v8258 = vsub.f32 %v2474, %v8257
  %v8259 = vand.u32 %v8258, 4294901760
  %v8260 = vsub.f32 %v8258, %v8259
  %v8261 = vand.u32 %v8260, 4294901760
  %8262 = vmatpush.msra.mxu0 %v8261
  %v8263 = vand.u32 %v2472, 4294901760
  %v8264 = vsub.f32 %v2472, %v8263
  %v8265 = vand.u32 %v8264, 4294901760
  %v8266 = vsub.f32 %v8264, %v8265
  %v8267 = vand.u32 %v8266, 4294901760
  %8268 = vmatpush.msra.mxu0 %v8267
  %v8269 = vand.u32 %v2470, 4294901760
  %v8270 = vsub.f32 %v2470, %v8269
  %v8271 = vand.u32 %v8270, 4294901760
  %v8272 = vsub.f32 %v8270, %v8271
  %v8273 = vand.u32 %v8272, 4294901760
  %8274 = vmatpush.msra.mxu0 %v8273
  %v8275 = vand.u32 %v2468, 4294901760
  %v8276 = vsub.f32 %v2468, %v8275
  %v8277 = vand.u32 %v8276, 4294901760
  %v8278 = vsub.f32 %v8276, %v8277
  %v8279 = vand.u32 %v8278, 4294901760
  %8280 = vmatpush.msra.mxu0 %v8279
  %v8281 = vand.u32 %v7088, 4294901760
  %8282 = vmatmul.f32.gmra.mxu0 %v8281
  %v8283 = vpop.f32.mrf.mxu0
  %v8284 = vadd.f32 %v8127, %v8283
  %v8285 = vand.u32 %v7090, 4294901760
  %8286 = vmatmul.f32.gmra.mxu0 %v8285
  %v8287 = vpop.f32.mrf.mxu0
  %v8288 = vadd.f32 %v8135, %v8287
  %v8289 = vand.u32 %v7092, 4294901760
  %8290 = vmatmul.f32.gmra.mxu0 %v8289
  %v8291 = vpop.f32.mrf.mxu0
  %v8292 = vadd.f32 %v8143, %v8291
  %v8293 = vand.u32 %v7094, 4294901760
  %8294 = vmatmul.f32.gmra.mxu0 %v8293
  %v8295 = vpop.f32.mrf.mxu0
  %v8296 = vadd.f32 %v8151, %v8295
  %v8297 = vand.u32 %v7096, 4294901760
  %8298 = vmatmul.f32.gmra.mxu0 %v8297
  %v8299 = vpop.f32.mrf.mxu0
  %v8300 = vadd.f32 %v8159, %v8299
  %v8301 = vand.u32 %v7098, 4294901760
  %8302 = vmatmul.f32.gmra.mxu0 %v8301
  %v8303 = vpop.f32.mrf.mxu0
  %v8304 = vadd.f32 %v8167, %v8303
  %v8305 = vand.u32 %v7100, 4294901760
  %8306 = vmatmul.f32.gmra.mxu0 %v8305
  %v8307 = vpop.f32.mrf.mxu0
  %v8308 = vadd.f32 %v8175, %v8307
  %v8309 = vand.u32 %v7102, 4294901760
  %8310 = vmatmul.f32.gmra.mxu0 %v8309
  %v8311 = vpop.f32.mrf.mxu0
  %v8312 = vadd.f32 %v8183, %v8311
  %8313 = vdwg.mxu0
  %v8314 = vand.u32 %v2498, 4294901760
  %v8315 = vsub.f32 %v2498, %v8314
  %8316 = vmatpush.msra.mxu0 %v8315
  %v8317 = vand.u32 %v2496, 4294901760
  %v8318 = vsub.f32 %v2496, %v8317
  %8319 = vmatpush.msra.mxu0 %v8318
  %v8320 = vand.u32 %v2494, 4294901760
  %v8321 = vsub.f32 %v2494, %v8320
  %8322 = vmatpush.msra.mxu0 %v8321
  %v8323 = vand.u32 %v2492, 4294901760
  %v8324 = vsub.f32 %v2492, %v8323
  %8325 = vmatpush.msra.mxu0 %v8324
  %v8326 = vand.u32 %v2490, 4294901760
  %v8327 = vsub.f32 %v2490, %v8326
  %8328 = vmatpush.msra.mxu0 %v8327
  %v8329 = vand.u32 %v2488, 4294901760
  %v8330 = vsub.f32 %v2488, %v8329
  %8331 = vmatpush.msra.mxu0 %v8330
  %v8332 = vand.u32 %v2486, 4294901760
  %v8333 = vsub.f32 %v2486, %v8332
  %8334 = vmatpush.msra.mxu0 %v8333
  %v8335 = vand.u32 %v2484, 4294901760
  %v8336 = vsub.f32 %v2484, %v8335
  %8337 = vmatpush.msra.mxu0 %v8336
  %v8338 = vand.u32 %v2482, 4294901760
  %v8339 = vsub.f32 %v2482, %v8338
  %8340 = vmatpush.msra.mxu0 %v8339
  %v8341 = vand.u32 %v2480, 4294901760
  %v8342 = vsub.f32 %v2480, %v8341
  %8343 = vmatpush.msra.mxu0 %v8342
  %v8344 = vand.u32 %v2478, 4294901760
  %v8345 = vsub.f32 %v2478, %v8344
  %8346 = vmatpush.msra.mxu0 %v8345
  %v8347 = vand.u32 %v2476, 4294901760
  %v8348 = vsub.f32 %v2476, %v8347
  %8349 = vmatpush.msra.mxu0 %v8348
  %v8350 = vand.u32 %v2474, 4294901760
  %v8351 = vsub.f32 %v2474, %v8350
  %8352 = vmatpush.msra.mxu0 %v8351
  %v8353 = vand.u32 %v2472, 4294901760
  %v8354 = vsub.f32 %v2472, %v8353
  %8355 = vmatpush.msra.mxu0 %v8354
  %v8356 = vand.u32 %v2470, 4294901760
  %v8357 = vsub.f32 %v2470, %v8356
  %8358 = vmatpush.msra.mxu0 %v8357
  %v8359 = vand.u32 %v2468, 4294901760
  %v8360 = vsub.f32 %v2468, %v8359
  %8361 = vmatpush.msra.mxu0 %v8360
  %v8362 = vand.u32 %v7088, 4294901760
  %v8363 = vsub.f32 %v7088, %v8362
  %8364 = vmatmul.f32.gmra.mxu0 %v8363
  %v8365 = vpop.f32.mrf.mxu0
  %v8366 = vadd.f32 %v8284, %v8365
  %v8367 = vand.u32 %v7090, 4294901760
  %v8368 = vsub.f32 %v7090, %v8367
  %8369 = vmatmul.f32.gmra.mxu0 %v8368
  %v8370 = vpop.f32.mrf.mxu0
  %v8371 = vadd.f32 %v8288, %v8370
  %v8372 = vand.u32 %v7092, 4294901760
  %v8373 = vsub.f32 %v7092, %v8372
  %8374 = vmatmul.f32.gmra.mxu0 %v8373
  %v8375 = vpop.f32.mrf.mxu0
  %v8376 = vadd.f32 %v8292, %v8375
  %v8377 = vand.u32 %v7094, 4294901760
  %v8378 = vsub.f32 %v7094, %v8377
  %8379 = vmatmul.f32.gmra.mxu0 %v8378
  %v8380 = vpop.f32.mrf.mxu0
  %v8381 = vadd.f32 %v8296, %v8380
  %v8382 = vand.u32 %v7096, 4294901760
  %v8383 = vsub.f32 %v7096, %v8382
  %8384 = vmatmul.f32.gmra.mxu0 %v8383
  %v8385 = vpop.f32.mrf.mxu0
  %v8386 = vadd.f32 %v8300, %v8385
  %v8387 = vand.u32 %v7098, 4294901760
  %v8388 = vsub.f32 %v7098, %v8387
  %8389 = vmatmul.f32.gmra.mxu0 %v8388
  %v8390 = vpop.f32.mrf.mxu0
  %v8391 = vadd.f32 %v8304, %v8390
  %v8392 = vand.u32 %v7100, 4294901760
  %v8393 = vsub.f32 %v7100, %v8392
  %8394 = vmatmul.f32.gmra.mxu0 %v8393
  %v8395 = vpop.f32.mrf.mxu0
  %v8396 = vadd.f32 %v8308, %v8395
  %v8397 = vand.u32 %v7102, 4294901760
  %v8398 = vsub.f32 %v7102, %v8397
  %8399 = vmatmul.f32.gmra.mxu0 %v8398
  %v8400 = vpop.f32.mrf.mxu0
  %v8401 = vadd.f32 %v8312, %v8400
  %8402 = vdwg.mxu0
  %v8403 = vand.u32 %v2498, 4294901760
  %8404 = vmatpush.msra.mxu0 %v8403
  %v8405 = vand.u32 %v2496, 4294901760
  %8406 = vmatpush.msra.mxu0 %v8405
  %v8407 = vand.u32 %v2494, 4294901760
  %8408 = vmatpush.msra.mxu0 %v8407
  %v8409 = vand.u32 %v2492, 4294901760
  %8410 = vmatpush.msra.mxu0 %v8409
  %v8411 = vand.u32 %v2490, 4294901760
  %8412 = vmatpush.msra.mxu0 %v8411
  %v8413 = vand.u32 %v2488, 4294901760
  %8414 = vmatpush.msra.mxu0 %v8413
  %v8415 = vand.u32 %v2486, 4294901760
  %8416 = vmatpush.msra.mxu0 %v8415
  %v8417 = vand.u32 %v2484, 4294901760
  %8418 = vmatpush.msra.mxu0 %v8417
  %v8419 = vand.u32 %v2482, 4294901760
  %8420 = vmatpush.msra.mxu0 %v8419
  %v8421 = vand.u32 %v2480, 4294901760
  %8422 = vmatpush.msra.mxu0 %v8421
  %v8423 = vand.u32 %v2478, 4294901760
  %8424 = vmatpush.msra.mxu0 %v8423
  %v8425 = vand.u32 %v2476, 4294901760
  %8426 = vmatpush.msra.mxu0 %v8425
  %v8427 = vand.u32 %v2474, 4294901760
  %8428 = vmatpush.msra.mxu0 %v8427
  %v8429 = vand.u32 %v2472, 4294901760
  %8430 = vmatpush.msra.mxu0 %v8429
  %v8431 = vand.u32 %v2470, 4294901760
  %8432 = vmatpush.msra.mxu0 %v8431
  %v8433 = vand.u32 %v2468, 4294901760
  %8434 = vmatpush.msra.mxu0 %v8433
  %v8435 = vand.u32 %v7088, 4294901760
  %v8436 = vsub.f32 %v7088, %v8435
  %v8437 = vand.u32 %v8436, 4294901760
  %8438 = vmatmul.f32.gmra.mxu0 %v8437
  %v8439 = vpop.f32.mrf.mxu0
  %v8440 = vadd.f32 %v8366, %v8439
  %v8441 = vand.u32 %v7090, 4294901760
  %v8442 = vsub.f32 %v7090, %v8441
  %v8443 = vand.u32 %v8442, 4294901760
  %8444 = vmatmul.f32.gmra.mxu0 %v8443
  %v8445 = vpop.f32.mrf.mxu0
  %v8446 = vadd.f32 %v8371, %v8445
  %v8447 = vand.u32 %v7092, 4294901760
  %v8448 = vsub.f32 %v7092, %v8447
  %v8449 = vand.u32 %v8448, 4294901760
  %8450 = vmatmul.f32.gmra.mxu0 %v8449
  %v8451 = vpop.f32.mrf.mxu0
  %v8452 = vadd.f32 %v8376, %v8451
  %v8453 = vand.u32 %v7094, 4294901760
  %v8454 = vsub.f32 %v7094, %v8453
  %v8455 = vand.u32 %v8454, 4294901760
  %8456 = vmatmul.f32.gmra.mxu0 %v8455
  %v8457 = vpop.f32.mrf.mxu0
  %v8458 = vadd.f32 %v8381, %v8457
  %v8459 = vand.u32 %v7096, 4294901760
  %v8460 = vsub.f32 %v7096, %v8459
  %v8461 = vand.u32 %v8460, 4294901760
  %8462 = vmatmul.f32.gmra.mxu0 %v8461
  %v8463 = vpop.f32.mrf.mxu0
  %v8464 = vadd.f32 %v8386, %v8463
  %v8465 = vand.u32 %v7098, 4294901760
  %v8466 = vsub.f32 %v7098, %v8465
  %v8467 = vand.u32 %v8466, 4294901760
  %8468 = vmatmul.f32.gmra.mxu0 %v8467
  %v8469 = vpop.f32.mrf.mxu0
  %v8470 = vadd.f32 %v8391, %v8469
  %v8471 = vand.u32 %v7100, 4294901760
  %v8472 = vsub.f32 %v7100, %v8471
  %v8473 = vand.u32 %v8472, 4294901760
  %8474 = vmatmul.f32.gmra.mxu0 %v8473
  %v8475 = vpop.f32.mrf.mxu0
  %v8476 = vadd.f32 %v8396, %v8475
  %v8477 = vand.u32 %v7102, 4294901760
  %v8478 = vsub.f32 %v7102, %v8477
  %v8479 = vand.u32 %v8478, 4294901760
  %8480 = vmatmul.f32.gmra.mxu0 %v8479
  %v8481 = vpop.f32.mrf.mxu0
  %v8482 = vadd.f32 %v8401, %v8481
  %8483 = vdwg.mxu0
  %v8484 = vand.u32 %v2498, 4294901760
  %v8485 = vsub.f32 %v2498, %v8484
  %v8486 = vand.u32 %v8485, 4294901760
  %8487 = vmatpush.msra.mxu0 %v8486
  %v8488 = vand.u32 %v2496, 4294901760
  %v8489 = vsub.f32 %v2496, %v8488
  %v8490 = vand.u32 %v8489, 4294901760
  %8491 = vmatpush.msra.mxu0 %v8490
  %v8492 = vand.u32 %v2494, 4294901760
  %v8493 = vsub.f32 %v2494, %v8492
  %v8494 = vand.u32 %v8493, 4294901760
  %8495 = vmatpush.msra.mxu0 %v8494
  %v8496 = vand.u32 %v2492, 4294901760
  %v8497 = vsub.f32 %v2492, %v8496
  %v8498 = vand.u32 %v8497, 4294901760
  %8499 = vmatpush.msra.mxu0 %v8498
  %v8500 = vand.u32 %v2490, 4294901760
  %v8501 = vsub.f32 %v2490, %v8500
  %v8502 = vand.u32 %v8501, 4294901760
  %8503 = vmatpush.msra.mxu0 %v8502
  %v8504 = vand.u32 %v2488, 4294901760
  %v8505 = vsub.f32 %v2488, %v8504
  %v8506 = vand.u32 %v8505, 4294901760
  %8507 = vmatpush.msra.mxu0 %v8506
  %v8508 = vand.u32 %v2486, 4294901760
  %v8509 = vsub.f32 %v2486, %v8508
  %v8510 = vand.u32 %v8509, 4294901760
  %8511 = vmatpush.msra.mxu0 %v8510
  %v8512 = vand.u32 %v2484, 4294901760
  %v8513 = vsub.f32 %v2484, %v8512
  %v8514 = vand.u32 %v8513, 4294901760
  %8515 = vmatpush.msra.mxu0 %v8514
  %v8516 = vand.u32 %v2482, 4294901760
  %v8517 = vsub.f32 %v2482, %v8516
  %v8518 = vand.u32 %v8517, 4294901760
  %8519 = vmatpush.msra.mxu0 %v8518
  %v8520 = vand.u32 %v2480, 4294901760
  %v8521 = vsub.f32 %v2480, %v8520
  %v8522 = vand.u32 %v8521, 4294901760
  %8523 = vmatpush.msra.mxu0 %v8522
  %v8524 = vand.u32 %v2478, 4294901760
  %v8525 = vsub.f32 %v2478, %v8524
  %v8526 = vand.u32 %v8525, 4294901760
  %8527 = vmatpush.msra.mxu0 %v8526
  %v8528 = vand.u32 %v2476, 4294901760
  %v8529 = vsub.f32 %v2476, %v8528
  %v8530 = vand.u32 %v8529, 4294901760
  %8531 = vmatpush.msra.mxu0 %v8530
  %v8532 = vand.u32 %v2474, 4294901760
  %v8533 = vsub.f32 %v2474, %v8532
  %v8534 = vand.u32 %v8533, 4294901760
  %8535 = vmatpush.msra.mxu0 %v8534
  %v8536 = vand.u32 %v2472, 4294901760
  %v8537 = vsub.f32 %v2472, %v8536
  %v8538 = vand.u32 %v8537, 4294901760
  %8539 = vmatpush.msra.mxu0 %v8538
  %v8540 = vand.u32 %v2470, 4294901760
  %v8541 = vsub.f32 %v2470, %v8540
  %v8542 = vand.u32 %v8541, 4294901760
  %8543 = vmatpush.msra.mxu0 %v8542
  %v8544 = vand.u32 %v2468, 4294901760
  %v8545 = vsub.f32 %v2468, %v8544
  %v8546 = vand.u32 %v8545, 4294901760
  %8547 = vmatpush.msra.mxu0 %v8546
  %v8548 = vand.u32 %v7088, 4294901760
  %8549 = vmatmul.f32.gmra.mxu0 %v8548
  %v8550 = vpop.f32.mrf.mxu0
  %v8551 = vadd.f32 %v8440, %v8550
  %v8552 = vand.u32 %v7090, 4294901760
  %8553 = vmatmul.f32.gmra.mxu0 %v8552
  %v8554 = vpop.f32.mrf.mxu0
  %v8555 = vadd.f32 %v8446, %v8554
  %v8556 = vand.u32 %v7092, 4294901760
  %8557 = vmatmul.f32.gmra.mxu0 %v8556
  %v8558 = vpop.f32.mrf.mxu0
  %v8559 = vadd.f32 %v8452, %v8558
  %v8560 = vand.u32 %v7094, 4294901760
  %8561 = vmatmul.f32.gmra.mxu0 %v8560
  %v8562 = vpop.f32.mrf.mxu0
  %v8563 = vadd.f32 %v8458, %v8562
  %v8564 = vand.u32 %v7096, 4294901760
  %8565 = vmatmul.f32.gmra.mxu0 %v8564
  %v8566 = vpop.f32.mrf.mxu0
  %v8567 = vadd.f32 %v8464, %v8566
  %v8568 = vand.u32 %v7098, 4294901760
  %8569 = vmatmul.f32.gmra.mxu0 %v8568
  %v8570 = vpop.f32.mrf.mxu0
  %v8571 = vadd.f32 %v8470, %v8570
  %v8572 = vand.u32 %v7100, 4294901760
  %8573 = vmatmul.f32.gmra.mxu0 %v8572
  %v8574 = vpop.f32.mrf.mxu0
  %v8575 = vadd.f32 %v8476, %v8574
  %v8576 = vand.u32 %v7102, 4294901760
  %8577 = vmatmul.f32.gmra.mxu0 %v8576
  %v8578 = vpop.f32.mrf.mxu0
  %v8579 = vadd.f32 %v8482, %v8578
  %8580 = vdwg.mxu0
  %v8581 = vand.u32 %v2498, 4294901760
  %8582 = vmatpush.msra.mxu0 %v8581
  %v8583 = vand.u32 %v2496, 4294901760
  %8584 = vmatpush.msra.mxu0 %v8583
  %v8585 = vand.u32 %v2494, 4294901760
  %8586 = vmatpush.msra.mxu0 %v8585
  %v8587 = vand.u32 %v2492, 4294901760
  %8588 = vmatpush.msra.mxu0 %v8587
  %v8589 = vand.u32 %v2490, 4294901760
  %8590 = vmatpush.msra.mxu0 %v8589
  %v8591 = vand.u32 %v2488, 4294901760
  %8592 = vmatpush.msra.mxu0 %v8591
  %v8593 = vand.u32 %v2486, 4294901760
  %8594 = vmatpush.msra.mxu0 %v8593
  %v8595 = vand.u32 %v2484, 4294901760
  %8596 = vmatpush.msra.mxu0 %v8595
  %v8597 = vand.u32 %v2482, 4294901760
  %8598 = vmatpush.msra.mxu0 %v8597
  %v8599 = vand.u32 %v2480, 4294901760
  %8600 = vmatpush.msra.mxu0 %v8599
  %v8601 = vand.u32 %v2478, 4294901760
  %8602 = vmatpush.msra.mxu0 %v8601
  %v8603 = vand.u32 %v2476, 4294901760
  %8604 = vmatpush.msra.mxu0 %v8603
  %v8605 = vand.u32 %v2474, 4294901760
  %8606 = vmatpush.msra.mxu0 %v8605
  %v8607 = vand.u32 %v2472, 4294901760
  %8608 = vmatpush.msra.mxu0 %v8607
  %v8609 = vand.u32 %v2470, 4294901760
  %8610 = vmatpush.msra.mxu0 %v8609
  %v8611 = vand.u32 %v2468, 4294901760
  %8612 = vmatpush.msra.mxu0 %v8611
  %v8613 = vand.u32 %v7088, 4294901760
  %8614 = vmatmul.f32.gmra.mxu0 %v8613
  %v8615 = vpop.f32.mrf.mxu0
  %v8616 = vadd.f32 %v8551, %v8615
  %v8617 = vand.u32 %v7090, 4294901760
  %8618 = vmatmul.f32.gmra.mxu0 %v8617
  %v8619 = vpop.f32.mrf.mxu0
  %v8620 = vadd.f32 %v8555, %v8619
  %v8621 = vand.u32 %v7092, 4294901760
  %8622 = vmatmul.f32.gmra.mxu0 %v8621
  %v8623 = vpop.f32.mrf.mxu0
  %v8624 = vadd.f32 %v8559, %v8623
  %v8625 = vand.u32 %v7094, 4294901760
  %8626 = vmatmul.f32.gmra.mxu0 %v8625
  %v8627 = vpop.f32.mrf.mxu0
  %v8628 = vadd.f32 %v8563, %v8627
  %v8629 = vand.u32 %v7096, 4294901760
  %8630 = vmatmul.f32.gmra.mxu0 %v8629
  %v8631 = vpop.f32.mrf.mxu0
  %v8632 = vadd.f32 %v8567, %v8631
  %v8633 = vand.u32 %v7098, 4294901760
  %8634 = vmatmul.f32.gmra.mxu0 %v8633
  %v8635 = vpop.f32.mrf.mxu0
  %v8636 = vadd.f32 %v8571, %v8635
  %v8637 = vand.u32 %v7100, 4294901760
  %8638 = vmatmul.f32.gmra.mxu0 %v8637
  %v8639 = vpop.f32.mrf.mxu0
  %v8640 = vadd.f32 %v8575, %v8639
  %v8641 = vand.u32 %v7102, 4294901760
  %8642 = vmatmul.f32.gmra.mxu0 %v8641
  %v8643 = vpop.f32.mrf.mxu0
  %v8644 = vadd.f32 %v8579, %v8643
  %8645 = vdwg.mxu0
  %8646 = vmatpush.msra.mxu0 0.0
  %8647 = vmatpush.msra.mxu0 0.0
  %8648 = vmatpush.msra.mxu0 0.0
  %8649 = vmatpush.msra.mxu0 0.0
  %8650 = vmatpush.msra.mxu0 0.0
  %8651 = vmatpush.msra.mxu0 0.0
  %8652 = vmatpush.msra.mxu0 0.0
  %8653 = vmatpush.msra.mxu0 0.0
  %8654 = vmatpush.msra.mxu0 0.0
  %8655 = vmatpush.msra.mxu0 0.0
  %8656 = vmatpush.msra.mxu0 0.0
  %8657 = vmatpush.msra.mxu0 0.0
  %v8658 = vand.u32 %v2506, 4294901760
  %8659 = vmatpush.msra.mxu0 %v8658
  %v8660 = vand.u32 %v2504, 4294901760
  %8661 = vmatpush.msra.mxu0 %v8660
  %v8662 = vand.u32 %v2502, 4294901760
  %8663 = vmatpush.msra.mxu0 %v8662
  %v8664 = vand.u32 %v2500, 4294901760
  %8665 = vmatpush.msra.mxu0 %v8664
  %v8666 = vand.u32 %v7105, 4294901760
  %v8667 = vsub.f32 %v7105, %v8666
  %v8668 = vand.u32 %v8667, 4294901760
  %v8669 = vsub.f32 %v8667, %v8668
  %v8670 = vand.u32 %v8669, 4294901760
  %8671 = vmatmul.f32.gmra.mxu0 %v8670
  %v8672 = vpop.f32.mrf.mxu0
  %v8673 = vadd.f32 %v8616, %v8672
  %v8674 = vand.u32 %v7108, 4294901760
  %v8675 = vsub.f32 %v7108, %v8674
  %v8676 = vand.u32 %v8675, 4294901760
  %v8677 = vsub.f32 %v8675, %v8676
  %v8678 = vand.u32 %v8677, 4294901760
  %8679 = vmatmul.f32.gmra.mxu0 %v8678
  %v8680 = vpop.f32.mrf.mxu0
  %v8681 = vadd.f32 %v8620, %v8680
  %v8682 = vand.u32 %v7111, 4294901760
  %v8683 = vsub.f32 %v7111, %v8682
  %v8684 = vand.u32 %v8683, 4294901760
  %v8685 = vsub.f32 %v8683, %v8684
  %v8686 = vand.u32 %v8685, 4294901760
  %8687 = vmatmul.f32.gmra.mxu0 %v8686
  %v8688 = vpop.f32.mrf.mxu0
  %v8689 = vadd.f32 %v8624, %v8688
  %v8690 = vand.u32 %v7114, 4294901760
  %v8691 = vsub.f32 %v7114, %v8690
  %v8692 = vand.u32 %v8691, 4294901760
  %v8693 = vsub.f32 %v8691, %v8692
  %v8694 = vand.u32 %v8693, 4294901760
  %8695 = vmatmul.f32.gmra.mxu0 %v8694
  %v8696 = vpop.f32.mrf.mxu0
  %v8697 = vadd.f32 %v8628, %v8696
  %v8698 = vand.u32 %v7117, 4294901760
  %v8699 = vsub.f32 %v7117, %v8698
  %v8700 = vand.u32 %v8699, 4294901760
  %v8701 = vsub.f32 %v8699, %v8700
  %v8702 = vand.u32 %v8701, 4294901760
  %8703 = vmatmul.f32.gmra.mxu0 %v8702
  %v8704 = vpop.f32.mrf.mxu0
  %v8705 = vadd.f32 %v8632, %v8704
  %v8706 = vand.u32 %v7120, 4294901760
  %v8707 = vsub.f32 %v7120, %v8706
  %v8708 = vand.u32 %v8707, 4294901760
  %v8709 = vsub.f32 %v8707, %v8708
  %v8710 = vand.u32 %v8709, 4294901760
  %8711 = vmatmul.f32.gmra.mxu0 %v8710
  %v8712 = vpop.f32.mrf.mxu0
  %v8713 = vadd.f32 %v8636, %v8712
  %v8714 = vand.u32 %v7123, 4294901760
  %v8715 = vsub.f32 %v7123, %v8714
  %v8716 = vand.u32 %v8715, 4294901760
  %v8717 = vsub.f32 %v8715, %v8716
  %v8718 = vand.u32 %v8717, 4294901760
  %8719 = vmatmul.f32.gmra.mxu0 %v8718
  %v8720 = vpop.f32.mrf.mxu0
  %v8721 = vadd.f32 %v8640, %v8720
  %v8722 = vand.u32 %v7126, 4294901760
  %v8723 = vsub.f32 %v7126, %v8722
  %v8724 = vand.u32 %v8723, 4294901760
  %v8725 = vsub.f32 %v8723, %v8724
  %v8726 = vand.u32 %v8725, 4294901760
  %8727 = vmatmul.f32.gmra.mxu0 %v8726
  %v8728 = vpop.f32.mrf.mxu0
  %v8729 = vadd.f32 %v8644, %v8728
  %8730 = vdwg.mxu0
  %8731 = vmatpush.msra.mxu0 0.0
  %8732 = vmatpush.msra.mxu0 0.0
  %8733 = vmatpush.msra.mxu0 0.0
  %8734 = vmatpush.msra.mxu0 0.0
  %8735 = vmatpush.msra.mxu0 0.0
  %8736 = vmatpush.msra.mxu0 0.0
  %8737 = vmatpush.msra.mxu0 0.0
  %8738 = vmatpush.msra.mxu0 0.0
  %8739 = vmatpush.msra.mxu0 0.0
  %8740 = vmatpush.msra.mxu0 0.0
  %8741 = vmatpush.msra.mxu0 0.0
  %8742 = vmatpush.msra.mxu0 0.0
  %v8743 = vand.u32 %v2506, 4294901760
  %v8744 = vsub.f32 %v2506, %v8743
  %v8745 = vand.u32 %v8744, 4294901760
  %v8746 = vsub.f32 %v8744, %v8745
  %v8747 = vand.u32 %v8746, 4294901760
  %8748 = vmatpush.msra.mxu0 %v8747
  %v8749 = vand.u32 %v2504, 4294901760
  %v8750 = vsub.f32 %v2504, %v8749
  %v8751 = vand.u32 %v8750, 4294901760
  %v8752 = vsub.f32 %v8750, %v8751
  %v8753 = vand.u32 %v8752, 4294901760
  %8754 = vmatpush.msra.mxu0 %v8753
  %v8755 = vand.u32 %v2502, 4294901760
  %v8756 = vsub.f32 %v2502, %v8755
  %v8757 = vand.u32 %v8756, 4294901760
  %v8758 = vsub.f32 %v8756, %v8757
  %v8759 = vand.u32 %v8758, 4294901760
  %8760 = vmatpush.msra.mxu0 %v8759
  %v8761 = vand.u32 %v2500, 4294901760
  %v8762 = vsub.f32 %v2500, %v8761
  %v8763 = vand.u32 %v8762, 4294901760
  %v8764 = vsub.f32 %v8762, %v8763
  %v8765 = vand.u32 %v8764, 4294901760
  %8766 = vmatpush.msra.mxu0 %v8765
  %v8767 = vand.u32 %v7105, 4294901760
  %8768 = vmatmul.f32.gmra.mxu0 %v8767
  %v8769 = vpop.f32.mrf.mxu0
  %v8770 = vadd.f32 %v8673, %v8769
  %v8771 = vand.u32 %v7108, 4294901760
  %8772 = vmatmul.f32.gmra.mxu0 %v8771
  %v8773 = vpop.f32.mrf.mxu0
  %v8774 = vadd.f32 %v8681, %v8773
  %v8775 = vand.u32 %v7111, 4294901760
  %8776 = vmatmul.f32.gmra.mxu0 %v8775
  %v8777 = vpop.f32.mrf.mxu0
  %v8778 = vadd.f32 %v8689, %v8777
  %v8779 = vand.u32 %v7114, 4294901760
  %8780 = vmatmul.f32.gmra.mxu0 %v8779
  %v8781 = vpop.f32.mrf.mxu0
  %v8782 = vadd.f32 %v8697, %v8781
  %v8783 = vand.u32 %v7117, 4294901760
  %8784 = vmatmul.f32.gmra.mxu0 %v8783
  %v8785 = vpop.f32.mrf.mxu0
  %v8786 = vadd.f32 %v8705, %v8785
  %v8787 = vand.u32 %v7120, 4294901760
  %8788 = vmatmul.f32.gmra.mxu0 %v8787
  %v8789 = vpop.f32.mrf.mxu0
  %v8790 = vadd.f32 %v8713, %v8789
  %v8791 = vand.u32 %v7123, 4294901760
  %8792 = vmatmul.f32.gmra.mxu0 %v8791
  %v8793 = vpop.f32.mrf.mxu0
  %v8794 = vadd.f32 %v8721, %v8793
  %v8795 = vand.u32 %v7126, 4294901760
  %8796 = vmatmul.f32.gmra.mxu0 %v8795
  %v8797 = vpop.f32.mrf.mxu0
  %v8798 = vadd.f32 %v8729, %v8797
  %8799 = vdwg.mxu0
  %8800 = vmatpush.msra.mxu0 0.0
  %8801 = vmatpush.msra.mxu0 0.0
  %8802 = vmatpush.msra.mxu0 0.0
  %8803 = vmatpush.msra.mxu0 0.0
  %8804 = vmatpush.msra.mxu0 0.0
  %8805 = vmatpush.msra.mxu0 0.0
  %8806 = vmatpush.msra.mxu0 0.0
  %8807 = vmatpush.msra.mxu0 0.0
  %8808 = vmatpush.msra.mxu0 0.0
  %8809 = vmatpush.msra.mxu0 0.0
  %8810 = vmatpush.msra.mxu0 0.0
  %8811 = vmatpush.msra.mxu0 0.0
  %v8812 = vand.u32 %v2506, 4294901760
  %v8813 = vsub.f32 %v2506, %v8812
  %8814 = vmatpush.msra.mxu0 %v8813
  %v8815 = vand.u32 %v2504, 4294901760
  %v8816 = vsub.f32 %v2504, %v8815
  %8817 = vmatpush.msra.mxu0 %v8816
  %v8818 = vand.u32 %v2502, 4294901760
  %v8819 = vsub.f32 %v2502, %v8818
  %8820 = vmatpush.msra.mxu0 %v8819
  %v8821 = vand.u32 %v2500, 4294901760
  %v8822 = vsub.f32 %v2500, %v8821
  %8823 = vmatpush.msra.mxu0 %v8822
  %v8824 = vand.u32 %v7105, 4294901760
  %v8825 = vsub.f32 %v7105, %v8824
  %8826 = vmatmul.f32.gmra.mxu0 %v8825
  %v8827 = vpop.f32.mrf.mxu0
  %v8828 = vadd.f32 %v8770, %v8827
  %v8829 = vand.u32 %v7108, 4294901760
  %v8830 = vsub.f32 %v7108, %v8829
  %8831 = vmatmul.f32.gmra.mxu0 %v8830
  %v8832 = vpop.f32.mrf.mxu0
  %v8833 = vadd.f32 %v8774, %v8832
  %v8834 = vand.u32 %v7111, 4294901760
  %v8835 = vsub.f32 %v7111, %v8834
  %8836 = vmatmul.f32.gmra.mxu0 %v8835
  %v8837 = vpop.f32.mrf.mxu0
  %v8838 = vadd.f32 %v8778, %v8837
  %v8839 = vand.u32 %v7114, 4294901760
  %v8840 = vsub.f32 %v7114, %v8839
  %8841 = vmatmul.f32.gmra.mxu0 %v8840
  %v8842 = vpop.f32.mrf.mxu0
  %v8843 = vadd.f32 %v8782, %v8842
  %v8844 = vand.u32 %v7117, 4294901760
  %v8845 = vsub.f32 %v7117, %v8844
  %8846 = vmatmul.f32.gmra.mxu0 %v8845
  %v8847 = vpop.f32.mrf.mxu0
  %v8848 = vadd.f32 %v8786, %v8847
  %v8849 = vand.u32 %v7120, 4294901760
  %v8850 = vsub.f32 %v7120, %v8849
  %8851 = vmatmul.f32.gmra.mxu0 %v8850
  %v8852 = vpop.f32.mrf.mxu0
  %v8853 = vadd.f32 %v8790, %v8852
  %v8854 = vand.u32 %v7123, 4294901760
  %v8855 = vsub.f32 %v7123, %v8854
  %8856 = vmatmul.f32.gmra.mxu0 %v8855
  %v8857 = vpop.f32.mrf.mxu0
  %v8858 = vadd.f32 %v8794, %v8857
  %v8859 = vand.u32 %v7126, 4294901760
  %v8860 = vsub.f32 %v7126, %v8859
  %8861 = vmatmul.f32.gmra.mxu0 %v8860
  %v8862 = vpop.f32.mrf.mxu0
  %v8863 = vadd.f32 %v8798, %v8862
  %8864 = vdwg.mxu0
  %8865 = vmatpush.msra.mxu0 0.0
  %8866 = vmatpush.msra.mxu0 0.0
  %8867 = vmatpush.msra.mxu0 0.0
  %8868 = vmatpush.msra.mxu0 0.0
  %8869 = vmatpush.msra.mxu0 0.0
  %8870 = vmatpush.msra.mxu0 0.0
  %8871 = vmatpush.msra.mxu0 0.0
  %8872 = vmatpush.msra.mxu0 0.0
  %8873 = vmatpush.msra.mxu0 0.0
  %8874 = vmatpush.msra.mxu0 0.0
  %8875 = vmatpush.msra.mxu0 0.0
  %8876 = vmatpush.msra.mxu0 0.0
  %v8877 = vand.u32 %v2506, 4294901760
  %8878 = vmatpush.msra.mxu0 %v8877
  %v8879 = vand.u32 %v2504, 4294901760
  %8880 = vmatpush.msra.mxu0 %v8879
  %v8881 = vand.u32 %v2502, 4294901760
  %8882 = vmatpush.msra.mxu0 %v8881
  %v8883 = vand.u32 %v2500, 4294901760
  %8884 = vmatpush.msra.mxu0 %v8883
  %v8885 = vand.u32 %v7105, 4294901760
  %v8886 = vsub.f32 %v7105, %v8885
  %v8887 = vand.u32 %v8886, 4294901760
  %8888 = vmatmul.f32.gmra.mxu0 %v8887
  %v8889 = vpop.f32.mrf.mxu0
  %v8890 = vadd.f32 %v8828, %v8889
  %v8891 = vand.u32 %v7108, 4294901760
  %v8892 = vsub.f32 %v7108, %v8891
  %v8893 = vand.u32 %v8892, 4294901760
  %8894 = vmatmul.f32.gmra.mxu0 %v8893
  %v8895 = vpop.f32.mrf.mxu0
  %v8896 = vadd.f32 %v8833, %v8895
  %v8897 = vand.u32 %v7111, 4294901760
  %v8898 = vsub.f32 %v7111, %v8897
  %v8899 = vand.u32 %v8898, 4294901760
  %8900 = vmatmul.f32.gmra.mxu0 %v8899
  %v8901 = vpop.f32.mrf.mxu0
  %v8902 = vadd.f32 %v8838, %v8901
  %v8903 = vand.u32 %v7114, 4294901760
  %v8904 = vsub.f32 %v7114, %v8903
  %v8905 = vand.u32 %v8904, 4294901760
  %8906 = vmatmul.f32.gmra.mxu0 %v8905
  %v8907 = vpop.f32.mrf.mxu0
  %v8908 = vadd.f32 %v8843, %v8907
  %v8909 = vand.u32 %v7117, 4294901760
  %v8910 = vsub.f32 %v7117, %v8909
  %v8911 = vand.u32 %v8910, 4294901760
  %8912 = vmatmul.f32.gmra.mxu0 %v8911
  %v8913 = vpop.f32.mrf.mxu0
  %v8914 = vadd.f32 %v8848, %v8913
  %v8915 = vand.u32 %v7120, 4294901760
  %v8916 = vsub.f32 %v7120, %v8915
  %v8917 = vand.u32 %v8916, 4294901760
  %8918 = vmatmul.f32.gmra.mxu0 %v8917
  %v8919 = vpop.f32.mrf.mxu0
  %v8920 = vadd.f32 %v8853, %v8919
  %v8921 = vand.u32 %v7123, 4294901760
  %v8922 = vsub.f32 %v7123, %v8921
  %v8923 = vand.u32 %v8922, 4294901760
  %8924 = vmatmul.f32.gmra.mxu0 %v8923
  %v8925 = vpop.f32.mrf.mxu0
  %v8926 = vadd.f32 %v8858, %v8925
  %v8927 = vand.u32 %v7126, 4294901760
  %v8928 = vsub.f32 %v7126, %v8927
  %v8929 = vand.u32 %v8928, 4294901760
  %8930 = vmatmul.f32.gmra.mxu0 %v8929
  %v8931 = vpop.f32.mrf.mxu0
  %v8932 = vadd.f32 %v8863, %v8931
  %8933 = vdwg.mxu0
  %8934 = vmatpush.msra.mxu0 0.0
  %8935 = vmatpush.msra.mxu0 0.0
  %8936 = vmatpush.msra.mxu0 0.0
  %8937 = vmatpush.msra.mxu0 0.0
  %8938 = vmatpush.msra.mxu0 0.0
  %8939 = vmatpush.msra.mxu0 0.0
  %8940 = vmatpush.msra.mxu0 0.0
  %8941 = vmatpush.msra.mxu0 0.0
  %8942 = vmatpush.msra.mxu0 0.0
  %8943 = vmatpush.msra.mxu0 0.0
  %8944 = vmatpush.msra.mxu0 0.0
  %8945 = vmatpush.msra.mxu0 0.0
  %v8946 = vand.u32 %v2506, 4294901760
  %v8947 = vsub.f32 %v2506, %v8946
  %v8948 = vand.u32 %v8947, 4294901760
  %8949 = vmatpush.msra.mxu0 %v8948
  %v8950 = vand.u32 %v2504, 4294901760
  %v8951 = vsub.f32 %v2504, %v8950
  %v8952 = vand.u32 %v8951, 4294901760
  %8953 = vmatpush.msra.mxu0 %v8952
  %v8954 = vand.u32 %v2502, 4294901760
  %v8955 = vsub.f32 %v2502, %v8954
  %v8956 = vand.u32 %v8955, 4294901760
  %8957 = vmatpush.msra.mxu0 %v8956
  %v8958 = vand.u32 %v2500, 4294901760
  %v8959 = vsub.f32 %v2500, %v8958
  %v8960 = vand.u32 %v8959, 4294901760
  %8961 = vmatpush.msra.mxu0 %v8960
  %v8962 = vand.u32 %v7105, 4294901760
  %8963 = vmatmul.f32.gmra.mxu0 %v8962
  %v8964 = vpop.f32.mrf.mxu0
  %v8965 = vadd.f32 %v8890, %v8964
  %v8966 = vand.u32 %v7108, 4294901760
  %8967 = vmatmul.f32.gmra.mxu0 %v8966
  %v8968 = vpop.f32.mrf.mxu0
  %v8969 = vadd.f32 %v8896, %v8968
  %v8970 = vand.u32 %v7111, 4294901760
  %8971 = vmatmul.f32.gmra.mxu0 %v8970
  %v8972 = vpop.f32.mrf.mxu0
  %v8973 = vadd.f32 %v8902, %v8972
  %v8974 = vand.u32 %v7114, 4294901760
  %8975 = vmatmul.f32.gmra.mxu0 %v8974
  %v8976 = vpop.f32.mrf.mxu0
  %v8977 = vadd.f32 %v8908, %v8976
  %v8978 = vand.u32 %v7117, 4294901760
  %8979 = vmatmul.f32.gmra.mxu0 %v8978
  %v8980 = vpop.f32.mrf.mxu0
  %v8981 = vadd.f32 %v8914, %v8980
  %v8982 = vand.u32 %v7120, 4294901760
  %8983 = vmatmul.f32.gmra.mxu0 %v8982
  %v8984 = vpop.f32.mrf.mxu0
  %v8985 = vadd.f32 %v8920, %v8984
  %v8986 = vand.u32 %v7123, 4294901760
  %8987 = vmatmul.f32.gmra.mxu0 %v8986
  %v8988 = vpop.f32.mrf.mxu0
  %v8989 = vadd.f32 %v8926, %v8988
  %v8990 = vand.u32 %v7126, 4294901760
  %8991 = vmatmul.f32.gmra.mxu0 %v8990
  %v8992 = vpop.f32.mrf.mxu0
  %v8993 = vadd.f32 %v8932, %v8992
  %8994 = vdwg.mxu0
  %8995 = vmatpush.msra.mxu0 0.0
  %8996 = vmatpush.msra.mxu0 0.0
  %8997 = vmatpush.msra.mxu0 0.0
  %8998 = vmatpush.msra.mxu0 0.0
  %8999 = vmatpush.msra.mxu0 0.0
  %9000 = vmatpush.msra.mxu0 0.0
  %9001 = vmatpush.msra.mxu0 0.0
  %9002 = vmatpush.msra.mxu0 0.0
  %9003 = vmatpush.msra.mxu0 0.0
  %9004 = vmatpush.msra.mxu0 0.0
  %9005 = vmatpush.msra.mxu0 0.0
  %9006 = vmatpush.msra.mxu0 0.0
  %v9007 = vand.u32 %v2506, 4294901760
  %9008 = vmatpush.msra.mxu0 %v9007
  %v9009 = vand.u32 %v2504, 4294901760
  %9010 = vmatpush.msra.mxu0 %v9009
  %v9011 = vand.u32 %v2502, 4294901760
  %9012 = vmatpush.msra.mxu0 %v9011
  %v9013 = vand.u32 %v2500, 4294901760
  %9014 = vmatpush.msra.mxu0 %v9013
  %v9015 = vand.u32 %v7105, 4294901760
  %9016 = vmatmul.f32.gmra.mxu0 %v9015
  %v9017 = vpop.f32.mrf.mxu0
  %v9018 = vadd.f32 %v8965, %v9017
  %v9019 = vand.u32 %v7108, 4294901760
  %9020 = vmatmul.f32.gmra.mxu0 %v9019
  %v9021 = vpop.f32.mrf.mxu0
  %v9022 = vadd.f32 %v8969, %v9021
  %v9023 = vand.u32 %v7111, 4294901760
  %9024 = vmatmul.f32.gmra.mxu0 %v9023
  %v9025 = vpop.f32.mrf.mxu0
  %v9026 = vadd.f32 %v8973, %v9025
  %v9027 = vand.u32 %v7114, 4294901760
  %9028 = vmatmul.f32.gmra.mxu0 %v9027
  %v9029 = vpop.f32.mrf.mxu0
  %v9030 = vadd.f32 %v8977, %v9029
  %v9031 = vand.u32 %v7117, 4294901760
  %9032 = vmatmul.f32.gmra.mxu0 %v9031
  %v9033 = vpop.f32.mrf.mxu0
  %v9034 = vadd.f32 %v8981, %v9033
  %v9035 = vand.u32 %v7120, 4294901760
  %9036 = vmatmul.f32.gmra.mxu0 %v9035
  %v9037 = vpop.f32.mrf.mxu0
  %v9038 = vadd.f32 %v8985, %v9037
  %v9039 = vand.u32 %v7123, 4294901760
  %9040 = vmatmul.f32.gmra.mxu0 %v9039
  %v9041 = vpop.f32.mrf.mxu0
  %v9042 = vadd.f32 %v8989, %v9041
  %v9043 = vand.u32 %v7126, 4294901760
  %9044 = vmatmul.f32.gmra.mxu0 %v9043
  %v9045 = vpop.f32.mrf.mxu0
  %v9046 = vadd.f32 %v8993, %v9045
  %9047 = vdwg.mxu0
  %v9048 = vadd.f32 %v5661, %v8058
  %v9049 = vadd.f32 %v5662, %v9018
  %v9050 = vadd.f32 %v5663, %v8062
  %v9051 = vadd.f32 %v5664, %v9022
  %v9052 = vadd.f32 %v5665, %v8066
  %v9053 = vadd.f32 %v5666, %v9026
  %v9054 = vadd.f32 %v5667, %v8070
  %v9055 = vadd.f32 %v5668, %v9030
  %v9056 = vadd.f32 %v5669, %v8074
  %v9057 = vadd.f32 %v5670, %v9034
  %v9058 = vadd.f32 %v5671, %v8078
  %v9059 = vadd.f32 %v5672, %v9038
  %v9060 = vadd.f32 %v5673, %v8082
  %v9061 = vadd.f32 %v5674, %v9042
  %v9062 = vadd.f32 %v5675, %v8086
  %v9063 = vadd.f32 %v5676, %v9046
  %v9064 = vmax.f32 %v9048, %v9050
  %v9065 = vmax.f32 %v9064, %v9052
  %v9066 = vmax.f32 %v9065, %v9054
  %v9067 = vrot.slane %v9066, 4
  %v9068 = vmax.f32 %v9066, %v9067
  %v9069 = vrot.slane %v9068, 2
  %v9070 = vmax.f32 %v9068, %v9069
  %v9071 = vrot.slane %v9070, 1
  %v9072 = vmax.f32 %v9070, %v9071
  %v9073 = vsel %vm2516, %v9049, -inf
  %v9074 = vsel %vm2516, %v9051, -inf
  %v9075 = vmax.f32 %v9073, %v9074
  %v9076 = vsel %vm2516, %v9053, -inf
  %v9077 = vmax.f32 %v9075, %v9076
  %v9078 = vsel %vm2516, %v9055, -inf
  %v9079 = vmax.f32 %v9077, %v9078
  %v9080 = vrot.slane %v9079, 4
  %v9081 = vmax.f32 %v9079, %v9080
  %v9082 = vrot.slane %v9081, 2
  %v9083 = vmax.f32 %v9081, %v9082
  %v9084 = vrot.slane %v9083, 1
  %v9085 = vmax.f32 %v9083, %v9084
  %v9086 = vmax.f32 %v9056, %v9058
  %v9087 = vmax.f32 %v9086, %v9060
  %v9088 = vmax.f32 %v9087, %v9062
  %v9089 = vrot.slane %v9088, 4
  %v9090 = vmax.f32 %v9088, %v9089
  %v9091 = vrot.slane %v9090, 2
  %v9092 = vmax.f32 %v9090, %v9091
  %v9093 = vrot.slane %v9092, 1
  %v9094 = vmax.f32 %v9092, %v9093
  %v9095 = vsel %vm2516, %v9057, -inf
  %v9096 = vsel %vm2516, %v9059, -inf
  %v9097 = vmax.f32 %v9095, %v9096
  %v9098 = vsel %vm2516, %v9061, -inf
  %v9099 = vmax.f32 %v9097, %v9098
  %v9100 = vsel %vm2516, %v9063, -inf
  %v9101 = vmax.f32 %v9099, %v9100
  %v9102 = vrot.slane %v9101, 4
  %v9103 = vmax.f32 %v9101, %v9102
  %v9104 = vrot.slane %v9103, 2
  %v9105 = vmax.f32 %v9103, %v9104
  %v9106 = vrot.slane %v9105, 1
  %v9107 = vmax.f32 %v9105, %v9106
  %v9108 = vsub.f32 %v9048, %v9072
  %v9109 = vsub.f32 %v9049, %v9085
  %v9110 = vsub.f32 %v9050, %v9072
  %v9111 = vsub.f32 %v9051, %v9085
  %v9112 = vsub.f32 %v9052, %v9072
  %v9113 = vsub.f32 %v9053, %v9085
  %v9114 = vsub.f32 %v9054, %v9072
  %v9115 = vsub.f32 %v9055, %v9085
  %v9116 = vsub.f32 %v9056, %v9094
  %v9117 = vsub.f32 %v9057, %v9107
  %v9118 = vsub.f32 %v9058, %v9094
  %v9119 = vsub.f32 %v9059, %v9107
  %v9120 = vsub.f32 %v9060, %v9094
  %v9121 = vsub.f32 %v9061, %v9107
  %v9122 = vsub.f32 %v9062, %v9094
  %v9123 = vsub.f32 %v9063, %v9107
  %v9124 = vmul.f32 %v9108, 1.442695
  %v9125 = vpow.pop %v9124
  %v9126 = vmul.f32 %v9109, 1.442695
  %v9127 = vpow.pop %v9126
  %v9128 = vmul.f32 %v9110, 1.442695
  %v9129 = vpow.pop %v9128
  %v9130 = vmul.f32 %v9111, 1.442695
  %v9131 = vpow.pop %v9130
  %v9132 = vmul.f32 %v9112, 1.442695
  %v9133 = vpow.pop %v9132
  %v9134 = vmul.f32 %v9113, 1.442695
  %v9135 = vpow.pop %v9134
  %v9136 = vmul.f32 %v9114, 1.442695
  %v9137 = vpow.pop %v9136
  %v9138 = vmul.f32 %v9115, 1.442695
  %v9139 = vpow.pop %v9138
  %v9140 = vmul.f32 %v9116, 1.442695
  %v9141 = vpow.pop %v9140
  %v9142 = vmul.f32 %v9117, 1.442695
  %v9143 = vpow.pop %v9142
  %v9144 = vmul.f32 %v9118, 1.442695
  %v9145 = vpow.pop %v9144
  %v9146 = vmul.f32 %v9119, 1.442695
  %v9147 = vpow.pop %v9146
  %v9148 = vmul.f32 %v9120, 1.442695
  %v9149 = vpow.pop %v9148
  %v9150 = vmul.f32 %v9121, 1.442695
  %v9151 = vpow.pop %v9150
  %v9152 = vmul.f32 %v9122, 1.442695
  %v9153 = vpow.pop %v9152
  %v9154 = vmul.f32 %v9123, 1.442695
  %v9155 = vpow.pop %v9154
  %v9156 = vadd.f32 %v9125, %v9129
  %v9157 = vadd.f32 %v9156, %v9133
  %v9158 = vadd.f32 %v9157, %v9137
  %v9159 = vrot.slane %v9158, 4
  %v9160 = vadd.f32 %v9158, %v9159
  %v9161 = vrot.slane %v9160, 2
  %v9162 = vadd.f32 %v9160, %v9161
  %v9163 = vrot.slane %v9162, 1
  %v9164 = vadd.f32 %v9162, %v9163
  %v9165 = vsel %vm2516, %v9127, 0.0
  %v9166 = vsel %vm2516, %v9131, 0.0
  %v9167 = vadd.f32 %v9165, %v9166
  %v9168 = vsel %vm2516, %v9135, 0.0
  %v9169 = vadd.f32 %v9167, %v9168
  %v9170 = vsel %vm2516, %v9139, 0.0
  %v9171 = vadd.f32 %v9169, %v9170
  %v9172 = vrot.slane %v9171, 4
  %v9173 = vadd.f32 %v9171, %v9172
  %v9174 = vrot.slane %v9173, 2
  %v9175 = vadd.f32 %v9173, %v9174
  %v9176 = vrot.slane %v9175, 1
  %v9177 = vadd.f32 %v9175, %v9176
  %v9178 = vadd.f32 %v9141, %v9145
  %v9179 = vadd.f32 %v9178, %v9149
  %v9180 = vadd.f32 %v9179, %v9153
  %v9181 = vrot.slane %v9180, 4
  %v9182 = vadd.f32 %v9180, %v9181
  %v9183 = vrot.slane %v9182, 2
  %v9184 = vadd.f32 %v9182, %v9183
  %v9185 = vrot.slane %v9184, 1
  %v9186 = vadd.f32 %v9184, %v9185
  %v9187 = vsel %vm2516, %v9143, 0.0
  %v9188 = vsel %vm2516, %v9147, 0.0
  %v9189 = vadd.f32 %v9187, %v9188
  %v9190 = vsel %vm2516, %v9151, 0.0
  %v9191 = vadd.f32 %v9189, %v9190
  %v9192 = vsel %vm2516, %v9155, 0.0
  %v9193 = vadd.f32 %v9191, %v9192
  %v9194 = vrot.slane %v9193, 4
  %v9195 = vadd.f32 %v9193, %v9194
  %v9196 = vrot.slane %v9195, 2
  %v9197 = vadd.f32 %v9195, %v9196
  %v9198 = vrot.slane %v9197, 1
  %v9199 = vadd.f32 %v9197, %v9198
  %v9200 = vrcp.pop %v9164
  %v9201 = vmul.f32 %v9164, %v9200
  %v9202 = vsub.f32 1.0, %v9201
  %v9203 = vmul.f32 %v9200, %v9202
  %v9204 = vadd.f32 %v9200, %v9203
  %vm9205 = vweird.f32 %v9164
  %vm9206 = vweird.f32 %v9200
  %vm9207 = vmor %vm9205, %vm9206
  %v9208 = vsel %vm9207, %v9200, %v9204
  %v9209 = vand.u32 2147483647, %v9164
  %vm9210 = vcmp.eq.f32.partialorder %v9209, 8.507059e+37
  %v9211 = vand.u32 %v9164, 2147483648
  %v9212 = vor.u32 1.1754944e-38, %v9211
  %v9213 = vsel %vm9210, %v9212, %v9208
  %v9214 = vmul.f32 %v9125, %v9213
  %v9215 = vrcp.pop %v9177
  %v9216 = vmul.f32 %v9177, %v9215
  %v9217 = vsub.f32 1.0, %v9216
  %v9218 = vmul.f32 %v9215, %v9217
  %v9219 = vadd.f32 %v9215, %v9218
  %vm9220 = vweird.f32 %v9177
  %vm9221 = vweird.f32 %v9215
  %vm9222 = vmor %vm9220, %vm9221
  %v9223 = vsel %vm9222, %v9215, %v9219
  %v9224 = vand.u32 2147483647, %v9177
  %vm9225 = vcmp.eq.f32.partialorder %v9224, 8.507059e+37
  %v9226 = vand.u32 %v9177, 2147483648
  %v9227 = vor.u32 1.1754944e-38, %v9226
  %v9228 = vsel %vm9225, %v9227, %v9223
  %v9229 = vmul.f32 %v9127, %v9228
  %v9230 = vmul.f32 %v9129, %v9213
  %v9231 = vmul.f32 %v9131, %v9228
  %v9232 = vmul.f32 %v9133, %v9213
  %v9233 = vmul.f32 %v9135, %v9228
  %v9234 = vmul.f32 %v9137, %v9213
  %v9235 = vmul.f32 %v9139, %v9228
  %v9236 = vrcp.pop %v9186
  %v9237 = vmul.f32 %v9186, %v9236
  %v9238 = vsub.f32 1.0, %v9237
  %v9239 = vmul.f32 %v9236, %v9238
  %v9240 = vadd.f32 %v9236, %v9239
  %vm9241 = vweird.f32 %v9186
  %vm9242 = vweird.f32 %v9236
  %vm9243 = vmor %vm9241, %vm9242
  %v9244 = vsel %vm9243, %v9236, %v9240
  %v9245 = vand.u32 2147483647, %v9186
  %vm9246 = vcmp.eq.f32.partialorder %v9245, 8.507059e+37
  %v9247 = vand.u32 %v9186, 2147483648
  %v9248 = vor.u32 1.1754944e-38, %v9247
  %v9249 = vsel %vm9246, %v9248, %v9244
  %v9250 = vmul.f32 %v9141, %v9249
  %v9251 = vrcp.pop %v9199
  %v9252 = vmul.f32 %v9199, %v9251
  %v9253 = vsub.f32 1.0, %v9252
  %v9254 = vmul.f32 %v9251, %v9253
  %v9255 = vadd.f32 %v9251, %v9254
  %vm9256 = vweird.f32 %v9199
  %vm9257 = vweird.f32 %v9251
  %vm9258 = vmor %vm9256, %vm9257
  %v9259 = vsel %vm9258, %v9251, %v9255
  %v9260 = vand.u32 2147483647, %v9199
  %vm9261 = vcmp.eq.f32.partialorder %v9260, 8.507059e+37
  %v9262 = vand.u32 %v9199, 2147483648
  %v9263 = vor.u32 1.1754944e-38, %v9262
  %v9264 = vsel %vm9261, %v9263, %v9259
  %v9265 = vmul.f32 %v9143, %v9264
  %v9266 = vmul.f32 %v9145, %v9249
  %v9267 = vmul.f32 %v9147, %v9264
  %v9268 = vmul.f32 %v9149, %v9249
  %v9269 = vmul.f32 %v9151, %v9264
  %v9270 = vmul.f32 %v9153, %v9249
  %v9271 = vmul.f32 %v9155, %v9264
  %v9272 = vmul.f32 %v9214, %v1177
  %v9273 = vmul.f32 %v9229, %v2293
  %v9274 = vmul.f32 %v9230, %v1181
  %v9275 = vmul.f32 %v9231, %v2297
  %v9276 = vmul.f32 %v9232, %v1185
  %v9277 = vmul.f32 %v9233, %v2301
  %v9278 = vmul.f32 %v9234, %v1189
  %v9279 = vmul.f32 %v9235, %v2305
  %v9280 = vmul.f32 %v9250, %v1193
  %v9281 = vmul.f32 %v9265, %v2309
  %v9282 = vmul.f32 %v9266, %v1197
  %v9283 = vmul.f32 %v9267, %v2313
  %v9284 = vmul.f32 %v9268, %v1201
  %v9285 = vmul.f32 %v9269, %v2317
  %v9286 = vmul.f32 %v9270, %v1205
  %v9287 = vmul.f32 %v9271, %v2321
  %v9288 = vadd.f32 %v9272, %v9274
  %v9289 = vadd.f32 %v9288, %v9276
  %v9290 = vadd.f32 %v9289, %v9278
  %v9291 = vrot.slane %v9290, 4
  %v9292 = vadd.f32 %v9290, %v9291
  %v9293 = vrot.slane %v9292, 2
  %v9294 = vadd.f32 %v9292, %v9293
  %v9295 = vrot.slane %v9294, 1
  %v9296 = vadd.f32 %v9294, %v9295
  %v9297 = vsel %vm2516, %v9273, 0.0
  %v9298 = vsel %vm2516, %v9275, 0.0
  %v9299 = vadd.f32 %v9297, %v9298
  %v9300 = vsel %vm2516, %v9277, 0.0
  %v9301 = vadd.f32 %v9299, %v9300
  %v9302 = vsel %vm2516, %v9279, 0.0
  %v9303 = vadd.f32 %v9301, %v9302
  %v9304 = vrot.slane %v9303, 4
  %v9305 = vadd.f32 %v9303, %v9304
  %v9306 = vrot.slane %v9305, 2
  %v9307 = vadd.f32 %v9305, %v9306
  %v9308 = vrot.slane %v9307, 1
  %v9309 = vadd.f32 %v9307, %v9308
  %v9310 = vadd.f32 %v9280, %v9282
  %v9311 = vadd.f32 %v9310, %v9284
  %v9312 = vadd.f32 %v9311, %v9286
  %v9313 = vrot.slane %v9312, 4
  %v9314 = vadd.f32 %v9312, %v9313
  %v9315 = vrot.slane %v9314, 2
  %v9316 = vadd.f32 %v9314, %v9315
  %v9317 = vrot.slane %v9316, 1
  %v9318 = vadd.f32 %v9316, %v9317
  %v9319 = vsel %vm2516, %v9281, 0.0
  %v9320 = vsel %vm2516, %v9283, 0.0
  %v9321 = vadd.f32 %v9319, %v9320
  %v9322 = vsel %vm2516, %v9285, 0.0
  %v9323 = vadd.f32 %v9321, %v9322
  %v9324 = vsel %vm2516, %v9287, 0.0
  %v9325 = vadd.f32 %v9323, %v9324
  %v9326 = vrot.slane %v9325, 4
  %v9327 = vadd.f32 %v9325, %v9326
  %v9328 = vrot.slane %v9327, 2
  %v9329 = vadd.f32 %v9327, %v9328
  %v9330 = vrot.slane %v9329, 1
  %v9331 = vadd.f32 %v9329, %v9330
  %v9332 = vmul.f32 %v9296, %v9296
  %v9333 = vmul.f32 %v9309, %v9309
  %v9334 = vmul.f32 %v9318, %v9318
  %v9335 = vmul.f32 %v9331, %v9331
  %v9340 = vsel %vm2564, %v9334, %v9332
  %v9341 = vsel %vm2564, %v9335, %v9333
  %v9343 = vsel %vm2516, %v9341, 0
  %v9345 = vand.u32 %v2497, 4294901760
  %9346 = vmatpush.msra.mxu0 %v9345
  %v9347 = vand.u32 %v2495, 4294901760
  %9348 = vmatpush.msra.mxu0 %v9347
  %v9349 = vand.u32 %v2493, 4294901760
  %9350 = vmatpush.msra.mxu0 %v9349
  %v9351 = vand.u32 %v2491, 4294901760
  %9352 = vmatpush.msra.mxu0 %v9351
  %v9353 = vand.u32 %v2489, 4294901760
  %9354 = vmatpush.msra.mxu0 %v9353
  %v9355 = vand.u32 %v2487, 4294901760
  %9356 = vmatpush.msra.mxu0 %v9355
  %v9357 = vand.u32 %v2485, 4294901760
  %9358 = vmatpush.msra.mxu0 %v9357
  %v9359 = vand.u32 %v2483, 4294901760
  %9360 = vmatpush.msra.mxu0 %v9359
  %v9361 = vand.u32 %v2481, 4294901760
  %9362 = vmatpush.msra.mxu0 %v9361
  %v9363 = vand.u32 %v2479, 4294901760
  %9364 = vmatpush.msra.mxu0 %v9363
  %v9365 = vand.u32 %v2477, 4294901760
  %9366 = vmatpush.msra.mxu0 %v9365
  %v9367 = vand.u32 %v2475, 4294901760
  %9368 = vmatpush.msra.mxu0 %v9367
  %v9369 = vand.u32 %v2473, 4294901760
  %9370 = vmatpush.msra.mxu0 %v9369
  %v9371 = vand.u32 %v2471, 4294901760
  %9372 = vmatpush.msra.mxu0 %v9371
  %v9373 = vand.u32 %v2469, 4294901760
  %9374 = vmatpush.msra.mxu0 %v9373
  %v9375 = vand.u32 %v2467, 4294901760
  %9376 = vmatpush.msra.mxu0 %v9375
  %v9377 = vand.u32 %v9340, 4294901760
  %v9378 = vsub.f32 %v9340, %v9377
  %v9379 = vand.u32 %v9378, 4294901760
  %v9380 = vsub.f32 %v9378, %v9379
  %v9381 = vand.u32 %v9380, 4294901760
  %9382 = vmatmul.f32.gmra.mxu0 %v9381
  %v9383 = vpop.f32.mrf.mxu0
  %v9384 = vadd.f32 0.0, %v9383
  %9385 = vdwg.mxu0
  %v9386 = vand.u32 %v2497, 4294901760
  %v9387 = vsub.f32 %v2497, %v9386
  %v9388 = vand.u32 %v9387, 4294901760
  %v9389 = vsub.f32 %v9387, %v9388
  %v9390 = vand.u32 %v9389, 4294901760
  %9391 = vmatpush.msra.mxu0 %v9390
  %v9392 = vand.u32 %v2495, 4294901760
  %v9393 = vsub.f32 %v2495, %v9392
  %v9394 = vand.u32 %v9393, 4294901760
  %v9395 = vsub.f32 %v9393, %v9394
  %v9396 = vand.u32 %v9395, 4294901760
  %9397 = vmatpush.msra.mxu0 %v9396
  %v9398 = vand.u32 %v2493, 4294901760
  %v9399 = vsub.f32 %v2493, %v9398
  %v9400 = vand.u32 %v9399, 4294901760
  %v9401 = vsub.f32 %v9399, %v9400
  %v9402 = vand.u32 %v9401, 4294901760
  %9403 = vmatpush.msra.mxu0 %v9402
  %v9404 = vand.u32 %v2491, 4294901760
  %v9405 = vsub.f32 %v2491, %v9404
  %v9406 = vand.u32 %v9405, 4294901760
  %v9407 = vsub.f32 %v9405, %v9406
  %v9408 = vand.u32 %v9407, 4294901760
  %9409 = vmatpush.msra.mxu0 %v9408
  %v9410 = vand.u32 %v2489, 4294901760
  %v9411 = vsub.f32 %v2489, %v9410
  %v9412 = vand.u32 %v9411, 4294901760
  %v9413 = vsub.f32 %v9411, %v9412
  %v9414 = vand.u32 %v9413, 4294901760
  %9415 = vmatpush.msra.mxu0 %v9414
  %v9416 = vand.u32 %v2487, 4294901760
  %v9417 = vsub.f32 %v2487, %v9416
  %v9418 = vand.u32 %v9417, 4294901760
  %v9419 = vsub.f32 %v9417, %v9418
  %v9420 = vand.u32 %v9419, 4294901760
  %9421 = vmatpush.msra.mxu0 %v9420
  %v9422 = vand.u32 %v2485, 4294901760
  %v9423 = vsub.f32 %v2485, %v9422
  %v9424 = vand.u32 %v9423, 4294901760
  %v9425 = vsub.f32 %v9423, %v9424
  %v9426 = vand.u32 %v9425, 4294901760
  %9427 = vmatpush.msra.mxu0 %v9426
  %v9428 = vand.u32 %v2483, 4294901760
  %v9429 = vsub.f32 %v2483, %v9428
  %v9430 = vand.u32 %v9429, 4294901760
  %v9431 = vsub.f32 %v9429, %v9430
  %v9432 = vand.u32 %v9431, 4294901760
  %9433 = vmatpush.msra.mxu0 %v9432
  %v9434 = vand.u32 %v2481, 4294901760
  %v9435 = vsub.f32 %v2481, %v9434
  %v9436 = vand.u32 %v9435, 4294901760
  %v9437 = vsub.f32 %v9435, %v9436
  %v9438 = vand.u32 %v9437, 4294901760
  %9439 = vmatpush.msra.mxu0 %v9438
  %v9440 = vand.u32 %v2479, 4294901760
  %v9441 = vsub.f32 %v2479, %v9440
  %v9442 = vand.u32 %v9441, 4294901760
  %v9443 = vsub.f32 %v9441, %v9442
  %v9444 = vand.u32 %v9443, 4294901760
  %9445 = vmatpush.msra.mxu0 %v9444
  %v9446 = vand.u32 %v2477, 4294901760
  %v9447 = vsub.f32 %v2477, %v9446
  %v9448 = vand.u32 %v9447, 4294901760
  %v9449 = vsub.f32 %v9447, %v9448
  %v9450 = vand.u32 %v9449, 4294901760
  %9451 = vmatpush.msra.mxu0 %v9450
  %v9452 = vand.u32 %v2475, 4294901760
  %v9453 = vsub.f32 %v2475, %v9452
  %v9454 = vand.u32 %v9453, 4294901760
  %v9455 = vsub.f32 %v9453, %v9454
  %v9456 = vand.u32 %v9455, 4294901760
  %9457 = vmatpush.msra.mxu0 %v9456
  %v9458 = vand.u32 %v2473, 4294901760
  %v9459 = vsub.f32 %v2473, %v9458
  %v9460 = vand.u32 %v9459, 4294901760
  %v9461 = vsub.f32 %v9459, %v9460
  %v9462 = vand.u32 %v9461, 4294901760
  %9463 = vmatpush.msra.mxu0 %v9462
  %v9464 = vand.u32 %v2471, 4294901760
  %v9465 = vsub.f32 %v2471, %v9464
  %v9466 = vand.u32 %v9465, 4294901760
  %v9467 = vsub.f32 %v9465, %v9466
  %v9468 = vand.u32 %v9467, 4294901760
  %9469 = vmatpush.msra.mxu0 %v9468
  %v9470 = vand.u32 %v2469, 4294901760
  %v9471 = vsub.f32 %v2469, %v9470
  %v9472 = vand.u32 %v9471, 4294901760
  %v9473 = vsub.f32 %v9471, %v9472
  %v9474 = vand.u32 %v9473, 4294901760
  %9475 = vmatpush.msra.mxu0 %v9474
  %v9476 = vand.u32 %v2467, 4294901760
  %v9477 = vsub.f32 %v2467, %v9476
  %v9478 = vand.u32 %v9477, 4294901760
  %v9479 = vsub.f32 %v9477, %v9478
  %v9480 = vand.u32 %v9479, 4294901760
  %9481 = vmatpush.msra.mxu0 %v9480
  %v9482 = vand.u32 %v9340, 4294901760
  %9483 = vmatmul.f32.gmra.mxu0 %v9482
  %v9484 = vpop.f32.mrf.mxu0
  %v9485 = vadd.f32 %v9384, %v9484
  %9486 = vdwg.mxu0
  %v9487 = vand.u32 %v2497, 4294901760
  %v9488 = vsub.f32 %v2497, %v9487
  %9489 = vmatpush.msra.mxu0 %v9488
  %v9490 = vand.u32 %v2495, 4294901760
  %v9491 = vsub.f32 %v2495, %v9490
  %9492 = vmatpush.msra.mxu0 %v9491
  %v9493 = vand.u32 %v2493, 4294901760
  %v9494 = vsub.f32 %v2493, %v9493
  %9495 = vmatpush.msra.mxu0 %v9494
  %v9496 = vand.u32 %v2491, 4294901760
  %v9497 = vsub.f32 %v2491, %v9496
  %9498 = vmatpush.msra.mxu0 %v9497
  %v9499 = vand.u32 %v2489, 4294901760
  %v9500 = vsub.f32 %v2489, %v9499
  %9501 = vmatpush.msra.mxu0 %v9500
  %v9502 = vand.u32 %v2487, 4294901760
  %v9503 = vsub.f32 %v2487, %v9502
  %9504 = vmatpush.msra.mxu0 %v9503
  %v9505 = vand.u32 %v2485, 4294901760
  %v9506 = vsub.f32 %v2485, %v9505
  %9507 = vmatpush.msra.mxu0 %v9506
  %v9508 = vand.u32 %v2483, 4294901760
  %v9509 = vsub.f32 %v2483, %v9508
  %9510 = vmatpush.msra.mxu0 %v9509
  %v9511 = vand.u32 %v2481, 4294901760
  %v9512 = vsub.f32 %v2481, %v9511
  %9513 = vmatpush.msra.mxu0 %v9512
  %v9514 = vand.u32 %v2479, 4294901760
  %v9515 = vsub.f32 %v2479, %v9514
  %9516 = vmatpush.msra.mxu0 %v9515
  %v9517 = vand.u32 %v2477, 4294901760
  %v9518 = vsub.f32 %v2477, %v9517
  %9519 = vmatpush.msra.mxu0 %v9518
  %v9520 = vand.u32 %v2475, 4294901760
  %v9521 = vsub.f32 %v2475, %v9520
  %9522 = vmatpush.msra.mxu0 %v9521
  %v9523 = vand.u32 %v2473, 4294901760
  %v9524 = vsub.f32 %v2473, %v9523
  %9525 = vmatpush.msra.mxu0 %v9524
  %v9526 = vand.u32 %v2471, 4294901760
  %v9527 = vsub.f32 %v2471, %v9526
  %9528 = vmatpush.msra.mxu0 %v9527
  %v9529 = vand.u32 %v2469, 4294901760
  %v9530 = vsub.f32 %v2469, %v9529
  %9531 = vmatpush.msra.mxu0 %v9530
  %v9532 = vand.u32 %v2467, 4294901760
  %v9533 = vsub.f32 %v2467, %v9532
  %9534 = vmatpush.msra.mxu0 %v9533
  %v9535 = vand.u32 %v9340, 4294901760
  %v9536 = vsub.f32 %v9340, %v9535
  %9537 = vmatmul.f32.gmra.mxu0 %v9536
  %v9538 = vpop.f32.mrf.mxu0
  %v9539 = vadd.f32 %v9485, %v9538
  %9540 = vdwg.mxu0
  %v9541 = vand.u32 %v2497, 4294901760
  %9542 = vmatpush.msra.mxu0 %v9541
  %v9543 = vand.u32 %v2495, 4294901760
  %9544 = vmatpush.msra.mxu0 %v9543
  %v9545 = vand.u32 %v2493, 4294901760
  %9546 = vmatpush.msra.mxu0 %v9545
  %v9547 = vand.u32 %v2491, 4294901760
  %9548 = vmatpush.msra.mxu0 %v9547
  %v9549 = vand.u32 %v2489, 4294901760
  %9550 = vmatpush.msra.mxu0 %v9549
  %v9551 = vand.u32 %v2487, 4294901760
  %9552 = vmatpush.msra.mxu0 %v9551
  %v9553 = vand.u32 %v2485, 4294901760
  %9554 = vmatpush.msra.mxu0 %v9553
  %v9555 = vand.u32 %v2483, 4294901760
  %9556 = vmatpush.msra.mxu0 %v9555
  %v9557 = vand.u32 %v2481, 4294901760
  %9558 = vmatpush.msra.mxu0 %v9557
  %v9559 = vand.u32 %v2479, 4294901760
  %9560 = vmatpush.msra.mxu0 %v9559
  %v9561 = vand.u32 %v2477, 4294901760
  %9562 = vmatpush.msra.mxu0 %v9561
  %v9563 = vand.u32 %v2475, 4294901760
  %9564 = vmatpush.msra.mxu0 %v9563
  %v9565 = vand.u32 %v2473, 4294901760
  %9566 = vmatpush.msra.mxu0 %v9565
  %v9567 = vand.u32 %v2471, 4294901760
  %9568 = vmatpush.msra.mxu0 %v9567
  %v9569 = vand.u32 %v2469, 4294901760
  %9570 = vmatpush.msra.mxu0 %v9569
  %v9571 = vand.u32 %v2467, 4294901760
  %9572 = vmatpush.msra.mxu0 %v9571
  %v9573 = vand.u32 %v9340, 4294901760
  %v9574 = vsub.f32 %v9340, %v9573
  %v9575 = vand.u32 %v9574, 4294901760
  %9576 = vmatmul.f32.gmra.mxu0 %v9575
  %v9577 = vpop.f32.mrf.mxu0
  %v9578 = vadd.f32 %v9539, %v9577
  %9579 = vdwg.mxu0
  %v9580 = vand.u32 %v2497, 4294901760
  %v9581 = vsub.f32 %v2497, %v9580
  %v9582 = vand.u32 %v9581, 4294901760
  %9583 = vmatpush.msra.mxu0 %v9582
  %v9584 = vand.u32 %v2495, 4294901760
  %v9585 = vsub.f32 %v2495, %v9584
  %v9586 = vand.u32 %v9585, 4294901760
  %9587 = vmatpush.msra.mxu0 %v9586
  %v9588 = vand.u32 %v2493, 4294901760
  %v9589 = vsub.f32 %v2493, %v9588
  %v9590 = vand.u32 %v9589, 4294901760
  %9591 = vmatpush.msra.mxu0 %v9590
  %v9592 = vand.u32 %v2491, 4294901760
  %v9593 = vsub.f32 %v2491, %v9592
  %v9594 = vand.u32 %v9593, 4294901760
  %9595 = vmatpush.msra.mxu0 %v9594
  %v9596 = vand.u32 %v2489, 4294901760
  %v9597 = vsub.f32 %v2489, %v9596
  %v9598 = vand.u32 %v9597, 4294901760
  %9599 = vmatpush.msra.mxu0 %v9598
  %v9600 = vand.u32 %v2487, 4294901760
  %v9601 = vsub.f32 %v2487, %v9600
  %v9602 = vand.u32 %v9601, 4294901760
  %9603 = vmatpush.msra.mxu0 %v9602
  %v9604 = vand.u32 %v2485, 4294901760
  %v9605 = vsub.f32 %v2485, %v9604
  %v9606 = vand.u32 %v9605, 4294901760
  %9607 = vmatpush.msra.mxu0 %v9606
  %v9608 = vand.u32 %v2483, 4294901760
  %v9609 = vsub.f32 %v2483, %v9608
  %v9610 = vand.u32 %v9609, 4294901760
  %9611 = vmatpush.msra.mxu0 %v9610
  %v9612 = vand.u32 %v2481, 4294901760
  %v9613 = vsub.f32 %v2481, %v9612
  %v9614 = vand.u32 %v9613, 4294901760
  %9615 = vmatpush.msra.mxu0 %v9614
  %v9616 = vand.u32 %v2479, 4294901760
  %v9617 = vsub.f32 %v2479, %v9616
  %v9618 = vand.u32 %v9617, 4294901760
  %9619 = vmatpush.msra.mxu0 %v9618
  %v9620 = vand.u32 %v2477, 4294901760
  %v9621 = vsub.f32 %v2477, %v9620
  %v9622 = vand.u32 %v9621, 4294901760
  %9623 = vmatpush.msra.mxu0 %v9622
  %v9624 = vand.u32 %v2475, 4294901760
  %v9625 = vsub.f32 %v2475, %v9624
  %v9626 = vand.u32 %v9625, 4294901760
  %9627 = vmatpush.msra.mxu0 %v9626
  %v9628 = vand.u32 %v2473, 4294901760
  %v9629 = vsub.f32 %v2473, %v9628
  %v9630 = vand.u32 %v9629, 4294901760
  %9631 = vmatpush.msra.mxu0 %v9630
  %v9632 = vand.u32 %v2471, 4294901760
  %v9633 = vsub.f32 %v2471, %v9632
  %v9634 = vand.u32 %v9633, 4294901760
  %9635 = vmatpush.msra.mxu0 %v9634
  %v9636 = vand.u32 %v2469, 4294901760
  %v9637 = vsub.f32 %v2469, %v9636
  %v9638 = vand.u32 %v9637, 4294901760
  %9639 = vmatpush.msra.mxu0 %v9638
  %v9640 = vand.u32 %v2467, 4294901760
  %v9641 = vsub.f32 %v2467, %v9640
  %v9642 = vand.u32 %v9641, 4294901760
  %9643 = vmatpush.msra.mxu0 %v9642
  %v9644 = vand.u32 %v9340, 4294901760
  %9645 = vmatmul.f32.gmra.mxu0 %v9644
  %v9646 = vpop.f32.mrf.mxu0
  %v9647 = vadd.f32 %v9578, %v9646
  %9648 = vdwg.mxu0
  %v9649 = vand.u32 %v2497, 4294901760
  %9650 = vmatpush.msra.mxu0 %v9649
  %v9651 = vand.u32 %v2495, 4294901760
  %9652 = vmatpush.msra.mxu0 %v9651
  %v9653 = vand.u32 %v2493, 4294901760
  %9654 = vmatpush.msra.mxu0 %v9653
  %v9655 = vand.u32 %v2491, 4294901760
  %9656 = vmatpush.msra.mxu0 %v9655
  %v9657 = vand.u32 %v2489, 4294901760
  %9658 = vmatpush.msra.mxu0 %v9657
  %v9659 = vand.u32 %v2487, 4294901760
  %9660 = vmatpush.msra.mxu0 %v9659
  %v9661 = vand.u32 %v2485, 4294901760
  %9662 = vmatpush.msra.mxu0 %v9661
  %v9663 = vand.u32 %v2483, 4294901760
  %9664 = vmatpush.msra.mxu0 %v9663
  %v9665 = vand.u32 %v2481, 4294901760
  %9666 = vmatpush.msra.mxu0 %v9665
  %v9667 = vand.u32 %v2479, 4294901760
  %9668 = vmatpush.msra.mxu0 %v9667
  %v9669 = vand.u32 %v2477, 4294901760
  %9670 = vmatpush.msra.mxu0 %v9669
  %v9671 = vand.u32 %v2475, 4294901760
  %9672 = vmatpush.msra.mxu0 %v9671
  %v9673 = vand.u32 %v2473, 4294901760
  %9674 = vmatpush.msra.mxu0 %v9673
  %v9675 = vand.u32 %v2471, 4294901760
  %9676 = vmatpush.msra.mxu0 %v9675
  %v9677 = vand.u32 %v2469, 4294901760
  %9678 = vmatpush.msra.mxu0 %v9677
  %v9679 = vand.u32 %v2467, 4294901760
  %9680 = vmatpush.msra.mxu0 %v9679
  %v9681 = vand.u32 %v9340, 4294901760
  %9682 = vmatmul.f32.gmra.mxu0 %v9681
  %v9683 = vpop.f32.mrf.mxu0
  %v9684 = vadd.f32 %v9647, %v9683
  %9685 = vdwg.mxu0
  %9686 = vmatpush.msra.mxu0 0.0
  %9687 = vmatpush.msra.mxu0 0.0
  %9688 = vmatpush.msra.mxu0 0.0
  %9689 = vmatpush.msra.mxu0 0.0
  %9690 = vmatpush.msra.mxu0 0.0
  %9691 = vmatpush.msra.mxu0 0.0
  %9692 = vmatpush.msra.mxu0 0.0
  %9693 = vmatpush.msra.mxu0 0.0
  %9694 = vmatpush.msra.mxu0 0.0
  %9695 = vmatpush.msra.mxu0 0.0
  %9696 = vmatpush.msra.mxu0 0.0
  %9697 = vmatpush.msra.mxu0 0.0
  %v9698 = vand.u32 %v2505, 4294901760
  %9699 = vmatpush.msra.mxu0 %v9698
  %v9700 = vand.u32 %v2503, 4294901760
  %9701 = vmatpush.msra.mxu0 %v9700
  %v9702 = vand.u32 %v2501, 4294901760
  %9703 = vmatpush.msra.mxu0 %v9702
  %v9704 = vand.u32 %v2499, 4294901760
  %9705 = vmatpush.msra.mxu0 %v9704
  %v9706 = vand.u32 %v9343, 4294901760
  %v9707 = vsub.f32 %v9343, %v9706
  %v9708 = vand.u32 %v9707, 4294901760
  %v9709 = vsub.f32 %v9707, %v9708
  %v9710 = vand.u32 %v9709, 4294901760
  %9711 = vmatmul.f32.gmra.mxu0 %v9710
  %v9712 = vpop.f32.mrf.mxu0
  %v9713 = vadd.f32 %v9684, %v9712
  %9714 = vdwg.mxu0
  %9715 = vmatpush.msra.mxu0 0.0
  %9716 = vmatpush.msra.mxu0 0.0
  %9717 = vmatpush.msra.mxu0 0.0
  %9718 = vmatpush.msra.mxu0 0.0
  %9719 = vmatpush.msra.mxu0 0.0
  %9720 = vmatpush.msra.mxu0 0.0
  %9721 = vmatpush.msra.mxu0 0.0
  %9722 = vmatpush.msra.mxu0 0.0
  %9723 = vmatpush.msra.mxu0 0.0
  %9724 = vmatpush.msra.mxu0 0.0
  %9725 = vmatpush.msra.mxu0 0.0
  %9726 = vmatpush.msra.mxu0 0.0
  %v9727 = vand.u32 %v2505, 4294901760
  %v9728 = vsub.f32 %v2505, %v9727
  %v9729 = vand.u32 %v9728, 4294901760
  %v9730 = vsub.f32 %v9728, %v9729
  %v9731 = vand.u32 %v9730, 4294901760
  %9732 = vmatpush.msra.mxu0 %v9731
  %v9733 = vand.u32 %v2503, 4294901760
  %v9734 = vsub.f32 %v2503, %v9733
  %v9735 = vand.u32 %v9734, 4294901760
  %v9736 = vsub.f32 %v9734, %v9735
  %v9737 = vand.u32 %v9736, 4294901760
  %9738 = vmatpush.msra.mxu0 %v9737
  %v9739 = vand.u32 %v2501, 4294901760
  %v9740 = vsub.f32 %v2501, %v9739
  %v9741 = vand.u32 %v9740, 4294901760
  %v9742 = vsub.f32 %v9740, %v9741
  %v9743 = vand.u32 %v9742, 4294901760
  %9744 = vmatpush.msra.mxu0 %v9743
  %v9745 = vand.u32 %v2499, 4294901760
  %v9746 = vsub.f32 %v2499, %v9745
  %v9747 = vand.u32 %v9746, 4294901760
  %v9748 = vsub.f32 %v9746, %v9747
  %v9749 = vand.u32 %v9748, 4294901760
  %9750 = vmatpush.msra.mxu0 %v9749
  %v9751 = vand.u32 %v9343, 4294901760
  %9752 = vmatmul.f32.gmra.mxu0 %v9751
  %v9753 = vpop.f32.mrf.mxu0
  %v9754 = vadd.f32 %v9713, %v9753
  %9755 = vdwg.mxu0
  %9756 = vmatpush.msra.mxu0 0.0
  %9757 = vmatpush.msra.mxu0 0.0
  %9758 = vmatpush.msra.mxu0 0.0
  %9759 = vmatpush.msra.mxu0 0.0
  %9760 = vmatpush.msra.mxu0 0.0
  %9761 = vmatpush.msra.mxu0 0.0
  %9762 = vmatpush.msra.mxu0 0.0
  %9763 = vmatpush.msra.mxu0 0.0
  %9764 = vmatpush.msra.mxu0 0.0
  %9765 = vmatpush.msra.mxu0 0.0
  %9766 = vmatpush.msra.mxu0 0.0
  %9767 = vmatpush.msra.mxu0 0.0
  %v9768 = vand.u32 %v2505, 4294901760
  %v9769 = vsub.f32 %v2505, %v9768
  %9770 = vmatpush.msra.mxu0 %v9769
  %v9771 = vand.u32 %v2503, 4294901760
  %v9772 = vsub.f32 %v2503, %v9771
  %9773 = vmatpush.msra.mxu0 %v9772
  %v9774 = vand.u32 %v2501, 4294901760
  %v9775 = vsub.f32 %v2501, %v9774
  %9776 = vmatpush.msra.mxu0 %v9775
  %v9777 = vand.u32 %v2499, 4294901760
  %v9778 = vsub.f32 %v2499, %v9777
  %9779 = vmatpush.msra.mxu0 %v9778
  %v9780 = vand.u32 %v9343, 4294901760
  %v9781 = vsub.f32 %v9343, %v9780
  %9782 = vmatmul.f32.gmra.mxu0 %v9781
  %v9783 = vpop.f32.mrf.mxu0
  %v9784 = vadd.f32 %v9754, %v9783
  %9785 = vdwg.mxu0
  %9786 = vmatpush.msra.mxu0 0.0
  %9787 = vmatpush.msra.mxu0 0.0
  %9788 = vmatpush.msra.mxu0 0.0
  %9789 = vmatpush.msra.mxu0 0.0
  %9790 = vmatpush.msra.mxu0 0.0
  %9791 = vmatpush.msra.mxu0 0.0
  %9792 = vmatpush.msra.mxu0 0.0
  %9793 = vmatpush.msra.mxu0 0.0
  %9794 = vmatpush.msra.mxu0 0.0
  %9795 = vmatpush.msra.mxu0 0.0
  %9796 = vmatpush.msra.mxu0 0.0
  %9797 = vmatpush.msra.mxu0 0.0
  %v9798 = vand.u32 %v2505, 4294901760
  %9799 = vmatpush.msra.mxu0 %v9798
  %v9800 = vand.u32 %v2503, 4294901760
  %9801 = vmatpush.msra.mxu0 %v9800
  %v9802 = vand.u32 %v2501, 4294901760
  %9803 = vmatpush.msra.mxu0 %v9802
  %v9804 = vand.u32 %v2499, 4294901760
  %9805 = vmatpush.msra.mxu0 %v9804
  %v9806 = vand.u32 %v9343, 4294901760
  %v9807 = vsub.f32 %v9343, %v9806
  %v9808 = vand.u32 %v9807, 4294901760
  %9809 = vmatmul.f32.gmra.mxu0 %v9808
  %v9810 = vpop.f32.mrf.mxu0
  %v9811 = vadd.f32 %v9784, %v9810
  %9812 = vdwg.mxu0
  %9813 = vmatpush.msra.mxu0 0.0
  %9814 = vmatpush.msra.mxu0 0.0
  %9815 = vmatpush.msra.mxu0 0.0
  %9816 = vmatpush.msra.mxu0 0.0
  %9817 = vmatpush.msra.mxu0 0.0
  %9818 = vmatpush.msra.mxu0 0.0
  %9819 = vmatpush.msra.mxu0 0.0
  %9820 = vmatpush.msra.mxu0 0.0
  %9821 = vmatpush.msra.mxu0 0.0
  %9822 = vmatpush.msra.mxu0 0.0
  %9823 = vmatpush.msra.mxu0 0.0
  %9824 = vmatpush.msra.mxu0 0.0
  %v9825 = vand.u32 %v2505, 4294901760
  %v9826 = vsub.f32 %v2505, %v9825
  %v9827 = vand.u32 %v9826, 4294901760
  %9828 = vmatpush.msra.mxu0 %v9827
  %v9829 = vand.u32 %v2503, 4294901760
  %v9830 = vsub.f32 %v2503, %v9829
  %v9831 = vand.u32 %v9830, 4294901760
  %9832 = vmatpush.msra.mxu0 %v9831
  %v9833 = vand.u32 %v2501, 4294901760
  %v9834 = vsub.f32 %v2501, %v9833
  %v9835 = vand.u32 %v9834, 4294901760
  %9836 = vmatpush.msra.mxu0 %v9835
  %v9837 = vand.u32 %v2499, 4294901760
  %v9838 = vsub.f32 %v2499, %v9837
  %v9839 = vand.u32 %v9838, 4294901760
  %9840 = vmatpush.msra.mxu0 %v9839
  %v9841 = vand.u32 %v9343, 4294901760
  %9842 = vmatmul.f32.gmra.mxu0 %v9841
  %v9843 = vpop.f32.mrf.mxu0
  %v9844 = vadd.f32 %v9811, %v9843
  %9845 = vdwg.mxu0
  %9846 = vmatpush.msra.mxu0 0.0
  %9847 = vmatpush.msra.mxu0 0.0
  %9848 = vmatpush.msra.mxu0 0.0
  %9849 = vmatpush.msra.mxu0 0.0
  %9850 = vmatpush.msra.mxu0 0.0
  %9851 = vmatpush.msra.mxu0 0.0
  %9852 = vmatpush.msra.mxu0 0.0
  %9853 = vmatpush.msra.mxu0 0.0
  %9854 = vmatpush.msra.mxu0 0.0
  %9855 = vmatpush.msra.mxu0 0.0
  %9856 = vmatpush.msra.mxu0 0.0
  %9857 = vmatpush.msra.mxu0 0.0
  %v9858 = vand.u32 %v2505, 4294901760
  %9859 = vmatpush.msra.mxu0 %v9858
  %v9860 = vand.u32 %v2503, 4294901760
  %9861 = vmatpush.msra.mxu0 %v9860
  %v9862 = vand.u32 %v2501, 4294901760
  %9863 = vmatpush.msra.mxu0 %v9862
  %v9864 = vand.u32 %v2499, 4294901760
  %9865 = vmatpush.msra.mxu0 %v9864
  %v9866 = vand.u32 %v9343, 4294901760
  %9867 = vmatmul.f32.gmra.mxu0 %v9866
  %v9868 = vpop.f32.mrf.mxu0
  %v9869 = vadd.f32 %v9844, %v9868
  %9870 = vdwg.mxu0
  %v9871 = vand.u32 %v2498, 4294901760
  %9872 = vmatpush.msra.mxu0 %v9871
  %v9873 = vand.u32 %v2496, 4294901760
  %9874 = vmatpush.msra.mxu0 %v9873
  %v9875 = vand.u32 %v2494, 4294901760
  %9876 = vmatpush.msra.mxu0 %v9875
  %v9877 = vand.u32 %v2492, 4294901760
  %9878 = vmatpush.msra.mxu0 %v9877
  %v9879 = vand.u32 %v2490, 4294901760
  %9880 = vmatpush.msra.mxu0 %v9879
  %v9881 = vand.u32 %v2488, 4294901760
  %9882 = vmatpush.msra.mxu0 %v9881
  %v9883 = vand.u32 %v2486, 4294901760
  %9884 = vmatpush.msra.mxu0 %v9883
  %v9885 = vand.u32 %v2484, 4294901760
  %9886 = vmatpush.msra.mxu0 %v9885
  %v9887 = vand.u32 %v2482, 4294901760
  %9888 = vmatpush.msra.mxu0 %v9887
  %v9889 = vand.u32 %v2480, 4294901760
  %9890 = vmatpush.msra.mxu0 %v9889
  %v9891 = vand.u32 %v2478, 4294901760
  %9892 = vmatpush.msra.mxu0 %v9891
  %v9893 = vand.u32 %v2476, 4294901760
  %9894 = vmatpush.msra.mxu0 %v9893
  %v9895 = vand.u32 %v2474, 4294901760
  %9896 = vmatpush.msra.mxu0 %v9895
  %v9897 = vand.u32 %v2472, 4294901760
  %9898 = vmatpush.msra.mxu0 %v9897
  %v9899 = vand.u32 %v2470, 4294901760
  %9900 = vmatpush.msra.mxu0 %v9899
  %v9901 = vand.u32 %v2468, 4294901760
  %9902 = vmatpush.msra.mxu0 %v9901
  %v9903 = vand.u32 %v9340, 4294901760
  %v9904 = vsub.f32 %v9340, %v9903
  %v9905 = vand.u32 %v9904, 4294901760
  %v9906 = vsub.f32 %v9904, %v9905
  %v9907 = vand.u32 %v9906, 4294901760
  %9908 = vmatmul.f32.gmra.mxu0 %v9907
  %v9909 = vpop.f32.mrf.mxu0
  %v9910 = vadd.f32 0.0, %v9909
  %9911 = vdwg.mxu0
  %v9912 = vand.u32 %v2498, 4294901760
  %v9913 = vsub.f32 %v2498, %v9912
  %v9914 = vand.u32 %v9913, 4294901760
  %v9915 = vsub.f32 %v9913, %v9914
  %v9916 = vand.u32 %v9915, 4294901760
  %9917 = vmatpush.msra.mxu0 %v9916
  %v9918 = vand.u32 %v2496, 4294901760
  %v9919 = vsub.f32 %v2496, %v9918
  %v9920 = vand.u32 %v9919, 4294901760
  %v9921 = vsub.f32 %v9919, %v9920
  %v9922 = vand.u32 %v9921, 4294901760
  %9923 = vmatpush.msra.mxu0 %v9922
  %v9924 = vand.u32 %v2494, 4294901760
  %v9925 = vsub.f32 %v2494, %v9924
  %v9926 = vand.u32 %v9925, 4294901760
  %v9927 = vsub.f32 %v9925, %v9926
  %v9928 = vand.u32 %v9927, 4294901760
  %9929 = vmatpush.msra.mxu0 %v9928
  %v9930 = vand.u32 %v2492, 4294901760
  %v9931 = vsub.f32 %v2492, %v9930
  %v9932 = vand.u32 %v9931, 4294901760
  %v9933 = vsub.f32 %v9931, %v9932
  %v9934 = vand.u32 %v9933, 4294901760
  %9935 = vmatpush.msra.mxu0 %v9934
  %v9936 = vand.u32 %v2490, 4294901760
  %v9937 = vsub.f32 %v2490, %v9936
  %v9938 = vand.u32 %v9937, 4294901760
  %v9939 = vsub.f32 %v9937, %v9938
  %v9940 = vand.u32 %v9939, 4294901760
  %9941 = vmatpush.msra.mxu0 %v9940
  %v9942 = vand.u32 %v2488, 4294901760
  %v9943 = vsub.f32 %v2488, %v9942
  %v9944 = vand.u32 %v9943, 4294901760
  %v9945 = vsub.f32 %v9943, %v9944
  %v9946 = vand.u32 %v9945, 4294901760
  %9947 = vmatpush.msra.mxu0 %v9946
  %v9948 = vand.u32 %v2486, 4294901760
  %v9949 = vsub.f32 %v2486, %v9948
  %v9950 = vand.u32 %v9949, 4294901760
  %v9951 = vsub.f32 %v9949, %v9950
  %v9952 = vand.u32 %v9951, 4294901760
  %9953 = vmatpush.msra.mxu0 %v9952
  %v9954 = vand.u32 %v2484, 4294901760
  %v9955 = vsub.f32 %v2484, %v9954
  %v9956 = vand.u32 %v9955, 4294901760
  %v9957 = vsub.f32 %v9955, %v9956
  %v9958 = vand.u32 %v9957, 4294901760
  %9959 = vmatpush.msra.mxu0 %v9958
  %v9960 = vand.u32 %v2482, 4294901760
  %v9961 = vsub.f32 %v2482, %v9960
  %v9962 = vand.u32 %v9961, 4294901760
  %v9963 = vsub.f32 %v9961, %v9962
  %v9964 = vand.u32 %v9963, 4294901760
  %9965 = vmatpush.msra.mxu0 %v9964
  %v9966 = vand.u32 %v2480, 4294901760
  %v9967 = vsub.f32 %v2480, %v9966
  %v9968 = vand.u32 %v9967, 4294901760
  %v9969 = vsub.f32 %v9967, %v9968
  %v9970 = vand.u32 %v9969, 4294901760
  %9971 = vmatpush.msra.mxu0 %v9970
  %v9972 = vand.u32 %v2478, 4294901760
  %v9973 = vsub.f32 %v2478, %v9972
  %v9974 = vand.u32 %v9973, 4294901760
  %v9975 = vsub.f32 %v9973, %v9974
  %v9976 = vand.u32 %v9975, 4294901760
  %9977 = vmatpush.msra.mxu0 %v9976
  %v9978 = vand.u32 %v2476, 4294901760
  %v9979 = vsub.f32 %v2476, %v9978
  %v9980 = vand.u32 %v9979, 4294901760
  %v9981 = vsub.f32 %v9979, %v9980
  %v9982 = vand.u32 %v9981, 4294901760
  %9983 = vmatpush.msra.mxu0 %v9982
  %v9984 = vand.u32 %v2474, 4294901760
  %v9985 = vsub.f32 %v2474, %v9984
  %v9986 = vand.u32 %v9985, 4294901760
  %v9987 = vsub.f32 %v9985, %v9986
  %v9988 = vand.u32 %v9987, 4294901760
  %9989 = vmatpush.msra.mxu0 %v9988
  %v9990 = vand.u32 %v2472, 4294901760
  %v9991 = vsub.f32 %v2472, %v9990
  %v9992 = vand.u32 %v9991, 4294901760
  %v9993 = vsub.f32 %v9991, %v9992
  %v9994 = vand.u32 %v9993, 4294901760
  %9995 = vmatpush.msra.mxu0 %v9994
  %v9996 = vand.u32 %v2470, 4294901760
  %v9997 = vsub.f32 %v2470, %v9996
  %v9998 = vand.u32 %v9997, 4294901760
  %v9999 = vsub.f32 %v9997, %v9998
  %v10000 = vand.u32 %v9999, 4294901760
  %10001 = vmatpush.msra.mxu0 %v10000
  %v10002 = vand.u32 %v2468, 4294901760
  %v10003 = vsub.f32 %v2468, %v10002
  %v10004 = vand.u32 %v10003, 4294901760
  %v10005 = vsub.f32 %v10003, %v10004
  %v10006 = vand.u32 %v10005, 4294901760
  %10007 = vmatpush.msra.mxu0 %v10006
  %v10008 = vand.u32 %v9340, 4294901760
  %10009 = vmatmul.f32.gmra.mxu0 %v10008
  %v10010 = vpop.f32.mrf.mxu0
  %v10011 = vadd.f32 %v9910, %v10010
  %10012 = vdwg.mxu0
  %v10013 = vand.u32 %v2498, 4294901760
  %v10014 = vsub.f32 %v2498, %v10013
  %10015 = vmatpush.msra.mxu0 %v10014
  %v10016 = vand.u32 %v2496, 4294901760
  %v10017 = vsub.f32 %v2496, %v10016
  %10018 = vmatpush.msra.mxu0 %v10017
  %v10019 = vand.u32 %v2494, 4294901760
  %v10020 = vsub.f32 %v2494, %v10019
  %10021 = vmatpush.msra.mxu0 %v10020
  %v10022 = vand.u32 %v2492, 4294901760
  %v10023 = vsub.f32 %v2492, %v10022
  %10024 = vmatpush.msra.mxu0 %v10023
  %v10025 = vand.u32 %v2490, 4294901760
  %v10026 = vsub.f32 %v2490, %v10025
  %10027 = vmatpush.msra.mxu0 %v10026
  %v10028 = vand.u32 %v2488, 4294901760
  %v10029 = vsub.f32 %v2488, %v10028
  %10030 = vmatpush.msra.mxu0 %v10029
  %v10031 = vand.u32 %v2486, 4294901760
  %v10032 = vsub.f32 %v2486, %v10031
  %10033 = vmatpush.msra.mxu0 %v10032
  %v10034 = vand.u32 %v2484, 4294901760
  %v10035 = vsub.f32 %v2484, %v10034
  %10036 = vmatpush.msra.mxu0 %v10035
  %v10037 = vand.u32 %v2482, 4294901760
  %v10038 = vsub.f32 %v2482, %v10037
  %10039 = vmatpush.msra.mxu0 %v10038
  %v10040 = vand.u32 %v2480, 4294901760
  %v10041 = vsub.f32 %v2480, %v10040
  %10042 = vmatpush.msra.mxu0 %v10041
  %v10043 = vand.u32 %v2478, 4294901760
  %v10044 = vsub.f32 %v2478, %v10043
  %10045 = vmatpush.msra.mxu0 %v10044
  %v10046 = vand.u32 %v2476, 4294901760
  %v10047 = vsub.f32 %v2476, %v10046
  %10048 = vmatpush.msra.mxu0 %v10047
  %v10049 = vand.u32 %v2474, 4294901760
  %v10050 = vsub.f32 %v2474, %v10049
  %10051 = vmatpush.msra.mxu0 %v10050
  %v10052 = vand.u32 %v2472, 4294901760
  %v10053 = vsub.f32 %v2472, %v10052
  %10054 = vmatpush.msra.mxu0 %v10053
  %v10055 = vand.u32 %v2470, 4294901760
  %v10056 = vsub.f32 %v2470, %v10055
  %10057 = vmatpush.msra.mxu0 %v10056
  %v10058 = vand.u32 %v2468, 4294901760
  %v10059 = vsub.f32 %v2468, %v10058
  %10060 = vmatpush.msra.mxu0 %v10059
  %v10061 = vand.u32 %v9340, 4294901760
  %v10062 = vsub.f32 %v9340, %v10061
  %10063 = vmatmul.f32.gmra.mxu0 %v10062
  %v10064 = vpop.f32.mrf.mxu0
  %v10065 = vadd.f32 %v10011, %v10064
  %10066 = vdwg.mxu0
  %v10067 = vand.u32 %v2498, 4294901760
  %10068 = vmatpush.msra.mxu0 %v10067
  %v10069 = vand.u32 %v2496, 4294901760
  %10070 = vmatpush.msra.mxu0 %v10069
  %v10071 = vand.u32 %v2494, 4294901760
  %10072 = vmatpush.msra.mxu0 %v10071
  %v10073 = vand.u32 %v2492, 4294901760
  %10074 = vmatpush.msra.mxu0 %v10073
  %v10075 = vand.u32 %v2490, 4294901760
  %10076 = vmatpush.msra.mxu0 %v10075
  %v10077 = vand.u32 %v2488, 4294901760
  %10078 = vmatpush.msra.mxu0 %v10077
  %v10079 = vand.u32 %v2486, 4294901760
  %10080 = vmatpush.msra.mxu0 %v10079
  %v10081 = vand.u32 %v2484, 4294901760
  %10082 = vmatpush.msra.mxu0 %v10081
  %v10083 = vand.u32 %v2482, 4294901760
  %10084 = vmatpush.msra.mxu0 %v10083
  %v10085 = vand.u32 %v2480, 4294901760
  %10086 = vmatpush.msra.mxu0 %v10085
  %v10087 = vand.u32 %v2478, 4294901760
  %10088 = vmatpush.msra.mxu0 %v10087
  %v10089 = vand.u32 %v2476, 4294901760
  %10090 = vmatpush.msra.mxu0 %v10089
  %v10091 = vand.u32 %v2474, 4294901760
  %10092 = vmatpush.msra.mxu0 %v10091
  %v10093 = vand.u32 %v2472, 4294901760
  %10094 = vmatpush.msra.mxu0 %v10093
  %v10095 = vand.u32 %v2470, 4294901760
  %10096 = vmatpush.msra.mxu0 %v10095
  %v10097 = vand.u32 %v2468, 4294901760
  %10098 = vmatpush.msra.mxu0 %v10097
  %v10099 = vand.u32 %v9340, 4294901760
  %v10100 = vsub.f32 %v9340, %v10099
  %v10101 = vand.u32 %v10100, 4294901760
  %10102 = vmatmul.f32.gmra.mxu0 %v10101
  %v10103 = vpop.f32.mrf.mxu0
  %v10104 = vadd.f32 %v10065, %v10103
  %10105 = vdwg.mxu0
  %v10106 = vand.u32 %v2498, 4294901760
  %v10107 = vsub.f32 %v2498, %v10106
  %v10108 = vand.u32 %v10107, 4294901760
  %10109 = vmatpush.msra.mxu0 %v10108
  %v10110 = vand.u32 %v2496, 4294901760
  %v10111 = vsub.f32 %v2496, %v10110
  %v10112 = vand.u32 %v10111, 4294901760
  %10113 = vmatpush.msra.mxu0 %v10112
  %v10114 = vand.u32 %v2494, 4294901760
  %v10115 = vsub.f32 %v2494, %v10114
  %v10116 = vand.u32 %v10115, 4294901760
  %10117 = vmatpush.msra.mxu0 %v10116
  %v10118 = vand.u32 %v2492, 4294901760
  %v10119 = vsub.f32 %v2492, %v10118
  %v10120 = vand.u32 %v10119, 4294901760
  %10121 = vmatpush.msra.mxu0 %v10120
  %v10122 = vand.u32 %v2490, 4294901760
  %v10123 = vsub.f32 %v2490, %v10122
  %v10124 = vand.u32 %v10123, 4294901760
  %10125 = vmatpush.msra.mxu0 %v10124
  %v10126 = vand.u32 %v2488, 4294901760
  %v10127 = vsub.f32 %v2488, %v10126
  %v10128 = vand.u32 %v10127, 4294901760
  %10129 = vmatpush.msra.mxu0 %v10128
  %v10130 = vand.u32 %v2486, 4294901760
  %v10131 = vsub.f32 %v2486, %v10130
  %v10132 = vand.u32 %v10131, 4294901760
  %10133 = vmatpush.msra.mxu0 %v10132
  %v10134 = vand.u32 %v2484, 4294901760
  %v10135 = vsub.f32 %v2484, %v10134
  %v10136 = vand.u32 %v10135, 4294901760
  %10137 = vmatpush.msra.mxu0 %v10136
  %v10138 = vand.u32 %v2482, 4294901760
  %v10139 = vsub.f32 %v2482, %v10138
  %v10140 = vand.u32 %v10139, 4294901760
  %10141 = vmatpush.msra.mxu0 %v10140
  %v10142 = vand.u32 %v2480, 4294901760
  %v10143 = vsub.f32 %v2480, %v10142
  %v10144 = vand.u32 %v10143, 4294901760
  %10145 = vmatpush.msra.mxu0 %v10144
  %v10146 = vand.u32 %v2478, 4294901760
  %v10147 = vsub.f32 %v2478, %v10146
  %v10148 = vand.u32 %v10147, 4294901760
  %10149 = vmatpush.msra.mxu0 %v10148
  %v10150 = vand.u32 %v2476, 4294901760
  %v10151 = vsub.f32 %v2476, %v10150
  %v10152 = vand.u32 %v10151, 4294901760
  %10153 = vmatpush.msra.mxu0 %v10152
  %v10154 = vand.u32 %v2474, 4294901760
  %v10155 = vsub.f32 %v2474, %v10154
  %v10156 = vand.u32 %v10155, 4294901760
  %10157 = vmatpush.msra.mxu0 %v10156
  %v10158 = vand.u32 %v2472, 4294901760
  %v10159 = vsub.f32 %v2472, %v10158
  %v10160 = vand.u32 %v10159, 4294901760
  %10161 = vmatpush.msra.mxu0 %v10160
  %v10162 = vand.u32 %v2470, 4294901760
  %v10163 = vsub.f32 %v2470, %v10162
  %v10164 = vand.u32 %v10163, 4294901760
  %10165 = vmatpush.msra.mxu0 %v10164
  %v10166 = vand.u32 %v2468, 4294901760
  %v10167 = vsub.f32 %v2468, %v10166
  %v10168 = vand.u32 %v10167, 4294901760
  %10169 = vmatpush.msra.mxu0 %v10168
  %v10170 = vand.u32 %v9340, 4294901760
  %10171 = vmatmul.f32.gmra.mxu0 %v10170
  %v10172 = vpop.f32.mrf.mxu0
  %v10173 = vadd.f32 %v10104, %v10172
  %10174 = vdwg.mxu0
  %v10175 = vand.u32 %v2498, 4294901760
  %10176 = vmatpush.msra.mxu0 %v10175
  %v10177 = vand.u32 %v2496, 4294901760
  %10178 = vmatpush.msra.mxu0 %v10177
  %v10179 = vand.u32 %v2494, 4294901760
  %10180 = vmatpush.msra.mxu0 %v10179
  %v10181 = vand.u32 %v2492, 4294901760
  %10182 = vmatpush.msra.mxu0 %v10181
  %v10183 = vand.u32 %v2490, 4294901760
  %10184 = vmatpush.msra.mxu0 %v10183
  %v10185 = vand.u32 %v2488, 4294901760
  %10186 = vmatpush.msra.mxu0 %v10185
  %v10187 = vand.u32 %v2486, 4294901760
  %10188 = vmatpush.msra.mxu0 %v10187
  %v10189 = vand.u32 %v2484, 4294901760
  %10190 = vmatpush.msra.mxu0 %v10189
  %v10191 = vand.u32 %v2482, 4294901760
  %10192 = vmatpush.msra.mxu0 %v10191
  %v10193 = vand.u32 %v2480, 4294901760
  %10194 = vmatpush.msra.mxu0 %v10193
  %v10195 = vand.u32 %v2478, 4294901760
  %10196 = vmatpush.msra.mxu0 %v10195
  %v10197 = vand.u32 %v2476, 4294901760
  %10198 = vmatpush.msra.mxu0 %v10197
  %v10199 = vand.u32 %v2474, 4294901760
  %10200 = vmatpush.msra.mxu0 %v10199
  %v10201 = vand.u32 %v2472, 4294901760
  %10202 = vmatpush.msra.mxu0 %v10201
  %v10203 = vand.u32 %v2470, 4294901760
  %10204 = vmatpush.msra.mxu0 %v10203
  %v10205 = vand.u32 %v2468, 4294901760
  %10206 = vmatpush.msra.mxu0 %v10205
  %v10207 = vand.u32 %v9340, 4294901760
  %10208 = vmatmul.f32.gmra.mxu0 %v10207
  %v10209 = vpop.f32.mrf.mxu0
  %v10210 = vadd.f32 %v10173, %v10209
  %10211 = vdwg.mxu0
  %10212 = vmatpush.msra.mxu0 0.0
  %10213 = vmatpush.msra.mxu0 0.0
  %10214 = vmatpush.msra.mxu0 0.0
  %10215 = vmatpush.msra.mxu0 0.0
  %10216 = vmatpush.msra.mxu0 0.0
  %10217 = vmatpush.msra.mxu0 0.0
  %10218 = vmatpush.msra.mxu0 0.0
  %10219 = vmatpush.msra.mxu0 0.0
  %10220 = vmatpush.msra.mxu0 0.0
  %10221 = vmatpush.msra.mxu0 0.0
  %10222 = vmatpush.msra.mxu0 0.0
  %10223 = vmatpush.msra.mxu0 0.0
  %v10224 = vand.u32 %v2506, 4294901760
  %10225 = vmatpush.msra.mxu0 %v10224
  %v10226 = vand.u32 %v2504, 4294901760
  %10227 = vmatpush.msra.mxu0 %v10226
  %v10228 = vand.u32 %v2502, 4294901760
  %10229 = vmatpush.msra.mxu0 %v10228
  %v10230 = vand.u32 %v2500, 4294901760
  %10231 = vmatpush.msra.mxu0 %v10230
  %v10232 = vand.u32 %v9343, 4294901760
  %v10233 = vsub.f32 %v9343, %v10232
  %v10234 = vand.u32 %v10233, 4294901760
  %v10235 = vsub.f32 %v10233, %v10234
  %v10236 = vand.u32 %v10235, 4294901760
  %10237 = vmatmul.f32.gmra.mxu0 %v10236
  %v10238 = vpop.f32.mrf.mxu0
  %v10239 = vadd.f32 %v10210, %v10238
  %10240 = vdwg.mxu0
  %10241 = vmatpush.msra.mxu0 0.0
  %10242 = vmatpush.msra.mxu0 0.0
  %10243 = vmatpush.msra.mxu0 0.0
  %10244 = vmatpush.msra.mxu0 0.0
  %10245 = vmatpush.msra.mxu0 0.0
  %10246 = vmatpush.msra.mxu0 0.0
  %10247 = vmatpush.msra.mxu0 0.0
  %10248 = vmatpush.msra.mxu0 0.0
  %10249 = vmatpush.msra.mxu0 0.0
  %10250 = vmatpush.msra.mxu0 0.0
  %10251 = vmatpush.msra.mxu0 0.0
  %10252 = vmatpush.msra.mxu0 0.0
  %v10253 = vand.u32 %v2506, 4294901760
  %v10254 = vsub.f32 %v2506, %v10253
  %v10255 = vand.u32 %v10254, 4294901760
  %v10256 = vsub.f32 %v10254, %v10255
  %v10257 = vand.u32 %v10256, 4294901760
  %10258 = vmatpush.msra.mxu0 %v10257
  %v10259 = vand.u32 %v2504, 4294901760
  %v10260 = vsub.f32 %v2504, %v10259
  %v10261 = vand.u32 %v10260, 4294901760
  %v10262 = vsub.f32 %v10260, %v10261
  %v10263 = vand.u32 %v10262, 4294901760
  %10264 = vmatpush.msra.mxu0 %v10263
  %v10265 = vand.u32 %v2502, 4294901760
  %v10266 = vsub.f32 %v2502, %v10265
  %v10267 = vand.u32 %v10266, 4294901760
  %v10268 = vsub.f32 %v10266, %v10267
  %v10269 = vand.u32 %v10268, 4294901760
  %10270 = vmatpush.msra.mxu0 %v10269
  %v10271 = vand.u32 %v2500, 4294901760
  %v10272 = vsub.f32 %v2500, %v10271
  %v10273 = vand.u32 %v10272, 4294901760
  %v10274 = vsub.f32 %v10272, %v10273
  %v10275 = vand.u32 %v10274, 4294901760
  %10276 = vmatpush.msra.mxu0 %v10275
  %v10277 = vand.u32 %v9343, 4294901760
  %10278 = vmatmul.f32.gmra.mxu0 %v10277
  %v10279 = vpop.f32.mrf.mxu0
  %v10280 = vadd.f32 %v10239, %v10279
  %10281 = vdwg.mxu0
  %10282 = vmatpush.msra.mxu0 0.0
  %10283 = vmatpush.msra.mxu0 0.0
  %10284 = vmatpush.msra.mxu0 0.0
  %10285 = vmatpush.msra.mxu0 0.0
  %10286 = vmatpush.msra.mxu0 0.0
  %10287 = vmatpush.msra.mxu0 0.0
  %10288 = vmatpush.msra.mxu0 0.0
  %10289 = vmatpush.msra.mxu0 0.0
  %10290 = vmatpush.msra.mxu0 0.0
  %10291 = vmatpush.msra.mxu0 0.0
  %10292 = vmatpush.msra.mxu0 0.0
  %10293 = vmatpush.msra.mxu0 0.0
  %v10294 = vand.u32 %v2506, 4294901760
  %v10295 = vsub.f32 %v2506, %v10294
  %10296 = vmatpush.msra.mxu0 %v10295
  %v10297 = vand.u32 %v2504, 4294901760
  %v10298 = vsub.f32 %v2504, %v10297
  %10299 = vmatpush.msra.mxu0 %v10298
  %v10300 = vand.u32 %v2502, 4294901760
  %v10301 = vsub.f32 %v2502, %v10300
  %10302 = vmatpush.msra.mxu0 %v10301
  %v10303 = vand.u32 %v2500, 4294901760
  %v10304 = vsub.f32 %v2500, %v10303
  %10305 = vmatpush.msra.mxu0 %v10304
  %v10306 = vand.u32 %v9343, 4294901760
  %v10307 = vsub.f32 %v9343, %v10306
  %10308 = vmatmul.f32.gmra.mxu0 %v10307
  %v10309 = vpop.f32.mrf.mxu0
  %v10310 = vadd.f32 %v10280, %v10309
  %10311 = vdwg.mxu0
  %10312 = vmatpush.msra.mxu0 0.0
  %10313 = vmatpush.msra.mxu0 0.0
  %10314 = vmatpush.msra.mxu0 0.0
  %10315 = vmatpush.msra.mxu0 0.0
  %10316 = vmatpush.msra.mxu0 0.0
  %10317 = vmatpush.msra.mxu0 0.0
  %10318 = vmatpush.msra.mxu0 0.0
  %10319 = vmatpush.msra.mxu0 0.0
  %10320 = vmatpush.msra.mxu0 0.0
  %10321 = vmatpush.msra.mxu0 0.0
  %10322 = vmatpush.msra.mxu0 0.0
  %10323 = vmatpush.msra.mxu0 0.0
  %v10324 = vand.u32 %v2506, 4294901760
  %10325 = vmatpush.msra.mxu0 %v10324
  %v10326 = vand.u32 %v2504, 4294901760
  %10327 = vmatpush.msra.mxu0 %v10326
  %v10328 = vand.u32 %v2502, 4294901760
  %10329 = vmatpush.msra.mxu0 %v10328
  %v10330 = vand.u32 %v2500, 4294901760
  %10331 = vmatpush.msra.mxu0 %v10330
  %v10332 = vand.u32 %v9343, 4294901760
  %v10333 = vsub.f32 %v9343, %v10332
  %v10334 = vand.u32 %v10333, 4294901760
  %10335 = vmatmul.f32.gmra.mxu0 %v10334
  %v10336 = vpop.f32.mrf.mxu0
  %v10337 = vadd.f32 %v10310, %v10336
  %10338 = vdwg.mxu0
  %10339 = vmatpush.msra.mxu0 0.0
  %10340 = vmatpush.msra.mxu0 0.0
  %10341 = vmatpush.msra.mxu0 0.0
  %10342 = vmatpush.msra.mxu0 0.0
  %10343 = vmatpush.msra.mxu0 0.0
  %10344 = vmatpush.msra.mxu0 0.0
  %10345 = vmatpush.msra.mxu0 0.0
  %10346 = vmatpush.msra.mxu0 0.0
  %10347 = vmatpush.msra.mxu0 0.0
  %10348 = vmatpush.msra.mxu0 0.0
  %10349 = vmatpush.msra.mxu0 0.0
  %10350 = vmatpush.msra.mxu0 0.0
  %v10351 = vand.u32 %v2506, 4294901760
  %v10352 = vsub.f32 %v2506, %v10351
  %v10353 = vand.u32 %v10352, 4294901760
  %10354 = vmatpush.msra.mxu0 %v10353
  %v10355 = vand.u32 %v2504, 4294901760
  %v10356 = vsub.f32 %v2504, %v10355
  %v10357 = vand.u32 %v10356, 4294901760
  %10358 = vmatpush.msra.mxu0 %v10357
  %v10359 = vand.u32 %v2502, 4294901760
  %v10360 = vsub.f32 %v2502, %v10359
  %v10361 = vand.u32 %v10360, 4294901760
  %10362 = vmatpush.msra.mxu0 %v10361
  %v10363 = vand.u32 %v2500, 4294901760
  %v10364 = vsub.f32 %v2500, %v10363
  %v10365 = vand.u32 %v10364, 4294901760
  %10366 = vmatpush.msra.mxu0 %v10365
  %v10367 = vand.u32 %v9343, 4294901760
  %10368 = vmatmul.f32.gmra.mxu0 %v10367
  %v10369 = vpop.f32.mrf.mxu0
  %v10370 = vadd.f32 %v10337, %v10369
  %10371 = vdwg.mxu0
  %10372 = vmatpush.msra.mxu0 0.0
  %10373 = vmatpush.msra.mxu0 0.0
  %10374 = vmatpush.msra.mxu0 0.0
  %10375 = vmatpush.msra.mxu0 0.0
  %10376 = vmatpush.msra.mxu0 0.0
  %10377 = vmatpush.msra.mxu0 0.0
  %10378 = vmatpush.msra.mxu0 0.0
  %10379 = vmatpush.msra.mxu0 0.0
  %10380 = vmatpush.msra.mxu0 0.0
  %10381 = vmatpush.msra.mxu0 0.0
  %10382 = vmatpush.msra.mxu0 0.0
  %10383 = vmatpush.msra.mxu0 0.0
  %v10384 = vand.u32 %v2506, 4294901760
  %10385 = vmatpush.msra.mxu0 %v10384
  %v10386 = vand.u32 %v2504, 4294901760
  %10387 = vmatpush.msra.mxu0 %v10386
  %v10388 = vand.u32 %v2502, 4294901760
  %10389 = vmatpush.msra.mxu0 %v10388
  %v10390 = vand.u32 %v2500, 4294901760
  %10391 = vmatpush.msra.mxu0 %v10390
  %v10392 = vand.u32 %v9343, 4294901760
  %10393 = vmatmul.f32.gmra.mxu0 %v10392
  %v10394 = vpop.f32.mrf.mxu0
  %v10395 = vadd.f32 %v10370, %v10394
  %10396 = vdwg.mxu0
  %v10397 = vadd.f32 %v9869, 1.0
  %v10398 = vadd.f32 %v10395, 1.0
  %v10399 = vrcp.pop %v10397
  %v10400 = vmul.f32 %v10397, %v10399
  %v10401 = vsub.f32 1.0, %v10400
  %v10402 = vmul.f32 %v10399, %v10401
  %v10403 = vadd.f32 %v10399, %v10402
  %vm10404 = vweird.f32 %v10397
  %vm10405 = vweird.f32 %v10399
  %vm10406 = vmor %vm10404, %vm10405
  %v10407 = vsel %vm10406, %v10399, %v10403
  %v10408 = vand.u32 2147483647, %v10397
  %vm10409 = vcmp.eq.f32.partialorder %v10408, 8.507059e+37
  %v10410 = vand.u32 %v10397, 2147483648
  %v10411 = vor.u32 1.1754944e-38, %v10410
  %v10412 = vsel %vm10409, %v10411, %v10407
  %v10413 = vmul.f32 %v9869, %v10412
  %v10414 = vrcp.pop %v10398
  %v10415 = vmul.f32 %v10398, %v10414
  %v10416 = vsub.f32 1.0, %v10415
  %v10417 = vmul.f32 %v10414, %v10416
  %v10418 = vadd.f32 %v10414, %v10417
  %vm10419 = vweird.f32 %v10398
  %vm10420 = vweird.f32 %v10414
  %vm10421 = vmor %vm10419, %vm10420
  %v10422 = vsel %vm10421, %v10414, %v10418
  %v10423 = vand.u32 2147483647, %v10398
  %vm10424 = vcmp.eq.f32.partialorder %v10423, 8.507059e+37
  %v10425 = vand.u32 %v10398, 2147483648
  %v10426 = vor.u32 1.1754944e-38, %v10425
  %v10427 = vsel %vm10424, %v10426, %v10422
  %v10428 = vmul.f32 %v10395, %v10427
  %v10433 = vsel %vm2564, %v9318, %v9296
  %v10434 = vsel %vm2564, %v9331, %v9309
  %v10437 = vmul.f32 %v10413, %v10433
  %v10438 = vmul.f32 %v10428, %v10434
  %v10439 = vrsqrt.pop %v9869
  %v10440 = vmul.f32 %v10439, %v9869
  %v10441 = vmul.f32 %v10440, %v10439
  %v10442 = vmul.f32 0.5, %v10441
  %v10443 = vsub.f32 1.5, %v10442
  %v10444 = vmul.f32 %v10439, %v10443
  %vm10445 = vweird.f32 %v9869
  %vm10446 = vweird.f32 %v10439
  %vm10447 = vmor %vm10445, %vm10446
  %v10448 = vsel %vm10447, %v10439, %v10444
  %v10449 = vrsqrt.pop %v10395
  %v10450 = vmul.f32 %v10449, %v10395
  %v10451 = vmul.f32 %v10450, %v10449
  %v10452 = vmul.f32 0.5, %v10451
  %v10453 = vsub.f32 1.5, %v10452
  %v10454 = vmul.f32 %v10449, %v10453
  %vm10455 = vweird.f32 %v10395
  %vm10456 = vweird.f32 %v10449
  %vm10457 = vmor %vm10455, %vm10456
  %v10458 = vsel %vm10457, %v10449, %v10454
  %v10459 = vmul.f32 %v10437, %v10448
  %v10460 = vmul.f32 %v10438, %v10458
  %v10463 = vrot.slane %v10460, 6
  %vm10464 = vcmask 1041408
  %v10465 = vsel %vm10464, %v10459, %v10463
  %vm10467 = vcmask 257026
  %vm10468 = vmor %vm10467, %vm10464
  %10469 = vst.msk [vmem:[%s2] sm:$0xf] %vm10468, %v10465
  // Predicated region
  $region10: #{capsule_layer_forward.1} parent=0 // pred_check
    _
  $region11: #{capsule_layer_forward.1} parent=0 // pred_check_branch
    %10471 = sbr.rel (0) target = $region13
  $region12: #{capsule_layer_forward.1} parent=0 // pred_region
    _
  $region13: #{capsule_layer_forward.1} parent=0 // pred_fallthru
    _
  // Predicated region
  $region14: #{capsule_layer_forward.1} parent=0 // pred_check
    _
  $region15: #{capsule_layer_forward.1} parent=0 // pred_check_branch
    %10473 = sbr.rel (0) target = $region17
  $region16: #{capsule_layer_forward.1} parent=0 // pred_region
    _
  $region17: #{capsule_layer_forward.1} parent=0 // pred_fallthru
    _

</llo_original>
